<compile_context>
chip_gen: v5e
topology: v5e:2x2
jax: 0.10.0
libtpu: 0.0.40
codegen_flags: <defaults>
</compile_context>

<pallas_src>
import functools

import jax
import jax.numpy as jnp
from jax import lax
from jax.experimental import pallas as pl
from jax.experimental.pallas import tpu as pltpu


# --------------------------------------------------------------------------
# small math helpers (only ops from the well-supported Mosaic set)
# --------------------------------------------------------------------------
def _layer_norm(x, g, b, eps=1e-5):
    mu = jnp.mean(x, axis=-1, keepdims=True)
    xc = x - mu
    var = jnp.mean(xc * xc, axis=-1, keepdims=True)
    return xc * lax.rsqrt(var + eps) * g + b


def _erf(x):
    # Abramowitz & Stegun 7.1.26 polynomial (|err| < 1.5e-7): avoids relying on a
    # native erf lowering; uses only mul/add/exp/where.
    ax = jnp.abs(x)
    t = 1.0 / (1.0 + 0.3275911 * ax)
    poly = t * (0.254829592 + t * (-0.284496736 + t * (1.421413741
               + t * (-1.453152027 + t * 1.061405429))))
    y = 1.0 - poly * jnp.exp(-ax * ax)
    return jnp.where(x < 0.0, -y, y)


def _gelu_exact(x):
    # PyTorch F.gelu default (erf form).
    # TODO(synk): on v5e (no bf16 VPU) the tanh-approximate GELU would move this
    #             work to the otherwise-idle EUP slot at a small numerics change.
    return 0.5 * x * (1.0 + _erf(x * 0.7071067811865476))


# --------------------------------------------------------------------------
# kernel
# --------------------------------------------------------------------------
def encoder_layer_kernel(
    x_ref, w_in_ref, b_in_ref, w_out_ref, b_out_ref,
    ln1_g_ref, ln1_b_ref,
    fc1_w_ref, fc1_b_ref, fc2_w_ref, fc2_b_ref,
    ln2_g_ref, ln2_b_ref,
    o_ref,
    *, num_heads, head_dim, kv_chunk,
):
    # One grid step == Bb batch elements; x block is (Bb, T, E).
    Bb, T, E = x_ref.shape
    M = Bb * T
    BH = Bb * num_heads
    hd = head_dim
    cdt = w_in_ref.dtype                 # matmul operand dtype (f32 or bf16)
    approx = cdt != jnp.float32          # approx reciprocal only in bf16 path

    x = x_ref[...].reshape(M, E)         # (M, E) f32 residual stream

    # ---- pre-LN (self-attention branch), f32 ----
    xn = _layer_norm(x, ln1_g_ref[0], ln1_b_ref[0])

    # ---- in_proj: (M, E) @ (E, 3E); q-scaling already folded into w_in/b_in ----
    qkv = jnp.dot(xn.astype(cdt), w_in_ref[...],
                  preferred_element_type=jnp.float32) + b_in_ref[0]

    def heads(t):                        # (M, E) f32 -> (Bb*H, T, hd)
        t = t.reshape(Bb, T, num_heads, hd)
        t = jnp.swapaxes(t, 1, 2)        # single sublane relayout per tensor
        return t.reshape(BH, T, hd)

    qh = heads(qkv[:, 0 * E:1 * E]).astype(cdt)
    kh = heads(qkv[:, 1 * E:2 * E]).astype(cdt)
    vh = heads(qkv[:, 2 * E:3 * E]).astype(cdt)

    # ---- KV-chunked online-softmax attention (never materializes full (H,T,T)) ----
    n_chunks = T // kv_chunk
    m_i = jnp.full((BH, T, 1), -jnp.inf, dtype=jnp.float32)
    l_i = jnp.zeros((BH, T, 1), dtype=jnp.float32)
    acc = jnp.zeros((BH, T, hd), dtype=jnp.float32)
    for c in range(n_chunks):            # static trip count (trace-time)
        kc = kh[:, c * kv_chunk:(c + 1) * kv_chunk, :]
        vc = vh[:, c * kv_chunk:(c + 1) * kv_chunk, :]
        s = jnp.einsum("bqd,bkd->bqk", qh, kc,
                       preferred_element_type=jnp.float32)   # (BH, T, ck) f32
        m_new = jnp.maximum(m_i, jnp.max(s, axis=-1, keepdims=True))
        alpha = jnp.exp(m_i - m_new)
        p = jnp.exp(s - m_new)
        l_i = alpha * l_i + jnp.sum(p, axis=-1, keepdims=True)
        acc = alpha * acc + jnp.einsum("bqk,bkd->bqd", p.astype(cdt), vc,
                                       preferred_element_type=jnp.float32)
        m_i = m_new
    ctx = acc * pl.reciprocal(l_i, approx=approx)             # (BH, T, hd)

    # ---- merge heads + out_proj + residual (f32) ----
    attn = jnp.swapaxes(ctx.reshape(Bb, num_heads, T, hd), 1, 2).reshape(M, E)
    attn = jnp.dot(attn.astype(cdt), w_out_ref[...],
                   preferred_element_type=jnp.float32) + b_out_ref[0]
    x1 = x + attn

    # ---- pre-LN (FFN branch) + FFN + residual ----
    x2n = _layer_norm(x1, ln2_g_ref[0], ln2_b_ref[0])
    h1 = jnp.dot(x2n.astype(cdt), fc1_w_ref[...],
                 preferred_element_type=jnp.float32) + fc1_b_ref[0]
    h1 = _gelu_exact(h1)
    h2 = jnp.dot(h1.astype(cdt), fc2_w_ref[...],
                 preferred_element_type=jnp.float32) + fc2_b_ref[0]

    o_ref[...] = (x1 + h2).reshape(Bb, T, E).astype(o_ref.dtype)


# --------------------------------------------------------------------------
# host-side helpers
# --------------------------------------------------------------------------
@functools.lru_cache(maxsize=None)
def _single_buffered_weights_supported():
    """Probe once whether this jax build accepts pl.Buffered(1) blocks.

    The try only wraps this tiny copy kernel, so genuine compile/VMEM errors in
    the real encoder kernel are never masked (review item)."""
    def _copy(x_ref, o_ref):
        o_ref[...] = x_ref[...]
    try:
        fn = pl.pallas_call(
            _copy,
            out_shape=jax.ShapeDtypeStruct((8, 128), jnp.float32),
            grid=(2,),
            in_specs=[pl.BlockSpec((8, 128), lambda i: (0, 0),
                                   pipeline_mode=pl.Buffered(1))],
            out_specs=pl.BlockSpec((8, 128), lambda i: (0, 0)),
        )
        jax.jit(fn).lower(jax.ShapeDtypeStruct((8, 128), jnp.float32)).compile()
        return True
    except Exception:
        return False


def _vmem_budget_bytes():
    # Generation-aware budget (128 MiB physical on v5e/v6e, 64 MiB on v7x) with
    # ~16 MiB headroom left for compiler-internal scratch.
    try:
        cap = int(pltpu.get_tpu_info().vmem_capacity_bytes)
    except Exception:
        cap = 64 << 20                       # conservative (v7x-sized) default
    return max(cap - (16 << 20), 32 << 20)


def _act_bytes(bb, T, E, F, H, kv_chunk, cbytes, io_bytes):
    """Peak live activation bytes per grid step.  Counts s, p, the cast of p,
    qkv, and the q/k/v head-split casts (review item)."""
    f32 = 4
    M = bb * T
    BH = bb * H
    io = 2 * 2 * M * E * io_bytes                        # double-buffered x / o blocks
    attn = (4 * M * E * f32                              # x, xn, ctx/acc, attn_out
            + 3 * M * E * f32                            # qkv (f32)
            + 3 * M * E * cbytes                         # q/k/v head-major casts
            + BH * T * kv_chunk * (2 * f32 + cbytes)     # s, p (f32) + p cast
            + 2 * BH * T * f32)                          # online-softmax m, l
    ffn = (4 * M * E * f32                               # x1, x2n, h2, output slab
           + M * F * (f32 + cbytes))                     # fc1 activation + cast
    return io + max(attn, ffn)


def _pick_kv_chunk(T, max_kv_chunk):
    if max_kv_chunk is None or T <= max_kv_chunk:
        return T
    for c in range(int(max_kv_chunk), 0, -1):            # prefer the largest divisor
        if T % c == 0:
            return c
    return T


def _pick_batch_block(B, T, E, F, H, kv_chunk, cbytes, io_bytes,
                      weight_resident, budget, target_rows=256):
    """Largest Bb s.t. (a) Bb*T <= target_rows (feed the MXU a real M dim),
    (b) grid keeps >= 2 steps when B >= 2 (v7x megacore), (c) VMEM fits."""
    best = 1
    for bb in range(1, B + 1):
        if B % bb:
            continue
        if bb > 1 and bb * T > target_rows:
            continue
        if B >= 2 and B // bb < 2:
            continue
        need = (weight_resident
                + _act_bytes(bb, T, E, F, H, kv_chunk, cbytes, io_bytes)
                + (8 << 20))
        if need > budget:
            continue
        best = bb
    return best


def prepare_params(params, *, num_heads, compute_dtype=None):
    """One-time host-side preparation (hoisted out of the per-call path):
       * fold 1/sqrt(head_dim) q-scaling into w_in[:, :E] / b_in[:, :E]
       * cast matmul weights to compute_dtype (biases / LN params stay f32)."""
    E = params["w_in"].shape[0]
    head_dim = E // num_heads
    scaling = float(head_dim) ** -0.5
    if compute_dtype is None:
        compute_dtype = params["w_in"].dtype
    w_in = params["w_in"].at[:, :E].multiply(scaling)
    b_in = params["b_in"].at[:, :E].multiply(scaling)
    return {
        "w_in": w_in.astype(compute_dtype),
        "b_in": b_in.astype(jnp.float32),
        "w_out": params["w_out"].astype(compute_dtype),
        "b_out": params["b_out"].astype(jnp.float32),
        "ln1_g": params["ln1_g"].astype(jnp.float32),
        "ln1_b": params["ln1_b"].astype(jnp.float32),
        "fc1_w": params["fc1_w"].astype(compute_dtype),
        "fc1_b": params["fc1_b"].astype(jnp.float32),
        "fc2_w": params["fc2_w"].astype(compute_dtype),
        "fc2_b": params["fc2_b"].astype(jnp.float32),
        "ln2_g": params["ln2_g"].astype(jnp.float32),
        "ln2_b": params["ln2_b"].astype(jnp.float32),
    }


def transformer_encoder_layer(x, prepared, *, num_heads,
                              batch_block=None, max_kv_chunk=512):
    B, T, E = x.shape
    assert E % num_heads == 0
    head_dim = E // num_heads
    F_dim = prepared["fc1_w"].shape[1]
    cbytes = prepared["w_in"].dtype.itemsize
    io_bytes = x.dtype.itemsize

    kv_chunk = _pick_kv_chunk(T, max_kv_chunk)
    single_buf = _single_buffered_weights_supported()
    wbuf = 1 if single_buf else 2

    weight_keys = ("w_in", "b_in", "w_out", "b_out", "ln1_g", "ln1_b",
                   "fc1_w", "fc1_b", "fc2_w", "fc2_b", "ln2_g", "ln2_b")
    weight_bytes = sum(int(prepared[k].size) * prepared[k].dtype.itemsize
                       for k in weight_keys)

    budget = _vmem_budget_bytes()
    if batch_block is None:
        Bb = _pick_batch_block(B, T, E, F_dim, num_heads, kv_chunk, cbytes,
                               io_bytes, wbuf * weight_bytes, budget)
    else:
        Bb = int(batch_block)
    assert B % Bb == 0

    act = _act_bytes(Bb, T, E, F_dim, num_heads, kv_chunk, cbytes, io_bytes)
    vmem_limit = int(min(max(wbuf * weight_bytes + act + (8 << 20), 16 << 20),
                         budget))

    kernel = functools.partial(encoder_layer_kernel, num_heads=num_heads,
                               head_dim=head_dim, kv_chunk=kv_chunk)

    def const_spec(shape):
        # Constant index map -> weights DMA'd once; Buffered(1) keeps them
        # resident once (no double buffer) when supported.
        if single_buf:
            return pl.BlockSpec(shape, lambda b: (0, 0),
                                pipeline_mode=pl.Buffered(1))
        return pl.BlockSpec(shape, lambda b: (0, 0))

    call = pl.pallas_call(
        kernel,
        out_shape=jax.ShapeDtypeStruct((B, T, E), x.dtype),
        grid_spec=pltpu.PrefetchScalarGridSpec(
            num_scalar_prefetch=0,
            grid=(B // Bb,),
            in_specs=[
                pl.BlockSpec((Bb, T, E), lambda b: (b, 0, 0)),   # x
                const_spec((E, 3 * E)),                          # w_in
                const_spec((1, 3 * E)),                          # b_in
                const_spec((E, E)),                              # w_out
                const_spec((1, E)),                              # b_out
                const_spec((1, E)),                              # ln1 gamma
                const_spec((1, E)),                              # ln1 beta
                const_spec((E, F_dim)),                          # fc1 w
                const_spec((1, F_dim)),                          # fc1 b
                const_spec((F_dim, E)),                          # fc2 w
                const_spec((1, E)),                              # fc2 b
                const_spec((1, E)),                              # ln2 gamma
                const_spec((1, E)),                              # ln2 beta
            ],
            out_specs=pl.BlockSpec((Bb, T, E), lambda b: (b, 0, 0)),
        ),
        compiler_params=pltpu.CompilerParams(
            dimension_semantics=("parallel",),
            vmem_limit_bytes=vmem_limit,
        ),
    )
    return call(x, prepared["w_in"], prepared["b_in"],
                prepared["w_out"], prepared["b_out"],
                prepared["ln1_g"], prepared["ln1_b"],
                prepared["fc1_w"], prepared["fc1_b"],
                prepared["fc2_w"], prepared["fc2_b"],
                prepared["ln2_g"], prepared["ln2_b"])


# ---------------- pure-JAX reference (for correctness check) ----------------
def reference_forward(x, params, *, num_heads):
    B, T, E = x.shape
    hd = E // num_heads
    scaling = float(hd) ** -0.5

    def ln(v, g, b, eps=1e-5):
        mu = jnp.mean(v, axis=-1, keepdims=True)
        var = jnp.mean((v - mu) ** 2, axis=-1, keepdims=True)
        return (v - mu) / jnp.sqrt(var + eps) * g[0] + b[0]

    residual = x
    h = ln(x, params["ln1_g"], params["ln1_b"])
    qkv = h @ params["w_in"] + params["b_in"][0]
    q, k, v = jnp.split(qkv, 3, axis=-1)
    q = q.reshape(B, T, num_heads, hd).transpose(0, 2, 1, 3) * scaling
    k = k.reshape(B, T, num_heads, hd).transpose(0, 2, 1, 3)
    v = v.reshape(B, T, num_heads, hd).transpose(0, 2, 1, 3)
    s = jnp.einsum("bhqd,bhkd->bhqk", q, k)
    p = jax.nn.softmax(s, axis=-1)
    o = jnp.einsum("bhqk,bhkd->bhqd", p, v)
    o = o.transpose(0, 2, 1, 3).reshape(B, T, E)
    o = o @ params["w_out"] + params["b_out"][0]
    x1 = residual + o

    residual = x1
    h = ln(x1, params["ln2_g"], params["ln2_b"])
    h = h @ params["fc1_w"] + params["fc1_b"][0]
    h = jax.nn.gelu(h, approximate=False)
    h = h @ params["fc2_w"] + params["fc2_b"][0]
    return residual + h


if __name__ == "__main__":
    # Small but TPU-friendly shapes: E multiple of 128 (lane-dense blocks),
    # T multiple of 8 (sublane aligned), B=4 so two batch elements are stacked
    # per grid step while the grid keeps 2 parallel steps.
    B, T, E, H, FFN = 4, 32, 128, 4, 256

    key = jax.random.PRNGKey(0)
    keys = jax.random.split(key, 13)

    def init(k, shape, scale=0.05):
        return jax.random.normal(k, shape, dtype=jnp.float32) * scale

    params = {
        "w_in":  init(keys[0], (E, 3 * E)),
        "b_in":  init(keys[1], (1, 3 * E)),
        "w_out": init(keys[2], (E, E)),
        "b_out": init(keys[3], (1, E)),
        "ln1_g": 1.0 + init(keys[4], (1, E)),
        "ln1_b": init(keys[5], (1, E)),
        "fc1_w": init(keys[6], (E, FFN)),
        "fc1_b": init(keys[7], (1, FFN)),
        "fc2_w": init(keys[8], (FFN, E)),
        "fc2_b": init(keys[9], (1, E)),
        "ln2_g": 1.0 + init(keys[10], (1, E)),
        "ln2_b": init(keys[11], (1, E)),
    }
    x = jax.random.normal(keys[12], (B, T, E), dtype=jnp.float32)

    ref = reference_forward(x, params, num_heads=H)

    # f32 path (single KV chunk): exact math, tight tolerance.
    prep = prepare_params(params, num_heads=H)
    out = jax.block_until_ready(transformer_encoder_layer(x, prep, num_heads=H))
    assert out.shape == (B, T, E)
    err = float(jnp.max(jnp.abs(out - ref)))
    assert err < 1e-3, f"f32 max abs diff {err}"

    # f32 path with forced multi-chunk KV loop (exercises the online softmax).
    out_c = jax.block_until_ready(
        transformer_encoder_layer(x, prep, num_heads=H, max_kv_chunk=8))
    err_c = float(jnp.max(jnp.abs(out_c - ref)))
    assert err_c < 1e-3, f"chunked f32 max abs diff {err_c}"

    # bf16 matmul operands (f32 accumulation / LN / softmax / residuals).
    prep_bf16 = prepare_params(params, num_heads=H, compute_dtype=jnp.bfloat16)
    out_b = jax.block_until_ready(
        transformer_encoder_layer(x, prep_bf16, num_heads=H))
    err_b = float(jnp.max(jnp.abs(out_b - ref)))
    assert err_b < 5e-2, f"bf16 max abs diff {err_b}"

    print("KERNEL_OK")
</pallas_src>

<mosaic_0001>
module attributes {stable_mosaic.version = 11 : i64} {
  func.func @encoder_layer_kernel(%arg0: i32, %arg1: memref<2x32x128xf32, #tpu.memory_space<vmem>>, %arg2: memref<128x384xf32, #tpu.memory_space<vmem>>, %arg3: memref<1x384xf32, #tpu.memory_space<vmem>>, %arg4: memref<128x128xf32, #tpu.memory_space<vmem>>, %arg5: memref<1x128xf32, #tpu.memory_space<vmem>>, %arg6: memref<1x128xf32, #tpu.memory_space<vmem>>, %arg7: memref<1x128xf32, #tpu.memory_space<vmem>>, %arg8: memref<128x256xf32, #tpu.memory_space<vmem>>, %arg9: memref<1x256xf32, #tpu.memory_space<vmem>>, %arg10: memref<256x128xf32, #tpu.memory_space<vmem>>, %arg11: memref<1x128xf32, #tpu.memory_space<vmem>>, %arg12: memref<1x128xf32, #tpu.memory_space<vmem>>, %arg13: memref<1x128xf32, #tpu.memory_space<vmem>>, %arg14: memref<2x32x128xf32, #tpu.memory_space<vmem>>) attributes {dimension_semantics = [#tpu.dimension_semantics<parallel>], iteration_bounds = array<i64: 2>, scalar_prefetch = 0 : i64, scratch_operands = 0 : i64, tpu.core_type = #tpu.core_type<tc>, window_params = [{transform_indices = @transform_0, window_bounds = array<i64: 2, 32, 128>}, {pipeline_mode = #tpu.pipeline_mode<synchronous>, transform_indices = @transform_1, window_bounds = array<i64: 128, 384>}, {pipeline_mode = #tpu.pipeline_mode<synchronous>, transform_indices = @transform_2, window_bounds = array<i64: 1, 384>}, {pipeline_mode = #tpu.pipeline_mode<synchronous>, transform_indices = @transform_3, window_bounds = array<i64: 128, 128>}, {pipeline_mode = #tpu.pipeline_mode<synchronous>, transform_indices = @transform_4, window_bounds = array<i64: 1, 128>}, {pipeline_mode = #tpu.pipeline_mode<synchronous>, transform_indices = @transform_5, window_bounds = array<i64: 1, 128>}, {pipeline_mode = #tpu.pipeline_mode<synchronous>, transform_indices = @transform_6, window_bounds = array<i64: 1, 128>}, {pipeline_mode = #tpu.pipeline_mode<synchronous>, transform_indices = @transform_7, window_bounds = array<i64: 128, 256>}, {pipeline_mode = #tpu.pipeline_mode<synchronous>, transform_indices = @transform_8, window_bounds = array<i64: 1, 256>}, {pipeline_mode = #tpu.pipeline_mode<synchronous>, transform_indices = @transform_9, window_bounds = array<i64: 256, 128>}, {pipeline_mode = #tpu.pipeline_mode<synchronous>, transform_indices = @transform_10, window_bounds = array<i64: 1, 128>}, {pipeline_mode = #tpu.pipeline_mode<synchronous>, transform_indices = @transform_11, window_bounds = array<i64: 1, 128>}, {pipeline_mode = #tpu.pipeline_mode<synchronous>, transform_indices = @transform_12, window_bounds = array<i64: 1, 128>}, {transform_indices = @transform_13, window_bounds = array<i64: 2, 32, 128>}]} {
    %c0 = arith.constant 0 : index
    %c0_0 = arith.constant 0 : index
    %c0_1 = arith.constant 0 : index
    %0 = vector.load %arg1[%c0, %c0_0, %c0_1] : memref<2x32x128xf32, #tpu.memory_space<vmem>>, vector<2x32x128xf32>
    %1 = vector.shape_cast %0 : vector<2x32x128xf32> to vector<64x128xf32>
    %c0_2 = arith.constant 0 : index
    %c0_3 = arith.constant 0 : index
    %2 = vector.load %arg6[%c0_2, %c0_3] : memref<1x128xf32, #tpu.memory_space<vmem>>, vector<1x128xf32>
    %3 = vector.shape_cast %2 : vector<1x128xf32> to vector<128xf32>
    %c0_4 = arith.constant 0 : index
    %c0_5 = arith.constant 0 : index
    %4 = vector.load %arg7[%c0_4, %c0_5] : memref<1x128xf32, #tpu.memory_space<vmem>>, vector<1x128xf32>
    %5 = vector.shape_cast %4 : vector<1x128xf32> to vector<128xf32>
    %cst = arith.constant dense<0.000000e+00> : vector<64xf32>
    %6 = vector.multi_reduction <add>, %1, %cst [1] : vector<64x128xf32> to vector<64xf32>
    %7 = vector.shape_cast %6 : vector<64xf32> to vector<64x1xf32>
    %cst_6 = arith.constant 1.280000e+02 : f32
    %8 = vector.broadcast %cst_6 : f32 to vector<64x1xf32>
    %9 = arith.divf %7, %8 : vector<64x1xf32>
    %10 = vector.broadcast %9 : vector<64x1xf32> to vector<64x128xf32>
    %11 = arith.subf %1, %10 : vector<64x128xf32>
    %12 = arith.mulf %11, %11 : vector<64x128xf32>
    %cst_7 = arith.constant dense<0.000000e+00> : vector<64xf32>
    %13 = vector.multi_reduction <add>, %12, %cst_7 [1] : vector<64x128xf32> to vector<64xf32>
    %14 = vector.shape_cast %13 : vector<64xf32> to vector<64x1xf32>
    %cst_8 = arith.constant 1.280000e+02 : f32
    %15 = vector.broadcast %cst_8 : f32 to vector<64x1xf32>
    %16 = arith.divf %14, %15 : vector<64x1xf32>
    %cst_9 = arith.constant 9.99999974E-6 : f32
    %17 = vector.broadcast %cst_9 : f32 to vector<64x1xf32>
    %18 = arith.addf %16, %17 : vector<64x1xf32>
    %19 = math.rsqrt %18 : vector<64x1xf32>
    %20 = vector.broadcast %19 : vector<64x1xf32> to vector<64x128xf32>
    %21 = arith.mulf %11, %20 : vector<64x128xf32>
    %22 = vector.shape_cast %3 : vector<128xf32> to vector<1x128xf32>
    %23 = vector.broadcast %22 : vector<1x128xf32> to vector<64x128xf32>
    %24 = arith.mulf %21, %23 : vector<64x128xf32>
    %25 = vector.shape_cast %5 : vector<128xf32> to vector<1x128xf32>
    %26 = vector.broadcast %25 : vector<1x128xf32> to vector<64x128xf32>
    %27 = arith.addf %24, %26 : vector<64x128xf32>
    %c0_10 = arith.constant 0 : index
    %c0_11 = arith.constant 0 : index
    %28 = vector.load %arg2[%c0_10, %c0_11] : memref<128x384xf32, #tpu.memory_space<vmem>>, vector<128x384xf32>
    %cst_12 = arith.constant dense<0.000000e+00> : vector<64x384xf32>
    %29 = tpu.matmul %27, %28, %cst_12 {dimension_numbers = #tpu.dot_dimension_numbers<[1], [0], [0], [1], [0, 0, 1, 1], [], []>} : vector<64x128xf32>, vector<128x384xf32>, vector<64x384xf32> -> vector<64x384xf32>
    %c0_13 = arith.constant 0 : index
    %c0_14 = arith.constant 0 : index
    %30 = vector.load %arg3[%c0_13, %c0_14] : memref<1x384xf32, #tpu.memory_space<vmem>>, vector<1x384xf32>
    %31 = vector.shape_cast %30 : vector<1x384xf32> to vector<384xf32>
    %32 = vector.shape_cast %31 : vector<384xf32> to vector<1x384xf32>
    %33 = vector.broadcast %32 : vector<1x384xf32> to vector<64x384xf32>
    %34 = arith.addf %29, %33 : vector<64x384xf32>
    %35 = vector.extract_strided_slice %34 {offsets = [0, 0], sizes = [64, 128], strides = [1, 1]} : vector<64x384xf32> to vector<64x128xf32>
    %36 = vector.shape_cast %35 : vector<64x128xf32> to vector<2x32x4x32xf32>
    %37 = tpu.transpose %36, [0, 2, 1, 3] : vector<2x32x4x32xf32> -> vector<2x4x32x32xf32>
    %38 = vector.shape_cast %37 : vector<2x4x32x32xf32> to vector<8x32x32xf32>
    %39 = vector.extract_strided_slice %34 {offsets = [0, 128], sizes = [64, 128], strides = [1, 1]} : vector<64x384xf32> to vector<64x128xf32>
    %40 = vector.shape_cast %39 : vector<64x128xf32> to vector<2x32x4x32xf32>
    %41 = tpu.transpose %40, [0, 2, 1, 3] : vector<2x32x4x32xf32> -> vector<2x4x32x32xf32>
    %42 = vector.shape_cast %41 : vector<2x4x32x32xf32> to vector<8x32x32xf32>
    %43 = vector.extract_strided_slice %34 {offsets = [0, 256], sizes = [64, 128], strides = [1, 1]} : vector<64x384xf32> to vector<64x128xf32>
    %44 = vector.shape_cast %43 : vector<64x128xf32> to vector<2x32x4x32xf32>
    %45 = tpu.transpose %44, [0, 2, 1, 3] : vector<2x32x4x32xf32> -> vector<2x4x32x32xf32>
    %46 = vector.shape_cast %45 : vector<2x4x32x32xf32> to vector<8x32x32xf32>
    %cst_15 = arith.constant 0xFF800000 : f32
    %47 = vector.broadcast %cst_15 : f32 to vector<8x32x1xf32>
    %cst_16 = arith.constant 0.000000e+00 : f32
    %48 = vector.broadcast %cst_16 : f32 to vector<8x32x1xf32>
    %cst_17 = arith.constant 0.000000e+00 : f32
    %49 = vector.broadcast %cst_17 : f32 to vector<8x32x32xf32>
    "tpu.trace_start"() <{level = 10 : i32, message = "bqd,bkd->bqk"}> : () -> ()
    %cst_18 = arith.constant dense<0.000000e+00> : vector<8x32x32xf32>
    %50 = tpu.matmul %38, %42, %cst_18 {dimension_numbers = #tpu.dot_dimension_numbers<[2], [2], [1], [1], [0, 0, 0, 1, 1, 1], [0], [0]>} : vector<8x32x32xf32>, vector<8x32x32xf32>, vector<8x32x32xf32> -> vector<8x32x32xf32>
    "tpu.trace_stop"() : () -> ()
    %cst_19 = arith.constant dense<0xFF800000> : vector<8x32xf32>
    %51 = vector.multi_reduction <maximumf>, %50, %cst_19 [2] : vector<8x32x32xf32> to vector<8x32xf32>
    %52 = vector.shape_cast %51 : vector<8x32xf32> to vector<8x32x1xf32>
    %53 = arith.maximumf %47, %52 : vector<8x32x1xf32>
    %54 = arith.subf %47, %53 : vector<8x32x1xf32>
    %55 = math.exp %54 : vector<8x32x1xf32>
    %56 = vector.broadcast %53 : vector<8x32x1xf32> to vector<8x32x32xf32>
    %57 = arith.subf %50, %56 : vector<8x32x32xf32>
    %58 = math.exp %57 : vector<8x32x32xf32>
    %59 = arith.mulf %55, %48 : vector<8x32x1xf32>
    %cst_20 = arith.constant dense<0.000000e+00> : vector<8x32xf32>
    %60 = vector.multi_reduction <add>, %58, %cst_20 [2] : vector<8x32x32xf32> to vector<8x32xf32>
    %61 = vector.shape_cast %60 : vector<8x32xf32> to vector<8x32x1xf32>
    %62 = arith.addf %59, %61 : vector<8x32x1xf32>
    %63 = vector.broadcast %55 : vector<8x32x1xf32> to vector<8x32x32xf32>
    %64 = arith.mulf %63, %49 : vector<8x32x32xf32>
    "tpu.trace_start"() <{level = 10 : i32, message = "bqk,bkd->bqd"}> : () -> ()
    %cst_21 = arith.constant dense<0.000000e+00> : vector<8x32x32xf32>
    %65 = tpu.matmul %58, %46, %cst_21 {dimension_numbers = #tpu.dot_dimension_numbers<[2], [1], [1], [2], [0, 0, 0, 1, 1, 2], [0], [0]>} : vector<8x32x32xf32>, vector<8x32x32xf32>, vector<8x32x32xf32> -> vector<8x32x32xf32>
    "tpu.trace_stop"() : () -> ()
    %66 = arith.addf %64, %65 : vector<8x32x32xf32>
    %67 = tpu.reciprocal %62 : vector<8x32x1xf32> -> vector<8x32x1xf32>
    %68 = vector.broadcast %67 : vector<8x32x1xf32> to vector<8x32x32xf32>
    %69 = arith.mulf %66, %68 : vector<8x32x32xf32>
    %70 = vector.shape_cast %69 : vector<8x32x32xf32> to vector<2x4x32x32xf32>
    %71 = tpu.transpose %70, [0, 2, 1, 3] : vector<2x4x32x32xf32> -> vector<2x32x4x32xf32>
    %72 = vector.shape_cast %71 : vector<2x32x4x32xf32> to vector<64x128xf32>
    %c0_22 = arith.constant 0 : index
    %c0_23 = arith.constant 0 : index
    %73 = vector.load %arg4[%c0_22, %c0_23] : memref<128x128xf32, #tpu.memory_space<vmem>>, vector<128x128xf32>
    %cst_24 = arith.constant dense<0.000000e+00> : vector<64x128xf32>
    %74 = tpu.matmul %72, %73, %cst_24 {dimension_numbers = #tpu.dot_dimension_numbers<[1], [0], [0], [1], [0, 0, 1, 1], [], []>} : vector<64x128xf32>, vector<128x128xf32>, vector<64x128xf32> -> vector<64x128xf32>
    %c0_25 = arith.constant 0 : index
    %c0_26 = arith.constant 0 : index
    %75 = vector.load %arg5[%c0_25, %c0_26] : memref<1x128xf32, #tpu.memory_space<vmem>>, vector<1x128xf32>
    %76 = vector.shape_cast %75 : vector<1x128xf32> to vector<128xf32>
    %77 = vector.shape_cast %76 : vector<128xf32> to vector<1x128xf32>
    %78 = vector.broadcast %77 : vector<1x128xf32> to vector<64x128xf32>
    %79 = arith.addf %74, %78 : vector<64x128xf32>
    %80 = arith.addf %1, %79 : vector<64x128xf32>
    %c0_27 = arith.constant 0 : index
    %c0_28 = arith.constant 0 : index
    %81 = vector.load %arg12[%c0_27, %c0_28] : memref<1x128xf32, #tpu.memory_space<vmem>>, vector<1x128xf32>
    %82 = vector.shape_cast %81 : vector<1x128xf32> to vector<128xf32>
    %c0_29 = arith.constant 0 : index
    %c0_30 = arith.constant 0 : index
    %83 = vector.load %arg13[%c0_29, %c0_30] : memref<1x128xf32, #tpu.memory_space<vmem>>, vector<1x128xf32>
    %84 = vector.shape_cast %83 : vector<1x128xf32> to vector<128xf32>
    %cst_31 = arith.constant dense<0.000000e+00> : vector<64xf32>
    %85 = vector.multi_reduction <add>, %80, %cst_31 [1] : vector<64x128xf32> to vector<64xf32>
    %86 = vector.shape_cast %85 : vector<64xf32> to vector<64x1xf32>
    %cst_32 = arith.constant 1.280000e+02 : f32
    %87 = vector.broadcast %cst_32 : f32 to vector<64x1xf32>
    %88 = arith.divf %86, %87 : vector<64x1xf32>
    %89 = vector.broadcast %88 : vector<64x1xf32> to vector<64x128xf32>
    %90 = arith.subf %80, %89 : vector<64x128xf32>
    %91 = arith.mulf %90, %90 : vector<64x128xf32>
    %cst_33 = arith.constant dense<0.000000e+00> : vector<64xf32>
    %92 = vector.multi_reduction <add>, %91, %cst_33 [1] : vector<64x128xf32> to vector<64xf32>
    %93 = vector.shape_cast %92 : vector<64xf32> to vector<64x1xf32>
    %cst_34 = arith.constant 1.280000e+02 : f32
    %94 = vector.broadcast %cst_34 : f32 to vector<64x1xf32>
    %95 = arith.divf %93, %94 : vector<64x1xf32>
    %cst_35 = arith.constant 9.99999974E-6 : f32
    %96 = vector.broadcast %cst_35 : f32 to vector<64x1xf32>
    %97 = arith.addf %95, %96 : vector<64x1xf32>
    %98 = math.rsqrt %97 : vector<64x1xf32>
    %99 = vector.broadcast %98 : vector<64x1xf32> to vector<64x128xf32>
    %100 = arith.mulf %90, %99 : vector<64x128xf32>
    %101 = vector.shape_cast %82 : vector<128xf32> to vector<1x128xf32>
    %102 = vector.broadcast %101 : vector<1x128xf32> to vector<64x128xf32>
    %103 = arith.mulf %100, %102 : vector<64x128xf32>
    %104 = vector.shape_cast %84 : vector<128xf32> to vector<1x128xf32>
    %105 = vector.broadcast %104 : vector<1x128xf32> to vector<64x128xf32>
    %106 = arith.addf %103, %105 : vector<64x128xf32>
    %c0_36 = arith.constant 0 : index
    %c0_37 = arith.constant 0 : index
    %107 = vector.load %arg8[%c0_36, %c0_37] : memref<128x256xf32, #tpu.memory_space<vmem>>, vector<128x256xf32>
    %cst_38 = arith.constant dense<0.000000e+00> : vector<64x256xf32>
    %108 = tpu.matmul %106, %107, %cst_38 {dimension_numbers = #tpu.dot_dimension_numbers<[1], [0], [0], [1], [0, 0, 1, 1], [], []>} : vector<64x128xf32>, vector<128x256xf32>, vector<64x256xf32> -> vector<64x256xf32>
    %c0_39 = arith.constant 0 : index
    %c0_40 = arith.constant 0 : index
    %109 = vector.load %arg9[%c0_39, %c0_40] : memref<1x256xf32, #tpu.memory_space<vmem>>, vector<1x256xf32>
    %110 = vector.shape_cast %109 : vector<1x256xf32> to vector<256xf32>
    %111 = vector.shape_cast %110 : vector<256xf32> to vector<1x256xf32>
    %112 = vector.broadcast %111 : vector<1x256xf32> to vector<64x256xf32>
    %113 = arith.addf %108, %112 : vector<64x256xf32>
    %cst_41 = arith.constant 5.000000e-01 : f32
    %114 = vector.broadcast %cst_41 : f32 to vector<64x256xf32>
    %115 = arith.mulf %114, %113 : vector<64x256xf32>
    %cst_42 = arith.constant 0.707106769 : f32
    %116 = vector.broadcast %cst_42 : f32 to vector<64x256xf32>
    %117 = arith.mulf %113, %116 : vector<64x256xf32>
    %118 = math.absf %117 : vector<64x256xf32>
    %cst_43 = arith.constant 0.327591091 : f32
    %119 = vector.broadcast %cst_43 : f32 to vector<64x256xf32>
    %120 = arith.mulf %119, %118 : vector<64x256xf32>
    %cst_44 = arith.constant 1.000000e+00 : f32
    %121 = vector.broadcast %cst_44 : f32 to vector<64x256xf32>
    %122 = arith.addf %121, %120 : vector<64x256xf32>
    %cst_45 = arith.constant 1.000000e+00 : f32
    %123 = vector.broadcast %cst_45 : f32 to vector<64x256xf32>
    %124 = arith.divf %123, %122 : vector<64x256xf32>
    %cst_46 = arith.constant 1.06140542 : f32
    %125 = vector.broadcast %cst_46 : f32 to vector<64x256xf32>
    %126 = arith.mulf %124, %125 : vector<64x256xf32>
    %cst_47 = arith.constant -1.45315206 : f32
    %127 = vector.broadcast %cst_47 : f32 to vector<64x256xf32>
    %128 = arith.addf %127, %126 : vector<64x256xf32>
    %129 = arith.mulf %124, %128 : vector<64x256xf32>
    %cst_48 = arith.constant 1.42141378 : f32
    %130 = vector.broadcast %cst_48 : f32 to vector<64x256xf32>
    %131 = arith.addf %130, %129 : vector<64x256xf32>
    %132 = arith.mulf %124, %131 : vector<64x256xf32>
    %cst_49 = arith.constant -0.284496725 : f32
    %133 = vector.broadcast %cst_49 : f32 to vector<64x256xf32>
    %134 = arith.addf %133, %132 : vector<64x256xf32>
    %135 = arith.mulf %124, %134 : vector<64x256xf32>
    %cst_50 = arith.constant 0.254829586 : f32
    %136 = vector.broadcast %cst_50 : f32 to vector<64x256xf32>
    %137 = arith.addf %136, %135 : vector<64x256xf32>
    %138 = arith.mulf %124, %137 : vector<64x256xf32>
    %cst_51 = arith.constant 0.000000e+00 : f32
    %139 = vector.broadcast %cst_51 : f32 to vector<64x256xf32>
    %140 = arith.subf %139, %118 : vector<64x256xf32>
    %141 = arith.mulf %140, %118 : vector<64x256xf32>
    %142 = math.exp %141 : vector<64x256xf32>
    %143 = arith.mulf %138, %142 : vector<64x256xf32>
    %cst_52 = arith.constant 1.000000e+00 : f32
    %144 = vector.broadcast %cst_52 : f32 to vector<64x256xf32>
    %145 = arith.subf %144, %143 : vector<64x256xf32>
    %cst_53 = arith.constant 0.000000e+00 : f32
    %146 = vector.broadcast %cst_53 : f32 to vector<64x256xf32>
    %147 = arith.cmpf olt, %117, %146 : vector<64x256xf32>
    %cst_54 = arith.constant 0.000000e+00 : f32
    %148 = vector.broadcast %cst_54 : f32 to vector<64x256xf32>
    %149 = arith.subf %148, %145 : vector<64x256xf32>
    %150 = arith.select %147, %149, %145 : vector<64x256xi1>, vector<64x256xf32>
    %cst_55 = arith.constant 1.000000e+00 : f32
    %151 = vector.broadcast %cst_55 : f32 to vector<64x256xf32>
    %152 = arith.addf %151, %150 : vector<64x256xf32>
    %153 = arith.mulf %115, %152 : vector<64x256xf32>
    %c0_56 = arith.constant 0 : index
    %c0_57 = arith.constant 0 : index
    %154 = vector.load %arg10[%c0_56, %c0_57] : memref<256x128xf32, #tpu.memory_space<vmem>>, vector<256x128xf32>
    %cst_58 = arith.constant dense<0.000000e+00> : vector<64x128xf32>
    %155 = tpu.matmul %153, %154, %cst_58 {dimension_numbers = #tpu.dot_dimension_numbers<[1], [0], [0], [1], [0, 0, 1, 1], [], []>} : vector<64x256xf32>, vector<256x128xf32>, vector<64x128xf32> -> vector<64x128xf32>
    %c0_59 = arith.constant 0 : index
    %c0_60 = arith.constant 0 : index
    %156 = vector.load %arg11[%c0_59, %c0_60] : memref<1x128xf32, #tpu.memory_space<vmem>>, vector<1x128xf32>
    %157 = vector.shape_cast %156 : vector<1x128xf32> to vector<128xf32>
    %158 = vector.shape_cast %157 : vector<128xf32> to vector<1x128xf32>
    %159 = vector.broadcast %158 : vector<1x128xf32> to vector<64x128xf32>
    %160 = arith.addf %155, %159 : vector<64x128xf32>
    %161 = arith.addf %80, %160 : vector<64x128xf32>
    %162 = vector.shape_cast %161 : vector<64x128xf32> to vector<2x32x128xf32>
    %c0_61 = arith.constant 0 : index
    %c0_62 = arith.constant 0 : index
    %c0_63 = arith.constant 0 : index
    %163 = vector.load %arg14[%c0_61, %c0_62, %c0_63] : memref<2x32x128xf32, #tpu.memory_space<vmem>>, vector<2x32x128xf32>
    tpu.vector_store %arg14[%c0_61, %c0_62, %c0_63], %162 {strides = array<i32>} : memref<2x32x128xf32, #tpu.memory_space<vmem>>, vector<2x32x128xf32>,
    return
  }
  func.func @transform_0(%arg0: i32) -> (i32, i32, i32) {
    %c0_i32 = arith.constant 0 : i32
    %c0_i32_0 = arith.constant 0 : i32
    %c0_i32_1 = arith.constant 0 : i32
    return %arg0, %c0_i32, %c0_i32_0 : i32, i32, i32
  }
  func.func @transform_1(%arg0: i32) -> (i32, i32) {
    %c0_i32 = arith.constant 0 : i32
    %c0_i32_0 = arith.constant 0 : i32
    %c0_i32_1 = arith.constant 0 : i32
    return %c0_i32, %c0_i32_0 : i32, i32
  }
  func.func @transform_2(%arg0: i32) -> (i32, i32) {
    %c0_i32 = arith.constant 0 : i32
    %c0_i32_0 = arith.constant 0 : i32
    %c0_i32_1 = arith.constant 0 : i32
    return %c0_i32, %c0_i32_0 : i32, i32
  }
  func.func @transform_3(%arg0: i32) -> (i32, i32) {
    %c0_i32 = arith.constant 0 : i32
    %c0_i32_0 = arith.constant 0 : i32
    %c0_i32_1 = arith.constant 0 : i32
    return %c0_i32, %c0_i32_0 : i32, i32
  }
  func.func @transform_4(%arg0: i32) -> (i32, i32) {
    %c0_i32 = arith.constant 0 : i32
    %c0_i32_0 = arith.constant 0 : i32
    %c0_i32_1 = arith.constant 0 : i32
    return %c0_i32, %c0_i32_0 : i32, i32
  }
  func.func @transform_5(%arg0: i32) -> (i32, i32) {
    %c0_i32 = arith.constant 0 : i32
    %c0_i32_0 = arith.constant 0 : i32
    %c0_i32_1 = arith.constant 0 : i32
    return %c0_i32, %c0_i32_0 : i32, i32
  }
  func.func @transform_6(%arg0: i32) -> (i32, i32) {
    %c0_i32 = arith.constant 0 : i32
    %c0_i32_0 = arith.constant 0 : i32
    %c0_i32_1 = arith.constant 0 : i32
    return %c0_i32, %c0_i32_0 : i32, i32
  }
  func.func @transform_7(%arg0: i32) -> (i32, i32) {
    %c0_i32 = arith.constant 0 : i32
    %c0_i32_0 = arith.constant 0 : i32
    %c0_i32_1 = arith.constant 0 : i32
    return %c0_i32, %c0_i32_0 : i32, i32
  }
  func.func @transform_8(%arg0: i32) -> (i32, i32) {
    %c0_i32 = arith.constant 0 : i32
    %c0_i32_0 = arith.constant 0 : i32
    %c0_i32_1 = arith.constant 0 : i32
    return %c0_i32, %c0_i32_0 : i32, i32
  }
  func.func @transform_9(%arg0: i32) -> (i32, i32) {
    %c0_i32 = arith.constant 0 : i32
    %c0_i32_0 = arith.constant 0 : i32
    %c0_i32_1 = arith.constant 0 : i32
    return %c0_i32, %c0_i32_0 : i32, i32
  }
  func.func @transform_10(%arg0: i32) -> (i32, i32) {
    %c0_i32 = arith.constant 0 : i32
    %c0_i32_0 = arith.constant 0 : i32
    %c0_i32_1 = arith.constant 0 : i32
    return %c0_i32, %c0_i32_0 : i32, i32
  }
  func.func @transform_11(%arg0: i32) -> (i32, i32) {
    %c0_i32 = arith.constant 0 : i32
    %c0_i32_0 = arith.constant 0 : i32
    %c0_i32_1 = arith.constant 0 : i32
    return %c0_i32, %c0_i32_0 : i32, i32
  }
  func.func @transform_12(%arg0: i32) -> (i32, i32) {
    %c0_i32 = arith.constant 0 : i32
    %c0_i32_0 = arith.constant 0 : i32
    %c0_i32_1 = arith.constant 0 : i32
    return %c0_i32, %c0_i32_0 : i32, i32
  }
  func.func @transform_13(%arg0: i32) -> (i32, i32, i32) {
    %c0_i32 = arith.constant 0 : i32
    %c0_i32_0 = arith.constant 0 : i32
    %c0_i32_1 = arith.constant 0 : i32
    return %arg0, %c0_i32, %c0_i32_0 : i32, i32, i32
  }
}

</mosaic_0001>

<llo_original>
// kernel: tpu_custom_call.1
$region0: #{tpu_custom_call.1}
  #allocation0 [shape = 'u32[]', space=smem, size = 0x4, offset = 0x4, fixed_abs, tag = 'smem constant byte address 0x4 - core index']
  #allocation1 [shape = 'u32[72,128]{1,0:T(1,128)}', space=vmem, size = 0x9000, scoped, tag = 'internal scratch']
  %s0 = inlined_call_operand.hbm [shape: f32[4,32,128], index: 0, kind: input, shape index: {}]
  %s1 = inlined_call_operand.hbm [shape: f32[128,384], index: 1, kind: input, shape index: {}]
  %s2 = inlined_call_operand.hbm [shape: f32[1,384], index: 2, kind: input, shape index: {}]
  %s3 = inlined_call_operand.hbm [shape: f32[128,128], index: 3, kind: input, shape index: {}]
  %s4 = inlined_call_operand.vmem [shape: f32[1,128], index: 4, kind: input, shape index: {}]
  %s5 = inlined_call_operand.vmem [shape: f32[1,128], index: 5, kind: input, shape index: {}]
  %s6 = inlined_call_operand.vmem [shape: f32[1,128], index: 6, kind: input, shape index: {}]
  %s7 = inlined_call_operand.hbm [shape: f32[128,256], index: 7, kind: input, shape index: {}]
  %s8 = inlined_call_operand.vmem [shape: f32[1,256], index: 8, kind: input, shape index: {}]
  %s9 = inlined_call_operand.hbm [shape: f32[256,128], index: 9, kind: input, shape index: {}]
  %s10 = inlined_call_operand.vmem [shape: f32[1,128], index: 10, kind: input, shape index: {}]
  %s11 = inlined_call_operand.vmem [shape: f32[1,128], index: 11, kind: input, shape index: {}]
  %s12 = inlined_call_operand.vmem [shape: f32[1,128], index: 12, kind: input, shape index: {}]
  %s13 = inlined_call_operand.hbm [shape: f32[4,32,128], index: 13, kind: output, shape index: {}]
  %s14 = sld [smem:[#allocation0]]
  $region109: #{tpu_custom_call.1} parent=0
    _
  %s16 = ssub.s32 1, %s14
  %s17 = scalar_select 0, %s16, %s14
  $region1: #{tpu_custom_call.1} parent=0
    #allocation2 [shape = 'u8[65536]{0}', space=vmem, size = 0x10000, scoped, tag = 'input window, operand 0']
    #allocation3 [shape = 's32[2]{0}', space=sflag, size = 0x8, scoped, tag = 'scoped memory for tpu_custom_call.1']
    #allocation4 [shape = 's32[2]{0}', space=sflag, size = 0x8, scoped, tag = 'scoped memory for tpu_custom_call.1']
    #allocation5 [shape = 'u8[196608]{0}', space=vmem, size = 0x30000, scoped, tag = 'input window, operand 1, single buffered']
    #allocation6 [shape = 's32[1]{0}', space=sflag, size = 0x4, scoped, tag = 'scoped memory for tpu_custom_call.1']
    #allocation7 [shape = 'u8[1536]{0}', space=vmem, size = 0x800, scoped, tag = 'input window, operand 2, single buffered']
    #allocation8 [shape = 'u8[65536]{0}', space=vmem, size = 0x10000, scoped, tag = 'input window, operand 3, single buffered']
    #allocation9 [shape = 's32[1]{0}', space=sflag, size = 0x4, scoped, tag = 'scoped memory for tpu_custom_call.1']
    #allocation10 [shape = 'u8[131072]{0}', space=vmem, size = 0x20000, scoped, tag = 'input window, operand 7, single buffered']
    #allocation11 [shape = 'u8[131072]{0}', space=vmem, size = 0x20000, scoped, tag = 'input window, operand 9, single buffered']
    #allocation12 [shape = 's32[1]{0}', space=sflag, size = 0x4, scoped, tag = 'scoped memory for tpu_custom_call.1']
    #allocation13 [shape = 'u8[65536]{0}', space=vmem, size = 0x10000, scoped, tag = 'output window, operand 0']
    %18 = vsyncpa [#allocation3], 0
    %s19 = scalar_lea.sflag [#allocation3], 1
    %20 = vsyncpa %s19, 0
    %21 = vsyncpa [#allocation6], 0
    %22 = vsyncpa [#allocation9], 0
    %23 = vsyncpa [#allocation12], 0
    %24 = vsyncpa [#allocation4], 0
    %s25 = scalar_lea.sflag [#allocation4], 1
    %26 = vsyncpa %s25, 0
    loop: start=0, step=1, limit=4
    $region2: #{tpu_custom_call.1} parent=1 // loop_pre_header
      _
    $region3: #{tpu_custom_call.1} parent=1 // loop_header
      %s28 = sphi 0, %s32
      %p29 = scmp.ge.s32.totalorder %s28, 4
      %s38 = sphi 0, %s40
      %s41 = sphi 0, %s38
      %s42 = sphi 0, %s41
      %s58 = sphi 0, %s42
      %s62 = sphi 0, %s62
      %s64 = sphi 0, %s62
      %s65 = sphi 0, %s64
      %s79 = sphi 0, %s65
      %s83 = sphi 0, %s83
      %s85 = sphi 0, %s83
      %s86 = sphi 0, %s85
      %s100 = sphi 0, %s86
      %s104 = sphi 0, %s104
      %s106 = sphi 0, %s104
      %s107 = sphi 0, %s106
      %s121 = sphi 0, %s107
      %s125 = sphi 0, %s125
      %s127 = sphi 0, %s125
      %s128 = sphi 0, %s127
      %s142 = sphi 0, %s128
      %s146 = sphi 0, %s146
      %s148 = sphi 0, %s146
      %s149 = sphi 0, %s148
      %s163 = sphi 0, %s149
      %s167 = sphi 0, %s167
      %s169 = sphi 0, %s167
      %s170 = sphi 0, %s169
      %s184 = sphi 0, %s170
      %s188 = sphi 0, %s188
      %s190 = sphi 0, %s188
      %s191 = sphi 0, %s190
      %s205 = sphi 0, %s191
      %s209 = sphi 0, %s209
      %s211 = sphi 0, %s209
      %s212 = sphi 0, %s211
      %s226 = sphi 0, %s212
      %s230 = sphi 0, %s230
      %s232 = sphi 0, %s230
      %s233 = sphi 0, %s232
      %s247 = sphi 0, %s233
      %s251 = sphi 0, %s251
      %s253 = sphi 0, %s251
      %s254 = sphi 0, %s253
      %s268 = sphi 0, %s254
      %s272 = sphi 0, %s272
      %s274 = sphi 0, %s272
      %s275 = sphi 0, %s274
      %s289 = sphi 0, %s275
      %s293 = sphi 0, %s293
      %s295 = sphi 0, %s293
      %s296 = sphi 0, %s295
      %s310 = sphi 0, %s296
      %s316 = sphi 0, %s318
      %s319 = sphi 0, %s316
      %s320 = sphi 0, %s319
      %s336 = sphi 0, %s320
    $region4: #{tpu_custom_call.1} parent=1 // loop_header_branch
      %31 = sbr.rel (%p29) target = $region8
    $region5: #{tpu_custom_call.1} parent=1 // loop_body
      %s33 = ssub.s32 %s28, 1
      %s34 = ssub.s32 %s28, 2
      %s35 = sadd.s32 %s28, 1
      %s36 = ssub.s32 %s28, %s35
      %p37 = scmp.eq.s32.totalorder %s36, 0
      %s39 = sadd.s32 %s38, 1
      %s40 = scalar_select %p37, %s38, %s39
      %p43 = pneg %p37
      %p44 = scmp.eq.s32.totalorder %s28, 1
      %p45 = por %p43, %p44
      %p46 = scmp.ne.s32.totalorder %s38, %s41
      %p47 = scmp.eq.s32.totalorder %s28, 0
      %p48 = por %p46, %p47
      %p49 = scmp.ne.s32.totalorder %s38, %s41
      %p50 = scmp.eq.s32.totalorder %s33, 1
      %p51 = por %p49, %p50
      %p52 = scmp.ne.s32.totalorder %s41, %s42
      %p53 = scmp.eq.s32.totalorder %s33, 0
      %p54 = por %p52, %p53
      %p55 = scmp.ne.s32.totalorder %s41, %s42
      %p56 = scmp.eq.s32.totalorder %s34, 1
      %p57 = por %p55, %p56
      %p59 = scmp.ne.s32.totalorder %s42, %s58
      %p60 = scmp.eq.s32.totalorder %s34, 0
      %p61 = por %p59, %p60
      %s63 = sadd.s32 %s62, 1
      %p66 = scmp.eq.s32.totalorder %s28, 1
      %p67 = scmp.ne.s32.totalorder %s62, %s64
      %p68 = scmp.eq.s32.totalorder %s28, 0
      %p69 = por %p67, %p68
      %p70 = scmp.ne.s32.totalorder %s62, %s64
      %p71 = scmp.eq.s32.totalorder %s33, 1
      %p72 = por %p70, %p71
      %p73 = scmp.ne.s32.totalorder %s64, %s65
      %p74 = scmp.eq.s32.totalorder %s33, 0
      %p75 = por %p73, %p74
      %p76 = scmp.ne.s32.totalorder %s64, %s65
      %p77 = scmp.eq.s32.totalorder %s34, 1
      %p78 = por %p76, %p77
      %p80 = scmp.ne.s32.totalorder %s65, %s79
      %p81 = scmp.eq.s32.totalorder %s34, 0
      %p82 = por %p80, %p81
      %s84 = sadd.s32 %s83, 1
      %p87 = scmp.eq.s32.totalorder %s28, 1
      %p88 = scmp.ne.s32.totalorder %s83, %s85
      %p89 = scmp.eq.s32.totalorder %s28, 0
      %p90 = por %p88, %p89
      %p91 = scmp.ne.s32.totalorder %s83, %s85
      %p92 = scmp.eq.s32.totalorder %s33, 1
      %p93 = por %p91, %p92
      %p94 = scmp.ne.s32.totalorder %s85, %s86
      %p95 = scmp.eq.s32.totalorder %s33, 0
      %p96 = por %p94, %p95
      %p97 = scmp.ne.s32.totalorder %s85, %s86
      %p98 = scmp.eq.s32.totalorder %s34, 1
      %p99 = por %p97, %p98
      %p101 = scmp.ne.s32.totalorder %s86, %s100
      %p102 = scmp.eq.s32.totalorder %s34, 0
      %p103 = por %p101, %p102
      %s105 = sadd.s32 %s104, 1
      %p108 = scmp.eq.s32.totalorder %s28, 1
      %p109 = scmp.ne.s32.totalorder %s104, %s106
      %p110 = scmp.eq.s32.totalorder %s28, 0
      %p111 = por %p109, %p110
      %p112 = scmp.ne.s32.totalorder %s104, %s106
      %p113 = scmp.eq.s32.totalorder %s33, 1
      %p114 = por %p112, %p113
      %p115 = scmp.ne.s32.totalorder %s106, %s107
      %p116 = scmp.eq.s32.totalorder %s33, 0
      %p117 = por %p115, %p116
      %p118 = scmp.ne.s32.totalorder %s106, %s107
      %p119 = scmp.eq.s32.totalorder %s34, 1
      %p120 = por %p118, %p119
      %p122 = scmp.ne.s32.totalorder %s107, %s121
      %p123 = scmp.eq.s32.totalorder %s34, 0
      %p124 = por %p122, %p123
      %s126 = sadd.s32 %s125, 1
      %p129 = scmp.eq.s32.totalorder %s28, 1
      %p130 = scmp.ne.s32.totalorder %s125, %s127
      %p131 = scmp.eq.s32.totalorder %s28, 0
      %p132 = por %p130, %p131
      %p133 = scmp.ne.s32.totalorder %s125, %s127
      %p134 = scmp.eq.s32.totalorder %s33, 1
      %p135 = por %p133, %p134
      %p136 = scmp.ne.s32.totalorder %s127, %s128
      %p137 = scmp.eq.s32.totalorder %s33, 0
      %p138 = por %p136, %p137
      %p139 = scmp.ne.s32.totalorder %s127, %s128
      %p140 = scmp.eq.s32.totalorder %s34, 1
      %p141 = por %p139, %p140
      %p143 = scmp.ne.s32.totalorder %s128, %s142
      %p144 = scmp.eq.s32.totalorder %s34, 0
      %p145 = por %p143, %p144
      %s147 = sadd.s32 %s146, 1
      %p150 = scmp.eq.s32.totalorder %s28, 1
      %p151 = scmp.ne.s32.totalorder %s146, %s148
      %p152 = scmp.eq.s32.totalorder %s28, 0
      %p153 = por %p151, %p152
      %p154 = scmp.ne.s32.totalorder %s146, %s148
      %p155 = scmp.eq.s32.totalorder %s33, 1
      %p156 = por %p154, %p155
      %p157 = scmp.ne.s32.totalorder %s148, %s149
      %p158 = scmp.eq.s32.totalorder %s33, 0
      %p159 = por %p157, %p158
      %p160 = scmp.ne.s32.totalorder %s148, %s149
      %p161 = scmp.eq.s32.totalorder %s34, 1
      %p162 = por %p160, %p161
      %p164 = scmp.ne.s32.totalorder %s149, %s163
      %p165 = scmp.eq.s32.totalorder %s34, 0
      %p166 = por %p164, %p165
      %s168 = sadd.s32 %s167, 1
      %p171 = scmp.eq.s32.totalorder %s28, 1
      %p172 = scmp.ne.s32.totalorder %s167, %s169
      %p173 = scmp.eq.s32.totalorder %s28, 0
      %p174 = por %p172, %p173
      %p175 = scmp.ne.s32.totalorder %s167, %s169
      %p176 = scmp.eq.s32.totalorder %s33, 1
      %p177 = por %p175, %p176
      %p178 = scmp.ne.s32.totalorder %s169, %s170
      %p179 = scmp.eq.s32.totalorder %s33, 0
      %p180 = por %p178, %p179
      %p181 = scmp.ne.s32.totalorder %s169, %s170
      %p182 = scmp.eq.s32.totalorder %s34, 1
      %p183 = por %p181, %p182
      %p185 = scmp.ne.s32.totalorder %s170, %s184
      %p186 = scmp.eq.s32.totalorder %s34, 0
      %p187 = por %p185, %p186
      %s189 = sadd.s32 %s188, 1
      %p192 = scmp.eq.s32.totalorder %s28, 1
      %p193 = scmp.ne.s32.totalorder %s188, %s190
      %p194 = scmp.eq.s32.totalorder %s28, 0
      %p195 = por %p193, %p194
      %p196 = scmp.ne.s32.totalorder %s188, %s190
      %p197 = scmp.eq.s32.totalorder %s33, 1
      %p198 = por %p196, %p197
      %p199 = scmp.ne.s32.totalorder %s190, %s191
      %p200 = scmp.eq.s32.totalorder %s33, 0
      %p201 = por %p199, %p200
      %p202 = scmp.ne.s32.totalorder %s190, %s191
      %p203 = scmp.eq.s32.totalorder %s34, 1
      %p204 = por %p202, %p203
      %p206 = scmp.ne.s32.totalorder %s191, %s205
      %p207 = scmp.eq.s32.totalorder %s34, 0
      %p208 = por %p206, %p207
      %s210 = sadd.s32 %s209, 1
      %p213 = scmp.eq.s32.totalorder %s28, 1
      %p214 = scmp.ne.s32.totalorder %s209, %s211
      %p215 = scmp.eq.s32.totalorder %s28, 0
      %p216 = por %p214, %p215
      %p217 = scmp.ne.s32.totalorder %s209, %s211
      %p218 = scmp.eq.s32.totalorder %s33, 1
      %p219 = por %p217, %p218
      %p220 = scmp.ne.s32.totalorder %s211, %s212
      %p221 = scmp.eq.s32.totalorder %s33, 0
      %p222 = por %p220, %p221
      %p223 = scmp.ne.s32.totalorder %s211, %s212
      %p224 = scmp.eq.s32.totalorder %s34, 1
      %p225 = por %p223, %p224
      %p227 = scmp.ne.s32.totalorder %s212, %s226
      %p228 = scmp.eq.s32.totalorder %s34, 0
      %p229 = por %p227, %p228
      %s231 = sadd.s32 %s230, 1
      %p234 = scmp.eq.s32.totalorder %s28, 1
      %p235 = scmp.ne.s32.totalorder %s230, %s232
      %p236 = scmp.eq.s32.totalorder %s28, 0
      %p237 = por %p235, %p236
      %p238 = scmp.ne.s32.totalorder %s230, %s232
      %p239 = scmp.eq.s32.totalorder %s33, 1
      %p240 = por %p238, %p239
      %p241 = scmp.ne.s32.totalorder %s232, %s233
      %p242 = scmp.eq.s32.totalorder %s33, 0
      %p243 = por %p241, %p242
      %p244 = scmp.ne.s32.totalorder %s232, %s233
      %p245 = scmp.eq.s32.totalorder %s34, 1
      %p246 = por %p244, %p245
      %p248 = scmp.ne.s32.totalorder %s233, %s247
      %p249 = scmp.eq.s32.totalorder %s34, 0
      %p250 = por %p248, %p249
      %s252 = sadd.s32 %s251, 1
      %p255 = scmp.eq.s32.totalorder %s28, 1
      %p256 = scmp.ne.s32.totalorder %s251, %s253
      %p257 = scmp.eq.s32.totalorder %s28, 0
      %p258 = por %p256, %p257
      %p259 = scmp.ne.s32.totalorder %s251, %s253
      %p260 = scmp.eq.s32.totalorder %s33, 1
      %p261 = por %p259, %p260
      %p262 = scmp.ne.s32.totalorder %s253, %s254
      %p263 = scmp.eq.s32.totalorder %s33, 0
      %p264 = por %p262, %p263
      %p265 = scmp.ne.s32.totalorder %s253, %s254
      %p266 = scmp.eq.s32.totalorder %s34, 1
      %p267 = por %p265, %p266
      %p269 = scmp.ne.s32.totalorder %s254, %s268
      %p270 = scmp.eq.s32.totalorder %s34, 0
      %p271 = por %p269, %p270
      %s273 = sadd.s32 %s272, 1
      %p276 = scmp.eq.s32.totalorder %s28, 1
      %p277 = scmp.ne.s32.totalorder %s272, %s274
      %p278 = scmp.eq.s32.totalorder %s28, 0
      %p279 = por %p277, %p278
      %p280 = scmp.ne.s32.totalorder %s272, %s274
      %p281 = scmp.eq.s32.totalorder %s33, 1
      %p282 = por %p280, %p281
      %p283 = scmp.ne.s32.totalorder %s274, %s275
      %p284 = scmp.eq.s32.totalorder %s33, 0
      %p285 = por %p283, %p284
      %p286 = scmp.ne.s32.totalorder %s274, %s275
      %p287 = scmp.eq.s32.totalorder %s34, 1
      %p288 = por %p286, %p287
      %p290 = scmp.ne.s32.totalorder %s275, %s289
      %p291 = scmp.eq.s32.totalorder %s34, 0
      %p292 = por %p290, %p291
      %s294 = sadd.s32 %s293, 1
      %p297 = scmp.eq.s32.totalorder %s28, 1
      %p298 = scmp.ne.s32.totalorder %s293, %s295
      %p299 = scmp.eq.s32.totalorder %s28, 0
      %p300 = por %p298, %p299
      %p301 = scmp.ne.s32.totalorder %s293, %s295
      %p302 = scmp.eq.s32.totalorder %s33, 1
      %p303 = por %p301, %p302
      %p304 = scmp.ne.s32.totalorder %s295, %s296
      %p305 = scmp.eq.s32.totalorder %s33, 0
      %p306 = por %p304, %p305
      %p307 = scmp.ne.s32.totalorder %s295, %s296
      %p308 = scmp.eq.s32.totalorder %s34, 1
      %p309 = por %p307, %p308
      %p311 = scmp.ne.s32.totalorder %s296, %s310
      %p312 = scmp.eq.s32.totalorder %s34, 0
      %p313 = por %p311, %p312
      %s314 = ssub.s32 %s28, %s35
      %p315 = scmp.eq.s32.totalorder %s314, 0
      %s317 = sadd.s32 %s316, 1
      %s318 = scalar_select %p315, %s316, %s317
      %p321 = pneg %p315
      %p322 = scmp.eq.s32.totalorder %s28, 1
      %p323 = por %p321, %p322
      %p324 = scmp.ne.s32.totalorder %s316, %s319
      %p325 = scmp.eq.s32.totalorder %s28, 0
      %p326 = por %p324, %p325
      %p327 = scmp.ne.s32.totalorder %s316, %s319
      %p328 = scmp.eq.s32.totalorder %s33, 1
      %p329 = por %p327, %p328
      %p330 = scmp.ne.s32.totalorder %s319, %s320
      %p331 = scmp.eq.s32.totalorder %s33, 0
      %p332 = por %p330, %p331
      %p333 = scmp.ne.s32.totalorder %s319, %s320
      %p334 = scmp.eq.s32.totalorder %s34, 1
      %p335 = por %p333, %p334
      %p337 = scmp.ne.s32.totalorder %s320, %s336
      %p338 = scmp.eq.s32.totalorder %s34, 0
      %p339 = por %p337, %p338
      %p340 = scmp.le.s32.totalorder 1, %s28
      %p341 = scmp.lt.s32.totalorder %s28, 3
      %p342 = pnand %p340, %p341
      %p343 = pneg %p342
      // Predicated region
      $region9: #{tpu_custom_call.1} parent=5 // pred_check
        _
      $region10: #{tpu_custom_call.1} parent=5 // pred_check_branch
        %345 = sbr.rel (%p342) target = $region12
      $region11: #{tpu_custom_call.1} parent=5 // pred_region
        %s346 = ssub.s32 %s28, 1
        // Predicated region
        $region13: #{tpu_custom_call.1} parent=11 // pred_check
          %p347 = pneg %p75
        $region14: #{tpu_custom_call.1} parent=11 // pred_check_branch
          %349 = sbr.rel (%p347) target = $region16
        $region15: #{tpu_custom_call.1} parent=11 // pred_region
          %351 = vsyncadd [#allocation6], 0
          %s352 = sshll.u32 %s1, 4
          %s353 = int_to_ptr.hbm [resolvable:$true] %s352
          %s354 = sshll.u32 [#allocation5], 4
          %s355 = int_to_ptr.vmem [resolvable:$true] %s354
          %360 = dma.hbm_to_vmem [thread:$0]  %s353, 6144, %s355, [#allocation6], 384, 384, 24
        $region16: #{tpu_custom_call.1} parent=11 // pred_fallthru
          _
        // Predicated region
        $region17: #{tpu_custom_call.1} parent=11 // pred_check
          %p361 = pneg %p96
        $region18: #{tpu_custom_call.1} parent=11 // pred_check_branch
          %363 = sbr.rel (%p361) target = $region20
        $region19: #{tpu_custom_call.1} parent=11 // pred_region
          %365 = vsyncadd [#allocation6], 0
          %s367 = sshll.u32 %s2, 4
          %s368 = int_to_ptr.hbm [resolvable:$true] %s367
          %s369 = sshll.u32 [#allocation7], 4
          %s370 = int_to_ptr.vmem [resolvable:$true] %s369
          %372 = dma.hbm_to_vmem [thread:$0]  %s368, 48, %s370, [#allocation6]
        $region20: #{tpu_custom_call.1} parent=11 // pred_fallthru
          _
        // Predicated region
        $region21: #{tpu_custom_call.1} parent=11 // pred_check
          %p373 = pneg %p117
        $region22: #{tpu_custom_call.1} parent=11 // pred_check_branch
          %375 = sbr.rel (%p373) target = $region24
        $region23: #{tpu_custom_call.1} parent=11 // pred_region
          %377 = vsyncadd [#allocation9], 0
          %s378 = sshll.u32 %s3, 4
          %s379 = int_to_ptr.hbm [resolvable:$true] %s378
          %s380 = sshll.u32 [#allocation8], 4
          %s381 = int_to_ptr.vmem [resolvable:$true] %s380
          %386 = dma.hbm_to_vmem [thread:$0]  %s379, 2048, %s381, [#allocation9], 128, 128, 8
        $region24: #{tpu_custom_call.1} parent=11 // pred_fallthru
          _
        // Predicated region
        $region25: #{tpu_custom_call.1} parent=11 // pred_check
          %p387 = pneg %p138
        $region26: #{tpu_custom_call.1} parent=11 // pred_check_branch
          %389 = sbr.rel (%p387) target = $region28
        $region27: #{tpu_custom_call.1} parent=11 // pred_region
          _
        $region28: #{tpu_custom_call.1} parent=11 // pred_fallthru
          _
        // Predicated region
        $region29: #{tpu_custom_call.1} parent=11 // pred_check
          %p390 = pneg %p159
        $region30: #{tpu_custom_call.1} parent=11 // pred_check_branch
          %392 = sbr.rel (%p390) target = $region32
        $region31: #{tpu_custom_call.1} parent=11 // pred_region
          _
        $region32: #{tpu_custom_call.1} parent=11 // pred_fallthru
          _
        // Predicated region
        $region33: #{tpu_custom_call.1} parent=11 // pred_check
          %p393 = pneg %p180
        $region34: #{tpu_custom_call.1} parent=11 // pred_check_branch
          %395 = sbr.rel (%p393) target = $region36
        $region35: #{tpu_custom_call.1} parent=11 // pred_region
          _
        $region36: #{tpu_custom_call.1} parent=11 // pred_fallthru
          _
        // Predicated region
        $region37: #{tpu_custom_call.1} parent=11 // pred_check
          %p396 = pneg %p201
        $region38: #{tpu_custom_call.1} parent=11 // pred_check_branch
          %398 = sbr.rel (%p396) target = $region40
        $region39: #{tpu_custom_call.1} parent=11 // pred_region
          %400 = vsyncadd [#allocation9], 0
          %s401 = sshll.u32 %s7, 4
          %s402 = int_to_ptr.hbm [resolvable:$true] %s401
          %s403 = sshll.u32 [#allocation10], 4
          %s404 = int_to_ptr.vmem [resolvable:$true] %s403
          %409 = dma.hbm_to_vmem [thread:$0]  %s402, 4096, %s404, [#allocation9], 256, 256, 16
        $region40: #{tpu_custom_call.1} parent=11 // pred_fallthru
          _
        // Predicated region
        $region41: #{tpu_custom_call.1} parent=11 // pred_check
          %p410 = pneg %p222
        $region42: #{tpu_custom_call.1} parent=11 // pred_check_branch
          %412 = sbr.rel (%p410) target = $region44
        $region43: #{tpu_custom_call.1} parent=11 // pred_region
          _
        $region44: #{tpu_custom_call.1} parent=11 // pred_fallthru
          _
        // Predicated region
        $region45: #{tpu_custom_call.1} parent=11 // pred_check
          %p413 = pneg %p243
        $region46: #{tpu_custom_call.1} parent=11 // pred_check_branch
          %415 = sbr.rel (%p413) target = $region48
        $region47: #{tpu_custom_call.1} parent=11 // pred_region
          %417 = vsyncadd [#allocation12], 0
          %s418 = sshll.u32 %s9, 4
          %s419 = int_to_ptr.hbm [resolvable:$true] %s418
          %s420 = sshll.u32 [#allocation11], 4
          %s421 = int_to_ptr.vmem [resolvable:$true] %s420
          %426 = dma.hbm_to_vmem [thread:$0]  %s419, 4096, %s421, [#allocation12], 128, 128, 8
        $region48: #{tpu_custom_call.1} parent=11 // pred_fallthru
          _
        // Predicated region
        $region49: #{tpu_custom_call.1} parent=11 // pred_check
          %p427 = pneg %p264
        $region50: #{tpu_custom_call.1} parent=11 // pred_check_branch
          %429 = sbr.rel (%p427) target = $region52
        $region51: #{tpu_custom_call.1} parent=11 // pred_region
          _
        $region52: #{tpu_custom_call.1} parent=11 // pred_fallthru
          _
        // Predicated region
        $region53: #{tpu_custom_call.1} parent=11 // pred_check
          %p430 = pneg %p285
        $region54: #{tpu_custom_call.1} parent=11 // pred_check_branch
          %432 = sbr.rel (%p430) target = $region56
        $region55: #{tpu_custom_call.1} parent=11 // pred_region
          _
        $region56: #{tpu_custom_call.1} parent=11 // pred_fallthru
          _
        // Predicated region
        $region57: #{tpu_custom_call.1} parent=11 // pred_check
          %p433 = pneg %p306
        $region58: #{tpu_custom_call.1} parent=11 // pred_check_branch
          %435 = sbr.rel (%p433) target = $region60
        $region59: #{tpu_custom_call.1} parent=11 // pred_region
          _
        $region60: #{tpu_custom_call.1} parent=11 // pred_fallthru
          _
      $region12: #{tpu_custom_call.1} parent=5 // pred_fallthru
        _
      %p436 = scmp.lt.s32.totalorder %s28, 2
      // Predicated region
      $region61: #{tpu_custom_call.1} parent=5 // pred_check
        %p437 = pneg %p436
      $region62: #{tpu_custom_call.1} parent=5 // pred_check_branch
        %439 = sbr.rel (%p437) target = $region64
      $region63: #{tpu_custom_call.1} parent=5 // pred_region
        // Predicated region
        $region65: #{tpu_custom_call.1} parent=63 // pred_check
          %p440 = pneg %p48
        $region66: #{tpu_custom_call.1} parent=63 // pred_check_branch
          %442 = sbr.rel (%p440) target = $region68
        $region67: #{tpu_custom_call.1} parent=63 // pred_region
          %s443 = sand.u32 %s38, 1
          %s444 = scalar_lea.sflag [#allocation3], %s443
          %s445 = sand.u32 %s38, 1
          %s446 = smul.addr %s445, 64
          %s447 = scalar_lea.vmem [#allocation2], %s446
          %s448 = smul.u32 2, %s28
          %450 = vsyncadd %s444, 0
          %s451 = smul.addr %s448, 4
          %s452 = smul.addr %s451, 8
          %s453 = scalar_lea.hbm %s0, %s452
          %s454 = sshll.u32 %s453, 4
          %s455 = int_to_ptr.hbm [resolvable:$true] %s454
          %s456 = sshll.u32 %s447, 4
          %s457 = int_to_ptr.vmem [resolvable:$true] %s456
          %462 = dma.hbm_to_vmem [thread:$0]  %s455, 1024, %s457, %s444, 128, 128, 8
        $region68: #{tpu_custom_call.1} parent=63 // pred_fallthru
          _
      $region64: #{tpu_custom_call.1} parent=5 // pred_fallthru
        _
      %p463 = scmp.le.s32.totalorder 1, %s28
      %p464 = scmp.lt.s32.totalorder %s28, 3
      %p465 = pnand %p463, %p464
      %p466 = pneg %p465
      // Predicated region
      $region69: #{tpu_custom_call.1} parent=5 // pred_check
        _
      $region70: #{tpu_custom_call.1} parent=5 // pred_check_branch
        %468 = sbr.rel (%p465) target = $region72
      $region71: #{tpu_custom_call.1} parent=5 // pred_region
        %s469 = ssub.s32 %s28, 1
        %s470 = sand.u32 %s41, 1
        %s471 = scalar_lea.sflag [#allocation3], %s470
        %s472 = sand.u32 %s41, 1
        %s473 = smul.addr %s472, 64
        %s474 = scalar_lea.vmem [#allocation2], %s473
        // Predicated region
        $region73: #{tpu_custom_call.1} parent=71 // pred_check
          %p475 = pneg %p54
        $region74: #{tpu_custom_call.1} parent=71 // pred_check_branch
          %477 = sbr.rel (%p475) target = $region76
        $region75: #{tpu_custom_call.1} parent=71 // pred_region
          %479 = dma.done %s471, 1024
        $region76: #{tpu_custom_call.1} parent=71 // pred_fallthru
          _
        // Predicated region
        $region77: #{tpu_custom_call.1} parent=71 // pred_check
          %p480 = pneg %p75
        $region78: #{tpu_custom_call.1} parent=71 // pred_check_branch
          %482 = sbr.rel (%p480) target = $region80
        $region79: #{tpu_custom_call.1} parent=71 // pred_region
          %484 = dma.done [#allocation6], 6144
        $region80: #{tpu_custom_call.1} parent=71 // pred_fallthru
          _
        // Predicated region
        $region81: #{tpu_custom_call.1} parent=71 // pred_check
          %p485 = pneg %p96
        $region82: #{tpu_custom_call.1} parent=71 // pred_check_branch
          %487 = sbr.rel (%p485) target = $region84
        $region83: #{tpu_custom_call.1} parent=71 // pred_region
          %489 = dma.done [#allocation6], 48
        $region84: #{tpu_custom_call.1} parent=71 // pred_fallthru
          _
        // Predicated region
        $region85: #{tpu_custom_call.1} parent=71 // pred_check
          %p490 = pneg %p117
        $region86: #{tpu_custom_call.1} parent=71 // pred_check_branch
          %492 = sbr.rel (%p490) target = $region88
        $region87: #{tpu_custom_call.1} parent=71 // pred_region
          %494 = dma.done [#allocation9], 2048
        $region88: #{tpu_custom_call.1} parent=71 // pred_fallthru
          _
        // Predicated region
        $region89: #{tpu_custom_call.1} parent=71 // pred_check
          %p495 = pneg %p201
        $region90: #{tpu_custom_call.1} parent=71 // pred_check_branch
          %497 = sbr.rel (%p495) target = $region92
        $region91: #{tpu_custom_call.1} parent=71 // pred_region
          %499 = dma.done [#allocation9], 4096
        $region92: #{tpu_custom_call.1} parent=71 // pred_fallthru
          _
        // Predicated region
        $region93: #{tpu_custom_call.1} parent=71 // pred_check
          %p500 = pneg %p243
        $region94: #{tpu_custom_call.1} parent=71 // pred_check_branch
          %502 = sbr.rel (%p500) target = $region96
        $region95: #{tpu_custom_call.1} parent=71 // pred_region
          %504 = dma.done [#allocation12], 4096
        $region96: #{tpu_custom_call.1} parent=71 // pred_fallthru
          _
        %s505 = sand.u32 %s41, 1
        %s506 = scalar_lea.sflag [#allocation3], %s505
        %s507 = sand.u32 %s41, 1
        %s508 = smul.addr %s507, 64
        %s509 = scalar_lea.vmem [#allocation2], %s508
        %p510 = pneg %p54
        %p511 = pneg %p51
        %p512 = pneg %p75
        %p513 = pneg %p72
        %p514 = pneg %p96
        %p515 = pneg %p93
        %p516 = pneg %p117
        %p517 = pneg %p114
        %p518 = pneg %p138
        %p519 = pneg %p135
        %p520 = pneg %p159
        %p521 = pneg %p156
        %p522 = pneg %p180
        %p523 = pneg %p177
        %p524 = pneg %p201
        %p525 = pneg %p198
        %p526 = pneg %p222
        %p527 = pneg %p219
        %p528 = pneg %p243
        %p529 = pneg %p240
        %p530 = pneg %p264
        %p531 = pneg %p261
        %p532 = pneg %p285
        %p533 = pneg %p282
        %p534 = pneg %p306
        %p535 = pneg %p303
        %p536 = pneg %p332
        %p537 = pneg %p329
        %s538 = sand.u32 %s319, 1
        %s539 = scalar_lea.sflag [#allocation4], %s538
        %s540 = sand.u32 %s319, 1
        %s541 = smul.addr %s540, 64
        %s542 = scalar_lea.vmem [#allocation13], %s541
        %s543 = smul.u32 2, %s33
        %s544 = smul.u32 2, %s33
        %v545 = vld [vmem:[%s474] sm:$0xff]
        %v546 = vld [vmem:[%s474 + $0x8] sm:$0xff]
        %v547 = vld [vmem:[%s474 + $0x10] sm:$0xff]
        %v548 = vld [vmem:[%s474 + $0x18] sm:$0xff]
        %v549 = vld [vmem:[%s474 + $0x20] sm:$0xff]
        %v550 = vld [vmem:[%s474 + $0x28] sm:$0xff]
        %v551 = vld [vmem:[%s474 + $0x30] sm:$0xff]
        %v552 = vld [vmem:[%s474 + $0x38] sm:$0xff]
        %v553 = vld [vmem:[%s5] sm:$0x1]
        %v554 = vld [vmem:[%s6] sm:$0x1]
        %555 = vadd.xlane.f32.xlu0 %v545
        %v556 = vpop.xlane.xlu0 %555
        %557 = vadd.xlane.f32.xlu0 %v546
        %v558 = vpop.xlane.xlu0 %557
        %559 = vadd.xlane.f32.xlu0 %v547
        %v560 = vpop.xlane.xlu0 %559
        %561 = vadd.xlane.f32.xlu0 %v548
        %v562 = vpop.xlane.xlu0 %561
        %563 = vadd.xlane.f32.xlu0 %v549
        %v564 = vpop.xlane.xlu0 %563
        %565 = vadd.xlane.f32.xlu0 %v550
        %v566 = vpop.xlane.xlu0 %565
        %567 = vadd.xlane.f32.xlu0 %v551
        %v568 = vpop.xlane.xlu0 %567
        %569 = vadd.xlane.f32.xlu0 %v552
        %v570 = vpop.xlane.xlu0 %569
        %v571 = vrcp.pop 128.0
        %v572 = vmul.f32 128.0, %v571
        %v573 = vsub.f32 1.0, %v572
        %v574 = vmul.f32 %v571, %v573
        %v575 = vadd.f32 %v571, %v574
        %vm576 = vweird.f32 %v571
        %v577 = vsel %vm576, %v571, %v575
        %v578 = vmul.f32 %v556, %v577
        %v579 = vmul.f32 %v558, %v577
        %v580 = vmul.f32 %v560, %v577
        %v581 = vmul.f32 %v562, %v577
        %v582 = vmul.f32 %v564, %v577
        %v583 = vmul.f32 %v566, %v577
        %v584 = vmul.f32 %v568, %v577
        %v585 = vmul.f32 %v570, %v577
        %v586 = vsub.f32 %v545, %v578
        %v587 = vsub.f32 %v546, %v579
        %v588 = vsub.f32 %v547, %v580
        %v589 = vsub.f32 %v548, %v581
        %v590 = vsub.f32 %v549, %v582
        %v591 = vsub.f32 %v550, %v583
        %v592 = vsub.f32 %v551, %v584
        %v593 = vsub.f32 %v552, %v585
        %v594 = vmul.f32 %v586, %v586
        %v595 = vmul.f32 %v587, %v587
        %v596 = vmul.f32 %v588, %v588
        %v597 = vmul.f32 %v589, %v589
        %v598 = vmul.f32 %v590, %v590
        %v599 = vmul.f32 %v591, %v591
        %v600 = vmul.f32 %v592, %v592
        %v601 = vmul.f32 %v593, %v593
        %602 = vadd.xlane.f32.xlu0 %v594
        %v603 = vpop.xlane.xlu0 %602
        %604 = vadd.xlane.f32.xlu0 %v595
        %v605 = vpop.xlane.xlu0 %604
        %606 = vadd.xlane.f32.xlu0 %v596
        %v607 = vpop.xlane.xlu0 %606
        %608 = vadd.xlane.f32.xlu0 %v597
        %v609 = vpop.xlane.xlu0 %608
        %610 = vadd.xlane.f32.xlu0 %v598
        %v611 = vpop.xlane.xlu0 %610
        %612 = vadd.xlane.f32.xlu0 %v599
        %v613 = vpop.xlane.xlu0 %612
        %614 = vadd.xlane.f32.xlu0 %v600
        %v615 = vpop.xlane.xlu0 %614
        %616 = vadd.xlane.f32.xlu0 %v601
        %v617 = vpop.xlane.xlu0 %616
        %v618 = vmul.f32 %v603, %v577
        %v619 = vmul.f32 %v605, %v577
        %v620 = vmul.f32 %v607, %v577
        %v621 = vmul.f32 %v609, %v577
        %v622 = vmul.f32 %v611, %v577
        %v623 = vmul.f32 %v613, %v577
        %v624 = vmul.f32 %v615, %v577
        %v625 = vmul.f32 %v617, %v577
        %v626 = vadd.f32 %v618, 1e-05
        %v627 = vadd.f32 %v619, 1e-05
        %v628 = vadd.f32 %v620, 1e-05
        %v629 = vadd.f32 %v621, 1e-05
        %v630 = vadd.f32 %v622, 1e-05
        %v631 = vadd.f32 %v623, 1e-05
        %v632 = vadd.f32 %v624, 1e-05
        %v633 = vadd.f32 %v625, 1e-05
        %v634 = vrsqrt.pop %v626
        %v635 = vmul.f32 %v634, %v626
        %v636 = vmul.f32 %v635, %v634
        %v637 = vmul.f32 0.5, %v636
        %v638 = vsub.f32 1.5, %v637
        %v639 = vmul.f32 %v634, %v638
        %vm640 = vweird.f32 %v626
        %vm641 = vweird.f32 %v634
        %vm642 = vmor %vm640, %vm641
        %v643 = vsel %vm642, %v634, %v639
        %v644 = vrsqrt.pop %v627
        %v645 = vmul.f32 %v644, %v627
        %v646 = vmul.f32 %v645, %v644
        %v647 = vmul.f32 0.5, %v646
        %v648 = vsub.f32 1.5, %v647
        %v649 = vmul.f32 %v644, %v648
        %vm650 = vweird.f32 %v627
        %vm651 = vweird.f32 %v644
        %vm652 = vmor %vm650, %vm651
        %v653 = vsel %vm652, %v644, %v649
        %v654 = vrsqrt.pop %v628
        %v655 = vmul.f32 %v654, %v628
        %v656 = vmul.f32 %v655, %v654
        %v657 = vmul.f32 0.5, %v656
        %v658 = vsub.f32 1.5, %v657
        %v659 = vmul.f32 %v654, %v658
        %vm660 = vweird.f32 %v628
        %vm661 = vweird.f32 %v654
        %vm662 = vmor %vm660, %vm661
        %v663 = vsel %vm662, %v654, %v659
        %v664 = vrsqrt.pop %v629
        %v665 = vmul.f32 %v664, %v629
        %v666 = vmul.f32 %v665, %v664
        %v667 = vmul.f32 0.5, %v666
        %v668 = vsub.f32 1.5, %v667
        %v669 = vmul.f32 %v664, %v668
        %vm670 = vweird.f32 %v629
        %vm671 = vweird.f32 %v664
        %vm672 = vmor %vm670, %vm671
        %v673 = vsel %vm672, %v664, %v669
        %v674 = vrsqrt.pop %v630
        %v675 = vmul.f32 %v674, %v630
        %v676 = vmul.f32 %v675, %v674
        %v677 = vmul.f32 0.5, %v676
        %v678 = vsub.f32 1.5, %v677
        %v679 = vmul.f32 %v674, %v678
        %vm680 = vweird.f32 %v630
        %vm681 = vweird.f32 %v674
        %vm682 = vmor %vm680, %vm681
        %v683 = vsel %vm682, %v674, %v679
        %v684 = vrsqrt.pop %v631
        %v685 = vmul.f32 %v684, %v631
        %v686 = vmul.f32 %v685, %v684
        %v687 = vmul.f32 0.5, %v686
        %v688 = vsub.f32 1.5, %v687
        %v689 = vmul.f32 %v684, %v688
        %vm690 = vweird.f32 %v631
        %vm691 = vweird.f32 %v684
        %vm692 = vmor %vm690, %vm691
        %v693 = vsel %vm692, %v684, %v689
        %v694 = vrsqrt.pop %v632
        %v695 = vmul.f32 %v694, %v632
        %v696 = vmul.f32 %v695, %v694
        %v697 = vmul.f32 0.5, %v696
        %v698 = vsub.f32 1.5, %v697
        %v699 = vmul.f32 %v694, %v698
        %vm700 = vweird.f32 %v632
        %vm701 = vweird.f32 %v694
        %vm702 = vmor %vm700, %vm701
        %v703 = vsel %vm702, %v694, %v699
        %v704 = vrsqrt.pop %v633
        %v705 = vmul.f32 %v704, %v633
        %v706 = vmul.f32 %v705, %v704
        %v707 = vmul.f32 0.5, %v706
        %v708 = vsub.f32 1.5, %v707
        %v709 = vmul.f32 %v704, %v708
        %vm710 = vweird.f32 %v633
        %vm711 = vweird.f32 %v704
        %vm712 = vmor %vm710, %vm711
        %v713 = vsel %vm712, %v704, %v709
        %v714 = vmul.f32 %v586, %v643
        %v715 = vmul.f32 %v587, %v653
        %v716 = vmul.f32 %v588, %v663
        %v717 = vmul.f32 %v589, %v673
        %v718 = vmul.f32 %v590, %v683
        %v719 = vmul.f32 %v591, %v693
        %v720 = vmul.f32 %v592, %v703
        %v721 = vmul.f32 %v593, %v713
        %v723 = vperm.slane %v553, 0
        %v725 = vmul.f32 %v714, %v723
        %v726 = vmul.f32 %v715, %v723
        %v727 = vmul.f32 %v716, %v723
        %v728 = vmul.f32 %v717, %v723
        %v729 = vmul.f32 %v718, %v723
        %v730 = vmul.f32 %v719, %v723
        %v731 = vmul.f32 %v720, %v723
        %v732 = vmul.f32 %v721, %v723
        %v734 = vperm.slane %v554, 0
        %v736 = vadd.f32 %v725, %v734
        %v737 = vadd.f32 %v726, %v734
        %v738 = vadd.f32 %v727, %v734
        %v739 = vadd.f32 %v728, %v734
        %v740 = vadd.f32 %v729, %v734
        %v741 = vadd.f32 %v730, %v734
        %v742 = vadd.f32 %v731, %v734
        %v743 = vadd.f32 %v732, %v734
        %v744 = vld [vmem:[#allocation5] sm:$0xff]
        %v745 = vld [vmem:[#allocation5 + $0x8] sm:$0xff]
        %v746 = vld [vmem:[#allocation5 + $0x10] sm:$0xff]
        %v747 = vld [vmem:[#allocation5 + $0x18] sm:$0xff]
        %v748 = vld [vmem:[#allocation5 + $0x20] sm:$0xff]
        %v749 = vld [vmem:[#allocation5 + $0x28] sm:$0xff]
        %v750 = vld [vmem:[#allocation5 + $0x30] sm:$0xff]
        %v751 = vld [vmem:[#allocation5 + $0x38] sm:$0xff]
        %v752 = vld [vmem:[#allocation5 + $0x40] sm:$0xff]
        %v753 = vld [vmem:[#allocation5 + $0x48] sm:$0xff]
        %v754 = vld [vmem:[#allocation5 + $0x50] sm:$0xff]
        %v755 = vld [vmem:[#allocation5 + $0x58] sm:$0xff]
        %v756 = vld [vmem:[#allocation5 + $0x60] sm:$0xff]
        %v757 = vld [vmem:[#allocation5 + $0x68] sm:$0xff]
        %v758 = vld [vmem:[#allocation5 + $0x70] sm:$0xff]
        %v759 = vld [vmem:[#allocation5 + $0x78] sm:$0xff]
        %v760 = vld [vmem:[#allocation5 + $0x80] sm:$0xff]
        %v761 = vld [vmem:[#allocation5 + $0x88] sm:$0xff]
        %v762 = vld [vmem:[#allocation5 + $0x90] sm:$0xff]
        %v763 = vld [vmem:[#allocation5 + $0x98] sm:$0xff]
        %v764 = vld [vmem:[#allocation5 + $0xa0] sm:$0xff]
        %v765 = vld [vmem:[#allocation5 + $0xa8] sm:$0xff]
        %v766 = vld [vmem:[#allocation5 + $0xb0] sm:$0xff]
        %v767 = vld [vmem:[#allocation5 + $0xb8] sm:$0xff]
        %v768 = vld [vmem:[#allocation5 + $0xc0] sm:$0xff]
        %v769 = vld [vmem:[#allocation5 + $0xc8] sm:$0xff]
        %v770 = vld [vmem:[#allocation5 + $0xd0] sm:$0xff]
        %v771 = vld [vmem:[#allocation5 + $0xd8] sm:$0xff]
        %v772 = vld [vmem:[#allocation5 + $0xe0] sm:$0xff]
        %v773 = vld [vmem:[#allocation5 + $0xe8] sm:$0xff]
        %v774 = vld [vmem:[#allocation5 + $0xf0] sm:$0xff]
        %v775 = vld [vmem:[#allocation5 + $0xf8] sm:$0xff]
        %v776 = vld [vmem:[#allocation5 + $0x100] sm:$0xff]
        %v777 = vld [vmem:[#allocation5 + $0x108] sm:$0xff]
        %v778 = vld [vmem:[#allocation5 + $0x110] sm:$0xff]
        %v779 = vld [vmem:[#allocation5 + $0x118] sm:$0xff]
        %v780 = vld [vmem:[#allocation5 + $0x120] sm:$0xff]
        %v781 = vld [vmem:[#allocation5 + $0x128] sm:$0xff]
        %v782 = vld [vmem:[#allocation5 + $0x130] sm:$0xff]
        %v783 = vld [vmem:[#allocation5 + $0x138] sm:$0xff]
        %v784 = vld [vmem:[#allocation5 + $0x140] sm:$0xff]
        %v785 = vld [vmem:[#allocation5 + $0x148] sm:$0xff]
        %v786 = vld [vmem:[#allocation5 + $0x150] sm:$0xff]
        %v787 = vld [vmem:[#allocation5 + $0x158] sm:$0xff]
        %v788 = vld [vmem:[#allocation5 + $0x160] sm:$0xff]
        %v789 = vld [vmem:[#allocation5 + $0x168] sm:$0xff]
        %v790 = vld [vmem:[#allocation5 + $0x170] sm:$0xff]
        %v791 = vld [vmem:[#allocation5 + $0x178] sm:$0xff]
        %v792 = vld [vmem:[#allocation7] sm:$0x7]
        %v794 = vperm.slane %v792, 0
        %v795 = vperm.slane %v792, 1
        %v796 = vperm.slane %v792, 2
        %800 = vmatpush.msra.mxu0 %v789
        %801 = vmatpush.msra.mxu0 %v786
        %802 = vmatpush.msra.mxu0 %v783
        %803 = vmatpush.msra.mxu0 %v780
        %804 = vmatpush.msra.mxu0 %v777
        %805 = vmatpush.msra.mxu0 %v774
        %806 = vmatpush.msra.mxu0 %v771
        %807 = vmatpush.msra.mxu0 %v768
        %808 = vmatpush.msra.mxu0 %v765
        %809 = vmatpush.msra.mxu0 %v762
        %810 = vmatpush.msra.mxu0 %v759
        %811 = vmatpush.msra.mxu0 %v756
        %812 = vmatpush.msra.mxu0 %v753
        %813 = vmatpush.msra.mxu0 %v750
        %814 = vmatpush.msra.mxu0 %v747
        %815 = vmatpush.msra.mxu0 %v744
        %816 = vmatmul.f32.gmra.mxu0 %v736
        %v817 = vpop.f32.mrf.mxu0
        %v818 = vadd.f32 %v794, %v817
        %819 = vmatmul.f32.gmra.mxu0 %v737
        %v820 = vpop.f32.mrf.mxu0
        %v821 = vadd.f32 %v794, %v820
        %822 = vmatmul.f32.gmra.mxu0 %v738
        %v823 = vpop.f32.mrf.mxu0
        %v824 = vadd.f32 %v794, %v823
        %825 = vmatmul.f32.gmra.mxu0 %v739
        %v826 = vpop.f32.mrf.mxu0
        %v827 = vadd.f32 %v794, %v826
        %828 = vmatmul.f32.gmra.mxu0 %v740
        %v829 = vpop.f32.mrf.mxu0
        %v830 = vadd.f32 %v794, %v829
        %831 = vmatmul.f32.gmra.mxu0 %v741
        %v832 = vpop.f32.mrf.mxu0
        %v833 = vadd.f32 %v794, %v832
        %834 = vmatmul.f32.gmra.mxu0 %v742
        %v835 = vpop.f32.mrf.mxu0
        %v836 = vadd.f32 %v794, %v835
        %837 = vmatmul.f32.gmra.mxu0 %v743
        %v838 = vpop.f32.mrf.mxu0
        %v839 = vadd.f32 %v794, %v838
        %840 = vdwg.mxu0
        %841 = vmatpush.msra.mxu0 %v790
        %842 = vmatpush.msra.mxu0 %v787
        %843 = vmatpush.msra.mxu0 %v784
        %844 = vmatpush.msra.mxu0 %v781
        %845 = vmatpush.msra.mxu0 %v778
        %846 = vmatpush.msra.mxu0 %v775
        %847 = vmatpush.msra.mxu0 %v772
        %848 = vmatpush.msra.mxu0 %v769
        %849 = vmatpush.msra.mxu0 %v766
        %850 = vmatpush.msra.mxu0 %v763
        %851 = vmatpush.msra.mxu0 %v760
        %852 = vmatpush.msra.mxu0 %v757
        %853 = vmatpush.msra.mxu0 %v754
        %854 = vmatpush.msra.mxu0 %v751
        %855 = vmatpush.msra.mxu0 %v748
        %856 = vmatpush.msra.mxu0 %v745
        %857 = vmatmul.f32.gmra.mxu0 %v736
        %v858 = vpop.f32.mrf.mxu0
        %v859 = vadd.f32 %v795, %v858
        %860 = vmatmul.f32.gmra.mxu0 %v737
        %v861 = vpop.f32.mrf.mxu0
        %v862 = vadd.f32 %v795, %v861
        %863 = vmatmul.f32.gmra.mxu0 %v738
        %v864 = vpop.f32.mrf.mxu0
        %v865 = vadd.f32 %v795, %v864
        %866 = vmatmul.f32.gmra.mxu0 %v739
        %v867 = vpop.f32.mrf.mxu0
        %v868 = vadd.f32 %v795, %v867
        %869 = vmatmul.f32.gmra.mxu0 %v740
        %v870 = vpop.f32.mrf.mxu0
        %v871 = vadd.f32 %v795, %v870
        %872 = vmatmul.f32.gmra.mxu0 %v741
        %v873 = vpop.f32.mrf.mxu0
        %v874 = vadd.f32 %v795, %v873
        %875 = vmatmul.f32.gmra.mxu0 %v742
        %v876 = vpop.f32.mrf.mxu0
        %v877 = vadd.f32 %v795, %v876
        %878 = vmatmul.f32.gmra.mxu0 %v743
        %v879 = vpop.f32.mrf.mxu0
        %v880 = vadd.f32 %v795, %v879
        %881 = vdwg.mxu0
        %882 = vmatpush.msra.mxu0 %v791
        %883 = vmatpush.msra.mxu0 %v788
        %884 = vmatpush.msra.mxu0 %v785
        %885 = vmatpush.msra.mxu0 %v782
        %886 = vmatpush.msra.mxu0 %v779
        %887 = vmatpush.msra.mxu0 %v776
        %888 = vmatpush.msra.mxu0 %v773
        %889 = vmatpush.msra.mxu0 %v770
        %890 = vmatpush.msra.mxu0 %v767
        %891 = vmatpush.msra.mxu0 %v764
        %892 = vmatpush.msra.mxu0 %v761
        %893 = vmatpush.msra.mxu0 %v758
        %894 = vmatpush.msra.mxu0 %v755
        %895 = vmatpush.msra.mxu0 %v752
        %896 = vmatpush.msra.mxu0 %v749
        %897 = vmatpush.msra.mxu0 %v746
        %898 = vmatmul.f32.gmra.mxu0 %v736
        %v899 = vpop.f32.mrf.mxu0
        %v900 = vadd.f32 %v796, %v899
        %901 = vmatmul.f32.gmra.mxu0 %v737
        %v902 = vpop.f32.mrf.mxu0
        %v903 = vadd.f32 %v796, %v902
        %904 = vmatmul.f32.gmra.mxu0 %v738
        %v905 = vpop.f32.mrf.mxu0
        %v906 = vadd.f32 %v796, %v905
        %907 = vmatmul.f32.gmra.mxu0 %v739
        %v908 = vpop.f32.mrf.mxu0
        %v909 = vadd.f32 %v796, %v908
        %910 = vmatmul.f32.gmra.mxu0 %v740
        %v911 = vpop.f32.mrf.mxu0
        %v912 = vadd.f32 %v796, %v911
        %913 = vmatmul.f32.gmra.mxu0 %v741
        %v914 = vpop.f32.mrf.mxu0
        %v915 = vadd.f32 %v796, %v914
        %916 = vmatmul.f32.gmra.mxu0 %v742
        %v917 = vpop.f32.mrf.mxu0
        %v918 = vadd.f32 %v796, %v917
        %919 = vmatmul.f32.gmra.mxu0 %v743
        %v920 = vpop.f32.mrf.mxu0
        %v921 = vadd.f32 %v796, %v920
        %922 = vdwg.mxu0
        %931 = vrot.lane.b32.xlu0 %v818, 96
        %v932 = vpop.permute.xlu0 %931
        %933 = vrot.lane.b32.xlu0 %v821, 96
        %v934 = vpop.permute.xlu0 %933
        %935 = vrot.lane.b32.xlu0 %v824, 96
        %v936 = vpop.permute.xlu0 %935
        %937 = vrot.lane.b32.xlu0 %v827, 96
        %v938 = vpop.permute.xlu0 %937
        %939 = vrot.lane.b32.xlu0 %v830, 96
        %v940 = vpop.permute.xlu0 %939
        %941 = vrot.lane.b32.xlu0 %v833, 96
        %v942 = vpop.permute.xlu0 %941
        %943 = vrot.lane.b32.xlu0 %v836, 96
        %v944 = vpop.permute.xlu0 %943
        %945 = vrot.lane.b32.xlu0 %v839, 96
        %v946 = vpop.permute.xlu0 %945
        %955 = vrot.lane.b32.xlu0 %v818, 64
        %v956 = vpop.permute.xlu0 %955
        %957 = vrot.lane.b32.xlu0 %v821, 64
        %v958 = vpop.permute.xlu0 %957
        %959 = vrot.lane.b32.xlu0 %v824, 64
        %v960 = vpop.permute.xlu0 %959
        %961 = vrot.lane.b32.xlu0 %v827, 64
        %v962 = vpop.permute.xlu0 %961
        %963 = vrot.lane.b32.xlu0 %v830, 64
        %v964 = vpop.permute.xlu0 %963
        %965 = vrot.lane.b32.xlu0 %v833, 64
        %v966 = vpop.permute.xlu0 %965
        %967 = vrot.lane.b32.xlu0 %v836, 64
        %v968 = vpop.permute.xlu0 %967
        %969 = vrot.lane.b32.xlu0 %v839, 64
        %v970 = vpop.permute.xlu0 %969
        %979 = vrot.lane.b32.xlu0 %v818, 32
        %v980 = vpop.permute.xlu0 %979
        %981 = vrot.lane.b32.xlu0 %v821, 32
        %v982 = vpop.permute.xlu0 %981
        %983 = vrot.lane.b32.xlu0 %v824, 32
        %v984 = vpop.permute.xlu0 %983
        %985 = vrot.lane.b32.xlu0 %v827, 32
        %v986 = vpop.permute.xlu0 %985
        %987 = vrot.lane.b32.xlu0 %v830, 32
        %v988 = vpop.permute.xlu0 %987
        %989 = vrot.lane.b32.xlu0 %v833, 32
        %v990 = vpop.permute.xlu0 %989
        %991 = vrot.lane.b32.xlu0 %v836, 32
        %v992 = vpop.permute.xlu0 %991
        %993 = vrot.lane.b32.xlu0 %v839, 32
        %v994 = vpop.permute.xlu0 %993
        %v1003 = vrot.slane %v956, 4
        %vm1004 = vcmask 1047556
        %v1005 = vsel %vm1004, %v1003, %v818
        %v1006 = vrot.slane %v818, 4
        %v1007 = vsel %vm1004, %v956, %v1006
        %v1009 = vunpack.c.l.s4 1983009808
        %v1010 = vunpack.c.0.s8 %v1009
        %v1011 = vperm.slane %v1005, %v1010
        %v1013 = vunpack.c.l.s4 1983009808
        %v1014 = vunpack.c.0.s8 %v1013
        %v1015 = vperm.slane %v1007, %v1014
        %v1016 = vrot.slane %v980, 4
        %v1017 = vsel %vm1004, %v1016, %v932
        %v1018 = vrot.slane %v932, 4
        %v1019 = vsel %vm1004, %v980, %v1018
        %v1021 = vunpack.c.l.s4 1983009808
        %v1022 = vunpack.c.0.s8 %v1021
        %v1023 = vperm.slane %v1017, %v1022
        %v1025 = vunpack.c.l.s4 1983009808
        %v1026 = vunpack.c.0.s8 %v1025
        %v1027 = vperm.slane %v1019, %v1026
        %v1028 = vrot.slane %v1023, 4
        %v1029 = vsel %vm1004, %v1028, %v1011
        %v1030 = vrot.slane %v1011, 4
        %v1031 = vsel %vm1004, %v1023, %v1030
        %v1033 = vunpack.c.l.s4 1934713408
        %v1034 = vunpack.c.0.s8 %v1033
        %v1035 = vperm.slane %v1029, %v1034
        %v1037 = vunpack.c.l.s4 1934713408
        %v1038 = vunpack.c.0.s8 %v1037
        %v1039 = vperm.slane %v1031, %v1038
        %v1040 = vrot.slane %v1027, 4
        %v1041 = vsel %vm1004, %v1040, %v1015
        %v1042 = vrot.slane %v1015, 4
        %v1043 = vsel %vm1004, %v1027, %v1042
        %v1045 = vunpack.c.l.s4 1934713408
        %v1046 = vunpack.c.0.s8 %v1045
        %v1047 = vperm.slane %v1041, %v1046
        %v1049 = vunpack.c.l.s4 1934713408
        %v1050 = vunpack.c.0.s8 %v1049
        %v1051 = vperm.slane %v1043, %v1050
        %v1052 = vrot.slane %v1035, 4
        %v1053 = vsel %vm1004, 0.0, %v1052
        %v1054 = vrot.slane %v1039, 4
        %v1055 = vsel %vm1004, 0.0, %v1054
        %v1056 = vrot.slane %v1047, 4
        %v1057 = vsel %vm1004, 0.0, %v1056
        %v1058 = vrot.slane %v1051, 4
        %v1059 = vsel %vm1004, 0.0, %v1058
        %v1060 = vrot.slane %v958, 4
        %v1061 = vsel %vm1004, %v1060, %v821
        %v1062 = vrot.slane %v821, 4
        %v1063 = vsel %vm1004, %v958, %v1062
        %v1065 = vunpack.c.l.s4 1983009808
        %v1066 = vunpack.c.0.s8 %v1065
        %v1067 = vperm.slane %v1061, %v1066
        %v1069 = vunpack.c.l.s4 1983009808
        %v1070 = vunpack.c.0.s8 %v1069
        %v1071 = vperm.slane %v1063, %v1070
        %v1072 = vrot.slane %v982, 4
        %v1073 = vsel %vm1004, %v1072, %v934
        %v1074 = vrot.slane %v934, 4
        %v1075 = vsel %vm1004, %v982, %v1074
        %v1077 = vunpack.c.l.s4 1983009808
        %v1078 = vunpack.c.0.s8 %v1077
        %v1079 = vperm.slane %v1073, %v1078
        %v1081 = vunpack.c.l.s4 1983009808
        %v1082 = vunpack.c.0.s8 %v1081
        %v1083 = vperm.slane %v1075, %v1082
        %v1084 = vrot.slane %v1079, 4
        %v1085 = vsel %vm1004, %v1084, %v1067
        %v1086 = vrot.slane %v1067, 4
        %v1087 = vsel %vm1004, %v1079, %v1086
        %v1089 = vunpack.c.l.s4 1934713408
        %v1090 = vunpack.c.0.s8 %v1089
        %v1091 = vperm.slane %v1085, %v1090
        %v1093 = vunpack.c.l.s4 1934713408
        %v1094 = vunpack.c.0.s8 %v1093
        %v1095 = vperm.slane %v1087, %v1094
        %v1096 = vrot.slane %v1083, 4
        %v1097 = vsel %vm1004, %v1096, %v1071
        %v1098 = vrot.slane %v1071, 4
        %v1099 = vsel %vm1004, %v1083, %v1098
        %v1101 = vunpack.c.l.s4 1934713408
        %v1102 = vunpack.c.0.s8 %v1101
        %v1103 = vperm.slane %v1097, %v1102
        %v1105 = vunpack.c.l.s4 1934713408
        %v1106 = vunpack.c.0.s8 %v1105
        %v1107 = vperm.slane %v1099, %v1106
        %v1108 = vrot.slane %v1091, 4
        %v1109 = vsel %vm1004, 0.0, %v1108
        %v1110 = vrot.slane %v1095, 4
        %v1111 = vsel %vm1004, 0.0, %v1110
        %v1112 = vrot.slane %v1103, 4
        %v1113 = vsel %vm1004, 0.0, %v1112
        %v1114 = vrot.slane %v1107, 4
        %v1115 = vsel %vm1004, 0.0, %v1114
        %v1116 = vrot.slane %v960, 4
        %v1117 = vsel %vm1004, %v1116, %v824
        %v1118 = vrot.slane %v824, 4
        %v1119 = vsel %vm1004, %v960, %v1118
        %v1121 = vunpack.c.l.s4 1983009808
        %v1122 = vunpack.c.0.s8 %v1121
        %v1123 = vperm.slane %v1117, %v1122
        %v1125 = vunpack.c.l.s4 1983009808
        %v1126 = vunpack.c.0.s8 %v1125
        %v1127 = vperm.slane %v1119, %v1126
        %v1128 = vrot.slane %v984, 4
        %v1129 = vsel %vm1004, %v1128, %v936
        %v1130 = vrot.slane %v936, 4
        %v1131 = vsel %vm1004, %v984, %v1130
        %v1133 = vunpack.c.l.s4 1983009808
        %v1134 = vunpack.c.0.s8 %v1133
        %v1135 = vperm.slane %v1129, %v1134
        %v1137 = vunpack.c.l.s4 1983009808
        %v1138 = vunpack.c.0.s8 %v1137
        %v1139 = vperm.slane %v1131, %v1138
        %v1140 = vrot.slane %v1135, 4
        %v1141 = vsel %vm1004, %v1140, %v1123
        %v1142 = vrot.slane %v1123, 4
        %v1143 = vsel %vm1004, %v1135, %v1142
        %v1145 = vunpack.c.l.s4 1934713408
        %v1146 = vunpack.c.0.s8 %v1145
        %v1147 = vperm.slane %v1141, %v1146
        %v1149 = vunpack.c.l.s4 1934713408
        %v1150 = vunpack.c.0.s8 %v1149
        %v1151 = vperm.slane %v1143, %v1150
        %v1152 = vrot.slane %v1139, 4
        %v1153 = vsel %vm1004, %v1152, %v1127
        %v1154 = vrot.slane %v1127, 4
        %v1155 = vsel %vm1004, %v1139, %v1154
        %v1157 = vunpack.c.l.s4 1934713408
        %v1158 = vunpack.c.0.s8 %v1157
        %v1159 = vperm.slane %v1153, %v1158
        %v1161 = vunpack.c.l.s4 1934713408
        %v1162 = vunpack.c.0.s8 %v1161
        %v1163 = vperm.slane %v1155, %v1162
        %v1164 = vrot.slane %v1147, 4
        %v1165 = vsel %vm1004, 0.0, %v1164
        %v1166 = vrot.slane %v1151, 4
        %v1167 = vsel %vm1004, 0.0, %v1166
        %v1168 = vrot.slane %v1159, 4
        %v1169 = vsel %vm1004, 0.0, %v1168
        %v1170 = vrot.slane %v1163, 4
        %v1171 = vsel %vm1004, 0.0, %v1170
        %v1172 = vrot.slane %v962, 4
        %v1173 = vsel %vm1004, %v1172, %v827
        %v1174 = vrot.slane %v827, 4
        %v1175 = vsel %vm1004, %v962, %v1174
        %v1177 = vunpack.c.l.s4 1983009808
        %v1178 = vunpack.c.0.s8 %v1177
        %v1179 = vperm.slane %v1173, %v1178
        %v1181 = vunpack.c.l.s4 1983009808
        %v1182 = vunpack.c.0.s8 %v1181
        %v1183 = vperm.slane %v1175, %v1182
        %v1184 = vrot.slane %v986, 4
        %v1185 = vsel %vm1004, %v1184, %v938
        %v1186 = vrot.slane %v938, 4
        %v1187 = vsel %vm1004, %v986, %v1186
        %v1189 = vunpack.c.l.s4 1983009808
        %v1190 = vunpack.c.0.s8 %v1189
        %v1191 = vperm.slane %v1185, %v1190
        %v1193 = vunpack.c.l.s4 1983009808
        %v1194 = vunpack.c.0.s8 %v1193
        %v1195 = vperm.slane %v1187, %v1194
        %v1196 = vrot.slane %v1191, 4
        %v1197 = vsel %vm1004, %v1196, %v1179
        %v1198 = vrot.slane %v1179, 4
        %v1199 = vsel %vm1004, %v1191, %v1198
        %v1201 = vunpack.c.l.s4 1934713408
        %v1202 = vunpack.c.0.s8 %v1201
        %v1203 = vperm.slane %v1197, %v1202
        %v1205 = vunpack.c.l.s4 1934713408
        %v1206 = vunpack.c.0.s8 %v1205
        %v1207 = vperm.slane %v1199, %v1206
        %v1208 = vrot.slane %v1195, 4
        %v1209 = vsel %vm1004, %v1208, %v1183
        %v1210 = vrot.slane %v1183, 4
        %v1211 = vsel %vm1004, %v1195, %v1210
        %v1213 = vunpack.c.l.s4 1934713408
        %v1214 = vunpack.c.0.s8 %v1213
        %v1215 = vperm.slane %v1209, %v1214
        %v1217 = vunpack.c.l.s4 1934713408
        %v1218 = vunpack.c.0.s8 %v1217
        %v1219 = vperm.slane %v1211, %v1218
        %v1220 = vrot.slane %v1203, 4
        %v1221 = vsel %vm1004, 0.0, %v1220
        %v1222 = vrot.slane %v1207, 4
        %v1223 = vsel %vm1004, 0.0, %v1222
        %v1224 = vrot.slane %v1215, 4
        %v1225 = vsel %vm1004, 0.0, %v1224
        %v1226 = vrot.slane %v1219, 4
        %v1227 = vsel %vm1004, 0.0, %v1226
        %v1228 = vrot.slane %v964, 4
        %v1229 = vsel %vm1004, %v1228, %v830
        %v1230 = vrot.slane %v830, 4
        %v1231 = vsel %vm1004, %v964, %v1230
        %v1233 = vunpack.c.l.s4 1983009808
        %v1234 = vunpack.c.0.s8 %v1233
        %v1235 = vperm.slane %v1229, %v1234
        %v1237 = vunpack.c.l.s4 1983009808
        %v1238 = vunpack.c.0.s8 %v1237
        %v1239 = vperm.slane %v1231, %v1238
        %v1240 = vrot.slane %v988, 4
        %v1241 = vsel %vm1004, %v1240, %v940
        %v1242 = vrot.slane %v940, 4
        %v1243 = vsel %vm1004, %v988, %v1242
        %v1245 = vunpack.c.l.s4 1983009808
        %v1246 = vunpack.c.0.s8 %v1245
        %v1247 = vperm.slane %v1241, %v1246
        %v1249 = vunpack.c.l.s4 1983009808
        %v1250 = vunpack.c.0.s8 %v1249
        %v1251 = vperm.slane %v1243, %v1250
        %v1252 = vrot.slane %v1247, 4
        %v1253 = vsel %vm1004, %v1252, %v1235
        %v1254 = vrot.slane %v1235, 4
        %v1255 = vsel %vm1004, %v1247, %v1254
        %v1257 = vunpack.c.l.s4 1934713408
        %v1258 = vunpack.c.0.s8 %v1257
        %v1259 = vperm.slane %v1253, %v1258
        %v1261 = vunpack.c.l.s4 1934713408
        %v1262 = vunpack.c.0.s8 %v1261
        %v1263 = vperm.slane %v1255, %v1262
        %v1264 = vrot.slane %v1251, 4
        %v1265 = vsel %vm1004, %v1264, %v1239
        %v1266 = vrot.slane %v1239, 4
        %v1267 = vsel %vm1004, %v1251, %v1266
        %v1269 = vunpack.c.l.s4 1934713408
        %v1270 = vunpack.c.0.s8 %v1269
        %v1271 = vperm.slane %v1265, %v1270
        %v1273 = vunpack.c.l.s4 1934713408
        %v1274 = vunpack.c.0.s8 %v1273
        %v1275 = vperm.slane %v1267, %v1274
        %v1276 = vrot.slane %v1259, 4
        %v1277 = vsel %vm1004, 0.0, %v1276
        %v1278 = vrot.slane %v1263, 4
        %v1279 = vsel %vm1004, 0.0, %v1278
        %v1280 = vrot.slane %v1271, 4
        %v1281 = vsel %vm1004, 0.0, %v1280
        %v1282 = vrot.slane %v1275, 4
        %v1283 = vsel %vm1004, 0.0, %v1282
        %v1284 = vrot.slane %v966, 4
        %v1285 = vsel %vm1004, %v1284, %v833
        %v1286 = vrot.slane %v833, 4
        %v1287 = vsel %vm1004, %v966, %v1286
        %v1289 = vunpack.c.l.s4 1983009808
        %v1290 = vunpack.c.0.s8 %v1289
        %v1291 = vperm.slane %v1285, %v1290
        %v1293 = vunpack.c.l.s4 1983009808
        %v1294 = vunpack.c.0.s8 %v1293
        %v1295 = vperm.slane %v1287, %v1294
        %v1296 = vrot.slane %v990, 4
        %v1297 = vsel %vm1004, %v1296, %v942
        %v1298 = vrot.slane %v942, 4
        %v1299 = vsel %vm1004, %v990, %v1298
        %v1301 = vunpack.c.l.s4 1983009808
        %v1302 = vunpack.c.0.s8 %v1301
        %v1303 = vperm.slane %v1297, %v1302
        %v1305 = vunpack.c.l.s4 1983009808
        %v1306 = vunpack.c.0.s8 %v1305
        %v1307 = vperm.slane %v1299, %v1306
        %v1308 = vrot.slane %v1303, 4
        %v1309 = vsel %vm1004, %v1308, %v1291
        %v1310 = vrot.slane %v1291, 4
        %v1311 = vsel %vm1004, %v1303, %v1310
        %v1313 = vunpack.c.l.s4 1934713408
        %v1314 = vunpack.c.0.s8 %v1313
        %v1315 = vperm.slane %v1309, %v1314
        %v1317 = vunpack.c.l.s4 1934713408
        %v1318 = vunpack.c.0.s8 %v1317
        %v1319 = vperm.slane %v1311, %v1318
        %v1320 = vrot.slane %v1307, 4
        %v1321 = vsel %vm1004, %v1320, %v1295
        %v1322 = vrot.slane %v1295, 4
        %v1323 = vsel %vm1004, %v1307, %v1322
        %v1325 = vunpack.c.l.s4 1934713408
        %v1326 = vunpack.c.0.s8 %v1325
        %v1327 = vperm.slane %v1321, %v1326
        %v1329 = vunpack.c.l.s4 1934713408
        %v1330 = vunpack.c.0.s8 %v1329
        %v1331 = vperm.slane %v1323, %v1330
        %v1332 = vrot.slane %v1315, 4
        %v1333 = vsel %vm1004, 0.0, %v1332
        %v1334 = vrot.slane %v1319, 4
        %v1335 = vsel %vm1004, 0.0, %v1334
        %v1336 = vrot.slane %v1327, 4
        %v1337 = vsel %vm1004, 0.0, %v1336
        %v1338 = vrot.slane %v1331, 4
        %v1339 = vsel %vm1004, 0.0, %v1338
        %v1340 = vrot.slane %v968, 4
        %v1341 = vsel %vm1004, %v1340, %v836
        %v1342 = vrot.slane %v836, 4
        %v1343 = vsel %vm1004, %v968, %v1342
        %v1345 = vunpack.c.l.s4 1983009808
        %v1346 = vunpack.c.0.s8 %v1345
        %v1347 = vperm.slane %v1341, %v1346
        %v1349 = vunpack.c.l.s4 1983009808
        %v1350 = vunpack.c.0.s8 %v1349
        %v1351 = vperm.slane %v1343, %v1350
        %v1352 = vrot.slane %v992, 4
        %v1353 = vsel %vm1004, %v1352, %v944
        %v1354 = vrot.slane %v944, 4
        %v1355 = vsel %vm1004, %v992, %v1354
        %v1357 = vunpack.c.l.s4 1983009808
        %v1358 = vunpack.c.0.s8 %v1357
        %v1359 = vperm.slane %v1353, %v1358
        %v1361 = vunpack.c.l.s4 1983009808
        %v1362 = vunpack.c.0.s8 %v1361
        %v1363 = vperm.slane %v1355, %v1362
        %v1364 = vrot.slane %v1359, 4
        %v1365 = vsel %vm1004, %v1364, %v1347
        %v1366 = vrot.slane %v1347, 4
        %v1367 = vsel %vm1004, %v1359, %v1366
        %v1369 = vunpack.c.l.s4 1934713408
        %v1370 = vunpack.c.0.s8 %v1369
        %v1371 = vperm.slane %v1365, %v1370
        %v1373 = vunpack.c.l.s4 1934713408
        %v1374 = vunpack.c.0.s8 %v1373
        %v1375 = vperm.slane %v1367, %v1374
        %v1376 = vrot.slane %v1363, 4
        %v1377 = vsel %vm1004, %v1376, %v1351
        %v1378 = vrot.slane %v1351, 4
        %v1379 = vsel %vm1004, %v1363, %v1378
        %v1381 = vunpack.c.l.s4 1934713408
        %v1382 = vunpack.c.0.s8 %v1381
        %v1383 = vperm.slane %v1377, %v1382
        %v1385 = vunpack.c.l.s4 1934713408
        %v1386 = vunpack.c.0.s8 %v1385
        %v1387 = vperm.slane %v1379, %v1386
        %v1388 = vrot.slane %v1371, 4
        %v1389 = vsel %vm1004, 0.0, %v1388
        %v1390 = vrot.slane %v1375, 4
        %v1391 = vsel %vm1004, 0.0, %v1390
        %v1392 = vrot.slane %v1383, 4
        %v1393 = vsel %vm1004, 0.0, %v1392
        %v1394 = vrot.slane %v1387, 4
        %v1395 = vsel %vm1004, 0.0, %v1394
        %v1396 = vrot.slane %v970, 4
        %v1397 = vsel %vm1004, %v1396, %v839
        %v1398 = vrot.slane %v839, 4
        %v1399 = vsel %vm1004, %v970, %v1398
        %v1401 = vunpack.c.l.s4 1983009808
        %v1402 = vunpack.c.0.s8 %v1401
        %v1403 = vperm.slane %v1397, %v1402
        %v1405 = vunpack.c.l.s4 1983009808
        %v1406 = vunpack.c.0.s8 %v1405
        %v1407 = vperm.slane %v1399, %v1406
        %v1408 = vrot.slane %v994, 4
        %v1409 = vsel %vm1004, %v1408, %v946
        %v1410 = vrot.slane %v946, 4
        %v1411 = vsel %vm1004, %v994, %v1410
        %v1413 = vunpack.c.l.s4 1983009808
        %v1414 = vunpack.c.0.s8 %v1413
        %v1415 = vperm.slane %v1409, %v1414
        %v1417 = vunpack.c.l.s4 1983009808
        %v1418 = vunpack.c.0.s8 %v1417
        %v1419 = vperm.slane %v1411, %v1418
        %v1420 = vrot.slane %v1415, 4
        %v1421 = vsel %vm1004, %v1420, %v1403
        %v1422 = vrot.slane %v1403, 4
        %v1423 = vsel %vm1004, %v1415, %v1422
        %v1425 = vunpack.c.l.s4 1934713408
        %v1426 = vunpack.c.0.s8 %v1425
        %v1427 = vperm.slane %v1421, %v1426
        %v1429 = vunpack.c.l.s4 1934713408
        %v1430 = vunpack.c.0.s8 %v1429
        %v1431 = vperm.slane %v1423, %v1430
        %v1432 = vrot.slane %v1419, 4
        %v1433 = vsel %vm1004, %v1432, %v1407
        %v1434 = vrot.slane %v1407, 4
        %v1435 = vsel %vm1004, %v1419, %v1434
        %v1437 = vunpack.c.l.s4 1934713408
        %v1438 = vunpack.c.0.s8 %v1437
        %v1439 = vperm.slane %v1433, %v1438
        %v1441 = vunpack.c.l.s4 1934713408
        %v1442 = vunpack.c.0.s8 %v1441
        %v1443 = vperm.slane %v1435, %v1442
        %v1444 = vrot.slane %v1427, 4
        %v1445 = vsel %vm1004, 0.0, %v1444
        %v1446 = vrot.slane %v1431, 4
        %v1447 = vsel %vm1004, 0.0, %v1446
        %v1448 = vrot.slane %v1439, 4
        %v1449 = vsel %vm1004, 0.0, %v1448
        %v1450 = vrot.slane %v1443, 4
        %v1451 = vsel %vm1004, 0.0, %v1450
        %v1452 = vsel %vm1004, %v1054, %v1035
        %v1454 = vunpack.c.l.s4 1983009808
        %v1455 = vunpack.c.0.s8 %v1454
        %v1456 = vperm.slane %v1452, %v1455
        %v1457 = vrot.slane %v1055, 4
        %v1458 = vsel %vm1004, %v1457, %v1053
        %v1460 = vunpack.c.l.s4 1983009808
        %v1461 = vunpack.c.0.s8 %v1460
        %v1462 = vperm.slane %v1458, %v1461
        %v1463 = vsel %vm1004, %v1058, %v1047
        %v1465 = vunpack.c.l.s4 1983009808
        %v1466 = vunpack.c.0.s8 %v1465
        %v1467 = vperm.slane %v1463, %v1466
        %v1468 = vrot.slane %v1059, 4
        %v1469 = vsel %vm1004, %v1468, %v1057
        %v1471 = vunpack.c.l.s4 1983009808
        %v1472 = vunpack.c.0.s8 %v1471
        %v1473 = vperm.slane %v1469, %v1472
        %v1474 = vrot.slane %v1462, 4
        %v1475 = vsel %vm1004, %v1474, %v1456
        %v1476 = vrot.slane %v1456, 4
        %v1477 = vsel %vm1004, %v1462, %v1476
        %v1479 = vunpack.c.l.s4 1934713408
        %v1480 = vunpack.c.0.s8 %v1479
        %v1481 = vperm.slane %v1475, %v1480
        %v1483 = vunpack.c.l.s4 1934713408
        %v1484 = vunpack.c.0.s8 %v1483
        %v1485 = vperm.slane %v1477, %v1484
        %v1486 = vrot.slane %v1473, 4
        %v1487 = vsel %vm1004, %v1486, %v1467
        %v1488 = vrot.slane %v1467, 4
        %v1489 = vsel %vm1004, %v1473, %v1488
        %v1491 = vunpack.c.l.s4 1934713408
        %v1492 = vunpack.c.0.s8 %v1491
        %v1493 = vperm.slane %v1487, %v1492
        %v1495 = vunpack.c.l.s4 1934713408
        %v1496 = vunpack.c.0.s8 %v1495
        %v1497 = vperm.slane %v1489, %v1496
        %v1498 = vrot.slane %v1493, 4
        %v1499 = vsel %vm1004, %v1498, %v1481
        %v1500 = vrot.slane %v1481, 4
        %v1501 = vsel %vm1004, %v1493, %v1500
        %v1502 = vrot.slane %v1497, 4
        %v1503 = vsel %vm1004, %v1502, %v1485
        %v1504 = vrot.slane %v1485, 4
        %v1505 = vsel %vm1004, %v1497, %v1504
        %v1506 = vsel %vm1004, %v1110, %v1091
        %v1508 = vunpack.c.l.s4 1983009808
        %v1509 = vunpack.c.0.s8 %v1508
        %v1510 = vperm.slane %v1506, %v1509
        %v1511 = vrot.slane %v1111, 4
        %v1512 = vsel %vm1004, %v1511, %v1109
        %v1514 = vunpack.c.l.s4 1983009808
        %v1515 = vunpack.c.0.s8 %v1514
        %v1516 = vperm.slane %v1512, %v1515
        %v1517 = vsel %vm1004, %v1114, %v1103
        %v1519 = vunpack.c.l.s4 1983009808
        %v1520 = vunpack.c.0.s8 %v1519
        %v1521 = vperm.slane %v1517, %v1520
        %v1522 = vrot.slane %v1115, 4
        %v1523 = vsel %vm1004, %v1522, %v1113
        %v1525 = vunpack.c.l.s4 1983009808
        %v1526 = vunpack.c.0.s8 %v1525
        %v1527 = vperm.slane %v1523, %v1526
        %v1528 = vrot.slane %v1516, 4
        %v1529 = vsel %vm1004, %v1528, %v1510
        %v1530 = vrot.slane %v1510, 4
        %v1531 = vsel %vm1004, %v1516, %v1530
        %v1533 = vunpack.c.l.s4 1934713408
        %v1534 = vunpack.c.0.s8 %v1533
        %v1535 = vperm.slane %v1529, %v1534
        %v1537 = vunpack.c.l.s4 1934713408
        %v1538 = vunpack.c.0.s8 %v1537
        %v1539 = vperm.slane %v1531, %v1538
        %v1540 = vrot.slane %v1527, 4
        %v1541 = vsel %vm1004, %v1540, %v1521
        %v1542 = vrot.slane %v1521, 4
        %v1543 = vsel %vm1004, %v1527, %v1542
        %v1545 = vunpack.c.l.s4 1934713408
        %v1546 = vunpack.c.0.s8 %v1545
        %v1547 = vperm.slane %v1541, %v1546
        %v1549 = vunpack.c.l.s4 1934713408
        %v1550 = vunpack.c.0.s8 %v1549
        %v1551 = vperm.slane %v1543, %v1550
        %v1552 = vrot.slane %v1547, 4
        %v1553 = vsel %vm1004, %v1552, %v1535
        %v1554 = vrot.slane %v1535, 4
        %v1555 = vsel %vm1004, %v1547, %v1554
        %v1556 = vrot.slane %v1551, 4
        %v1557 = vsel %vm1004, %v1556, %v1539
        %v1558 = vrot.slane %v1539, 4
        %v1559 = vsel %vm1004, %v1551, %v1558
        %v1560 = vsel %vm1004, %v1166, %v1147
        %v1562 = vunpack.c.l.s4 1983009808
        %v1563 = vunpack.c.0.s8 %v1562
        %v1564 = vperm.slane %v1560, %v1563
        %v1565 = vrot.slane %v1167, 4
        %v1566 = vsel %vm1004, %v1565, %v1165
        %v1568 = vunpack.c.l.s4 1983009808
        %v1569 = vunpack.c.0.s8 %v1568
        %v1570 = vperm.slane %v1566, %v1569
        %v1571 = vsel %vm1004, %v1170, %v1159
        %v1573 = vunpack.c.l.s4 1983009808
        %v1574 = vunpack.c.0.s8 %v1573
        %v1575 = vperm.slane %v1571, %v1574
        %v1576 = vrot.slane %v1171, 4
        %v1577 = vsel %vm1004, %v1576, %v1169
        %v1579 = vunpack.c.l.s4 1983009808
        %v1580 = vunpack.c.0.s8 %v1579
        %v1581 = vperm.slane %v1577, %v1580
        %v1582 = vrot.slane %v1570, 4
        %v1583 = vsel %vm1004, %v1582, %v1564
        %v1584 = vrot.slane %v1564, 4
        %v1585 = vsel %vm1004, %v1570, %v1584
        %v1587 = vunpack.c.l.s4 1934713408
        %v1588 = vunpack.c.0.s8 %v1587
        %v1589 = vperm.slane %v1583, %v1588
        %v1591 = vunpack.c.l.s4 1934713408
        %v1592 = vunpack.c.0.s8 %v1591
        %v1593 = vperm.slane %v1585, %v1592
        %v1594 = vrot.slane %v1581, 4
        %v1595 = vsel %vm1004, %v1594, %v1575
        %v1596 = vrot.slane %v1575, 4
        %v1597 = vsel %vm1004, %v1581, %v1596
        %v1599 = vunpack.c.l.s4 1934713408
        %v1600 = vunpack.c.0.s8 %v1599
        %v1601 = vperm.slane %v1595, %v1600
        %v1603 = vunpack.c.l.s4 1934713408
        %v1604 = vunpack.c.0.s8 %v1603
        %v1605 = vperm.slane %v1597, %v1604
        %v1606 = vrot.slane %v1601, 4
        %v1607 = vsel %vm1004, %v1606, %v1589
        %v1608 = vrot.slane %v1589, 4
        %v1609 = vsel %vm1004, %v1601, %v1608
        %v1610 = vrot.slane %v1605, 4
        %v1611 = vsel %vm1004, %v1610, %v1593
        %v1612 = vrot.slane %v1593, 4
        %v1613 = vsel %vm1004, %v1605, %v1612
        %v1614 = vsel %vm1004, %v1222, %v1203
        %v1616 = vunpack.c.l.s4 1983009808
        %v1617 = vunpack.c.0.s8 %v1616
        %v1618 = vperm.slane %v1614, %v1617
        %v1619 = vrot.slane %v1223, 4
        %v1620 = vsel %vm1004, %v1619, %v1221
        %v1622 = vunpack.c.l.s4 1983009808
        %v1623 = vunpack.c.0.s8 %v1622
        %v1624 = vperm.slane %v1620, %v1623
        %v1625 = vsel %vm1004, %v1226, %v1215
        %v1627 = vunpack.c.l.s4 1983009808
        %v1628 = vunpack.c.0.s8 %v1627
        %v1629 = vperm.slane %v1625, %v1628
        %v1630 = vrot.slane %v1227, 4
        %v1631 = vsel %vm1004, %v1630, %v1225
        %v1633 = vunpack.c.l.s4 1983009808
        %v1634 = vunpack.c.0.s8 %v1633
        %v1635 = vperm.slane %v1631, %v1634
        %v1636 = vrot.slane %v1624, 4
        %v1637 = vsel %vm1004, %v1636, %v1618
        %v1638 = vrot.slane %v1618, 4
        %v1639 = vsel %vm1004, %v1624, %v1638
        %v1641 = vunpack.c.l.s4 1934713408
        %v1642 = vunpack.c.0.s8 %v1641
        %v1643 = vperm.slane %v1637, %v1642
        %v1645 = vunpack.c.l.s4 1934713408
        %v1646 = vunpack.c.0.s8 %v1645
        %v1647 = vperm.slane %v1639, %v1646
        %v1648 = vrot.slane %v1635, 4
        %v1649 = vsel %vm1004, %v1648, %v1629
        %v1650 = vrot.slane %v1629, 4
        %v1651 = vsel %vm1004, %v1635, %v1650
        %v1653 = vunpack.c.l.s4 1934713408
        %v1654 = vunpack.c.0.s8 %v1653
        %v1655 = vperm.slane %v1649, %v1654
        %v1657 = vunpack.c.l.s4 1934713408
        %v1658 = vunpack.c.0.s8 %v1657
        %v1659 = vperm.slane %v1651, %v1658
        %v1660 = vrot.slane %v1655, 4
        %v1661 = vsel %vm1004, %v1660, %v1643
        %v1662 = vrot.slane %v1643, 4
        %v1663 = vsel %vm1004, %v1655, %v1662
        %v1664 = vrot.slane %v1659, 4
        %v1665 = vsel %vm1004, %v1664, %v1647
        %v1666 = vrot.slane %v1647, 4
        %v1667 = vsel %vm1004, %v1659, %v1666
        %v1668 = vsel %vm1004, %v1278, %v1259
        %v1670 = vunpack.c.l.s4 1983009808
        %v1671 = vunpack.c.0.s8 %v1670
        %v1672 = vperm.slane %v1668, %v1671
        %v1673 = vrot.slane %v1279, 4
        %v1674 = vsel %vm1004, %v1673, %v1277
        %v1676 = vunpack.c.l.s4 1983009808
        %v1677 = vunpack.c.0.s8 %v1676
        %v1678 = vperm.slane %v1674, %v1677
        %v1679 = vsel %vm1004, %v1282, %v1271
        %v1681 = vunpack.c.l.s4 1983009808
        %v1682 = vunpack.c.0.s8 %v1681
        %v1683 = vperm.slane %v1679, %v1682
        %v1684 = vrot.slane %v1283, 4
        %v1685 = vsel %vm1004, %v1684, %v1281
        %v1687 = vunpack.c.l.s4 1983009808
        %v1688 = vunpack.c.0.s8 %v1687
        %v1689 = vperm.slane %v1685, %v1688
        %v1690 = vrot.slane %v1678, 4
        %v1691 = vsel %vm1004, %v1690, %v1672
        %v1692 = vrot.slane %v1672, 4
        %v1693 = vsel %vm1004, %v1678, %v1692
        %v1695 = vunpack.c.l.s4 1934713408
        %v1696 = vunpack.c.0.s8 %v1695
        %v1697 = vperm.slane %v1691, %v1696
        %v1699 = vunpack.c.l.s4 1934713408
        %v1700 = vunpack.c.0.s8 %v1699
        %v1701 = vperm.slane %v1693, %v1700
        %v1702 = vrot.slane %v1689, 4
        %v1703 = vsel %vm1004, %v1702, %v1683
        %v1704 = vrot.slane %v1683, 4
        %v1705 = vsel %vm1004, %v1689, %v1704
        %v1707 = vunpack.c.l.s4 1934713408
        %v1708 = vunpack.c.0.s8 %v1707
        %v1709 = vperm.slane %v1703, %v1708
        %v1711 = vunpack.c.l.s4 1934713408
        %v1712 = vunpack.c.0.s8 %v1711
        %v1713 = vperm.slane %v1705, %v1712
        %v1714 = vrot.slane %v1709, 4
        %v1715 = vsel %vm1004, %v1714, %v1697
        %v1716 = vrot.slane %v1697, 4
        %v1717 = vsel %vm1004, %v1709, %v1716
        %v1718 = vrot.slane %v1713, 4
        %v1719 = vsel %vm1004, %v1718, %v1701
        %v1720 = vrot.slane %v1701, 4
        %v1721 = vsel %vm1004, %v1713, %v1720
        %v1722 = vsel %vm1004, %v1334, %v1315
        %v1724 = vunpack.c.l.s4 1983009808
        %v1725 = vunpack.c.0.s8 %v1724
        %v1726 = vperm.slane %v1722, %v1725
        %v1727 = vrot.slane %v1335, 4
        %v1728 = vsel %vm1004, %v1727, %v1333
        %v1730 = vunpack.c.l.s4 1983009808
        %v1731 = vunpack.c.0.s8 %v1730
        %v1732 = vperm.slane %v1728, %v1731
        %v1733 = vsel %vm1004, %v1338, %v1327
        %v1735 = vunpack.c.l.s4 1983009808
        %v1736 = vunpack.c.0.s8 %v1735
        %v1737 = vperm.slane %v1733, %v1736
        %v1738 = vrot.slane %v1339, 4
        %v1739 = vsel %vm1004, %v1738, %v1337
        %v1741 = vunpack.c.l.s4 1983009808
        %v1742 = vunpack.c.0.s8 %v1741
        %v1743 = vperm.slane %v1739, %v1742
        %v1744 = vrot.slane %v1732, 4
        %v1745 = vsel %vm1004, %v1744, %v1726
        %v1746 = vrot.slane %v1726, 4
        %v1747 = vsel %vm1004, %v1732, %v1746
        %v1749 = vunpack.c.l.s4 1934713408
        %v1750 = vunpack.c.0.s8 %v1749
        %v1751 = vperm.slane %v1745, %v1750
        %v1753 = vunpack.c.l.s4 1934713408
        %v1754 = vunpack.c.0.s8 %v1753
        %v1755 = vperm.slane %v1747, %v1754
        %v1756 = vrot.slane %v1743, 4
        %v1757 = vsel %vm1004, %v1756, %v1737
        %v1758 = vrot.slane %v1737, 4
        %v1759 = vsel %vm1004, %v1743, %v1758
        %v1761 = vunpack.c.l.s4 1934713408
        %v1762 = vunpack.c.0.s8 %v1761
        %v1763 = vperm.slane %v1757, %v1762
        %v1765 = vunpack.c.l.s4 1934713408
        %v1766 = vunpack.c.0.s8 %v1765
        %v1767 = vperm.slane %v1759, %v1766
        %v1768 = vrot.slane %v1763, 4
        %v1769 = vsel %vm1004, %v1768, %v1751
        %v1770 = vrot.slane %v1751, 4
        %v1771 = vsel %vm1004, %v1763, %v1770
        %v1772 = vrot.slane %v1767, 4
        %v1773 = vsel %vm1004, %v1772, %v1755
        %v1774 = vrot.slane %v1755, 4
        %v1775 = vsel %vm1004, %v1767, %v1774
        %v1776 = vsel %vm1004, %v1390, %v1371
        %v1778 = vunpack.c.l.s4 1983009808
        %v1779 = vunpack.c.0.s8 %v1778
        %v1780 = vperm.slane %v1776, %v1779
        %v1781 = vrot.slane %v1391, 4
        %v1782 = vsel %vm1004, %v1781, %v1389
        %v1784 = vunpack.c.l.s4 1983009808
        %v1785 = vunpack.c.0.s8 %v1784
        %v1786 = vperm.slane %v1782, %v1785
        %v1787 = vsel %vm1004, %v1394, %v1383
        %v1789 = vunpack.c.l.s4 1983009808
        %v1790 = vunpack.c.0.s8 %v1789
        %v1791 = vperm.slane %v1787, %v1790
        %v1792 = vrot.slane %v1395, 4
        %v1793 = vsel %vm1004, %v1792, %v1393
        %v1795 = vunpack.c.l.s4 1983009808
        %v1796 = vunpack.c.0.s8 %v1795
        %v1797 = vperm.slane %v1793, %v1796
        %v1798 = vrot.slane %v1786, 4
        %v1799 = vsel %vm1004, %v1798, %v1780
        %v1800 = vrot.slane %v1780, 4
        %v1801 = vsel %vm1004, %v1786, %v1800
        %v1803 = vunpack.c.l.s4 1934713408
        %v1804 = vunpack.c.0.s8 %v1803
        %v1805 = vperm.slane %v1799, %v1804
        %v1807 = vunpack.c.l.s4 1934713408
        %v1808 = vunpack.c.0.s8 %v1807
        %v1809 = vperm.slane %v1801, %v1808
        %v1810 = vrot.slane %v1797, 4
        %v1811 = vsel %vm1004, %v1810, %v1791
        %v1812 = vrot.slane %v1791, 4
        %v1813 = vsel %vm1004, %v1797, %v1812
        %v1815 = vunpack.c.l.s4 1934713408
        %v1816 = vunpack.c.0.s8 %v1815
        %v1817 = vperm.slane %v1811, %v1816
        %v1819 = vunpack.c.l.s4 1934713408
        %v1820 = vunpack.c.0.s8 %v1819
        %v1821 = vperm.slane %v1813, %v1820
        %v1822 = vrot.slane %v1817, 4
        %v1823 = vsel %vm1004, %v1822, %v1805
        %v1824 = vrot.slane %v1805, 4
        %v1825 = vsel %vm1004, %v1817, %v1824
        %v1826 = vrot.slane %v1821, 4
        %v1827 = vsel %vm1004, %v1826, %v1809
        %v1828 = vrot.slane %v1809, 4
        %v1829 = vsel %vm1004, %v1821, %v1828
        %v1830 = vsel %vm1004, %v1446, %v1427
        %v1832 = vunpack.c.l.s4 1983009808
        %v1833 = vunpack.c.0.s8 %v1832
        %v1834 = vperm.slane %v1830, %v1833
        %v1835 = vrot.slane %v1447, 4
        %v1836 = vsel %vm1004, %v1835, %v1445
        %v1838 = vunpack.c.l.s4 1983009808
        %v1839 = vunpack.c.0.s8 %v1838
        %v1840 = vperm.slane %v1836, %v1839
        %v1841 = vsel %vm1004, %v1450, %v1439
        %v1843 = vunpack.c.l.s4 1983009808
        %v1844 = vunpack.c.0.s8 %v1843
        %v1845 = vperm.slane %v1841, %v1844
        %v1846 = vrot.slane %v1451, 4
        %v1847 = vsel %vm1004, %v1846, %v1449
        %v1849 = vunpack.c.l.s4 1983009808
        %v1850 = vunpack.c.0.s8 %v1849
        %v1851 = vperm.slane %v1847, %v1850
        %v1852 = vrot.slane %v1840, 4
        %v1853 = vsel %vm1004, %v1852, %v1834
        %v1854 = vrot.slane %v1834, 4
        %v1855 = vsel %vm1004, %v1840, %v1854
        %v1857 = vunpack.c.l.s4 1934713408
        %v1858 = vunpack.c.0.s8 %v1857
        %v1859 = vperm.slane %v1853, %v1858
        %v1861 = vunpack.c.l.s4 1934713408
        %v1862 = vunpack.c.0.s8 %v1861
        %v1863 = vperm.slane %v1855, %v1862
        %v1864 = vrot.slane %v1851, 4
        %v1865 = vsel %vm1004, %v1864, %v1845
        %v1866 = vrot.slane %v1845, 4
        %v1867 = vsel %vm1004, %v1851, %v1866
        %v1869 = vunpack.c.l.s4 1934713408
        %v1870 = vunpack.c.0.s8 %v1869
        %v1871 = vperm.slane %v1865, %v1870
        %v1873 = vunpack.c.l.s4 1934713408
        %v1874 = vunpack.c.0.s8 %v1873
        %v1875 = vperm.slane %v1867, %v1874
        %v1876 = vrot.slane %v1871, 4
        %v1877 = vsel %vm1004, %v1876, %v1859
        %v1878 = vrot.slane %v1859, 4
        %v1879 = vsel %vm1004, %v1871, %v1878
        %v1880 = vrot.slane %v1875, 4
        %v1881 = vsel %vm1004, %v1880, %v1863
        %v1882 = vrot.slane %v1863, 4
        %v1883 = vsel %vm1004, %v1875, %v1882
        %1892 = vrot.lane.b32.xlu0 %v859, 96
        %v1893 = vpop.permute.xlu0 %1892
        %1894 = vrot.lane.b32.xlu0 %v862, 96
        %v1895 = vpop.permute.xlu0 %1894
        %1896 = vrot.lane.b32.xlu0 %v865, 96
        %v1897 = vpop.permute.xlu0 %1896
        %1898 = vrot.lane.b32.xlu0 %v868, 96
        %v1899 = vpop.permute.xlu0 %1898
        %1900 = vrot.lane.b32.xlu0 %v871, 96
        %v1901 = vpop.permute.xlu0 %1900
        %1902 = vrot.lane.b32.xlu0 %v874, 96
        %v1903 = vpop.permute.xlu0 %1902
        %1904 = vrot.lane.b32.xlu0 %v877, 96
        %v1905 = vpop.permute.xlu0 %1904
        %1906 = vrot.lane.b32.xlu0 %v880, 96
        %v1907 = vpop.permute.xlu0 %1906
        %1916 = vrot.lane.b32.xlu0 %v859, 64
        %v1917 = vpop.permute.xlu0 %1916
        %1918 = vrot.lane.b32.xlu0 %v862, 64
        %v1919 = vpop.permute.xlu0 %1918
        %1920 = vrot.lane.b32.xlu0 %v865, 64
        %v1921 = vpop.permute.xlu0 %1920
        %1922 = vrot.lane.b32.xlu0 %v868, 64
        %v1923 = vpop.permute.xlu0 %1922
        %1924 = vrot.lane.b32.xlu0 %v871, 64
        %v1925 = vpop.permute.xlu0 %1924
        %1926 = vrot.lane.b32.xlu0 %v874, 64
        %v1927 = vpop.permute.xlu0 %1926
        %1928 = vrot.lane.b32.xlu0 %v877, 64
        %v1929 = vpop.permute.xlu0 %1928
        %1930 = vrot.lane.b32.xlu0 %v880, 64
        %v1931 = vpop.permute.xlu0 %1930
        %1940 = vrot.lane.b32.xlu0 %v859, 32
        %v1941 = vpop.permute.xlu0 %1940
        %1942 = vrot.lane.b32.xlu0 %v862, 32
        %v1943 = vpop.permute.xlu0 %1942
        %1944 = vrot.lane.b32.xlu0 %v865, 32
        %v1945 = vpop.permute.xlu0 %1944
        %1946 = vrot.lane.b32.xlu0 %v868, 32
        %v1947 = vpop.permute.xlu0 %1946
        %1948 = vrot.lane.b32.xlu0 %v871, 32
        %v1949 = vpop.permute.xlu0 %1948
        %1950 = vrot.lane.b32.xlu0 %v874, 32
        %v1951 = vpop.permute.xlu0 %1950
        %1952 = vrot.lane.b32.xlu0 %v877, 32
        %v1953 = vpop.permute.xlu0 %1952
        %1954 = vrot.lane.b32.xlu0 %v880, 32
        %v1955 = vpop.permute.xlu0 %1954
        %v1964 = vrot.slane %v1917, 4
        %v1965 = vsel %vm1004, %v1964, %v859
        %v1966 = vrot.slane %v859, 4
        %v1967 = vsel %vm1004, %v1917, %v1966
        %v1969 = vunpack.c.l.s4 1983009808
        %v1970 = vunpack.c.0.s8 %v1969
        %v1971 = vperm.slane %v1965, %v1970
        %v1973 = vunpack.c.l.s4 1983009808
        %v1974 = vunpack.c.0.s8 %v1973
        %v1975 = vperm.slane %v1967, %v1974
        %v1976 = vrot.slane %v1941, 4
        %v1977 = vsel %vm1004, %v1976, %v1893
        %v1978 = vrot.slane %v1893, 4
        %v1979 = vsel %vm1004, %v1941, %v1978
        %v1981 = vunpack.c.l.s4 1983009808
        %v1982 = vunpack.c.0.s8 %v1981
        %v1983 = vperm.slane %v1977, %v1982
        %v1985 = vunpack.c.l.s4 1983009808
        %v1986 = vunpack.c.0.s8 %v1985
        %v1987 = vperm.slane %v1979, %v1986
        %v1988 = vrot.slane %v1983, 4
        %v1989 = vsel %vm1004, %v1988, %v1971
        %v1990 = vrot.slane %v1971, 4
        %v1991 = vsel %vm1004, %v1983, %v1990
        %v1993 = vunpack.c.l.s4 1934713408
        %v1994 = vunpack.c.0.s8 %v1993
        %v1995 = vperm.slane %v1989, %v1994
        %v1997 = vunpack.c.l.s4 1934713408
        %v1998 = vunpack.c.0.s8 %v1997
        %v1999 = vperm.slane %v1991, %v1998
        %v2000 = vrot.slane %v1987, 4
        %v2001 = vsel %vm1004, %v2000, %v1975
        %v2002 = vrot.slane %v1975, 4
        %v2003 = vsel %vm1004, %v1987, %v2002
        %v2005 = vunpack.c.l.s4 1934713408
        %v2006 = vunpack.c.0.s8 %v2005
        %v2007 = vperm.slane %v2001, %v2006
        %v2009 = vunpack.c.l.s4 1934713408
        %v2010 = vunpack.c.0.s8 %v2009
        %v2011 = vperm.slane %v2003, %v2010
        %v2012 = vrot.slane %v1995, 4
        %v2013 = vsel %vm1004, 0.0, %v2012
        %v2014 = vrot.slane %v1999, 4
        %v2015 = vsel %vm1004, 0.0, %v2014
        %v2016 = vrot.slane %v2007, 4
        %v2017 = vsel %vm1004, 0.0, %v2016
        %v2018 = vrot.slane %v2011, 4
        %v2019 = vsel %vm1004, 0.0, %v2018
        %v2020 = vrot.slane %v1919, 4
        %v2021 = vsel %vm1004, %v2020, %v862
        %v2022 = vrot.slane %v862, 4
        %v2023 = vsel %vm1004, %v1919, %v2022
        %v2025 = vunpack.c.l.s4 1983009808
        %v2026 = vunpack.c.0.s8 %v2025
        %v2027 = vperm.slane %v2021, %v2026
        %v2029 = vunpack.c.l.s4 1983009808
        %v2030 = vunpack.c.0.s8 %v2029
        %v2031 = vperm.slane %v2023, %v2030
        %v2032 = vrot.slane %v1943, 4
        %v2033 = vsel %vm1004, %v2032, %v1895
        %v2034 = vrot.slane %v1895, 4
        %v2035 = vsel %vm1004, %v1943, %v2034
        %v2037 = vunpack.c.l.s4 1983009808
        %v2038 = vunpack.c.0.s8 %v2037
        %v2039 = vperm.slane %v2033, %v2038
        %v2041 = vunpack.c.l.s4 1983009808
        %v2042 = vunpack.c.0.s8 %v2041
        %v2043 = vperm.slane %v2035, %v2042
        %v2044 = vrot.slane %v2039, 4
        %v2045 = vsel %vm1004, %v2044, %v2027
        %v2046 = vrot.slane %v2027, 4
        %v2047 = vsel %vm1004, %v2039, %v2046
        %v2049 = vunpack.c.l.s4 1934713408
        %v2050 = vunpack.c.0.s8 %v2049
        %v2051 = vperm.slane %v2045, %v2050
        %v2053 = vunpack.c.l.s4 1934713408
        %v2054 = vunpack.c.0.s8 %v2053
        %v2055 = vperm.slane %v2047, %v2054
        %v2056 = vrot.slane %v2043, 4
        %v2057 = vsel %vm1004, %v2056, %v2031
        %v2058 = vrot.slane %v2031, 4
        %v2059 = vsel %vm1004, %v2043, %v2058
        %v2061 = vunpack.c.l.s4 1934713408
        %v2062 = vunpack.c.0.s8 %v2061
        %v2063 = vperm.slane %v2057, %v2062
        %v2065 = vunpack.c.l.s4 1934713408
        %v2066 = vunpack.c.0.s8 %v2065
        %v2067 = vperm.slane %v2059, %v2066
        %v2068 = vrot.slane %v2051, 4
        %v2069 = vsel %vm1004, 0.0, %v2068
        %v2070 = vrot.slane %v2055, 4
        %v2071 = vsel %vm1004, 0.0, %v2070
        %v2072 = vrot.slane %v2063, 4
        %v2073 = vsel %vm1004, 0.0, %v2072
        %v2074 = vrot.slane %v2067, 4
        %v2075 = vsel %vm1004, 0.0, %v2074
        %v2076 = vrot.slane %v1921, 4
        %v2077 = vsel %vm1004, %v2076, %v865
        %v2078 = vrot.slane %v865, 4
        %v2079 = vsel %vm1004, %v1921, %v2078
        %v2081 = vunpack.c.l.s4 1983009808
        %v2082 = vunpack.c.0.s8 %v2081
        %v2083 = vperm.slane %v2077, %v2082
        %v2085 = vunpack.c.l.s4 1983009808
        %v2086 = vunpack.c.0.s8 %v2085
        %v2087 = vperm.slane %v2079, %v2086
        %v2088 = vrot.slane %v1945, 4
        %v2089 = vsel %vm1004, %v2088, %v1897
        %v2090 = vrot.slane %v1897, 4
        %v2091 = vsel %vm1004, %v1945, %v2090
        %v2093 = vunpack.c.l.s4 1983009808
        %v2094 = vunpack.c.0.s8 %v2093
        %v2095 = vperm.slane %v2089, %v2094
        %v2097 = vunpack.c.l.s4 1983009808
        %v2098 = vunpack.c.0.s8 %v2097
        %v2099 = vperm.slane %v2091, %v2098
        %v2100 = vrot.slane %v2095, 4
        %v2101 = vsel %vm1004, %v2100, %v2083
        %v2102 = vrot.slane %v2083, 4
        %v2103 = vsel %vm1004, %v2095, %v2102
        %v2105 = vunpack.c.l.s4 1934713408
        %v2106 = vunpack.c.0.s8 %v2105
        %v2107 = vperm.slane %v2101, %v2106
        %v2109 = vunpack.c.l.s4 1934713408
        %v2110 = vunpack.c.0.s8 %v2109
        %v2111 = vperm.slane %v2103, %v2110
        %v2112 = vrot.slane %v2099, 4
        %v2113 = vsel %vm1004, %v2112, %v2087
        %v2114 = vrot.slane %v2087, 4
        %v2115 = vsel %vm1004, %v2099, %v2114
        %v2117 = vunpack.c.l.s4 1934713408
        %v2118 = vunpack.c.0.s8 %v2117
        %v2119 = vperm.slane %v2113, %v2118
        %v2121 = vunpack.c.l.s4 1934713408
        %v2122 = vunpack.c.0.s8 %v2121
        %v2123 = vperm.slane %v2115, %v2122
        %v2124 = vrot.slane %v2107, 4
        %v2125 = vsel %vm1004, 0.0, %v2124
        %v2126 = vrot.slane %v2111, 4
        %v2127 = vsel %vm1004, 0.0, %v2126
        %v2128 = vrot.slane %v2119, 4
        %v2129 = vsel %vm1004, 0.0, %v2128
        %v2130 = vrot.slane %v2123, 4
        %v2131 = vsel %vm1004, 0.0, %v2130
        %v2132 = vrot.slane %v1923, 4
        %v2133 = vsel %vm1004, %v2132, %v868
        %v2134 = vrot.slane %v868, 4
        %v2135 = vsel %vm1004, %v1923, %v2134
        %v2137 = vunpack.c.l.s4 1983009808
        %v2138 = vunpack.c.0.s8 %v2137
        %v2139 = vperm.slane %v2133, %v2138
        %v2141 = vunpack.c.l.s4 1983009808
        %v2142 = vunpack.c.0.s8 %v2141
        %v2143 = vperm.slane %v2135, %v2142
        %v2144 = vrot.slane %v1947, 4
        %v2145 = vsel %vm1004, %v2144, %v1899
        %v2146 = vrot.slane %v1899, 4
        %v2147 = vsel %vm1004, %v1947, %v2146
        %v2149 = vunpack.c.l.s4 1983009808
        %v2150 = vunpack.c.0.s8 %v2149
        %v2151 = vperm.slane %v2145, %v2150
        %v2153 = vunpack.c.l.s4 1983009808
        %v2154 = vunpack.c.0.s8 %v2153
        %v2155 = vperm.slane %v2147, %v2154
        %v2156 = vrot.slane %v2151, 4
        %v2157 = vsel %vm1004, %v2156, %v2139
        %v2158 = vrot.slane %v2139, 4
        %v2159 = vsel %vm1004, %v2151, %v2158
        %v2161 = vunpack.c.l.s4 1934713408
        %v2162 = vunpack.c.0.s8 %v2161
        %v2163 = vperm.slane %v2157, %v2162
        %v2165 = vunpack.c.l.s4 1934713408
        %v2166 = vunpack.c.0.s8 %v2165
        %v2167 = vperm.slane %v2159, %v2166
        %v2168 = vrot.slane %v2155, 4
        %v2169 = vsel %vm1004, %v2168, %v2143
        %v2170 = vrot.slane %v2143, 4
        %v2171 = vsel %vm1004, %v2155, %v2170
        %v2173 = vunpack.c.l.s4 1934713408
        %v2174 = vunpack.c.0.s8 %v2173
        %v2175 = vperm.slane %v2169, %v2174
        %v2177 = vunpack.c.l.s4 1934713408
        %v2178 = vunpack.c.0.s8 %v2177
        %v2179 = vperm.slane %v2171, %v2178
        %v2180 = vrot.slane %v2163, 4
        %v2181 = vsel %vm1004, 0.0, %v2180
        %v2182 = vrot.slane %v2167, 4
        %v2183 = vsel %vm1004, 0.0, %v2182
        %v2184 = vrot.slane %v2175, 4
        %v2185 = vsel %vm1004, 0.0, %v2184
        %v2186 = vrot.slane %v2179, 4
        %v2187 = vsel %vm1004, 0.0, %v2186
        %v2188 = vrot.slane %v1925, 4
        %v2189 = vsel %vm1004, %v2188, %v871
        %v2190 = vrot.slane %v871, 4
        %v2191 = vsel %vm1004, %v1925, %v2190
        %v2193 = vunpack.c.l.s4 1983009808
        %v2194 = vunpack.c.0.s8 %v2193
        %v2195 = vperm.slane %v2189, %v2194
        %v2197 = vunpack.c.l.s4 1983009808
        %v2198 = vunpack.c.0.s8 %v2197
        %v2199 = vperm.slane %v2191, %v2198
        %v2200 = vrot.slane %v1949, 4
        %v2201 = vsel %vm1004, %v2200, %v1901
        %v2202 = vrot.slane %v1901, 4
        %v2203 = vsel %vm1004, %v1949, %v2202
        %v2205 = vunpack.c.l.s4 1983009808
        %v2206 = vunpack.c.0.s8 %v2205
        %v2207 = vperm.slane %v2201, %v2206
        %v2209 = vunpack.c.l.s4 1983009808
        %v2210 = vunpack.c.0.s8 %v2209
        %v2211 = vperm.slane %v2203, %v2210
        %v2212 = vrot.slane %v2207, 4
        %v2213 = vsel %vm1004, %v2212, %v2195
        %v2214 = vrot.slane %v2195, 4
        %v2215 = vsel %vm1004, %v2207, %v2214
        %v2217 = vunpack.c.l.s4 1934713408
        %v2218 = vunpack.c.0.s8 %v2217
        %v2219 = vperm.slane %v2213, %v2218
        %v2221 = vunpack.c.l.s4 1934713408
        %v2222 = vunpack.c.0.s8 %v2221
        %v2223 = vperm.slane %v2215, %v2222
        %v2224 = vrot.slane %v2211, 4
        %v2225 = vsel %vm1004, %v2224, %v2199
        %v2226 = vrot.slane %v2199, 4
        %v2227 = vsel %vm1004, %v2211, %v2226
        %v2229 = vunpack.c.l.s4 1934713408
        %v2230 = vunpack.c.0.s8 %v2229
        %v2231 = vperm.slane %v2225, %v2230
        %v2233 = vunpack.c.l.s4 1934713408
        %v2234 = vunpack.c.0.s8 %v2233
        %v2235 = vperm.slane %v2227, %v2234
        %v2236 = vrot.slane %v2219, 4
        %v2237 = vsel %vm1004, 0.0, %v2236
        %v2238 = vrot.slane %v2223, 4
        %v2239 = vsel %vm1004, 0.0, %v2238
        %v2240 = vrot.slane %v2231, 4
        %v2241 = vsel %vm1004, 0.0, %v2240
        %v2242 = vrot.slane %v2235, 4
        %v2243 = vsel %vm1004, 0.0, %v2242
        %v2244 = vrot.slane %v1927, 4
        %v2245 = vsel %vm1004, %v2244, %v874
        %v2246 = vrot.slane %v874, 4
        %v2247 = vsel %vm1004, %v1927, %v2246
        %v2249 = vunpack.c.l.s4 1983009808
        %v2250 = vunpack.c.0.s8 %v2249
        %v2251 = vperm.slane %v2245, %v2250
        %v2253 = vunpack.c.l.s4 1983009808
        %v2254 = vunpack.c.0.s8 %v2253
        %v2255 = vperm.slane %v2247, %v2254
        %v2256 = vrot.slane %v1951, 4
        %v2257 = vsel %vm1004, %v2256, %v1903
        %v2258 = vrot.slane %v1903, 4
        %v2259 = vsel %vm1004, %v1951, %v2258
        %v2261 = vunpack.c.l.s4 1983009808
        %v2262 = vunpack.c.0.s8 %v2261
        %v2263 = vperm.slane %v2257, %v2262
        %v2265 = vunpack.c.l.s4 1983009808
        %v2266 = vunpack.c.0.s8 %v2265
        %v2267 = vperm.slane %v2259, %v2266
        %v2268 = vrot.slane %v2263, 4
        %v2269 = vsel %vm1004, %v2268, %v2251
        %v2270 = vrot.slane %v2251, 4
        %v2271 = vsel %vm1004, %v2263, %v2270
        %v2273 = vunpack.c.l.s4 1934713408
        %v2274 = vunpack.c.0.s8 %v2273
        %v2275 = vperm.slane %v2269, %v2274
        %v2277 = vunpack.c.l.s4 1934713408
        %v2278 = vunpack.c.0.s8 %v2277
        %v2279 = vperm.slane %v2271, %v2278
        %v2280 = vrot.slane %v2267, 4
        %v2281 = vsel %vm1004, %v2280, %v2255
        %v2282 = vrot.slane %v2255, 4
        %v2283 = vsel %vm1004, %v2267, %v2282
        %v2285 = vunpack.c.l.s4 1934713408
        %v2286 = vunpack.c.0.s8 %v2285
        %v2287 = vperm.slane %v2281, %v2286
        %v2289 = vunpack.c.l.s4 1934713408
        %v2290 = vunpack.c.0.s8 %v2289
        %v2291 = vperm.slane %v2283, %v2290
        %v2292 = vrot.slane %v2275, 4
        %v2293 = vsel %vm1004, 0.0, %v2292
        %v2294 = vrot.slane %v2279, 4
        %v2295 = vsel %vm1004, 0.0, %v2294
        %v2296 = vrot.slane %v2287, 4
        %v2297 = vsel %vm1004, 0.0, %v2296
        %v2298 = vrot.slane %v2291, 4
        %v2299 = vsel %vm1004, 0.0, %v2298
        %v2300 = vrot.slane %v1929, 4
        %v2301 = vsel %vm1004, %v2300, %v877
        %v2302 = vrot.slane %v877, 4
        %v2303 = vsel %vm1004, %v1929, %v2302
        %v2305 = vunpack.c.l.s4 1983009808
        %v2306 = vunpack.c.0.s8 %v2305
        %v2307 = vperm.slane %v2301, %v2306
        %v2309 = vunpack.c.l.s4 1983009808
        %v2310 = vunpack.c.0.s8 %v2309
        %v2311 = vperm.slane %v2303, %v2310
        %v2312 = vrot.slane %v1953, 4
        %v2313 = vsel %vm1004, %v2312, %v1905
        %v2314 = vrot.slane %v1905, 4
        %v2315 = vsel %vm1004, %v1953, %v2314
        %v2317 = vunpack.c.l.s4 1983009808
        %v2318 = vunpack.c.0.s8 %v2317
        %v2319 = vperm.slane %v2313, %v2318
        %v2321 = vunpack.c.l.s4 1983009808
        %v2322 = vunpack.c.0.s8 %v2321
        %v2323 = vperm.slane %v2315, %v2322
        %v2324 = vrot.slane %v2319, 4
        %v2325 = vsel %vm1004, %v2324, %v2307
        %v2326 = vrot.slane %v2307, 4
        %v2327 = vsel %vm1004, %v2319, %v2326
        %v2329 = vunpack.c.l.s4 1934713408
        %v2330 = vunpack.c.0.s8 %v2329
        %v2331 = vperm.slane %v2325, %v2330
        %v2333 = vunpack.c.l.s4 1934713408
        %v2334 = vunpack.c.0.s8 %v2333
        %v2335 = vperm.slane %v2327, %v2334
        %v2336 = vrot.slane %v2323, 4
        %v2337 = vsel %vm1004, %v2336, %v2311
        %v2338 = vrot.slane %v2311, 4
        %v2339 = vsel %vm1004, %v2323, %v2338
        %v2341 = vunpack.c.l.s4 1934713408
        %v2342 = vunpack.c.0.s8 %v2341
        %v2343 = vperm.slane %v2337, %v2342
        %v2345 = vunpack.c.l.s4 1934713408
        %v2346 = vunpack.c.0.s8 %v2345
        %v2347 = vperm.slane %v2339, %v2346
        %v2348 = vrot.slane %v2331, 4
        %v2349 = vsel %vm1004, 0.0, %v2348
        %v2350 = vrot.slane %v2335, 4
        %v2351 = vsel %vm1004, 0.0, %v2350
        %v2352 = vrot.slane %v2343, 4
        %v2353 = vsel %vm1004, 0.0, %v2352
        %v2354 = vrot.slane %v2347, 4
        %v2355 = vsel %vm1004, 0.0, %v2354
        %v2356 = vrot.slane %v1931, 4
        %v2357 = vsel %vm1004, %v2356, %v880
        %v2358 = vrot.slane %v880, 4
        %v2359 = vsel %vm1004, %v1931, %v2358
        %v2361 = vunpack.c.l.s4 1983009808
        %v2362 = vunpack.c.0.s8 %v2361
        %v2363 = vperm.slane %v2357, %v2362
        %v2365 = vunpack.c.l.s4 1983009808
        %v2366 = vunpack.c.0.s8 %v2365
        %v2367 = vperm.slane %v2359, %v2366
        %v2368 = vrot.slane %v1955, 4
        %v2369 = vsel %vm1004, %v2368, %v1907
        %v2370 = vrot.slane %v1907, 4
        %v2371 = vsel %vm1004, %v1955, %v2370
        %v2373 = vunpack.c.l.s4 1983009808
        %v2374 = vunpack.c.0.s8 %v2373
        %v2375 = vperm.slane %v2369, %v2374
        %v2377 = vunpack.c.l.s4 1983009808
        %v2378 = vunpack.c.0.s8 %v2377
        %v2379 = vperm.slane %v2371, %v2378
        %v2380 = vrot.slane %v2375, 4
        %v2381 = vsel %vm1004, %v2380, %v2363
        %v2382 = vrot.slane %v2363, 4
        %v2383 = vsel %vm1004, %v2375, %v2382
        %v2385 = vunpack.c.l.s4 1934713408
        %v2386 = vunpack.c.0.s8 %v2385
        %v2387 = vperm.slane %v2381, %v2386
        %v2389 = vunpack.c.l.s4 1934713408
        %v2390 = vunpack.c.0.s8 %v2389
        %v2391 = vperm.slane %v2383, %v2390
        %v2392 = vrot.slane %v2379, 4
        %v2393 = vsel %vm1004, %v2392, %v2367
        %v2394 = vrot.slane %v2367, 4
        %v2395 = vsel %vm1004, %v2379, %v2394
        %v2397 = vunpack.c.l.s4 1934713408
        %v2398 = vunpack.c.0.s8 %v2397
        %v2399 = vperm.slane %v2393, %v2398
        %v2401 = vunpack.c.l.s4 1934713408
        %v2402 = vunpack.c.0.s8 %v2401
        %v2403 = vperm.slane %v2395, %v2402
        %v2404 = vrot.slane %v2387, 4
        %v2405 = vsel %vm1004, 0.0, %v2404
        %v2406 = vrot.slane %v2391, 4
        %v2407 = vsel %vm1004, 0.0, %v2406
        %v2408 = vrot.slane %v2399, 4
        %v2409 = vsel %vm1004, 0.0, %v2408
        %v2410 = vrot.slane %v2403, 4
        %v2411 = vsel %vm1004, 0.0, %v2410
        %v2412 = vsel %vm1004, %v2014, %v1995
        %v2414 = vunpack.c.l.s4 1983009808
        %v2415 = vunpack.c.0.s8 %v2414
        %v2416 = vperm.slane %v2412, %v2415
        %v2417 = vrot.slane %v2015, 4
        %v2418 = vsel %vm1004, %v2417, %v2013
        %v2420 = vunpack.c.l.s4 1983009808
        %v2421 = vunpack.c.0.s8 %v2420
        %v2422 = vperm.slane %v2418, %v2421
        %v2423 = vsel %vm1004, %v2018, %v2007
        %v2425 = vunpack.c.l.s4 1983009808
        %v2426 = vunpack.c.0.s8 %v2425
        %v2427 = vperm.slane %v2423, %v2426
        %v2428 = vrot.slane %v2019, 4
        %v2429 = vsel %vm1004, %v2428, %v2017
        %v2431 = vunpack.c.l.s4 1983009808
        %v2432 = vunpack.c.0.s8 %v2431
        %v2433 = vperm.slane %v2429, %v2432
        %v2434 = vrot.slane %v2422, 4
        %v2435 = vsel %vm1004, %v2434, %v2416
        %v2436 = vrot.slane %v2416, 4
        %v2437 = vsel %vm1004, %v2422, %v2436
        %v2439 = vunpack.c.l.s4 1934713408
        %v2440 = vunpack.c.0.s8 %v2439
        %v2441 = vperm.slane %v2435, %v2440
        %v2443 = vunpack.c.l.s4 1934713408
        %v2444 = vunpack.c.0.s8 %v2443
        %v2445 = vperm.slane %v2437, %v2444
        %v2446 = vrot.slane %v2433, 4
        %v2447 = vsel %vm1004, %v2446, %v2427
        %v2448 = vrot.slane %v2427, 4
        %v2449 = vsel %vm1004, %v2433, %v2448
        %v2451 = vunpack.c.l.s4 1934713408
        %v2452 = vunpack.c.0.s8 %v2451
        %v2453 = vperm.slane %v2447, %v2452
        %v2455 = vunpack.c.l.s4 1934713408
        %v2456 = vunpack.c.0.s8 %v2455
        %v2457 = vperm.slane %v2449, %v2456
        %v2458 = vrot.slane %v2453, 4
        %v2459 = vsel %vm1004, %v2458, %v2441
        %v2460 = vrot.slane %v2441, 4
        %v2461 = vsel %vm1004, %v2453, %v2460
        %v2462 = vrot.slane %v2457, 4
        %v2463 = vsel %vm1004, %v2462, %v2445
        %v2464 = vrot.slane %v2445, 4
        %v2465 = vsel %vm1004, %v2457, %v2464
        %v2466 = vsel %vm1004, %v2070, %v2051
        %v2468 = vunpack.c.l.s4 1983009808
        %v2469 = vunpack.c.0.s8 %v2468
        %v2470 = vperm.slane %v2466, %v2469
        %v2471 = vrot.slane %v2071, 4
        %v2472 = vsel %vm1004, %v2471, %v2069
        %v2474 = vunpack.c.l.s4 1983009808
        %v2475 = vunpack.c.0.s8 %v2474
        %v2476 = vperm.slane %v2472, %v2475
        %v2477 = vsel %vm1004, %v2074, %v2063
        %v2479 = vunpack.c.l.s4 1983009808
        %v2480 = vunpack.c.0.s8 %v2479
        %v2481 = vperm.slane %v2477, %v2480
        %v2482 = vrot.slane %v2075, 4
        %v2483 = vsel %vm1004, %v2482, %v2073
        %v2485 = vunpack.c.l.s4 1983009808
        %v2486 = vunpack.c.0.s8 %v2485
        %v2487 = vperm.slane %v2483, %v2486
        %v2488 = vrot.slane %v2476, 4
        %v2489 = vsel %vm1004, %v2488, %v2470
        %v2490 = vrot.slane %v2470, 4
        %v2491 = vsel %vm1004, %v2476, %v2490
        %v2493 = vunpack.c.l.s4 1934713408
        %v2494 = vunpack.c.0.s8 %v2493
        %v2495 = vperm.slane %v2489, %v2494
        %v2497 = vunpack.c.l.s4 1934713408
        %v2498 = vunpack.c.0.s8 %v2497
        %v2499 = vperm.slane %v2491, %v2498
        %v2500 = vrot.slane %v2487, 4
        %v2501 = vsel %vm1004, %v2500, %v2481
        %v2502 = vrot.slane %v2481, 4
        %v2503 = vsel %vm1004, %v2487, %v2502
        %v2505 = vunpack.c.l.s4 1934713408
        %v2506 = vunpack.c.0.s8 %v2505
        %v2507 = vperm.slane %v2501, %v2506
        %v2509 = vunpack.c.l.s4 1934713408
        %v2510 = vunpack.c.0.s8 %v2509
        %v2511 = vperm.slane %v2503, %v2510
        %v2512 = vrot.slane %v2507, 4
        %v2513 = vsel %vm1004, %v2512, %v2495
        %v2514 = vrot.slane %v2495, 4
        %v2515 = vsel %vm1004, %v2507, %v2514
        %v2516 = vrot.slane %v2511, 4
        %v2517 = vsel %vm1004, %v2516, %v2499
        %v2518 = vrot.slane %v2499, 4
        %v2519 = vsel %vm1004, %v2511, %v2518
        %v2520 = vsel %vm1004, %v2126, %v2107
        %v2522 = vunpack.c.l.s4 1983009808
        %v2523 = vunpack.c.0.s8 %v2522
        %v2524 = vperm.slane %v2520, %v2523
        %v2525 = vrot.slane %v2127, 4
        %v2526 = vsel %vm1004, %v2525, %v2125
        %v2528 = vunpack.c.l.s4 1983009808
        %v2529 = vunpack.c.0.s8 %v2528
        %v2530 = vperm.slane %v2526, %v2529
        %v2531 = vsel %vm1004, %v2130, %v2119
        %v2533 = vunpack.c.l.s4 1983009808
        %v2534 = vunpack.c.0.s8 %v2533
        %v2535 = vperm.slane %v2531, %v2534
        %v2536 = vrot.slane %v2131, 4
        %v2537 = vsel %vm1004, %v2536, %v2129
        %v2539 = vunpack.c.l.s4 1983009808
        %v2540 = vunpack.c.0.s8 %v2539
        %v2541 = vperm.slane %v2537, %v2540
        %v2542 = vrot.slane %v2530, 4
        %v2543 = vsel %vm1004, %v2542, %v2524
        %v2544 = vrot.slane %v2524, 4
        %v2545 = vsel %vm1004, %v2530, %v2544
        %v2547 = vunpack.c.l.s4 1934713408
        %v2548 = vunpack.c.0.s8 %v2547
        %v2549 = vperm.slane %v2543, %v2548
        %v2551 = vunpack.c.l.s4 1934713408
        %v2552 = vunpack.c.0.s8 %v2551
        %v2553 = vperm.slane %v2545, %v2552
        %v2554 = vrot.slane %v2541, 4
        %v2555 = vsel %vm1004, %v2554, %v2535
        %v2556 = vrot.slane %v2535, 4
        %v2557 = vsel %vm1004, %v2541, %v2556
        %v2559 = vunpack.c.l.s4 1934713408
        %v2560 = vunpack.c.0.s8 %v2559
        %v2561 = vperm.slane %v2555, %v2560
        %v2563 = vunpack.c.l.s4 1934713408
        %v2564 = vunpack.c.0.s8 %v2563
        %v2565 = vperm.slane %v2557, %v2564
        %v2566 = vrot.slane %v2561, 4
        %v2567 = vsel %vm1004, %v2566, %v2549
        %v2568 = vrot.slane %v2549, 4
        %v2569 = vsel %vm1004, %v2561, %v2568
        %v2570 = vrot.slane %v2565, 4
        %v2571 = vsel %vm1004, %v2570, %v2553
        %v2572 = vrot.slane %v2553, 4
        %v2573 = vsel %vm1004, %v2565, %v2572
        %v2574 = vsel %vm1004, %v2182, %v2163
        %v2576 = vunpack.c.l.s4 1983009808
        %v2577 = vunpack.c.0.s8 %v2576
        %v2578 = vperm.slane %v2574, %v2577
        %v2579 = vrot.slane %v2183, 4
        %v2580 = vsel %vm1004, %v2579, %v2181
        %v2582 = vunpack.c.l.s4 1983009808
        %v2583 = vunpack.c.0.s8 %v2582
        %v2584 = vperm.slane %v2580, %v2583
        %v2585 = vsel %vm1004, %v2186, %v2175
        %v2587 = vunpack.c.l.s4 1983009808
        %v2588 = vunpack.c.0.s8 %v2587
        %v2589 = vperm.slane %v2585, %v2588
        %v2590 = vrot.slane %v2187, 4
        %v2591 = vsel %vm1004, %v2590, %v2185
        %v2593 = vunpack.c.l.s4 1983009808
        %v2594 = vunpack.c.0.s8 %v2593
        %v2595 = vperm.slane %v2591, %v2594
        %v2596 = vrot.slane %v2584, 4
        %v2597 = vsel %vm1004, %v2596, %v2578
        %v2598 = vrot.slane %v2578, 4
        %v2599 = vsel %vm1004, %v2584, %v2598
        %v2601 = vunpack.c.l.s4 1934713408
        %v2602 = vunpack.c.0.s8 %v2601
        %v2603 = vperm.slane %v2597, %v2602
        %v2605 = vunpack.c.l.s4 1934713408
        %v2606 = vunpack.c.0.s8 %v2605
        %v2607 = vperm.slane %v2599, %v2606
        %v2608 = vrot.slane %v2595, 4
        %v2609 = vsel %vm1004, %v2608, %v2589
        %v2610 = vrot.slane %v2589, 4
        %v2611 = vsel %vm1004, %v2595, %v2610
        %v2613 = vunpack.c.l.s4 1934713408
        %v2614 = vunpack.c.0.s8 %v2613
        %v2615 = vperm.slane %v2609, %v2614
        %v2617 = vunpack.c.l.s4 1934713408
        %v2618 = vunpack.c.0.s8 %v2617
        %v2619 = vperm.slane %v2611, %v2618
        %v2620 = vrot.slane %v2615, 4
        %v2621 = vsel %vm1004, %v2620, %v2603
        %v2622 = vrot.slane %v2603, 4
        %v2623 = vsel %vm1004, %v2615, %v2622
        %v2624 = vrot.slane %v2619, 4
        %v2625 = vsel %vm1004, %v2624, %v2607
        %v2626 = vrot.slane %v2607, 4
        %v2627 = vsel %vm1004, %v2619, %v2626
        %v2628 = vsel %vm1004, %v2238, %v2219
        %v2630 = vunpack.c.l.s4 1983009808
        %v2631 = vunpack.c.0.s8 %v2630
        %v2632 = vperm.slane %v2628, %v2631
        %v2633 = vrot.slane %v2239, 4
        %v2634 = vsel %vm1004, %v2633, %v2237
        %v2636 = vunpack.c.l.s4 1983009808
        %v2637 = vunpack.c.0.s8 %v2636
        %v2638 = vperm.slane %v2634, %v2637
        %v2639 = vsel %vm1004, %v2242, %v2231
        %v2641 = vunpack.c.l.s4 1983009808
        %v2642 = vunpack.c.0.s8 %v2641
        %v2643 = vperm.slane %v2639, %v2642
        %v2644 = vrot.slane %v2243, 4
        %v2645 = vsel %vm1004, %v2644, %v2241
        %v2647 = vunpack.c.l.s4 1983009808
        %v2648 = vunpack.c.0.s8 %v2647
        %v2649 = vperm.slane %v2645, %v2648
        %v2650 = vrot.slane %v2638, 4
        %v2651 = vsel %vm1004, %v2650, %v2632
        %v2652 = vrot.slane %v2632, 4
        %v2653 = vsel %vm1004, %v2638, %v2652
        %v2655 = vunpack.c.l.s4 1934713408
        %v2656 = vunpack.c.0.s8 %v2655
        %v2657 = vperm.slane %v2651, %v2656
        %v2659 = vunpack.c.l.s4 1934713408
        %v2660 = vunpack.c.0.s8 %v2659
        %v2661 = vperm.slane %v2653, %v2660
        %v2662 = vrot.slane %v2649, 4
        %v2663 = vsel %vm1004, %v2662, %v2643
        %v2664 = vrot.slane %v2643, 4
        %v2665 = vsel %vm1004, %v2649, %v2664
        %v2667 = vunpack.c.l.s4 1934713408
        %v2668 = vunpack.c.0.s8 %v2667
        %v2669 = vperm.slane %v2663, %v2668
        %v2671 = vunpack.c.l.s4 1934713408
        %v2672 = vunpack.c.0.s8 %v2671
        %v2673 = vperm.slane %v2665, %v2672
        %v2674 = vrot.slane %v2669, 4
        %v2675 = vsel %vm1004, %v2674, %v2657
        %v2676 = vrot.slane %v2657, 4
        %v2677 = vsel %vm1004, %v2669, %v2676
        %v2678 = vrot.slane %v2673, 4
        %v2679 = vsel %vm1004, %v2678, %v2661
        %v2680 = vrot.slane %v2661, 4
        %v2681 = vsel %vm1004, %v2673, %v2680
        %v2682 = vsel %vm1004, %v2294, %v2275
        %v2684 = vunpack.c.l.s4 1983009808
        %v2685 = vunpack.c.0.s8 %v2684
        %v2686 = vperm.slane %v2682, %v2685
        %v2687 = vrot.slane %v2295, 4
        %v2688 = vsel %vm1004, %v2687, %v2293
        %v2690 = vunpack.c.l.s4 1983009808
        %v2691 = vunpack.c.0.s8 %v2690
        %v2692 = vperm.slane %v2688, %v2691
        %v2693 = vsel %vm1004, %v2298, %v2287
        %v2695 = vunpack.c.l.s4 1983009808
        %v2696 = vunpack.c.0.s8 %v2695
        %v2697 = vperm.slane %v2693, %v2696
        %v2698 = vrot.slane %v2299, 4
        %v2699 = vsel %vm1004, %v2698, %v2297
        %v2701 = vunpack.c.l.s4 1983009808
        %v2702 = vunpack.c.0.s8 %v2701
        %v2703 = vperm.slane %v2699, %v2702
        %v2704 = vrot.slane %v2692, 4
        %v2705 = vsel %vm1004, %v2704, %v2686
        %v2706 = vrot.slane %v2686, 4
        %v2707 = vsel %vm1004, %v2692, %v2706
        %v2709 = vunpack.c.l.s4 1934713408
        %v2710 = vunpack.c.0.s8 %v2709
        %v2711 = vperm.slane %v2705, %v2710
        %v2713 = vunpack.c.l.s4 1934713408
        %v2714 = vunpack.c.0.s8 %v2713
        %v2715 = vperm.slane %v2707, %v2714
        %v2716 = vrot.slane %v2703, 4
        %v2717 = vsel %vm1004, %v2716, %v2697
        %v2718 = vrot.slane %v2697, 4
        %v2719 = vsel %vm1004, %v2703, %v2718
        %v2721 = vunpack.c.l.s4 1934713408
        %v2722 = vunpack.c.0.s8 %v2721
        %v2723 = vperm.slane %v2717, %v2722
        %v2725 = vunpack.c.l.s4 1934713408
        %v2726 = vunpack.c.0.s8 %v2725
        %v2727 = vperm.slane %v2719, %v2726
        %v2728 = vrot.slane %v2723, 4
        %v2729 = vsel %vm1004, %v2728, %v2711
        %v2730 = vrot.slane %v2711, 4
        %v2731 = vsel %vm1004, %v2723, %v2730
        %v2732 = vrot.slane %v2727, 4
        %v2733 = vsel %vm1004, %v2732, %v2715
        %v2734 = vrot.slane %v2715, 4
        %v2735 = vsel %vm1004, %v2727, %v2734
        %v2736 = vsel %vm1004, %v2350, %v2331
        %v2738 = vunpack.c.l.s4 1983009808
        %v2739 = vunpack.c.0.s8 %v2738
        %v2740 = vperm.slane %v2736, %v2739
        %v2741 = vrot.slane %v2351, 4
        %v2742 = vsel %vm1004, %v2741, %v2349
        %v2744 = vunpack.c.l.s4 1983009808
        %v2745 = vunpack.c.0.s8 %v2744
        %v2746 = vperm.slane %v2742, %v2745
        %v2747 = vsel %vm1004, %v2354, %v2343
        %v2749 = vunpack.c.l.s4 1983009808
        %v2750 = vunpack.c.0.s8 %v2749
        %v2751 = vperm.slane %v2747, %v2750
        %v2752 = vrot.slane %v2355, 4
        %v2753 = vsel %vm1004, %v2752, %v2353
        %v2755 = vunpack.c.l.s4 1983009808
        %v2756 = vunpack.c.0.s8 %v2755
        %v2757 = vperm.slane %v2753, %v2756
        %v2758 = vrot.slane %v2746, 4
        %v2759 = vsel %vm1004, %v2758, %v2740
        %v2760 = vrot.slane %v2740, 4
        %v2761 = vsel %vm1004, %v2746, %v2760
        %v2763 = vunpack.c.l.s4 1934713408
        %v2764 = vunpack.c.0.s8 %v2763
        %v2765 = vperm.slane %v2759, %v2764
        %v2767 = vunpack.c.l.s4 1934713408
        %v2768 = vunpack.c.0.s8 %v2767
        %v2769 = vperm.slane %v2761, %v2768
        %v2770 = vrot.slane %v2757, 4
        %v2771 = vsel %vm1004, %v2770, %v2751
        %v2772 = vrot.slane %v2751, 4
        %v2773 = vsel %vm1004, %v2757, %v2772
        %v2775 = vunpack.c.l.s4 1934713408
        %v2776 = vunpack.c.0.s8 %v2775
        %v2777 = vperm.slane %v2771, %v2776
        %v2779 = vunpack.c.l.s4 1934713408
        %v2780 = vunpack.c.0.s8 %v2779
        %v2781 = vperm.slane %v2773, %v2780
        %v2782 = vrot.slane %v2777, 4
        %v2783 = vsel %vm1004, %v2782, %v2765
        %v2784 = vrot.slane %v2765, 4
        %v2785 = vsel %vm1004, %v2777, %v2784
        %v2786 = vrot.slane %v2781, 4
        %v2787 = vsel %vm1004, %v2786, %v2769
        %v2788 = vrot.slane %v2769, 4
        %v2789 = vsel %vm1004, %v2781, %v2788
        %v2790 = vsel %vm1004, %v2406, %v2387
        %v2792 = vunpack.c.l.s4 1983009808
        %v2793 = vunpack.c.0.s8 %v2792
        %v2794 = vperm.slane %v2790, %v2793
        %v2795 = vrot.slane %v2407, 4
        %v2796 = vsel %vm1004, %v2795, %v2405
        %v2798 = vunpack.c.l.s4 1983009808
        %v2799 = vunpack.c.0.s8 %v2798
        %v2800 = vperm.slane %v2796, %v2799
        %v2801 = vsel %vm1004, %v2410, %v2399
        %v2803 = vunpack.c.l.s4 1983009808
        %v2804 = vunpack.c.0.s8 %v2803
        %v2805 = vperm.slane %v2801, %v2804
        %v2806 = vrot.slane %v2411, 4
        %v2807 = vsel %vm1004, %v2806, %v2409
        %v2809 = vunpack.c.l.s4 1983009808
        %v2810 = vunpack.c.0.s8 %v2809
        %v2811 = vperm.slane %v2807, %v2810
        %v2812 = vrot.slane %v2800, 4
        %v2813 = vsel %vm1004, %v2812, %v2794
        %v2814 = vrot.slane %v2794, 4
        %v2815 = vsel %vm1004, %v2800, %v2814
        %v2817 = vunpack.c.l.s4 1934713408
        %v2818 = vunpack.c.0.s8 %v2817
        %v2819 = vperm.slane %v2813, %v2818
        %v2821 = vunpack.c.l.s4 1934713408
        %v2822 = vunpack.c.0.s8 %v2821
        %v2823 = vperm.slane %v2815, %v2822
        %v2824 = vrot.slane %v2811, 4
        %v2825 = vsel %vm1004, %v2824, %v2805
        %v2826 = vrot.slane %v2805, 4
        %v2827 = vsel %vm1004, %v2811, %v2826
        %v2829 = vunpack.c.l.s4 1934713408
        %v2830 = vunpack.c.0.s8 %v2829
        %v2831 = vperm.slane %v2825, %v2830
        %v2833 = vunpack.c.l.s4 1934713408
        %v2834 = vunpack.c.0.s8 %v2833
        %v2835 = vperm.slane %v2827, %v2834
        %v2836 = vrot.slane %v2831, 4
        %v2837 = vsel %vm1004, %v2836, %v2819
        %v2838 = vrot.slane %v2819, 4
        %v2839 = vsel %vm1004, %v2831, %v2838
        %v2840 = vrot.slane %v2835, 4
        %v2841 = vsel %vm1004, %v2840, %v2823
        %v2842 = vrot.slane %v2823, 4
        %v2843 = vsel %vm1004, %v2835, %v2842
        %2852 = vrot.lane.b32.xlu0 %v900, 96
        %v2853 = vpop.permute.xlu0 %2852
        %2854 = vrot.lane.b32.xlu0 %v903, 96
        %v2855 = vpop.permute.xlu0 %2854
        %2856 = vrot.lane.b32.xlu0 %v906, 96
        %v2857 = vpop.permute.xlu0 %2856
        %2858 = vrot.lane.b32.xlu0 %v909, 96
        %v2859 = vpop.permute.xlu0 %2858
        %2860 = vrot.lane.b32.xlu0 %v912, 96
        %v2861 = vpop.permute.xlu0 %2860
        %2862 = vrot.lane.b32.xlu0 %v915, 96
        %v2863 = vpop.permute.xlu0 %2862
        %2864 = vrot.lane.b32.xlu0 %v918, 96
        %v2865 = vpop.permute.xlu0 %2864
        %2866 = vrot.lane.b32.xlu0 %v921, 96
        %v2867 = vpop.permute.xlu0 %2866
        %2876 = vrot.lane.b32.xlu0 %v900, 64
        %v2877 = vpop.permute.xlu0 %2876
        %2878 = vrot.lane.b32.xlu0 %v903, 64
        %v2879 = vpop.permute.xlu0 %2878
        %2880 = vrot.lane.b32.xlu0 %v906, 64
        %v2881 = vpop.permute.xlu0 %2880
        %2882 = vrot.lane.b32.xlu0 %v909, 64
        %v2883 = vpop.permute.xlu0 %2882
        %2884 = vrot.lane.b32.xlu0 %v912, 64
        %v2885 = vpop.permute.xlu0 %2884
        %2886 = vrot.lane.b32.xlu0 %v915, 64
        %v2887 = vpop.permute.xlu0 %2886
        %2888 = vrot.lane.b32.xlu0 %v918, 64
        %v2889 = vpop.permute.xlu0 %2888
        %2890 = vrot.lane.b32.xlu0 %v921, 64
        %v2891 = vpop.permute.xlu0 %2890
        %2900 = vrot.lane.b32.xlu0 %v900, 32
        %v2901 = vpop.permute.xlu0 %2900
        %2902 = vrot.lane.b32.xlu0 %v903, 32
        %v2903 = vpop.permute.xlu0 %2902
        %2904 = vrot.lane.b32.xlu0 %v906, 32
        %v2905 = vpop.permute.xlu0 %2904
        %2906 = vrot.lane.b32.xlu0 %v909, 32
        %v2907 = vpop.permute.xlu0 %2906
        %2908 = vrot.lane.b32.xlu0 %v912, 32
        %v2909 = vpop.permute.xlu0 %2908
        %2910 = vrot.lane.b32.xlu0 %v915, 32
        %v2911 = vpop.permute.xlu0 %2910
        %2912 = vrot.lane.b32.xlu0 %v918, 32
        %v2913 = vpop.permute.xlu0 %2912
        %2914 = vrot.lane.b32.xlu0 %v921, 32
        %v2915 = vpop.permute.xlu0 %2914
        %v2924 = vrot.slane %v2877, 4
        %v2925 = vsel %vm1004, %v2924, %v900
        %v2926 = vrot.slane %v900, 4
        %v2927 = vsel %vm1004, %v2877, %v2926
        %v2929 = vunpack.c.l.s4 1983009808
        %v2930 = vunpack.c.0.s8 %v2929
        %v2931 = vperm.slane %v2925, %v2930
        %v2933 = vunpack.c.l.s4 1983009808
        %v2934 = vunpack.c.0.s8 %v2933
        %v2935 = vperm.slane %v2927, %v2934
        %v2936 = vrot.slane %v2901, 4
        %v2937 = vsel %vm1004, %v2936, %v2853
        %v2938 = vrot.slane %v2853, 4
        %v2939 = vsel %vm1004, %v2901, %v2938
        %v2941 = vunpack.c.l.s4 1983009808
        %v2942 = vunpack.c.0.s8 %v2941
        %v2943 = vperm.slane %v2937, %v2942
        %v2945 = vunpack.c.l.s4 1983009808
        %v2946 = vunpack.c.0.s8 %v2945
        %v2947 = vperm.slane %v2939, %v2946
        %v2948 = vrot.slane %v2943, 4
        %v2949 = vsel %vm1004, %v2948, %v2931
        %v2950 = vrot.slane %v2931, 4
        %v2951 = vsel %vm1004, %v2943, %v2950
        %v2953 = vunpack.c.l.s4 1934713408
        %v2954 = vunpack.c.0.s8 %v2953
        %v2955 = vperm.slane %v2949, %v2954
        %v2957 = vunpack.c.l.s4 1934713408
        %v2958 = vunpack.c.0.s8 %v2957
        %v2959 = vperm.slane %v2951, %v2958
        %v2960 = vrot.slane %v2947, 4
        %v2961 = vsel %vm1004, %v2960, %v2935
        %v2962 = vrot.slane %v2935, 4
        %v2963 = vsel %vm1004, %v2947, %v2962
        %v2965 = vunpack.c.l.s4 1934713408
        %v2966 = vunpack.c.0.s8 %v2965
        %v2967 = vperm.slane %v2961, %v2966
        %v2969 = vunpack.c.l.s4 1934713408
        %v2970 = vunpack.c.0.s8 %v2969
        %v2971 = vperm.slane %v2963, %v2970
        %v2972 = vrot.slane %v2955, 4
        %v2973 = vsel %vm1004, 0.0, %v2972
        %v2974 = vrot.slane %v2959, 4
        %v2975 = vsel %vm1004, 0.0, %v2974
        %v2976 = vrot.slane %v2967, 4
        %v2977 = vsel %vm1004, 0.0, %v2976
        %v2978 = vrot.slane %v2971, 4
        %v2979 = vsel %vm1004, 0.0, %v2978
        %v2980 = vrot.slane %v2879, 4
        %v2981 = vsel %vm1004, %v2980, %v903
        %v2982 = vrot.slane %v903, 4
        %v2983 = vsel %vm1004, %v2879, %v2982
        %v2985 = vunpack.c.l.s4 1983009808
        %v2986 = vunpack.c.0.s8 %v2985
        %v2987 = vperm.slane %v2981, %v2986
        %v2989 = vunpack.c.l.s4 1983009808
        %v2990 = vunpack.c.0.s8 %v2989
        %v2991 = vperm.slane %v2983, %v2990
        %v2992 = vrot.slane %v2903, 4
        %v2993 = vsel %vm1004, %v2992, %v2855
        %v2994 = vrot.slane %v2855, 4
        %v2995 = vsel %vm1004, %v2903, %v2994
        %v2997 = vunpack.c.l.s4 1983009808
        %v2998 = vunpack.c.0.s8 %v2997
        %v2999 = vperm.slane %v2993, %v2998
        %v3001 = vunpack.c.l.s4 1983009808
        %v3002 = vunpack.c.0.s8 %v3001
        %v3003 = vperm.slane %v2995, %v3002
        %v3004 = vrot.slane %v2999, 4
        %v3005 = vsel %vm1004, %v3004, %v2987
        %v3006 = vrot.slane %v2987, 4
        %v3007 = vsel %vm1004, %v2999, %v3006
        %v3009 = vunpack.c.l.s4 1934713408
        %v3010 = vunpack.c.0.s8 %v3009
        %v3011 = vperm.slane %v3005, %v3010
        %v3013 = vunpack.c.l.s4 1934713408
        %v3014 = vunpack.c.0.s8 %v3013
        %v3015 = vperm.slane %v3007, %v3014
        %v3016 = vrot.slane %v3003, 4
        %v3017 = vsel %vm1004, %v3016, %v2991
        %v3018 = vrot.slane %v2991, 4
        %v3019 = vsel %vm1004, %v3003, %v3018
        %v3021 = vunpack.c.l.s4 1934713408
        %v3022 = vunpack.c.0.s8 %v3021
        %v3023 = vperm.slane %v3017, %v3022
        %v3025 = vunpack.c.l.s4 1934713408
        %v3026 = vunpack.c.0.s8 %v3025
        %v3027 = vperm.slane %v3019, %v3026
        %v3028 = vrot.slane %v3011, 4
        %v3029 = vsel %vm1004, 0.0, %v3028
        %v3030 = vrot.slane %v3015, 4
        %v3031 = vsel %vm1004, 0.0, %v3030
        %v3032 = vrot.slane %v3023, 4
        %v3033 = vsel %vm1004, 0.0, %v3032
        %v3034 = vrot.slane %v3027, 4
        %v3035 = vsel %vm1004, 0.0, %v3034
        %v3036 = vrot.slane %v2881, 4
        %v3037 = vsel %vm1004, %v3036, %v906
        %v3038 = vrot.slane %v906, 4
        %v3039 = vsel %vm1004, %v2881, %v3038
        %v3041 = vunpack.c.l.s4 1983009808
        %v3042 = vunpack.c.0.s8 %v3041
        %v3043 = vperm.slane %v3037, %v3042
        %v3045 = vunpack.c.l.s4 1983009808
        %v3046 = vunpack.c.0.s8 %v3045
        %v3047 = vperm.slane %v3039, %v3046
        %v3048 = vrot.slane %v2905, 4
        %v3049 = vsel %vm1004, %v3048, %v2857
        %v3050 = vrot.slane %v2857, 4
        %v3051 = vsel %vm1004, %v2905, %v3050
        %v3053 = vunpack.c.l.s4 1983009808
        %v3054 = vunpack.c.0.s8 %v3053
        %v3055 = vperm.slane %v3049, %v3054
        %v3057 = vunpack.c.l.s4 1983009808
        %v3058 = vunpack.c.0.s8 %v3057
        %v3059 = vperm.slane %v3051, %v3058
        %v3060 = vrot.slane %v3055, 4
        %v3061 = vsel %vm1004, %v3060, %v3043
        %v3062 = vrot.slane %v3043, 4
        %v3063 = vsel %vm1004, %v3055, %v3062
        %v3065 = vunpack.c.l.s4 1934713408
        %v3066 = vunpack.c.0.s8 %v3065
        %v3067 = vperm.slane %v3061, %v3066
        %v3069 = vunpack.c.l.s4 1934713408
        %v3070 = vunpack.c.0.s8 %v3069
        %v3071 = vperm.slane %v3063, %v3070
        %v3072 = vrot.slane %v3059, 4
        %v3073 = vsel %vm1004, %v3072, %v3047
        %v3074 = vrot.slane %v3047, 4
        %v3075 = vsel %vm1004, %v3059, %v3074
        %v3077 = vunpack.c.l.s4 1934713408
        %v3078 = vunpack.c.0.s8 %v3077
        %v3079 = vperm.slane %v3073, %v3078
        %v3081 = vunpack.c.l.s4 1934713408
        %v3082 = vunpack.c.0.s8 %v3081
        %v3083 = vperm.slane %v3075, %v3082
        %v3084 = vrot.slane %v3067, 4
        %v3085 = vsel %vm1004, 0.0, %v3084
        %v3086 = vrot.slane %v3071, 4
        %v3087 = vsel %vm1004, 0.0, %v3086
        %v3088 = vrot.slane %v3079, 4
        %v3089 = vsel %vm1004, 0.0, %v3088
        %v3090 = vrot.slane %v3083, 4
        %v3091 = vsel %vm1004, 0.0, %v3090
        %v3092 = vrot.slane %v2883, 4
        %v3093 = vsel %vm1004, %v3092, %v909
        %v3094 = vrot.slane %v909, 4
        %v3095 = vsel %vm1004, %v2883, %v3094
        %v3097 = vunpack.c.l.s4 1983009808
        %v3098 = vunpack.c.0.s8 %v3097
        %v3099 = vperm.slane %v3093, %v3098
        %v3101 = vunpack.c.l.s4 1983009808
        %v3102 = vunpack.c.0.s8 %v3101
        %v3103 = vperm.slane %v3095, %v3102
        %v3104 = vrot.slane %v2907, 4
        %v3105 = vsel %vm1004, %v3104, %v2859
        %v3106 = vrot.slane %v2859, 4
        %v3107 = vsel %vm1004, %v2907, %v3106
        %v3109 = vunpack.c.l.s4 1983009808
        %v3110 = vunpack.c.0.s8 %v3109
        %v3111 = vperm.slane %v3105, %v3110
        %v3113 = vunpack.c.l.s4 1983009808
        %v3114 = vunpack.c.0.s8 %v3113
        %v3115 = vperm.slane %v3107, %v3114
        %v3116 = vrot.slane %v3111, 4
        %v3117 = vsel %vm1004, %v3116, %v3099
        %v3118 = vrot.slane %v3099, 4
        %v3119 = vsel %vm1004, %v3111, %v3118
        %v3121 = vunpack.c.l.s4 1934713408
        %v3122 = vunpack.c.0.s8 %v3121
        %v3123 = vperm.slane %v3117, %v3122
        %v3125 = vunpack.c.l.s4 1934713408
        %v3126 = vunpack.c.0.s8 %v3125
        %v3127 = vperm.slane %v3119, %v3126
        %v3128 = vrot.slane %v3115, 4
        %v3129 = vsel %vm1004, %v3128, %v3103
        %v3130 = vrot.slane %v3103, 4
        %v3131 = vsel %vm1004, %v3115, %v3130
        %v3133 = vunpack.c.l.s4 1934713408
        %v3134 = vunpack.c.0.s8 %v3133
        %v3135 = vperm.slane %v3129, %v3134
        %v3137 = vunpack.c.l.s4 1934713408
        %v3138 = vunpack.c.0.s8 %v3137
        %v3139 = vperm.slane %v3131, %v3138
        %v3140 = vrot.slane %v3123, 4
        %v3141 = vsel %vm1004, 0.0, %v3140
        %v3142 = vrot.slane %v3127, 4
        %v3143 = vsel %vm1004, 0.0, %v3142
        %v3144 = vrot.slane %v3135, 4
        %v3145 = vsel %vm1004, 0.0, %v3144
        %v3146 = vrot.slane %v3139, 4
        %v3147 = vsel %vm1004, 0.0, %v3146
        %v3148 = vrot.slane %v2885, 4
        %v3149 = vsel %vm1004, %v3148, %v912
        %v3150 = vrot.slane %v912, 4
        %v3151 = vsel %vm1004, %v2885, %v3150
        %v3153 = vunpack.c.l.s4 1983009808
        %v3154 = vunpack.c.0.s8 %v3153
        %v3155 = vperm.slane %v3149, %v3154
        %v3157 = vunpack.c.l.s4 1983009808
        %v3158 = vunpack.c.0.s8 %v3157
        %v3159 = vperm.slane %v3151, %v3158
        %v3160 = vrot.slane %v2909, 4
        %v3161 = vsel %vm1004, %v3160, %v2861
        %v3162 = vrot.slane %v2861, 4
        %v3163 = vsel %vm1004, %v2909, %v3162
        %v3165 = vunpack.c.l.s4 1983009808
        %v3166 = vunpack.c.0.s8 %v3165
        %v3167 = vperm.slane %v3161, %v3166
        %v3169 = vunpack.c.l.s4 1983009808
        %v3170 = vunpack.c.0.s8 %v3169
        %v3171 = vperm.slane %v3163, %v3170
        %v3172 = vrot.slane %v3167, 4
        %v3173 = vsel %vm1004, %v3172, %v3155
        %v3174 = vrot.slane %v3155, 4
        %v3175 = vsel %vm1004, %v3167, %v3174
        %v3177 = vunpack.c.l.s4 1934713408
        %v3178 = vunpack.c.0.s8 %v3177
        %v3179 = vperm.slane %v3173, %v3178
        %v3181 = vunpack.c.l.s4 1934713408
        %v3182 = vunpack.c.0.s8 %v3181
        %v3183 = vperm.slane %v3175, %v3182
        %v3184 = vrot.slane %v3171, 4
        %v3185 = vsel %vm1004, %v3184, %v3159
        %v3186 = vrot.slane %v3159, 4
        %v3187 = vsel %vm1004, %v3171, %v3186
        %v3189 = vunpack.c.l.s4 1934713408
        %v3190 = vunpack.c.0.s8 %v3189
        %v3191 = vperm.slane %v3185, %v3190
        %v3193 = vunpack.c.l.s4 1934713408
        %v3194 = vunpack.c.0.s8 %v3193
        %v3195 = vperm.slane %v3187, %v3194
        %v3196 = vrot.slane %v3179, 4
        %v3197 = vsel %vm1004, 0.0, %v3196
        %v3198 = vrot.slane %v3183, 4
        %v3199 = vsel %vm1004, 0.0, %v3198
        %v3200 = vrot.slane %v3191, 4
        %v3201 = vsel %vm1004, 0.0, %v3200
        %v3202 = vrot.slane %v3195, 4
        %v3203 = vsel %vm1004, 0.0, %v3202
        %v3204 = vrot.slane %v2887, 4
        %v3205 = vsel %vm1004, %v3204, %v915
        %v3206 = vrot.slane %v915, 4
        %v3207 = vsel %vm1004, %v2887, %v3206
        %v3209 = vunpack.c.l.s4 1983009808
        %v3210 = vunpack.c.0.s8 %v3209
        %v3211 = vperm.slane %v3205, %v3210
        %v3213 = vunpack.c.l.s4 1983009808
        %v3214 = vunpack.c.0.s8 %v3213
        %v3215 = vperm.slane %v3207, %v3214
        %v3216 = vrot.slane %v2911, 4
        %v3217 = vsel %vm1004, %v3216, %v2863
        %v3218 = vrot.slane %v2863, 4
        %v3219 = vsel %vm1004, %v2911, %v3218
        %v3221 = vunpack.c.l.s4 1983009808
        %v3222 = vunpack.c.0.s8 %v3221
        %v3223 = vperm.slane %v3217, %v3222
        %v3225 = vunpack.c.l.s4 1983009808
        %v3226 = vunpack.c.0.s8 %v3225
        %v3227 = vperm.slane %v3219, %v3226
        %v3228 = vrot.slane %v3223, 4
        %v3229 = vsel %vm1004, %v3228, %v3211
        %v3230 = vrot.slane %v3211, 4
        %v3231 = vsel %vm1004, %v3223, %v3230
        %v3233 = vunpack.c.l.s4 1934713408
        %v3234 = vunpack.c.0.s8 %v3233
        %v3235 = vperm.slane %v3229, %v3234
        %v3237 = vunpack.c.l.s4 1934713408
        %v3238 = vunpack.c.0.s8 %v3237
        %v3239 = vperm.slane %v3231, %v3238
        %v3240 = vrot.slane %v3227, 4
        %v3241 = vsel %vm1004, %v3240, %v3215
        %v3242 = vrot.slane %v3215, 4
        %v3243 = vsel %vm1004, %v3227, %v3242
        %v3245 = vunpack.c.l.s4 1934713408
        %v3246 = vunpack.c.0.s8 %v3245
        %v3247 = vperm.slane %v3241, %v3246
        %v3249 = vunpack.c.l.s4 1934713408
        %v3250 = vunpack.c.0.s8 %v3249
        %v3251 = vperm.slane %v3243, %v3250
        %v3252 = vrot.slane %v3235, 4
        %v3253 = vsel %vm1004, 0.0, %v3252
        %v3254 = vrot.slane %v3239, 4
        %v3255 = vsel %vm1004, 0.0, %v3254
        %v3256 = vrot.slane %v3247, 4
        %v3257 = vsel %vm1004, 0.0, %v3256
        %v3258 = vrot.slane %v3251, 4
        %v3259 = vsel %vm1004, 0.0, %v3258
        %v3260 = vrot.slane %v2889, 4
        %v3261 = vsel %vm1004, %v3260, %v918
        %v3262 = vrot.slane %v918, 4
        %v3263 = vsel %vm1004, %v2889, %v3262
        %v3265 = vunpack.c.l.s4 1983009808
        %v3266 = vunpack.c.0.s8 %v3265
        %v3267 = vperm.slane %v3261, %v3266
        %v3269 = vunpack.c.l.s4 1983009808
        %v3270 = vunpack.c.0.s8 %v3269
        %v3271 = vperm.slane %v3263, %v3270
        %v3272 = vrot.slane %v2913, 4
        %v3273 = vsel %vm1004, %v3272, %v2865
        %v3274 = vrot.slane %v2865, 4
        %v3275 = vsel %vm1004, %v2913, %v3274
        %v3277 = vunpack.c.l.s4 1983009808
        %v3278 = vunpack.c.0.s8 %v3277
        %v3279 = vperm.slane %v3273, %v3278
        %v3281 = vunpack.c.l.s4 1983009808
        %v3282 = vunpack.c.0.s8 %v3281
        %v3283 = vperm.slane %v3275, %v3282
        %v3284 = vrot.slane %v3279, 4
        %v3285 = vsel %vm1004, %v3284, %v3267
        %v3286 = vrot.slane %v3267, 4
        %v3287 = vsel %vm1004, %v3279, %v3286
        %v3289 = vunpack.c.l.s4 1934713408
        %v3290 = vunpack.c.0.s8 %v3289
        %v3291 = vperm.slane %v3285, %v3290
        %v3293 = vunpack.c.l.s4 1934713408
        %v3294 = vunpack.c.0.s8 %v3293
        %v3295 = vperm.slane %v3287, %v3294
        %v3296 = vrot.slane %v3283, 4
        %v3297 = vsel %vm1004, %v3296, %v3271
        %v3298 = vrot.slane %v3271, 4
        %v3299 = vsel %vm1004, %v3283, %v3298
        %v3301 = vunpack.c.l.s4 1934713408
        %v3302 = vunpack.c.0.s8 %v3301
        %v3303 = vperm.slane %v3297, %v3302
        %v3305 = vunpack.c.l.s4 1934713408
        %v3306 = vunpack.c.0.s8 %v3305
        %v3307 = vperm.slane %v3299, %v3306
        %v3308 = vrot.slane %v3291, 4
        %v3309 = vsel %vm1004, 0.0, %v3308
        %v3310 = vrot.slane %v3295, 4
        %v3311 = vsel %vm1004, 0.0, %v3310
        %v3312 = vrot.slane %v3303, 4
        %v3313 = vsel %vm1004, 0.0, %v3312
        %v3314 = vrot.slane %v3307, 4
        %v3315 = vsel %vm1004, 0.0, %v3314
        %v3316 = vrot.slane %v2891, 4
        %v3317 = vsel %vm1004, %v3316, %v921
        %v3318 = vrot.slane %v921, 4
        %v3319 = vsel %vm1004, %v2891, %v3318
        %v3321 = vunpack.c.l.s4 1983009808
        %v3322 = vunpack.c.0.s8 %v3321
        %v3323 = vperm.slane %v3317, %v3322
        %v3325 = vunpack.c.l.s4 1983009808
        %v3326 = vunpack.c.0.s8 %v3325
        %v3327 = vperm.slane %v3319, %v3326
        %v3328 = vrot.slane %v2915, 4
        %v3329 = vsel %vm1004, %v3328, %v2867
        %v3330 = vrot.slane %v2867, 4
        %v3331 = vsel %vm1004, %v2915, %v3330
        %v3333 = vunpack.c.l.s4 1983009808
        %v3334 = vunpack.c.0.s8 %v3333
        %v3335 = vperm.slane %v3329, %v3334
        %v3337 = vunpack.c.l.s4 1983009808
        %v3338 = vunpack.c.0.s8 %v3337
        %v3339 = vperm.slane %v3331, %v3338
        %v3340 = vrot.slane %v3335, 4
        %v3341 = vsel %vm1004, %v3340, %v3323
        %v3342 = vrot.slane %v3323, 4
        %v3343 = vsel %vm1004, %v3335, %v3342
        %v3345 = vunpack.c.l.s4 1934713408
        %v3346 = vunpack.c.0.s8 %v3345
        %v3347 = vperm.slane %v3341, %v3346
        %v3349 = vunpack.c.l.s4 1934713408
        %v3350 = vunpack.c.0.s8 %v3349
        %v3351 = vperm.slane %v3343, %v3350
        %v3352 = vrot.slane %v3339, 4
        %v3353 = vsel %vm1004, %v3352, %v3327
        %v3354 = vrot.slane %v3327, 4
        %v3355 = vsel %vm1004, %v3339, %v3354
        %v3357 = vunpack.c.l.s4 1934713408
        %v3358 = vunpack.c.0.s8 %v3357
        %v3359 = vperm.slane %v3353, %v3358
        %v3361 = vunpack.c.l.s4 1934713408
        %v3362 = vunpack.c.0.s8 %v3361
        %v3363 = vperm.slane %v3355, %v3362
        %v3364 = vrot.slane %v3347, 4
        %v3365 = vsel %vm1004, 0.0, %v3364
        %v3366 = vrot.slane %v3351, 4
        %v3367 = vsel %vm1004, 0.0, %v3366
        %v3368 = vrot.slane %v3359, 4
        %v3369 = vsel %vm1004, 0.0, %v3368
        %v3370 = vrot.slane %v3363, 4
        %v3371 = vsel %vm1004, 0.0, %v3370
        %v3372 = vsel %vm1004, %v2974, %v2955
        %v3374 = vunpack.c.l.s4 1983009808
        %v3375 = vunpack.c.0.s8 %v3374
        %v3376 = vperm.slane %v3372, %v3375
        %v3377 = vrot.slane %v2975, 4
        %v3378 = vsel %vm1004, %v3377, %v2973
        %v3380 = vunpack.c.l.s4 1983009808
        %v3381 = vunpack.c.0.s8 %v3380
        %v3382 = vperm.slane %v3378, %v3381
        %v3383 = vsel %vm1004, %v2978, %v2967
        %v3385 = vunpack.c.l.s4 1983009808
        %v3386 = vunpack.c.0.s8 %v3385
        %v3387 = vperm.slane %v3383, %v3386
        %v3388 = vrot.slane %v2979, 4
        %v3389 = vsel %vm1004, %v3388, %v2977
        %v3391 = vunpack.c.l.s4 1983009808
        %v3392 = vunpack.c.0.s8 %v3391
        %v3393 = vperm.slane %v3389, %v3392
        %v3394 = vrot.slane %v3382, 4
        %v3395 = vsel %vm1004, %v3394, %v3376
        %v3396 = vrot.slane %v3376, 4
        %v3397 = vsel %vm1004, %v3382, %v3396
        %v3399 = vunpack.c.l.s4 1934713408
        %v3400 = vunpack.c.0.s8 %v3399
        %v3401 = vperm.slane %v3395, %v3400
        %v3403 = vunpack.c.l.s4 1934713408
        %v3404 = vunpack.c.0.s8 %v3403
        %v3405 = vperm.slane %v3397, %v3404
        %v3406 = vrot.slane %v3393, 4
        %v3407 = vsel %vm1004, %v3406, %v3387
        %v3408 = vrot.slane %v3387, 4
        %v3409 = vsel %vm1004, %v3393, %v3408
        %v3411 = vunpack.c.l.s4 1934713408
        %v3412 = vunpack.c.0.s8 %v3411
        %v3413 = vperm.slane %v3407, %v3412
        %v3415 = vunpack.c.l.s4 1934713408
        %v3416 = vunpack.c.0.s8 %v3415
        %v3417 = vperm.slane %v3409, %v3416
        %v3418 = vrot.slane %v3413, 4
        %v3419 = vsel %vm1004, %v3418, %v3401
        %v3420 = vrot.slane %v3401, 4
        %v3421 = vsel %vm1004, %v3413, %v3420
        %v3422 = vrot.slane %v3417, 4
        %v3423 = vsel %vm1004, %v3422, %v3405
        %v3424 = vrot.slane %v3405, 4
        %v3425 = vsel %vm1004, %v3417, %v3424
        %v3426 = vsel %vm1004, %v3030, %v3011
        %v3428 = vunpack.c.l.s4 1983009808
        %v3429 = vunpack.c.0.s8 %v3428
        %v3430 = vperm.slane %v3426, %v3429
        %v3431 = vrot.slane %v3031, 4
        %v3432 = vsel %vm1004, %v3431, %v3029
        %v3434 = vunpack.c.l.s4 1983009808
        %v3435 = vunpack.c.0.s8 %v3434
        %v3436 = vperm.slane %v3432, %v3435
        %v3437 = vsel %vm1004, %v3034, %v3023
        %v3439 = vunpack.c.l.s4 1983009808
        %v3440 = vunpack.c.0.s8 %v3439
        %v3441 = vperm.slane %v3437, %v3440
        %v3442 = vrot.slane %v3035, 4
        %v3443 = vsel %vm1004, %v3442, %v3033
        %v3445 = vunpack.c.l.s4 1983009808
        %v3446 = vunpack.c.0.s8 %v3445
        %v3447 = vperm.slane %v3443, %v3446
        %v3448 = vrot.slane %v3436, 4
        %v3449 = vsel %vm1004, %v3448, %v3430
        %v3450 = vrot.slane %v3430, 4
        %v3451 = vsel %vm1004, %v3436, %v3450
        %v3453 = vunpack.c.l.s4 1934713408
        %v3454 = vunpack.c.0.s8 %v3453
        %v3455 = vperm.slane %v3449, %v3454
        %v3457 = vunpack.c.l.s4 1934713408
        %v3458 = vunpack.c.0.s8 %v3457
        %v3459 = vperm.slane %v3451, %v3458
        %v3460 = vrot.slane %v3447, 4
        %v3461 = vsel %vm1004, %v3460, %v3441
        %v3462 = vrot.slane %v3441, 4
        %v3463 = vsel %vm1004, %v3447, %v3462
        %v3465 = vunpack.c.l.s4 1934713408
        %v3466 = vunpack.c.0.s8 %v3465
        %v3467 = vperm.slane %v3461, %v3466
        %v3469 = vunpack.c.l.s4 1934713408
        %v3470 = vunpack.c.0.s8 %v3469
        %v3471 = vperm.slane %v3463, %v3470
        %v3472 = vrot.slane %v3467, 4
        %v3473 = vsel %vm1004, %v3472, %v3455
        %v3474 = vrot.slane %v3455, 4
        %v3475 = vsel %vm1004, %v3467, %v3474
        %v3476 = vrot.slane %v3471, 4
        %v3477 = vsel %vm1004, %v3476, %v3459
        %v3478 = vrot.slane %v3459, 4
        %v3479 = vsel %vm1004, %v3471, %v3478
        %v3480 = vsel %vm1004, %v3086, %v3067
        %v3482 = vunpack.c.l.s4 1983009808
        %v3483 = vunpack.c.0.s8 %v3482
        %v3484 = vperm.slane %v3480, %v3483
        %v3485 = vrot.slane %v3087, 4
        %v3486 = vsel %vm1004, %v3485, %v3085
        %v3488 = vunpack.c.l.s4 1983009808
        %v3489 = vunpack.c.0.s8 %v3488
        %v3490 = vperm.slane %v3486, %v3489
        %v3491 = vsel %vm1004, %v3090, %v3079
        %v3493 = vunpack.c.l.s4 1983009808
        %v3494 = vunpack.c.0.s8 %v3493
        %v3495 = vperm.slane %v3491, %v3494
        %v3496 = vrot.slane %v3091, 4
        %v3497 = vsel %vm1004, %v3496, %v3089
        %v3499 = vunpack.c.l.s4 1983009808
        %v3500 = vunpack.c.0.s8 %v3499
        %v3501 = vperm.slane %v3497, %v3500
        %v3502 = vrot.slane %v3490, 4
        %v3503 = vsel %vm1004, %v3502, %v3484
        %v3504 = vrot.slane %v3484, 4
        %v3505 = vsel %vm1004, %v3490, %v3504
        %v3507 = vunpack.c.l.s4 1934713408
        %v3508 = vunpack.c.0.s8 %v3507
        %v3509 = vperm.slane %v3503, %v3508
        %v3511 = vunpack.c.l.s4 1934713408
        %v3512 = vunpack.c.0.s8 %v3511
        %v3513 = vperm.slane %v3505, %v3512
        %v3514 = vrot.slane %v3501, 4
        %v3515 = vsel %vm1004, %v3514, %v3495
        %v3516 = vrot.slane %v3495, 4
        %v3517 = vsel %vm1004, %v3501, %v3516
        %v3519 = vunpack.c.l.s4 1934713408
        %v3520 = vunpack.c.0.s8 %v3519
        %v3521 = vperm.slane %v3515, %v3520
        %v3523 = vunpack.c.l.s4 1934713408
        %v3524 = vunpack.c.0.s8 %v3523
        %v3525 = vperm.slane %v3517, %v3524
        %v3526 = vrot.slane %v3521, 4
        %v3527 = vsel %vm1004, %v3526, %v3509
        %v3528 = vrot.slane %v3509, 4
        %v3529 = vsel %vm1004, %v3521, %v3528
        %v3530 = vrot.slane %v3525, 4
        %v3531 = vsel %vm1004, %v3530, %v3513
        %v3532 = vrot.slane %v3513, 4
        %v3533 = vsel %vm1004, %v3525, %v3532
        %v3534 = vsel %vm1004, %v3142, %v3123
        %v3536 = vunpack.c.l.s4 1983009808
        %v3537 = vunpack.c.0.s8 %v3536
        %v3538 = vperm.slane %v3534, %v3537
        %v3539 = vrot.slane %v3143, 4
        %v3540 = vsel %vm1004, %v3539, %v3141
        %v3542 = vunpack.c.l.s4 1983009808
        %v3543 = vunpack.c.0.s8 %v3542
        %v3544 = vperm.slane %v3540, %v3543
        %v3545 = vsel %vm1004, %v3146, %v3135
        %v3547 = vunpack.c.l.s4 1983009808
        %v3548 = vunpack.c.0.s8 %v3547
        %v3549 = vperm.slane %v3545, %v3548
        %v3550 = vrot.slane %v3147, 4
        %v3551 = vsel %vm1004, %v3550, %v3145
        %v3553 = vunpack.c.l.s4 1983009808
        %v3554 = vunpack.c.0.s8 %v3553
        %v3555 = vperm.slane %v3551, %v3554
        %v3556 = vrot.slane %v3544, 4
        %v3557 = vsel %vm1004, %v3556, %v3538
        %v3558 = vrot.slane %v3538, 4
        %v3559 = vsel %vm1004, %v3544, %v3558
        %v3561 = vunpack.c.l.s4 1934713408
        %v3562 = vunpack.c.0.s8 %v3561
        %v3563 = vperm.slane %v3557, %v3562
        %v3565 = vunpack.c.l.s4 1934713408
        %v3566 = vunpack.c.0.s8 %v3565
        %v3567 = vperm.slane %v3559, %v3566
        %v3568 = vrot.slane %v3555, 4
        %v3569 = vsel %vm1004, %v3568, %v3549
        %v3570 = vrot.slane %v3549, 4
        %v3571 = vsel %vm1004, %v3555, %v3570
        %v3573 = vunpack.c.l.s4 1934713408
        %v3574 = vunpack.c.0.s8 %v3573
        %v3575 = vperm.slane %v3569, %v3574
        %v3577 = vunpack.c.l.s4 1934713408
        %v3578 = vunpack.c.0.s8 %v3577
        %v3579 = vperm.slane %v3571, %v3578
        %v3580 = vrot.slane %v3575, 4
        %v3581 = vsel %vm1004, %v3580, %v3563
        %v3582 = vrot.slane %v3563, 4
        %v3583 = vsel %vm1004, %v3575, %v3582
        %v3584 = vrot.slane %v3579, 4
        %v3585 = vsel %vm1004, %v3584, %v3567
        %v3586 = vrot.slane %v3567, 4
        %v3587 = vsel %vm1004, %v3579, %v3586
        %v3588 = vsel %vm1004, %v3198, %v3179
        %v3590 = vunpack.c.l.s4 1983009808
        %v3591 = vunpack.c.0.s8 %v3590
        %v3592 = vperm.slane %v3588, %v3591
        %v3593 = vrot.slane %v3199, 4
        %v3594 = vsel %vm1004, %v3593, %v3197
        %v3596 = vunpack.c.l.s4 1983009808
        %v3597 = vunpack.c.0.s8 %v3596
        %v3598 = vperm.slane %v3594, %v3597
        %v3599 = vsel %vm1004, %v3202, %v3191
        %v3601 = vunpack.c.l.s4 1983009808
        %v3602 = vunpack.c.0.s8 %v3601
        %v3603 = vperm.slane %v3599, %v3602
        %v3604 = vrot.slane %v3203, 4
        %v3605 = vsel %vm1004, %v3604, %v3201
        %v3607 = vunpack.c.l.s4 1983009808
        %v3608 = vunpack.c.0.s8 %v3607
        %v3609 = vperm.slane %v3605, %v3608
        %v3610 = vrot.slane %v3598, 4
        %v3611 = vsel %vm1004, %v3610, %v3592
        %v3612 = vrot.slane %v3592, 4
        %v3613 = vsel %vm1004, %v3598, %v3612
        %v3615 = vunpack.c.l.s4 1934713408
        %v3616 = vunpack.c.0.s8 %v3615
        %v3617 = vperm.slane %v3611, %v3616
        %v3619 = vunpack.c.l.s4 1934713408
        %v3620 = vunpack.c.0.s8 %v3619
        %v3621 = vperm.slane %v3613, %v3620
        %v3622 = vrot.slane %v3609, 4
        %v3623 = vsel %vm1004, %v3622, %v3603
        %v3624 = vrot.slane %v3603, 4
        %v3625 = vsel %vm1004, %v3609, %v3624
        %v3627 = vunpack.c.l.s4 1934713408
        %v3628 = vunpack.c.0.s8 %v3627
        %v3629 = vperm.slane %v3623, %v3628
        %v3631 = vunpack.c.l.s4 1934713408
        %v3632 = vunpack.c.0.s8 %v3631
        %v3633 = vperm.slane %v3625, %v3632
        %v3634 = vrot.slane %v3629, 4
        %v3635 = vsel %vm1004, %v3634, %v3617
        %v3636 = vrot.slane %v3617, 4
        %v3637 = vsel %vm1004, %v3629, %v3636
        %v3638 = vrot.slane %v3633, 4
        %v3639 = vsel %vm1004, %v3638, %v3621
        %v3640 = vrot.slane %v3621, 4
        %v3641 = vsel %vm1004, %v3633, %v3640
        %v3642 = vsel %vm1004, %v3254, %v3235
        %v3644 = vunpack.c.l.s4 1983009808
        %v3645 = vunpack.c.0.s8 %v3644
        %v3646 = vperm.slane %v3642, %v3645
        %v3647 = vrot.slane %v3255, 4
        %v3648 = vsel %vm1004, %v3647, %v3253
        %v3650 = vunpack.c.l.s4 1983009808
        %v3651 = vunpack.c.0.s8 %v3650
        %v3652 = vperm.slane %v3648, %v3651
        %v3653 = vsel %vm1004, %v3258, %v3247
        %v3655 = vunpack.c.l.s4 1983009808
        %v3656 = vunpack.c.0.s8 %v3655
        %v3657 = vperm.slane %v3653, %v3656
        %v3658 = vrot.slane %v3259, 4
        %v3659 = vsel %vm1004, %v3658, %v3257
        %v3661 = vunpack.c.l.s4 1983009808
        %v3662 = vunpack.c.0.s8 %v3661
        %v3663 = vperm.slane %v3659, %v3662
        %v3664 = vrot.slane %v3652, 4
        %v3665 = vsel %vm1004, %v3664, %v3646
        %v3666 = vrot.slane %v3646, 4
        %v3667 = vsel %vm1004, %v3652, %v3666
        %v3669 = vunpack.c.l.s4 1934713408
        %v3670 = vunpack.c.0.s8 %v3669
        %v3671 = vperm.slane %v3665, %v3670
        %v3673 = vunpack.c.l.s4 1934713408
        %v3674 = vunpack.c.0.s8 %v3673
        %v3675 = vperm.slane %v3667, %v3674
        %v3676 = vrot.slane %v3663, 4
        %v3677 = vsel %vm1004, %v3676, %v3657
        %v3678 = vrot.slane %v3657, 4
        %v3679 = vsel %vm1004, %v3663, %v3678
        %v3681 = vunpack.c.l.s4 1934713408
        %v3682 = vunpack.c.0.s8 %v3681
        %v3683 = vperm.slane %v3677, %v3682
        %v3685 = vunpack.c.l.s4 1934713408
        %v3686 = vunpack.c.0.s8 %v3685
        %v3687 = vperm.slane %v3679, %v3686
        %v3688 = vrot.slane %v3683, 4
        %v3689 = vsel %vm1004, %v3688, %v3671
        %v3690 = vrot.slane %v3671, 4
        %v3691 = vsel %vm1004, %v3683, %v3690
        %v3692 = vrot.slane %v3687, 4
        %v3693 = vsel %vm1004, %v3692, %v3675
        %v3694 = vrot.slane %v3675, 4
        %v3695 = vsel %vm1004, %v3687, %v3694
        %v3696 = vsel %vm1004, %v3310, %v3291
        %v3698 = vunpack.c.l.s4 1983009808
        %v3699 = vunpack.c.0.s8 %v3698
        %v3700 = vperm.slane %v3696, %v3699
        %v3701 = vrot.slane %v3311, 4
        %v3702 = vsel %vm1004, %v3701, %v3309
        %v3704 = vunpack.c.l.s4 1983009808
        %v3705 = vunpack.c.0.s8 %v3704
        %v3706 = vperm.slane %v3702, %v3705
        %v3707 = vsel %vm1004, %v3314, %v3303
        %v3709 = vunpack.c.l.s4 1983009808
        %v3710 = vunpack.c.0.s8 %v3709
        %v3711 = vperm.slane %v3707, %v3710
        %v3712 = vrot.slane %v3315, 4
        %v3713 = vsel %vm1004, %v3712, %v3313
        %v3715 = vunpack.c.l.s4 1983009808
        %v3716 = vunpack.c.0.s8 %v3715
        %v3717 = vperm.slane %v3713, %v3716
        %v3718 = vrot.slane %v3706, 4
        %v3719 = vsel %vm1004, %v3718, %v3700
        %v3720 = vrot.slane %v3700, 4
        %v3721 = vsel %vm1004, %v3706, %v3720
        %v3723 = vunpack.c.l.s4 1934713408
        %v3724 = vunpack.c.0.s8 %v3723
        %v3725 = vperm.slane %v3719, %v3724
        %v3727 = vunpack.c.l.s4 1934713408
        %v3728 = vunpack.c.0.s8 %v3727
        %v3729 = vperm.slane %v3721, %v3728
        %v3730 = vrot.slane %v3717, 4
        %v3731 = vsel %vm1004, %v3730, %v3711
        %v3732 = vrot.slane %v3711, 4
        %v3733 = vsel %vm1004, %v3717, %v3732
        %v3735 = vunpack.c.l.s4 1934713408
        %v3736 = vunpack.c.0.s8 %v3735
        %v3737 = vperm.slane %v3731, %v3736
        %v3739 = vunpack.c.l.s4 1934713408
        %v3740 = vunpack.c.0.s8 %v3739
        %v3741 = vperm.slane %v3733, %v3740
        %v3742 = vrot.slane %v3737, 4
        %v3743 = vsel %vm1004, %v3742, %v3725
        %v3744 = vrot.slane %v3725, 4
        %v3745 = vsel %vm1004, %v3737, %v3744
        %v3746 = vrot.slane %v3741, 4
        %v3747 = vsel %vm1004, %v3746, %v3729
        %v3748 = vrot.slane %v3729, 4
        %v3749 = vsel %vm1004, %v3741, %v3748
        %v3750 = vsel %vm1004, %v3366, %v3347
        %v3752 = vunpack.c.l.s4 1983009808
        %v3753 = vunpack.c.0.s8 %v3752
        %v3754 = vperm.slane %v3750, %v3753
        %v3755 = vrot.slane %v3367, 4
        %v3756 = vsel %vm1004, %v3755, %v3365
        %v3758 = vunpack.c.l.s4 1983009808
        %v3759 = vunpack.c.0.s8 %v3758
        %v3760 = vperm.slane %v3756, %v3759
        %v3761 = vsel %vm1004, %v3370, %v3359
        %v3763 = vunpack.c.l.s4 1983009808
        %v3764 = vunpack.c.0.s8 %v3763
        %v3765 = vperm.slane %v3761, %v3764
        %v3766 = vrot.slane %v3371, 4
        %v3767 = vsel %vm1004, %v3766, %v3369
        %v3769 = vunpack.c.l.s4 1983009808
        %v3770 = vunpack.c.0.s8 %v3769
        %v3771 = vperm.slane %v3767, %v3770
        %v3772 = vrot.slane %v3760, 4
        %v3773 = vsel %vm1004, %v3772, %v3754
        %v3774 = vrot.slane %v3754, 4
        %v3775 = vsel %vm1004, %v3760, %v3774
        %v3777 = vunpack.c.l.s4 1934713408
        %v3778 = vunpack.c.0.s8 %v3777
        %v3779 = vperm.slane %v3773, %v3778
        %v3781 = vunpack.c.l.s4 1934713408
        %v3782 = vunpack.c.0.s8 %v3781
        %v3783 = vperm.slane %v3775, %v3782
        %v3784 = vrot.slane %v3771, 4
        %v3785 = vsel %vm1004, %v3784, %v3765
        %v3786 = vrot.slane %v3765, 4
        %v3787 = vsel %vm1004, %v3771, %v3786
        %v3789 = vunpack.c.l.s4 1934713408
        %v3790 = vunpack.c.0.s8 %v3789
        %v3791 = vperm.slane %v3785, %v3790
        %v3793 = vunpack.c.l.s4 1934713408
        %v3794 = vunpack.c.0.s8 %v3793
        %v3795 = vperm.slane %v3787, %v3794
        %v3796 = vrot.slane %v3791, 4
        %v3797 = vsel %vm1004, %v3796, %v3779
        %v3798 = vrot.slane %v3779, 4
        %v3799 = vsel %vm1004, %v3791, %v3798
        %v3800 = vrot.slane %v3795, 4
        %v3801 = vsel %vm1004, %v3800, %v3783
        %v3802 = vrot.slane %v3783, 4
        %v3803 = vsel %vm1004, %v3795, %v3802
        %vm3804 = vcmask 261120
        %v3806 = vsel %vm3804, %v1499, 0
        %v3809 = vsel %vm3804, %v1553, 0
        %v3812 = vsel %vm3804, %v1607, 0
        %v3815 = vsel %vm3804, %v1661, 0
        %v3818 = vsel %vm3804, %v2459, 0
        %v3821 = vsel %vm3804, %v2513, 0
        %v3824 = vsel %vm3804, %v2567, 0
        %v3827 = vsel %vm3804, %v2621, 0
        %3829 = vmatpush.xpose.msra.mxu0 0.0
        %3830 = vmatpush.xpose.msra.mxu0 0.0
        %3831 = vmatpush.xpose.msra.mxu0 0.0
        %3832 = vmatpush.xpose.msra.mxu0 0.0
        %3833 = vmatpush.xpose.msra.mxu0 0.0
        %3834 = vmatpush.xpose.msra.mxu0 0.0
        %3835 = vmatpush.xpose.msra.mxu0 0.0
        %3836 = vmatpush.xpose.msra.mxu0 0.0
        %3837 = vmatpush.xpose.msra.mxu0 0.0
        %3838 = vmatpush.xpose.msra.mxu0 0.0
        %3839 = vmatpush.xpose.msra.mxu0 0.0
        %3840 = vmatpush.xpose.msra.mxu0 0.0
        %3841 = vmatpush.xpose.msra.mxu0 %v3827
        %3842 = vmatpush.xpose.msra.mxu0 %v3824
        %3843 = vmatpush.xpose.msra.mxu0 %v3821
        %3844 = vmatpush.xpose.msra.mxu0 %v3818
        %3845 = vmatmul.f32.gmra.mxu0 %v3806
        %v3846 = vpop.f32.mrf.mxu0
        %v3847 = vadd.f32 0.0, %v3846
        %3848 = vmatmul.f32.gmra.mxu0 %v3809
        %v3849 = vpop.f32.mrf.mxu0
        %v3850 = vadd.f32 0.0, %v3849
        %3851 = vmatmul.f32.gmra.mxu0 %v3812
        %v3852 = vpop.f32.mrf.mxu0
        %v3853 = vadd.f32 0.0, %v3852
        %3854 = vmatmul.f32.gmra.mxu0 %v3815
        %v3855 = vpop.f32.mrf.mxu0
        %v3856 = vadd.f32 0.0, %v3855
        %3857 = vdwg.mxu0
        %v3859 = vsel %vm3804, %v1501, 0
        %v3862 = vsel %vm3804, %v1555, 0
        %v3865 = vsel %vm3804, %v1609, 0
        %v3868 = vsel %vm3804, %v1663, 0
        %v3871 = vsel %vm3804, %v2461, 0
        %v3874 = vsel %vm3804, %v2515, 0
        %v3877 = vsel %vm3804, %v2569, 0
        %v3880 = vsel %vm3804, %v2623, 0
        %3882 = vmatpush.xpose.msra.mxu0 0.0
        %3883 = vmatpush.xpose.msra.mxu0 0.0
        %3884 = vmatpush.xpose.msra.mxu0 0.0
        %3885 = vmatpush.xpose.msra.mxu0 0.0
        %3886 = vmatpush.xpose.msra.mxu0 0.0
        %3887 = vmatpush.xpose.msra.mxu0 0.0
        %3888 = vmatpush.xpose.msra.mxu0 0.0
        %3889 = vmatpush.xpose.msra.mxu0 0.0
        %3890 = vmatpush.xpose.msra.mxu0 0.0
        %3891 = vmatpush.xpose.msra.mxu0 0.0
        %3892 = vmatpush.xpose.msra.mxu0 0.0
        %3893 = vmatpush.xpose.msra.mxu0 0.0
        %3894 = vmatpush.xpose.msra.mxu0 %v3880
        %3895 = vmatpush.xpose.msra.mxu0 %v3877
        %3896 = vmatpush.xpose.msra.mxu0 %v3874
        %3897 = vmatpush.xpose.msra.mxu0 %v3871
        %3898 = vmatmul.f32.gmra.mxu0 %v3859
        %v3899 = vpop.f32.mrf.mxu0
        %v3900 = vadd.f32 0.0, %v3899
        %3901 = vmatmul.f32.gmra.mxu0 %v3862
        %v3902 = vpop.f32.mrf.mxu0
        %v3903 = vadd.f32 0.0, %v3902
        %3904 = vmatmul.f32.gmra.mxu0 %v3865
        %v3905 = vpop.f32.mrf.mxu0
        %v3906 = vadd.f32 0.0, %v3905
        %3907 = vmatmul.f32.gmra.mxu0 %v3868
        %v3908 = vpop.f32.mrf.mxu0
        %v3909 = vadd.f32 0.0, %v3908
        %3910 = vdwg.mxu0
        %v3912 = vsel %vm3804, %v1503, 0
        %v3915 = vsel %vm3804, %v1557, 0
        %v3918 = vsel %vm3804, %v1611, 0
        %v3921 = vsel %vm3804, %v1665, 0
        %v3924 = vsel %vm3804, %v2463, 0
        %v3927 = vsel %vm3804, %v2517, 0
        %v3930 = vsel %vm3804, %v2571, 0
        %v3933 = vsel %vm3804, %v2625, 0
        %3935 = vmatpush.xpose.msra.mxu0 0.0
        %3936 = vmatpush.xpose.msra.mxu0 0.0
        %3937 = vmatpush.xpose.msra.mxu0 0.0
        %3938 = vmatpush.xpose.msra.mxu0 0.0
        %3939 = vmatpush.xpose.msra.mxu0 0.0
        %3940 = vmatpush.xpose.msra.mxu0 0.0
        %3941 = vmatpush.xpose.msra.mxu0 0.0
        %3942 = vmatpush.xpose.msra.mxu0 0.0
        %3943 = vmatpush.xpose.msra.mxu0 0.0
        %3944 = vmatpush.xpose.msra.mxu0 0.0
        %3945 = vmatpush.xpose.msra.mxu0 0.0
        %3946 = vmatpush.xpose.msra.mxu0 0.0
        %3947 = vmatpush.xpose.msra.mxu0 %v3933
        %3948 = vmatpush.xpose.msra.mxu0 %v3930
        %3949 = vmatpush.xpose.msra.mxu0 %v3927
        %3950 = vmatpush.xpose.msra.mxu0 %v3924
        %3951 = vmatmul.f32.gmra.mxu0 %v3912
        %v3952 = vpop.f32.mrf.mxu0
        %v3953 = vadd.f32 0.0, %v3952
        %3954 = vmatmul.f32.gmra.mxu0 %v3915
        %v3955 = vpop.f32.mrf.mxu0
        %v3956 = vadd.f32 0.0, %v3955
        %3957 = vmatmul.f32.gmra.mxu0 %v3918
        %v3958 = vpop.f32.mrf.mxu0
        %v3959 = vadd.f32 0.0, %v3958
        %3960 = vmatmul.f32.gmra.mxu0 %v3921
        %v3961 = vpop.f32.mrf.mxu0
        %v3962 = vadd.f32 0.0, %v3961
        %3963 = vdwg.mxu0
        %v3965 = vsel %vm3804, %v1505, 0
        %v3968 = vsel %vm3804, %v1559, 0
        %v3971 = vsel %vm3804, %v1613, 0
        %v3974 = vsel %vm3804, %v1667, 0
        %v3977 = vsel %vm3804, %v2465, 0
        %v3980 = vsel %vm3804, %v2519, 0
        %v3983 = vsel %vm3804, %v2573, 0
        %v3986 = vsel %vm3804, %v2627, 0
        %3988 = vmatpush.xpose.msra.mxu0 0.0
        %3989 = vmatpush.xpose.msra.mxu0 0.0
        %3990 = vmatpush.xpose.msra.mxu0 0.0
        %3991 = vmatpush.xpose.msra.mxu0 0.0
        %3992 = vmatpush.xpose.msra.mxu0 0.0
        %3993 = vmatpush.xpose.msra.mxu0 0.0
        %3994 = vmatpush.xpose.msra.mxu0 0.0
        %3995 = vmatpush.xpose.msra.mxu0 0.0
        %3996 = vmatpush.xpose.msra.mxu0 0.0
        %3997 = vmatpush.xpose.msra.mxu0 0.0
        %3998 = vmatpush.xpose.msra.mxu0 0.0
        %3999 = vmatpush.xpose.msra.mxu0 0.0
        %4000 = vmatpush.xpose.msra.mxu0 %v3986
        %4001 = vmatpush.xpose.msra.mxu0 %v3983
        %4002 = vmatpush.xpose.msra.mxu0 %v3980
        %4003 = vmatpush.xpose.msra.mxu0 %v3977
        %4004 = vmatmul.f32.gmra.mxu0 %v3965
        %v4005 = vpop.f32.mrf.mxu0
        %v4006 = vadd.f32 0.0, %v4005
        %4007 = vmatmul.f32.gmra.mxu0 %v3968
        %v4008 = vpop.f32.mrf.mxu0
        %v4009 = vadd.f32 0.0, %v4008
        %4010 = vmatmul.f32.gmra.mxu0 %v3971
        %v4011 = vpop.f32.mrf.mxu0
        %v4012 = vadd.f32 0.0, %v4011
        %4013 = vmatmul.f32.gmra.mxu0 %v3974
        %v4014 = vpop.f32.mrf.mxu0
        %v4015 = vadd.f32 0.0, %v4014
        %4016 = vdwg.mxu0
        %v4018 = vsel %vm3804, %v1715, 0
        %v4021 = vsel %vm3804, %v1769, 0
        %v4024 = vsel %vm3804, %v1823, 0
        %v4027 = vsel %vm3804, %v1877, 0
        %v4030 = vsel %vm3804, %v2675, 0
        %v4033 = vsel %vm3804, %v2729, 0
        %v4036 = vsel %vm3804, %v2783, 0
        %v4039 = vsel %vm3804, %v2837, 0
        %4041 = vmatpush.xpose.msra.mxu0 0.0
        %4042 = vmatpush.xpose.msra.mxu0 0.0
        %4043 = vmatpush.xpose.msra.mxu0 0.0
        %4044 = vmatpush.xpose.msra.mxu0 0.0
        %4045 = vmatpush.xpose.msra.mxu0 0.0
        %4046 = vmatpush.xpose.msra.mxu0 0.0
        %4047 = vmatpush.xpose.msra.mxu0 0.0
        %4048 = vmatpush.xpose.msra.mxu0 0.0
        %4049 = vmatpush.xpose.msra.mxu0 0.0
        %4050 = vmatpush.xpose.msra.mxu0 0.0
        %4051 = vmatpush.xpose.msra.mxu0 0.0
        %4052 = vmatpush.xpose.msra.mxu0 0.0
        %4053 = vmatpush.xpose.msra.mxu0 %v4039
        %4054 = vmatpush.xpose.msra.mxu0 %v4036
        %4055 = vmatpush.xpose.msra.mxu0 %v4033
        %4056 = vmatpush.xpose.msra.mxu0 %v4030
        %4057 = vmatmul.f32.gmra.mxu0 %v4018
        %v4058 = vpop.f32.mrf.mxu0
        %v4059 = vadd.f32 0.0, %v4058
        %4060 = vmatmul.f32.gmra.mxu0 %v4021
        %v4061 = vpop.f32.mrf.mxu0
        %v4062 = vadd.f32 0.0, %v4061
        %4063 = vmatmul.f32.gmra.mxu0 %v4024
        %v4064 = vpop.f32.mrf.mxu0
        %v4065 = vadd.f32 0.0, %v4064
        %4066 = vmatmul.f32.gmra.mxu0 %v4027
        %v4067 = vpop.f32.mrf.mxu0
        %v4068 = vadd.f32 0.0, %v4067
        %4069 = vdwg.mxu0
        %v4071 = vsel %vm3804, %v1717, 0
        %v4074 = vsel %vm3804, %v1771, 0
        %v4077 = vsel %vm3804, %v1825, 0
        %v4080 = vsel %vm3804, %v1879, 0
        %v4083 = vsel %vm3804, %v2677, 0
        %v4086 = vsel %vm3804, %v2731, 0
        %v4089 = vsel %vm3804, %v2785, 0
        %v4092 = vsel %vm3804, %v2839, 0
        %4094 = vmatpush.xpose.msra.mxu0 0.0
        %4095 = vmatpush.xpose.msra.mxu0 0.0
        %4096 = vmatpush.xpose.msra.mxu0 0.0
        %4097 = vmatpush.xpose.msra.mxu0 0.0
        %4098 = vmatpush.xpose.msra.mxu0 0.0
        %4099 = vmatpush.xpose.msra.mxu0 0.0
        %4100 = vmatpush.xpose.msra.mxu0 0.0
        %4101 = vmatpush.xpose.msra.mxu0 0.0
        %4102 = vmatpush.xpose.msra.mxu0 0.0
        %4103 = vmatpush.xpose.msra.mxu0 0.0
        %4104 = vmatpush.xpose.msra.mxu0 0.0
        %4105 = vmatpush.xpose.msra.mxu0 0.0
        %4106 = vmatpush.xpose.msra.mxu0 %v4092
        %4107 = vmatpush.xpose.msra.mxu0 %v4089
        %4108 = vmatpush.xpose.msra.mxu0 %v4086
        %4109 = vmatpush.xpose.msra.mxu0 %v4083
        %4110 = vmatmul.f32.gmra.mxu0 %v4071
        %v4111 = vpop.f32.mrf.mxu0
        %v4112 = vadd.f32 0.0, %v4111
        %4113 = vmatmul.f32.gmra.mxu0 %v4074
        %v4114 = vpop.f32.mrf.mxu0
        %v4115 = vadd.f32 0.0, %v4114
        %4116 = vmatmul.f32.gmra.mxu0 %v4077
        %v4117 = vpop.f32.mrf.mxu0
        %v4118 = vadd.f32 0.0, %v4117
        %4119 = vmatmul.f32.gmra.mxu0 %v4080
        %v4120 = vpop.f32.mrf.mxu0
        %v4121 = vadd.f32 0.0, %v4120
        %4122 = vdwg.mxu0
        %v4124 = vsel %vm3804, %v1719, 0
        %v4127 = vsel %vm3804, %v1773, 0
        %v4130 = vsel %vm3804, %v1827, 0
        %v4133 = vsel %vm3804, %v1881, 0
        %v4136 = vsel %vm3804, %v2679, 0
        %v4139 = vsel %vm3804, %v2733, 0
        %v4142 = vsel %vm3804, %v2787, 0
        %v4145 = vsel %vm3804, %v2841, 0
        %4147 = vmatpush.xpose.msra.mxu0 0.0
        %4148 = vmatpush.xpose.msra.mxu0 0.0
        %4149 = vmatpush.xpose.msra.mxu0 0.0
        %4150 = vmatpush.xpose.msra.mxu0 0.0
        %4151 = vmatpush.xpose.msra.mxu0 0.0
        %4152 = vmatpush.xpose.msra.mxu0 0.0
        %4153 = vmatpush.xpose.msra.mxu0 0.0
        %4154 = vmatpush.xpose.msra.mxu0 0.0
        %4155 = vmatpush.xpose.msra.mxu0 0.0
        %4156 = vmatpush.xpose.msra.mxu0 0.0
        %4157 = vmatpush.xpose.msra.mxu0 0.0
        %4158 = vmatpush.xpose.msra.mxu0 0.0
        %4159 = vmatpush.xpose.msra.mxu0 %v4145
        %4160 = vmatpush.xpose.msra.mxu0 %v4142
        %4161 = vmatpush.xpose.msra.mxu0 %v4139
        %4162 = vmatpush.xpose.msra.mxu0 %v4136
        %4163 = vmatmul.f32.gmra.mxu0 %v4124
        %v4164 = vpop.f32.mrf.mxu0
        %v4165 = vadd.f32 0.0, %v4164
        %4166 = vmatmul.f32.gmra.mxu0 %v4127
        %v4167 = vpop.f32.mrf.mxu0
        %v4168 = vadd.f32 0.0, %v4167
        %4169 = vmatmul.f32.gmra.mxu0 %v4130
        %v4170 = vpop.f32.mrf.mxu0
        %v4171 = vadd.f32 0.0, %v4170
        %4172 = vmatmul.f32.gmra.mxu0 %v4133
        %v4173 = vpop.f32.mrf.mxu0
        %v4174 = vadd.f32 0.0, %v4173
        %4175 = vdwg.mxu0
        %v4177 = vsel %vm3804, %v1721, 0
        %v4180 = vsel %vm3804, %v1775, 0
        %v4183 = vsel %vm3804, %v1829, 0
        %v4186 = vsel %vm3804, %v1883, 0
        %v4189 = vsel %vm3804, %v2681, 0
        %v4192 = vsel %vm3804, %v2735, 0
        %v4195 = vsel %vm3804, %v2789, 0
        %v4198 = vsel %vm3804, %v2843, 0
        %4200 = vmatpush.xpose.msra.mxu0 0.0
        %4201 = vmatpush.xpose.msra.mxu0 0.0
        %4202 = vmatpush.xpose.msra.mxu0 0.0
        %4203 = vmatpush.xpose.msra.mxu0 0.0
        %4204 = vmatpush.xpose.msra.mxu0 0.0
        %4205 = vmatpush.xpose.msra.mxu0 0.0
        %4206 = vmatpush.xpose.msra.mxu0 0.0
        %4207 = vmatpush.xpose.msra.mxu0 0.0
        %4208 = vmatpush.xpose.msra.mxu0 0.0
        %4209 = vmatpush.xpose.msra.mxu0 0.0
        %4210 = vmatpush.xpose.msra.mxu0 0.0
        %4211 = vmatpush.xpose.msra.mxu0 0.0
        %4212 = vmatpush.xpose.msra.mxu0 %v4198
        %4213 = vmatpush.xpose.msra.mxu0 %v4195
        %4214 = vmatpush.xpose.msra.mxu0 %v4192
        %4215 = vmatpush.xpose.msra.mxu0 %v4189
        %4216 = vmatmul.f32.gmra.mxu0 %v4177
        %v4217 = vpop.f32.mrf.mxu0
        %v4218 = vadd.f32 0.0, %v4217
        %4219 = vmatmul.f32.gmra.mxu0 %v4180
        %v4220 = vpop.f32.mrf.mxu0
        %v4221 = vadd.f32 0.0, %v4220
        %4222 = vmatmul.f32.gmra.mxu0 %v4183
        %v4223 = vpop.f32.mrf.mxu0
        %v4224 = vadd.f32 0.0, %v4223
        %4225 = vmatmul.f32.gmra.mxu0 %v4186
        %v4226 = vpop.f32.mrf.mxu0
        %v4227 = vadd.f32 0.0, %v4226
        %4228 = vdwg.mxu0
        %v4229 = vsel %vm3804, %v3847, -inf
        %4230 = vmax.xlane.f32.xlu0 %v4229
        %v4231 = vpop.xlane.xlu0 %4230
        %v4232 = vsel %vm3804, %v3850, -inf
        %4233 = vmax.xlane.f32.xlu0 %v4232
        %v4234 = vpop.xlane.xlu0 %4233
        %v4235 = vsel %vm3804, %v3853, -inf
        %4236 = vmax.xlane.f32.xlu0 %v4235
        %v4237 = vpop.xlane.xlu0 %4236
        %v4238 = vsel %vm3804, %v3856, -inf
        %4239 = vmax.xlane.f32.xlu0 %v4238
        %v4240 = vpop.xlane.xlu0 %4239
        %v4241 = vsel %vm3804, %v3900, -inf
        %4242 = vmax.xlane.f32.xlu0 %v4241
        %v4243 = vpop.xlane.xlu0 %4242
        %v4244 = vsel %vm3804, %v3903, -inf
        %4245 = vmax.xlane.f32.xlu0 %v4244
        %v4246 = vpop.xlane.xlu0 %4245
        %v4247 = vsel %vm3804, %v3906, -inf
        %4248 = vmax.xlane.f32.xlu0 %v4247
        %v4249 = vpop.xlane.xlu0 %4248
        %v4250 = vsel %vm3804, %v3909, -inf
        %4251 = vmax.xlane.f32.xlu0 %v4250
        %v4252 = vpop.xlane.xlu0 %4251
        %v4253 = vsel %vm3804, %v3953, -inf
        %4254 = vmax.xlane.f32.xlu0 %v4253
        %v4255 = vpop.xlane.xlu0 %4254
        %v4256 = vsel %vm3804, %v3956, -inf
        %4257 = vmax.xlane.f32.xlu0 %v4256
        %v4258 = vpop.xlane.xlu0 %4257
        %v4259 = vsel %vm3804, %v3959, -inf
        %4260 = vmax.xlane.f32.xlu0 %v4259
        %v4261 = vpop.xlane.xlu0 %4260
        %v4262 = vsel %vm3804, %v3962, -inf
        %4263 = vmax.xlane.f32.xlu0 %v4262
        %v4264 = vpop.xlane.xlu0 %4263
        %v4265 = vsel %vm3804, %v4006, -inf
        %4266 = vmax.xlane.f32.xlu0 %v4265
        %v4267 = vpop.xlane.xlu0 %4266
        %v4268 = vsel %vm3804, %v4009, -inf
        %4269 = vmax.xlane.f32.xlu0 %v4268
        %v4270 = vpop.xlane.xlu0 %4269
        %v4271 = vsel %vm3804, %v4012, -inf
        %4272 = vmax.xlane.f32.xlu0 %v4271
        %v4273 = vpop.xlane.xlu0 %4272
        %v4274 = vsel %vm3804, %v4015, -inf
        %4275 = vmax.xlane.f32.xlu0 %v4274
        %v4276 = vpop.xlane.xlu0 %4275
        %v4277 = vsel %vm3804, %v4059, -inf
        %4278 = vmax.xlane.f32.xlu0 %v4277
        %v4279 = vpop.xlane.xlu0 %4278
        %v4280 = vsel %vm3804, %v4062, -inf
        %4281 = vmax.xlane.f32.xlu0 %v4280
        %v4282 = vpop.xlane.xlu0 %4281
        %v4283 = vsel %vm3804, %v4065, -inf
        %4284 = vmax.xlane.f32.xlu0 %v4283
        %v4285 = vpop.xlane.xlu0 %4284
        %v4286 = vsel %vm3804, %v4068, -inf
        %4287 = vmax.xlane.f32.xlu0 %v4286
        %v4288 = vpop.xlane.xlu0 %4287
        %v4289 = vsel %vm3804, %v4112, -inf
        %4290 = vmax.xlane.f32.xlu0 %v4289
        %v4291 = vpop.xlane.xlu0 %4290
        %v4292 = vsel %vm3804, %v4115, -inf
        %4293 = vmax.xlane.f32.xlu0 %v4292
        %v4294 = vpop.xlane.xlu0 %4293
        %v4295 = vsel %vm3804, %v4118, -inf
        %4296 = vmax.xlane.f32.xlu0 %v4295
        %v4297 = vpop.xlane.xlu0 %4296
        %v4298 = vsel %vm3804, %v4121, -inf
        %4299 = vmax.xlane.f32.xlu0 %v4298
        %v4300 = vpop.xlane.xlu0 %4299
        %v4301 = vsel %vm3804, %v4165, -inf
        %4302 = vmax.xlane.f32.xlu0 %v4301
        %v4303 = vpop.xlane.xlu0 %4302
        %v4304 = vsel %vm3804, %v4168, -inf
        %4305 = vmax.xlane.f32.xlu0 %v4304
        %v4306 = vpop.xlane.xlu0 %4305
        %v4307 = vsel %vm3804, %v4171, -inf
        %4308 = vmax.xlane.f32.xlu0 %v4307
        %v4309 = vpop.xlane.xlu0 %4308
        %v4310 = vsel %vm3804, %v4174, -inf
        %4311 = vmax.xlane.f32.xlu0 %v4310
        %v4312 = vpop.xlane.xlu0 %4311
        %v4313 = vsel %vm3804, %v4218, -inf
        %4314 = vmax.xlane.f32.xlu0 %v4313
        %v4315 = vpop.xlane.xlu0 %4314
        %v4316 = vsel %vm3804, %v4221, -inf
        %4317 = vmax.xlane.f32.xlu0 %v4316
        %v4318 = vpop.xlane.xlu0 %4317
        %v4319 = vsel %vm3804, %v4224, -inf
        %4320 = vmax.xlane.f32.xlu0 %v4319
        %v4321 = vpop.xlane.xlu0 %4320
        %v4322 = vsel %vm3804, %v4227, -inf
        %4323 = vmax.xlane.f32.xlu0 %v4322
        %v4324 = vpop.xlane.xlu0 %4323
        %v4325 = vsub.f32 -inf, %v4231
        %v4326 = vsub.f32 -inf, %v4234
        %v4327 = vsub.f32 -inf, %v4237
        %v4328 = vsub.f32 -inf, %v4240
        %v4329 = vsub.f32 -inf, %v4243
        %v4330 = vsub.f32 -inf, %v4246
        %v4331 = vsub.f32 -inf, %v4249
        %v4332 = vsub.f32 -inf, %v4252
        %v4333 = vsub.f32 -inf, %v4255
        %v4334 = vsub.f32 -inf, %v4258
        %v4335 = vsub.f32 -inf, %v4261
        %v4336 = vsub.f32 -inf, %v4264
        %v4337 = vsub.f32 -inf, %v4267
        %v4338 = vsub.f32 -inf, %v4270
        %v4339 = vsub.f32 -inf, %v4273
        %v4340 = vsub.f32 -inf, %v4276
        %v4341 = vsub.f32 -inf, %v4279
        %v4342 = vsub.f32 -inf, %v4282
        %v4343 = vsub.f32 -inf, %v4285
        %v4344 = vsub.f32 -inf, %v4288
        %v4345 = vsub.f32 -inf, %v4291
        %v4346 = vsub.f32 -inf, %v4294
        %v4347 = vsub.f32 -inf, %v4297
        %v4348 = vsub.f32 -inf, %v4300
        %v4349 = vsub.f32 -inf, %v4303
        %v4350 = vsub.f32 -inf, %v4306
        %v4351 = vsub.f32 -inf, %v4309
        %v4352 = vsub.f32 -inf, %v4312
        %v4353 = vsub.f32 -inf, %v4315
        %v4354 = vsub.f32 -inf, %v4318
        %v4355 = vsub.f32 -inf, %v4321
        %v4356 = vsub.f32 -inf, %v4324
        %v4357 = vmul.f32 %v4325, 1.442695
        %v4358 = vpow.pop %v4357
        %v4359 = vmul.f32 %v4326, 1.442695
        %v4360 = vpow.pop %v4359
        %v4361 = vmul.f32 %v4327, 1.442695
        %v4362 = vpow.pop %v4361
        %v4363 = vmul.f32 %v4328, 1.442695
        %v4364 = vpow.pop %v4363
        %v4365 = vmul.f32 %v4329, 1.442695
        %v4366 = vpow.pop %v4365
        %v4367 = vmul.f32 %v4330, 1.442695
        %v4368 = vpow.pop %v4367
        %v4369 = vmul.f32 %v4331, 1.442695
        %v4370 = vpow.pop %v4369
        %v4371 = vmul.f32 %v4332, 1.442695
        %v4372 = vpow.pop %v4371
        %v4373 = vmul.f32 %v4333, 1.442695
        %v4374 = vpow.pop %v4373
        %v4375 = vmul.f32 %v4334, 1.442695
        %v4376 = vpow.pop %v4375
        %v4377 = vmul.f32 %v4335, 1.442695
        %v4378 = vpow.pop %v4377
        %v4379 = vmul.f32 %v4336, 1.442695
        %v4380 = vpow.pop %v4379
        %v4381 = vmul.f32 %v4337, 1.442695
        %v4382 = vpow.pop %v4381
        %v4383 = vmul.f32 %v4338, 1.442695
        %v4384 = vpow.pop %v4383
        %v4385 = vmul.f32 %v4339, 1.442695
        %v4386 = vpow.pop %v4385
        %v4387 = vmul.f32 %v4340, 1.442695
        %v4388 = vpow.pop %v4387
        %v4389 = vmul.f32 %v4341, 1.442695
        %v4390 = vpow.pop %v4389
        %v4391 = vmul.f32 %v4342, 1.442695
        %v4392 = vpow.pop %v4391
        %v4393 = vmul.f32 %v4343, 1.442695
        %v4394 = vpow.pop %v4393
        %v4395 = vmul.f32 %v4344, 1.442695
        %v4396 = vpow.pop %v4395
        %v4397 = vmul.f32 %v4345, 1.442695
        %v4398 = vpow.pop %v4397
        %v4399 = vmul.f32 %v4346, 1.442695
        %v4400 = vpow.pop %v4399
        %v4401 = vmul.f32 %v4347, 1.442695
        %v4402 = vpow.pop %v4401
        %v4403 = vmul.f32 %v4348, 1.442695
        %v4404 = vpow.pop %v4403
        %v4405 = vmul.f32 %v4349, 1.442695
        %v4406 = vpow.pop %v4405
        %v4407 = vmul.f32 %v4350, 1.442695
        %v4408 = vpow.pop %v4407
        %v4409 = vmul.f32 %v4351, 1.442695
        %v4410 = vpow.pop %v4409
        %v4411 = vmul.f32 %v4352, 1.442695
        %v4412 = vpow.pop %v4411
        %v4413 = vmul.f32 %v4353, 1.442695
        %v4414 = vpow.pop %v4413
        %v4415 = vmul.f32 %v4354, 1.442695
        %v4416 = vpow.pop %v4415
        %v4417 = vmul.f32 %v4355, 1.442695
        %v4418 = vpow.pop %v4417
        %v4419 = vmul.f32 %v4356, 1.442695
        %v4420 = vpow.pop %v4419
        %v4421 = vsub.f32 %v3847, %v4231
        %v4422 = vsub.f32 %v3850, %v4234
        %v4423 = vsub.f32 %v3853, %v4237
        %v4424 = vsub.f32 %v3856, %v4240
        %v4425 = vsub.f32 %v3900, %v4243
        %v4426 = vsub.f32 %v3903, %v4246
        %v4427 = vsub.f32 %v3906, %v4249
        %v4428 = vsub.f32 %v3909, %v4252
        %v4429 = vsub.f32 %v3953, %v4255
        %v4430 = vsub.f32 %v3956, %v4258
        %v4431 = vsub.f32 %v3959, %v4261
        %v4432 = vsub.f32 %v3962, %v4264
        %v4433 = vsub.f32 %v4006, %v4267
        %v4434 = vsub.f32 %v4009, %v4270
        %v4435 = vsub.f32 %v4012, %v4273
        %v4436 = vsub.f32 %v4015, %v4276
        %v4437 = vsub.f32 %v4059, %v4279
        %v4438 = vsub.f32 %v4062, %v4282
        %v4439 = vsub.f32 %v4065, %v4285
        %v4440 = vsub.f32 %v4068, %v4288
        %v4441 = vsub.f32 %v4112, %v4291
        %v4442 = vsub.f32 %v4115, %v4294
        %v4443 = vsub.f32 %v4118, %v4297
        %v4444 = vsub.f32 %v4121, %v4300
        %v4445 = vsub.f32 %v4165, %v4303
        %v4446 = vsub.f32 %v4168, %v4306
        %v4447 = vsub.f32 %v4171, %v4309
        %v4448 = vsub.f32 %v4174, %v4312
        %v4449 = vsub.f32 %v4218, %v4315
        %v4450 = vsub.f32 %v4221, %v4318
        %v4451 = vsub.f32 %v4224, %v4321
        %v4452 = vsub.f32 %v4227, %v4324
        %v4453 = vmul.f32 %v4421, 1.442695
        %v4454 = vpow.pop %v4453
        %v4455 = vmul.f32 %v4422, 1.442695
        %v4456 = vpow.pop %v4455
        %v4457 = vmul.f32 %v4423, 1.442695
        %v4458 = vpow.pop %v4457
        %v4459 = vmul.f32 %v4424, 1.442695
        %v4460 = vpow.pop %v4459
        %v4461 = vmul.f32 %v4425, 1.442695
        %v4462 = vpow.pop %v4461
        %v4463 = vmul.f32 %v4426, 1.442695
        %v4464 = vpow.pop %v4463
        %v4465 = vmul.f32 %v4427, 1.442695
        %v4466 = vpow.pop %v4465
        %v4467 = vmul.f32 %v4428, 1.442695
        %v4468 = vpow.pop %v4467
        %v4469 = vmul.f32 %v4429, 1.442695
        %v4470 = vpow.pop %v4469
        %v4471 = vmul.f32 %v4430, 1.442695
        %v4472 = vpow.pop %v4471
        %v4473 = vmul.f32 %v4431, 1.442695
        %v4474 = vpow.pop %v4473
        %v4475 = vmul.f32 %v4432, 1.442695
        %v4476 = vpow.pop %v4475
        %v4477 = vmul.f32 %v4433, 1.442695
        %v4478 = vpow.pop %v4477
        %v4479 = vmul.f32 %v4434, 1.442695
        %v4480 = vpow.pop %v4479
        %v4481 = vmul.f32 %v4435, 1.442695
        %v4482 = vpow.pop %v4481
        %v4483 = vmul.f32 %v4436, 1.442695
        %v4484 = vpow.pop %v4483
        %v4485 = vmul.f32 %v4437, 1.442695
        %v4486 = vpow.pop %v4485
        %v4487 = vmul.f32 %v4438, 1.442695
        %v4488 = vpow.pop %v4487
        %v4489 = vmul.f32 %v4439, 1.442695
        %v4490 = vpow.pop %v4489
        %v4491 = vmul.f32 %v4440, 1.442695
        %v4492 = vpow.pop %v4491
        %v4493 = vmul.f32 %v4441, 1.442695
        %v4494 = vpow.pop %v4493
        %v4495 = vmul.f32 %v4442, 1.442695
        %v4496 = vpow.pop %v4495
        %v4497 = vmul.f32 %v4443, 1.442695
        %v4498 = vpow.pop %v4497
        %v4499 = vmul.f32 %v4444, 1.442695
        %v4500 = vpow.pop %v4499
        %v4501 = vmul.f32 %v4445, 1.442695
        %v4502 = vpow.pop %v4501
        %v4503 = vmul.f32 %v4446, 1.442695
        %v4504 = vpow.pop %v4503
        %v4505 = vmul.f32 %v4447, 1.442695
        %v4506 = vpow.pop %v4505
        %v4507 = vmul.f32 %v4448, 1.442695
        %v4508 = vpow.pop %v4507
        %v4509 = vmul.f32 %v4449, 1.442695
        %v4510 = vpow.pop %v4509
        %v4511 = vmul.f32 %v4450, 1.442695
        %v4512 = vpow.pop %v4511
        %v4513 = vmul.f32 %v4451, 1.442695
        %v4514 = vpow.pop %v4513
        %v4515 = vmul.f32 %v4452, 1.442695
        %v4516 = vpow.pop %v4515
        %v4517 = vmul.f32 %v4358, 0.0
        %v4518 = vmul.f32 %v4360, 0.0
        %v4519 = vmul.f32 %v4362, 0.0
        %v4520 = vmul.f32 %v4364, 0.0
        %v4521 = vmul.f32 %v4366, 0.0
        %v4522 = vmul.f32 %v4368, 0.0
        %v4523 = vmul.f32 %v4370, 0.0
        %v4524 = vmul.f32 %v4372, 0.0
        %v4525 = vmul.f32 %v4374, 0.0
        %v4526 = vmul.f32 %v4376, 0.0
        %v4527 = vmul.f32 %v4378, 0.0
        %v4528 = vmul.f32 %v4380, 0.0
        %v4529 = vmul.f32 %v4382, 0.0
        %v4530 = vmul.f32 %v4384, 0.0
        %v4531 = vmul.f32 %v4386, 0.0
        %v4532 = vmul.f32 %v4388, 0.0
        %v4533 = vmul.f32 %v4390, 0.0
        %v4534 = vmul.f32 %v4392, 0.0
        %v4535 = vmul.f32 %v4394, 0.0
        %v4536 = vmul.f32 %v4396, 0.0
        %v4537 = vmul.f32 %v4398, 0.0
        %v4538 = vmul.f32 %v4400, 0.0
        %v4539 = vmul.f32 %v4402, 0.0
        %v4540 = vmul.f32 %v4404, 0.0
        %v4541 = vmul.f32 %v4406, 0.0
        %v4542 = vmul.f32 %v4408, 0.0
        %v4543 = vmul.f32 %v4410, 0.0
        %v4544 = vmul.f32 %v4412, 0.0
        %v4545 = vmul.f32 %v4414, 0.0
        %v4546 = vmul.f32 %v4416, 0.0
        %v4547 = vmul.f32 %v4418, 0.0
        %v4548 = vmul.f32 %v4420, 0.0
        %v4549 = vsel %vm3804, %v4454, 0.0
        %4550 = vadd.xlane.f32.xlu0 %v4549
        %v4551 = vpop.xlane.xlu0 %4550
        %v4552 = vsel %vm3804, %v4456, 0.0
        %4553 = vadd.xlane.f32.xlu0 %v4552
        %v4554 = vpop.xlane.xlu0 %4553
        %v4555 = vsel %vm3804, %v4458, 0.0
        %4556 = vadd.xlane.f32.xlu0 %v4555
        %v4557 = vpop.xlane.xlu0 %4556
        %v4558 = vsel %vm3804, %v4460, 0.0
        %4559 = vadd.xlane.f32.xlu0 %v4558
        %v4560 = vpop.xlane.xlu0 %4559
        %v4561 = vsel %vm3804, %v4462, 0.0
        %4562 = vadd.xlane.f32.xlu0 %v4561
        %v4563 = vpop.xlane.xlu0 %4562
        %v4564 = vsel %vm3804, %v4464, 0.0
        %4565 = vadd.xlane.f32.xlu0 %v4564
        %v4566 = vpop.xlane.xlu0 %4565
        %v4567 = vsel %vm3804, %v4466, 0.0
        %4568 = vadd.xlane.f32.xlu0 %v4567
        %v4569 = vpop.xlane.xlu0 %4568
        %v4570 = vsel %vm3804, %v4468, 0.0
        %4571 = vadd.xlane.f32.xlu0 %v4570
        %v4572 = vpop.xlane.xlu0 %4571
        %v4573 = vsel %vm3804, %v4470, 0.0
        %4574 = vadd.xlane.f32.xlu0 %v4573
        %v4575 = vpop.xlane.xlu0 %4574
        %v4576 = vsel %vm3804, %v4472, 0.0
        %4577 = vadd.xlane.f32.xlu0 %v4576
        %v4578 = vpop.xlane.xlu0 %4577
        %v4579 = vsel %vm3804, %v4474, 0.0
        %4580 = vadd.xlane.f32.xlu0 %v4579
        %v4581 = vpop.xlane.xlu0 %4580
        %v4582 = vsel %vm3804, %v4476, 0.0
        %4583 = vadd.xlane.f32.xlu0 %v4582
        %v4584 = vpop.xlane.xlu0 %4583
        %v4585 = vsel %vm3804, %v4478, 0.0
        %4586 = vadd.xlane.f32.xlu0 %v4585
        %v4587 = vpop.xlane.xlu0 %4586
        %v4588 = vsel %vm3804, %v4480, 0.0
        %4589 = vadd.xlane.f32.xlu0 %v4588
        %v4590 = vpop.xlane.xlu0 %4589
        %v4591 = vsel %vm3804, %v4482, 0.0
        %4592 = vadd.xlane.f32.xlu0 %v4591
        %v4593 = vpop.xlane.xlu0 %4592
        %v4594 = vsel %vm3804, %v4484, 0.0
        %4595 = vadd.xlane.f32.xlu0 %v4594
        %v4596 = vpop.xlane.xlu0 %4595
        %v4597 = vsel %vm3804, %v4486, 0.0
        %4598 = vadd.xlane.f32.xlu0 %v4597
        %v4599 = vpop.xlane.xlu0 %4598
        %v4600 = vsel %vm3804, %v4488, 0.0
        %4601 = vadd.xlane.f32.xlu0 %v4600
        %v4602 = vpop.xlane.xlu0 %4601
        %v4603 = vsel %vm3804, %v4490, 0.0
        %4604 = vadd.xlane.f32.xlu0 %v4603
        %v4605 = vpop.xlane.xlu0 %4604
        %v4606 = vsel %vm3804, %v4492, 0.0
        %4607 = vadd.xlane.f32.xlu0 %v4606
        %v4608 = vpop.xlane.xlu0 %4607
        %v4609 = vsel %vm3804, %v4494, 0.0
        %4610 = vadd.xlane.f32.xlu0 %v4609
        %v4611 = vpop.xlane.xlu0 %4610
        %v4612 = vsel %vm3804, %v4496, 0.0
        %4613 = vadd.xlane.f32.xlu0 %v4612
        %v4614 = vpop.xlane.xlu0 %4613
        %v4615 = vsel %vm3804, %v4498, 0.0
        %4616 = vadd.xlane.f32.xlu0 %v4615
        %v4617 = vpop.xlane.xlu0 %4616
        %v4618 = vsel %vm3804, %v4500, 0.0
        %4619 = vadd.xlane.f32.xlu0 %v4618
        %v4620 = vpop.xlane.xlu0 %4619
        %v4621 = vsel %vm3804, %v4502, 0.0
        %4622 = vadd.xlane.f32.xlu0 %v4621
        %v4623 = vpop.xlane.xlu0 %4622
        %v4624 = vsel %vm3804, %v4504, 0.0
        %4625 = vadd.xlane.f32.xlu0 %v4624
        %v4626 = vpop.xlane.xlu0 %4625
        %v4627 = vsel %vm3804, %v4506, 0.0
        %4628 = vadd.xlane.f32.xlu0 %v4627
        %v4629 = vpop.xlane.xlu0 %4628
        %v4630 = vsel %vm3804, %v4508, 0.0
        %4631 = vadd.xlane.f32.xlu0 %v4630
        %v4632 = vpop.xlane.xlu0 %4631
        %v4633 = vsel %vm3804, %v4510, 0.0
        %4634 = vadd.xlane.f32.xlu0 %v4633
        %v4635 = vpop.xlane.xlu0 %4634
        %v4636 = vsel %vm3804, %v4512, 0.0
        %4637 = vadd.xlane.f32.xlu0 %v4636
        %v4638 = vpop.xlane.xlu0 %4637
        %v4639 = vsel %vm3804, %v4514, 0.0
        %4640 = vadd.xlane.f32.xlu0 %v4639
        %v4641 = vpop.xlane.xlu0 %4640
        %v4642 = vsel %vm3804, %v4516, 0.0
        %4643 = vadd.xlane.f32.xlu0 %v4642
        %v4644 = vpop.xlane.xlu0 %4643
        %v4645 = vadd.f32 %v4517, %v4551
        %v4646 = vadd.f32 %v4518, %v4554
        %v4647 = vadd.f32 %v4519, %v4557
        %v4648 = vadd.f32 %v4520, %v4560
        %v4649 = vadd.f32 %v4521, %v4563
        %v4650 = vadd.f32 %v4522, %v4566
        %v4651 = vadd.f32 %v4523, %v4569
        %v4652 = vadd.f32 %v4524, %v4572
        %v4653 = vadd.f32 %v4525, %v4575
        %v4654 = vadd.f32 %v4526, %v4578
        %v4655 = vadd.f32 %v4527, %v4581
        %v4656 = vadd.f32 %v4528, %v4584
        %v4657 = vadd.f32 %v4529, %v4587
        %v4658 = vadd.f32 %v4530, %v4590
        %v4659 = vadd.f32 %v4531, %v4593
        %v4660 = vadd.f32 %v4532, %v4596
        %v4661 = vadd.f32 %v4533, %v4599
        %v4662 = vadd.f32 %v4534, %v4602
        %v4663 = vadd.f32 %v4535, %v4605
        %v4664 = vadd.f32 %v4536, %v4608
        %v4665 = vadd.f32 %v4537, %v4611
        %v4666 = vadd.f32 %v4538, %v4614
        %v4667 = vadd.f32 %v4539, %v4617
        %v4668 = vadd.f32 %v4540, %v4620
        %v4669 = vadd.f32 %v4541, %v4623
        %v4670 = vadd.f32 %v4542, %v4626
        %v4671 = vadd.f32 %v4543, %v4629
        %v4672 = vadd.f32 %v4544, %v4632
        %v4673 = vadd.f32 %v4545, %v4635
        %v4674 = vadd.f32 %v4546, %v4638
        %v4675 = vadd.f32 %v4547, %v4641
        %v4676 = vadd.f32 %v4548, %v4644
        %v4678 = vsel %vm3804, %v4454, 0
        %v4681 = vsel %vm3804, %v4456, 0
        %v4684 = vsel %vm3804, %v4458, 0
        %v4687 = vsel %vm3804, %v4460, 0
        %4689 = vmatpush.msra.mxu0 0.0
        %4690 = vmatpush.msra.mxu0 0.0
        %4691 = vmatpush.msra.mxu0 0.0
        %4692 = vmatpush.msra.mxu0 0.0
        %4693 = vmatpush.msra.mxu0 0.0
        %4694 = vmatpush.msra.mxu0 0.0
        %4695 = vmatpush.msra.mxu0 0.0
        %4696 = vmatpush.msra.mxu0 0.0
        %4697 = vmatpush.msra.mxu0 0.0
        %4698 = vmatpush.msra.mxu0 0.0
        %4699 = vmatpush.msra.mxu0 0.0
        %4700 = vmatpush.msra.mxu0 0.0
        %4701 = vmatpush.msra.mxu0 %v3581
        %4702 = vmatpush.msra.mxu0 %v3527
        %4703 = vmatpush.msra.mxu0 %v3473
        %4704 = vmatpush.msra.mxu0 %v3419
        %4705 = vmatmul.f32.gmra.mxu0 %v4678
        %v4706 = vpop.f32.mrf.mxu0
        %v4707 = vadd.f32 0.0, %v4706
        %4708 = vmatmul.f32.gmra.mxu0 %v4681
        %v4709 = vpop.f32.mrf.mxu0
        %v4710 = vadd.f32 0.0, %v4709
        %4711 = vmatmul.f32.gmra.mxu0 %v4684
        %v4712 = vpop.f32.mrf.mxu0
        %v4713 = vadd.f32 0.0, %v4712
        %4714 = vmatmul.f32.gmra.mxu0 %v4687
        %v4715 = vpop.f32.mrf.mxu0
        %v4716 = vadd.f32 0.0, %v4715
        %4717 = vdwg.mxu0
        %v4719 = vsel %vm3804, %v4462, 0
        %v4722 = vsel %vm3804, %v4464, 0
        %v4725 = vsel %vm3804, %v4466, 0
        %v4728 = vsel %vm3804, %v4468, 0
        %4730 = vmatpush.msra.mxu0 0.0
        %4731 = vmatpush.msra.mxu0 0.0
        %4732 = vmatpush.msra.mxu0 0.0
        %4733 = vmatpush.msra.mxu0 0.0
        %4734 = vmatpush.msra.mxu0 0.0
        %4735 = vmatpush.msra.mxu0 0.0
        %4736 = vmatpush.msra.mxu0 0.0
        %4737 = vmatpush.msra.mxu0 0.0
        %4738 = vmatpush.msra.mxu0 0.0
        %4739 = vmatpush.msra.mxu0 0.0
        %4740 = vmatpush.msra.mxu0 0.0
        %4741 = vmatpush.msra.mxu0 0.0
        %4742 = vmatpush.msra.mxu0 %v3583
        %4743 = vmatpush.msra.mxu0 %v3529
        %4744 = vmatpush.msra.mxu0 %v3475
        %4745 = vmatpush.msra.mxu0 %v3421
        %4746 = vmatmul.f32.gmra.mxu0 %v4719
        %v4747 = vpop.f32.mrf.mxu0
        %v4748 = vadd.f32 0.0, %v4747
        %4749 = vmatmul.f32.gmra.mxu0 %v4722
        %v4750 = vpop.f32.mrf.mxu0
        %v4751 = vadd.f32 0.0, %v4750
        %4752 = vmatmul.f32.gmra.mxu0 %v4725
        %v4753 = vpop.f32.mrf.mxu0
        %v4754 = vadd.f32 0.0, %v4753
        %4755 = vmatmul.f32.gmra.mxu0 %v4728
        %v4756 = vpop.f32.mrf.mxu0
        %v4757 = vadd.f32 0.0, %v4756
        %4758 = vdwg.mxu0
        %v4760 = vsel %vm3804, %v4470, 0
        %v4763 = vsel %vm3804, %v4472, 0
        %v4766 = vsel %vm3804, %v4474, 0
        %v4769 = vsel %vm3804, %v4476, 0
        %4771 = vmatpush.msra.mxu0 0.0
        %4772 = vmatpush.msra.mxu0 0.0
        %4773 = vmatpush.msra.mxu0 0.0
        %4774 = vmatpush.msra.mxu0 0.0
        %4775 = vmatpush.msra.mxu0 0.0
        %4776 = vmatpush.msra.mxu0 0.0
        %4777 = vmatpush.msra.mxu0 0.0
        %4778 = vmatpush.msra.mxu0 0.0
        %4779 = vmatpush.msra.mxu0 0.0
        %4780 = vmatpush.msra.mxu0 0.0
        %4781 = vmatpush.msra.mxu0 0.0
        %4782 = vmatpush.msra.mxu0 0.0
        %4783 = vmatpush.msra.mxu0 %v3585
        %4784 = vmatpush.msra.mxu0 %v3531
        %4785 = vmatpush.msra.mxu0 %v3477
        %4786 = vmatpush.msra.mxu0 %v3423
        %4787 = vmatmul.f32.gmra.mxu0 %v4760
        %v4788 = vpop.f32.mrf.mxu0
        %v4789 = vadd.f32 0.0, %v4788
        %4790 = vmatmul.f32.gmra.mxu0 %v4763
        %v4791 = vpop.f32.mrf.mxu0
        %v4792 = vadd.f32 0.0, %v4791
        %4793 = vmatmul.f32.gmra.mxu0 %v4766
        %v4794 = vpop.f32.mrf.mxu0
        %v4795 = vadd.f32 0.0, %v4794
        %4796 = vmatmul.f32.gmra.mxu0 %v4769
        %v4797 = vpop.f32.mrf.mxu0
        %v4798 = vadd.f32 0.0, %v4797
        %4799 = vdwg.mxu0
        %v4801 = vsel %vm3804, %v4478, 0
        %v4804 = vsel %vm3804, %v4480, 0
        %v4807 = vsel %vm3804, %v4482, 0
        %v4810 = vsel %vm3804, %v4484, 0
        %4812 = vmatpush.msra.mxu0 0.0
        %4813 = vmatpush.msra.mxu0 0.0
        %4814 = vmatpush.msra.mxu0 0.0
        %4815 = vmatpush.msra.mxu0 0.0
        %4816 = vmatpush.msra.mxu0 0.0
        %4817 = vmatpush.msra.mxu0 0.0
        %4818 = vmatpush.msra.mxu0 0.0
        %4819 = vmatpush.msra.mxu0 0.0
        %4820 = vmatpush.msra.mxu0 0.0
        %4821 = vmatpush.msra.mxu0 0.0
        %4822 = vmatpush.msra.mxu0 0.0
        %4823 = vmatpush.msra.mxu0 0.0
        %4824 = vmatpush.msra.mxu0 %v3587
        %4825 = vmatpush.msra.mxu0 %v3533
        %4826 = vmatpush.msra.mxu0 %v3479
        %4827 = vmatpush.msra.mxu0 %v3425
        %4828 = vmatmul.f32.gmra.mxu0 %v4801
        %v4829 = vpop.f32.mrf.mxu0
        %v4830 = vadd.f32 0.0, %v4829
        %4831 = vmatmul.f32.gmra.mxu0 %v4804
        %v4832 = vpop.f32.mrf.mxu0
        %v4833 = vadd.f32 0.0, %v4832
        %4834 = vmatmul.f32.gmra.mxu0 %v4807
        %v4835 = vpop.f32.mrf.mxu0
        %v4836 = vadd.f32 0.0, %v4835
        %4837 = vmatmul.f32.gmra.mxu0 %v4810
        %v4838 = vpop.f32.mrf.mxu0
        %v4839 = vadd.f32 0.0, %v4838
        %4840 = vdwg.mxu0
        %v4842 = vsel %vm3804, %v4486, 0
        %v4845 = vsel %vm3804, %v4488, 0
        %v4848 = vsel %vm3804, %v4490, 0
        %v4851 = vsel %vm3804, %v4492, 0
        %4853 = vmatpush.msra.mxu0 0.0
        %4854 = vmatpush.msra.mxu0 0.0
        %4855 = vmatpush.msra.mxu0 0.0
        %4856 = vmatpush.msra.mxu0 0.0
        %4857 = vmatpush.msra.mxu0 0.0
        %4858 = vmatpush.msra.mxu0 0.0
        %4859 = vmatpush.msra.mxu0 0.0
        %4860 = vmatpush.msra.mxu0 0.0
        %4861 = vmatpush.msra.mxu0 0.0
        %4862 = vmatpush.msra.mxu0 0.0
        %4863 = vmatpush.msra.mxu0 0.0
        %4864 = vmatpush.msra.mxu0 0.0
        %4865 = vmatpush.msra.mxu0 %v3797
        %4866 = vmatpush.msra.mxu0 %v3743
        %4867 = vmatpush.msra.mxu0 %v3689
        %4868 = vmatpush.msra.mxu0 %v3635
        %4869 = vmatmul.f32.gmra.mxu0 %v4842
        %v4870 = vpop.f32.mrf.mxu0
        %v4871 = vadd.f32 0.0, %v4870
        %4872 = vmatmul.f32.gmra.mxu0 %v4845
        %v4873 = vpop.f32.mrf.mxu0
        %v4874 = vadd.f32 0.0, %v4873
        %4875 = vmatmul.f32.gmra.mxu0 %v4848
        %v4876 = vpop.f32.mrf.mxu0
        %v4877 = vadd.f32 0.0, %v4876
        %4878 = vmatmul.f32.gmra.mxu0 %v4851
        %v4879 = vpop.f32.mrf.mxu0
        %v4880 = vadd.f32 0.0, %v4879
        %4881 = vdwg.mxu0
        %v4883 = vsel %vm3804, %v4494, 0
        %v4886 = vsel %vm3804, %v4496, 0
        %v4889 = vsel %vm3804, %v4498, 0
        %v4892 = vsel %vm3804, %v4500, 0
        %4894 = vmatpush.msra.mxu0 0.0
        %4895 = vmatpush.msra.mxu0 0.0
        %4896 = vmatpush.msra.mxu0 0.0
        %4897 = vmatpush.msra.mxu0 0.0
        %4898 = vmatpush.msra.mxu0 0.0
        %4899 = vmatpush.msra.mxu0 0.0
        %4900 = vmatpush.msra.mxu0 0.0
        %4901 = vmatpush.msra.mxu0 0.0
        %4902 = vmatpush.msra.mxu0 0.0
        %4903 = vmatpush.msra.mxu0 0.0
        %4904 = vmatpush.msra.mxu0 0.0
        %4905 = vmatpush.msra.mxu0 0.0
        %4906 = vmatpush.msra.mxu0 %v3799
        %4907 = vmatpush.msra.mxu0 %v3745
        %4908 = vmatpush.msra.mxu0 %v3691
        %4909 = vmatpush.msra.mxu0 %v3637
        %4910 = vmatmul.f32.gmra.mxu0 %v4883
        %v4911 = vpop.f32.mrf.mxu0
        %v4912 = vadd.f32 0.0, %v4911
        %4913 = vmatmul.f32.gmra.mxu0 %v4886
        %v4914 = vpop.f32.mrf.mxu0
        %v4915 = vadd.f32 0.0, %v4914
        %4916 = vmatmul.f32.gmra.mxu0 %v4889
        %v4917 = vpop.f32.mrf.mxu0
        %v4918 = vadd.f32 0.0, %v4917
        %4919 = vmatmul.f32.gmra.mxu0 %v4892
        %v4920 = vpop.f32.mrf.mxu0
        %v4921 = vadd.f32 0.0, %v4920
        %4922 = vdwg.mxu0
        %v4924 = vsel %vm3804, %v4502, 0
        %v4927 = vsel %vm3804, %v4504, 0
        %v4930 = vsel %vm3804, %v4506, 0
        %v4933 = vsel %vm3804, %v4508, 0
        %4935 = vmatpush.msra.mxu0 0.0
        %4936 = vmatpush.msra.mxu0 0.0
        %4937 = vmatpush.msra.mxu0 0.0
        %4938 = vmatpush.msra.mxu0 0.0
        %4939 = vmatpush.msra.mxu0 0.0
        %4940 = vmatpush.msra.mxu0 0.0
        %4941 = vmatpush.msra.mxu0 0.0
        %4942 = vmatpush.msra.mxu0 0.0
        %4943 = vmatpush.msra.mxu0 0.0
        %4944 = vmatpush.msra.mxu0 0.0
        %4945 = vmatpush.msra.mxu0 0.0
        %4946 = vmatpush.msra.mxu0 0.0
        %4947 = vmatpush.msra.mxu0 %v3801
        %4948 = vmatpush.msra.mxu0 %v3747
        %4949 = vmatpush.msra.mxu0 %v3693
        %4950 = vmatpush.msra.mxu0 %v3639
        %4951 = vmatmul.f32.gmra.mxu0 %v4924
        %v4952 = vpop.f32.mrf.mxu0
        %v4953 = vadd.f32 0.0, %v4952
        %4954 = vmatmul.f32.gmra.mxu0 %v4927
        %v4955 = vpop.f32.mrf.mxu0
        %v4956 = vadd.f32 0.0, %v4955
        %4957 = vmatmul.f32.gmra.mxu0 %v4930
        %v4958 = vpop.f32.mrf.mxu0
        %v4959 = vadd.f32 0.0, %v4958
        %4960 = vmatmul.f32.gmra.mxu0 %v4933
        %v4961 = vpop.f32.mrf.mxu0
        %v4962 = vadd.f32 0.0, %v4961
        %4963 = vdwg.mxu0
        %v4965 = vsel %vm3804, %v4510, 0
        %v4968 = vsel %vm3804, %v4512, 0
        %v4971 = vsel %vm3804, %v4514, 0
        %v4974 = vsel %vm3804, %v4516, 0
        %4976 = vmatpush.msra.mxu0 0.0
        %4977 = vmatpush.msra.mxu0 0.0
        %4978 = vmatpush.msra.mxu0 0.0
        %4979 = vmatpush.msra.mxu0 0.0
        %4980 = vmatpush.msra.mxu0 0.0
        %4981 = vmatpush.msra.mxu0 0.0
        %4982 = vmatpush.msra.mxu0 0.0
        %4983 = vmatpush.msra.mxu0 0.0
        %4984 = vmatpush.msra.mxu0 0.0
        %4985 = vmatpush.msra.mxu0 0.0
        %4986 = vmatpush.msra.mxu0 0.0
        %4987 = vmatpush.msra.mxu0 0.0
        %4988 = vmatpush.msra.mxu0 %v3803
        %4989 = vmatpush.msra.mxu0 %v3749
        %4990 = vmatpush.msra.mxu0 %v3695
        %4991 = vmatpush.msra.mxu0 %v3641
        %4992 = vmatmul.f32.gmra.mxu0 %v4965
        %v4993 = vpop.f32.mrf.mxu0
        %v4994 = vadd.f32 0.0, %v4993
        %4995 = vmatmul.f32.gmra.mxu0 %v4968
        %v4996 = vpop.f32.mrf.mxu0
        %v4997 = vadd.f32 0.0, %v4996
        %4998 = vmatmul.f32.gmra.mxu0 %v4971
        %v4999 = vpop.f32.mrf.mxu0
        %v5000 = vadd.f32 0.0, %v4999
        %5001 = vmatmul.f32.gmra.mxu0 %v4974
        %v5002 = vpop.f32.mrf.mxu0
        %v5003 = vadd.f32 0.0, %v5002
        %5004 = vdwg.mxu0
        %v5005 = vadd.f32 %v4517, %v4707
        %v5006 = vadd.f32 %v4518, %v4710
        %v5007 = vadd.f32 %v4519, %v4713
        %v5008 = vadd.f32 %v4520, %v4716
        %v5009 = vadd.f32 %v4521, %v4748
        %v5010 = vadd.f32 %v4522, %v4751
        %v5011 = vadd.f32 %v4523, %v4754
        %v5012 = vadd.f32 %v4524, %v4757
        %v5013 = vadd.f32 %v4525, %v4789
        %v5014 = vadd.f32 %v4526, %v4792
        %v5015 = vadd.f32 %v4527, %v4795
        %v5016 = vadd.f32 %v4528, %v4798
        %v5017 = vadd.f32 %v4529, %v4830
        %v5018 = vadd.f32 %v4530, %v4833
        %v5019 = vadd.f32 %v4531, %v4836
        %v5020 = vadd.f32 %v4532, %v4839
        %v5021 = vadd.f32 %v4533, %v4871
        %v5022 = vadd.f32 %v4534, %v4874
        %v5023 = vadd.f32 %v4535, %v4877
        %v5024 = vadd.f32 %v4536, %v4880
        %v5025 = vadd.f32 %v4537, %v4912
        %v5026 = vadd.f32 %v4538, %v4915
        %v5027 = vadd.f32 %v4539, %v4918
        %v5028 = vadd.f32 %v4540, %v4921
        %v5029 = vadd.f32 %v4541, %v4953
        %v5030 = vadd.f32 %v4542, %v4956
        %v5031 = vadd.f32 %v4543, %v4959
        %v5032 = vadd.f32 %v4544, %v4962
        %v5033 = vadd.f32 %v4545, %v4994
        %v5034 = vadd.f32 %v4546, %v4997
        %v5035 = vadd.f32 %v4547, %v5000
        %v5036 = vadd.f32 %v4548, %v5003
        %v5037 = vrcp.pop %v4645
        %v5038 = vmul.f32 %v4645, %v5037
        %v5039 = vsub.f32 1.0, %v5038
        %v5040 = vmul.f32 %v5037, %v5039
        %v5041 = vadd.f32 %v5037, %v5040
        %vm5042 = vweird.f32 %v4645
        %vm5043 = vweird.f32 %v5037
        %vm5044 = vmor %vm5042, %vm5043
        %v5045 = vsel %vm5044, %v5037, %v5041
        %v5046 = vand.u32 2147483647, %v4645
        %vm5047 = vcmp.eq.f32.partialorder %v5046, 8.507059e+37
        %v5048 = vand.u32 %v4645, 2147483648
        %v5049 = vor.u32 1.1754944e-38, %v5048
        %v5050 = vsel %vm5047, %v5049, %v5045
        %v5051 = vrcp.pop %v4646
        %v5052 = vmul.f32 %v4646, %v5051
        %v5053 = vsub.f32 1.0, %v5052
        %v5054 = vmul.f32 %v5051, %v5053
        %v5055 = vadd.f32 %v5051, %v5054
        %vm5056 = vweird.f32 %v4646
        %vm5057 = vweird.f32 %v5051
        %vm5058 = vmor %vm5056, %vm5057
        %v5059 = vsel %vm5058, %v5051, %v5055
        %v5060 = vand.u32 2147483647, %v4646
        %vm5061 = vcmp.eq.f32.partialorder %v5060, 8.507059e+37
        %v5062 = vand.u32 %v4646, 2147483648
        %v5063 = vor.u32 1.1754944e-38, %v5062
        %v5064 = vsel %vm5061, %v5063, %v5059
        %v5065 = vrcp.pop %v4647
        %v5066 = vmul.f32 %v4647, %v5065
        %v5067 = vsub.f32 1.0, %v5066
        %v5068 = vmul.f32 %v5065, %v5067
        %v5069 = vadd.f32 %v5065, %v5068
        %vm5070 = vweird.f32 %v4647
        %vm5071 = vweird.f32 %v5065
        %vm5072 = vmor %vm5070, %vm5071
        %v5073 = vsel %vm5072, %v5065, %v5069
        %v5074 = vand.u32 2147483647, %v4647
        %vm5075 = vcmp.eq.f32.partialorder %v5074, 8.507059e+37
        %v5076 = vand.u32 %v4647, 2147483648
        %v5077 = vor.u32 1.1754944e-38, %v5076
        %v5078 = vsel %vm5075, %v5077, %v5073
        %v5079 = vrcp.pop %v4648
        %v5080 = vmul.f32 %v4648, %v5079
        %v5081 = vsub.f32 1.0, %v5080
        %v5082 = vmul.f32 %v5079, %v5081
        %v5083 = vadd.f32 %v5079, %v5082
        %vm5084 = vweird.f32 %v4648
        %vm5085 = vweird.f32 %v5079
        %vm5086 = vmor %vm5084, %vm5085
        %v5087 = vsel %vm5086, %v5079, %v5083
        %v5088 = vand.u32 2147483647, %v4648
        %vm5089 = vcmp.eq.f32.partialorder %v5088, 8.507059e+37
        %v5090 = vand.u32 %v4648, 2147483648
        %v5091 = vor.u32 1.1754944e-38, %v5090
        %v5092 = vsel %vm5089, %v5091, %v5087
        %v5093 = vrcp.pop %v4649
        %v5094 = vmul.f32 %v4649, %v5093
        %v5095 = vsub.f32 1.0, %v5094
        %v5096 = vmul.f32 %v5093, %v5095
        %v5097 = vadd.f32 %v5093, %v5096
        %vm5098 = vweird.f32 %v4649
        %vm5099 = vweird.f32 %v5093
        %vm5100 = vmor %vm5098, %vm5099
        %v5101 = vsel %vm5100, %v5093, %v5097
        %v5102 = vand.u32 2147483647, %v4649
        %vm5103 = vcmp.eq.f32.partialorder %v5102, 8.507059e+37
        %v5104 = vand.u32 %v4649, 2147483648
        %v5105 = vor.u32 1.1754944e-38, %v5104
        %v5106 = vsel %vm5103, %v5105, %v5101
        %v5107 = vrcp.pop %v4650
        %v5108 = vmul.f32 %v4650, %v5107
        %v5109 = vsub.f32 1.0, %v5108
        %v5110 = vmul.f32 %v5107, %v5109
        %v5111 = vadd.f32 %v5107, %v5110
        %vm5112 = vweird.f32 %v4650
        %vm5113 = vweird.f32 %v5107
        %vm5114 = vmor %vm5112, %vm5113
        %v5115 = vsel %vm5114, %v5107, %v5111
        %v5116 = vand.u32 2147483647, %v4650
        %vm5117 = vcmp.eq.f32.partialorder %v5116, 8.507059e+37
        %v5118 = vand.u32 %v4650, 2147483648
        %v5119 = vor.u32 1.1754944e-38, %v5118
        %v5120 = vsel %vm5117, %v5119, %v5115
        %v5121 = vrcp.pop %v4651
        %v5122 = vmul.f32 %v4651, %v5121
        %v5123 = vsub.f32 1.0, %v5122
        %v5124 = vmul.f32 %v5121, %v5123
        %v5125 = vadd.f32 %v5121, %v5124
        %vm5126 = vweird.f32 %v4651
        %vm5127 = vweird.f32 %v5121
        %vm5128 = vmor %vm5126, %vm5127
        %v5129 = vsel %vm5128, %v5121, %v5125
        %v5130 = vand.u32 2147483647, %v4651
        %vm5131 = vcmp.eq.f32.partialorder %v5130, 8.507059e+37
        %v5132 = vand.u32 %v4651, 2147483648
        %v5133 = vor.u32 1.1754944e-38, %v5132
        %v5134 = vsel %vm5131, %v5133, %v5129
        %v5135 = vrcp.pop %v4652
        %v5136 = vmul.f32 %v4652, %v5135
        %v5137 = vsub.f32 1.0, %v5136
        %v5138 = vmul.f32 %v5135, %v5137
        %v5139 = vadd.f32 %v5135, %v5138
        %vm5140 = vweird.f32 %v4652
        %vm5141 = vweird.f32 %v5135
        %vm5142 = vmor %vm5140, %vm5141
        %v5143 = vsel %vm5142, %v5135, %v5139
        %v5144 = vand.u32 2147483647, %v4652
        %vm5145 = vcmp.eq.f32.partialorder %v5144, 8.507059e+37
        %v5146 = vand.u32 %v4652, 2147483648
        %v5147 = vor.u32 1.1754944e-38, %v5146
        %v5148 = vsel %vm5145, %v5147, %v5143
        %v5149 = vrcp.pop %v4653
        %v5150 = vmul.f32 %v4653, %v5149
        %v5151 = vsub.f32 1.0, %v5150
        %v5152 = vmul.f32 %v5149, %v5151
        %v5153 = vadd.f32 %v5149, %v5152
        %vm5154 = vweird.f32 %v4653
        %vm5155 = vweird.f32 %v5149
        %vm5156 = vmor %vm5154, %vm5155
        %v5157 = vsel %vm5156, %v5149, %v5153
        %v5158 = vand.u32 2147483647, %v4653
        %vm5159 = vcmp.eq.f32.partialorder %v5158, 8.507059e+37
        %v5160 = vand.u32 %v4653, 2147483648
        %v5161 = vor.u32 1.1754944e-38, %v5160
        %v5162 = vsel %vm5159, %v5161, %v5157
        %v5163 = vrcp.pop %v4654
        %v5164 = vmul.f32 %v4654, %v5163
        %v5165 = vsub.f32 1.0, %v5164
        %v5166 = vmul.f32 %v5163, %v5165
        %v5167 = vadd.f32 %v5163, %v5166
        %vm5168 = vweird.f32 %v4654
        %vm5169 = vweird.f32 %v5163
        %vm5170 = vmor %vm5168, %vm5169
        %v5171 = vsel %vm5170, %v5163, %v5167
        %v5172 = vand.u32 2147483647, %v4654
        %vm5173 = vcmp.eq.f32.partialorder %v5172, 8.507059e+37
        %v5174 = vand.u32 %v4654, 2147483648
        %v5175 = vor.u32 1.1754944e-38, %v5174
        %v5176 = vsel %vm5173, %v5175, %v5171
        %v5177 = vrcp.pop %v4655
        %v5178 = vmul.f32 %v4655, %v5177
        %v5179 = vsub.f32 1.0, %v5178
        %v5180 = vmul.f32 %v5177, %v5179
        %v5181 = vadd.f32 %v5177, %v5180
        %vm5182 = vweird.f32 %v4655
        %vm5183 = vweird.f32 %v5177
        %vm5184 = vmor %vm5182, %vm5183
        %v5185 = vsel %vm5184, %v5177, %v5181
        %v5186 = vand.u32 2147483647, %v4655
        %vm5187 = vcmp.eq.f32.partialorder %v5186, 8.507059e+37
        %v5188 = vand.u32 %v4655, 2147483648
        %v5189 = vor.u32 1.1754944e-38, %v5188
        %v5190 = vsel %vm5187, %v5189, %v5185
        %v5191 = vrcp.pop %v4656
        %v5192 = vmul.f32 %v4656, %v5191
        %v5193 = vsub.f32 1.0, %v5192
        %v5194 = vmul.f32 %v5191, %v5193
        %v5195 = vadd.f32 %v5191, %v5194
        %vm5196 = vweird.f32 %v4656
        %vm5197 = vweird.f32 %v5191
        %vm5198 = vmor %vm5196, %vm5197
        %v5199 = vsel %vm5198, %v5191, %v5195
        %v5200 = vand.u32 2147483647, %v4656
        %vm5201 = vcmp.eq.f32.partialorder %v5200, 8.507059e+37
        %v5202 = vand.u32 %v4656, 2147483648
        %v5203 = vor.u32 1.1754944e-38, %v5202
        %v5204 = vsel %vm5201, %v5203, %v5199
        %v5205 = vrcp.pop %v4657
        %v5206 = vmul.f32 %v4657, %v5205
        %v5207 = vsub.f32 1.0, %v5206
        %v5208 = vmul.f32 %v5205, %v5207
        %v5209 = vadd.f32 %v5205, %v5208
        %vm5210 = vweird.f32 %v4657
        %vm5211 = vweird.f32 %v5205
        %vm5212 = vmor %vm5210, %vm5211
        %v5213 = vsel %vm5212, %v5205, %v5209
        %v5214 = vand.u32 2147483647, %v4657
        %vm5215 = vcmp.eq.f32.partialorder %v5214, 8.507059e+37
        %v5216 = vand.u32 %v4657, 2147483648
        %v5217 = vor.u32 1.1754944e-38, %v5216
        %v5218 = vsel %vm5215, %v5217, %v5213
        %v5219 = vrcp.pop %v4658
        %v5220 = vmul.f32 %v4658, %v5219
        %v5221 = vsub.f32 1.0, %v5220
        %v5222 = vmul.f32 %v5219, %v5221
        %v5223 = vadd.f32 %v5219, %v5222
        %vm5224 = vweird.f32 %v4658
        %vm5225 = vweird.f32 %v5219
        %vm5226 = vmor %vm5224, %vm5225
        %v5227 = vsel %vm5226, %v5219, %v5223
        %v5228 = vand.u32 2147483647, %v4658
        %vm5229 = vcmp.eq.f32.partialorder %v5228, 8.507059e+37
        %v5230 = vand.u32 %v4658, 2147483648
        %v5231 = vor.u32 1.1754944e-38, %v5230
        %v5232 = vsel %vm5229, %v5231, %v5227
        %v5233 = vrcp.pop %v4659
        %v5234 = vmul.f32 %v4659, %v5233
        %v5235 = vsub.f32 1.0, %v5234
        %v5236 = vmul.f32 %v5233, %v5235
        %v5237 = vadd.f32 %v5233, %v5236
        %vm5238 = vweird.f32 %v4659
        %vm5239 = vweird.f32 %v5233
        %vm5240 = vmor %vm5238, %vm5239
        %v5241 = vsel %vm5240, %v5233, %v5237
        %v5242 = vand.u32 2147483647, %v4659
        %vm5243 = vcmp.eq.f32.partialorder %v5242, 8.507059e+37
        %v5244 = vand.u32 %v4659, 2147483648
        %v5245 = vor.u32 1.1754944e-38, %v5244
        %v5246 = vsel %vm5243, %v5245, %v5241
        %v5247 = vrcp.pop %v4660
        %v5248 = vmul.f32 %v4660, %v5247
        %v5249 = vsub.f32 1.0, %v5248
        %v5250 = vmul.f32 %v5247, %v5249
        %v5251 = vadd.f32 %v5247, %v5250
        %vm5252 = vweird.f32 %v4660
        %vm5253 = vweird.f32 %v5247
        %vm5254 = vmor %vm5252, %vm5253
        %v5255 = vsel %vm5254, %v5247, %v5251
        %v5256 = vand.u32 2147483647, %v4660
        %vm5257 = vcmp.eq.f32.partialorder %v5256, 8.507059e+37
        %v5258 = vand.u32 %v4660, 2147483648
        %v5259 = vor.u32 1.1754944e-38, %v5258
        %v5260 = vsel %vm5257, %v5259, %v5255
        %v5261 = vrcp.pop %v4661
        %v5262 = vmul.f32 %v4661, %v5261
        %v5263 = vsub.f32 1.0, %v5262
        %v5264 = vmul.f32 %v5261, %v5263
        %v5265 = vadd.f32 %v5261, %v5264
        %vm5266 = vweird.f32 %v4661
        %vm5267 = vweird.f32 %v5261
        %vm5268 = vmor %vm5266, %vm5267
        %v5269 = vsel %vm5268, %v5261, %v5265
        %v5270 = vand.u32 2147483647, %v4661
        %vm5271 = vcmp.eq.f32.partialorder %v5270, 8.507059e+37
        %v5272 = vand.u32 %v4661, 2147483648
        %v5273 = vor.u32 1.1754944e-38, %v5272
        %v5274 = vsel %vm5271, %v5273, %v5269
        %v5275 = vrcp.pop %v4662
        %v5276 = vmul.f32 %v4662, %v5275
        %v5277 = vsub.f32 1.0, %v5276
        %v5278 = vmul.f32 %v5275, %v5277
        %v5279 = vadd.f32 %v5275, %v5278
        %vm5280 = vweird.f32 %v4662
        %vm5281 = vweird.f32 %v5275
        %vm5282 = vmor %vm5280, %vm5281
        %v5283 = vsel %vm5282, %v5275, %v5279
        %v5284 = vand.u32 2147483647, %v4662
        %vm5285 = vcmp.eq.f32.partialorder %v5284, 8.507059e+37
        %v5286 = vand.u32 %v4662, 2147483648
        %v5287 = vor.u32 1.1754944e-38, %v5286
        %v5288 = vsel %vm5285, %v5287, %v5283
        %v5289 = vrcp.pop %v4663
        %v5290 = vmul.f32 %v4663, %v5289
        %v5291 = vsub.f32 1.0, %v5290
        %v5292 = vmul.f32 %v5289, %v5291
        %v5293 = vadd.f32 %v5289, %v5292
        %vm5294 = vweird.f32 %v4663
        %vm5295 = vweird.f32 %v5289
        %vm5296 = vmor %vm5294, %vm5295
        %v5297 = vsel %vm5296, %v5289, %v5293
        %v5298 = vand.u32 2147483647, %v4663
        %vm5299 = vcmp.eq.f32.partialorder %v5298, 8.507059e+37
        %v5300 = vand.u32 %v4663, 2147483648
        %v5301 = vor.u32 1.1754944e-38, %v5300
        %v5302 = vsel %vm5299, %v5301, %v5297
        %v5303 = vrcp.pop %v4664
        %v5304 = vmul.f32 %v4664, %v5303
        %v5305 = vsub.f32 1.0, %v5304
        %v5306 = vmul.f32 %v5303, %v5305
        %v5307 = vadd.f32 %v5303, %v5306
        %vm5308 = vweird.f32 %v4664
        %vm5309 = vweird.f32 %v5303
        %vm5310 = vmor %vm5308, %vm5309
        %v5311 = vsel %vm5310, %v5303, %v5307
        %v5312 = vand.u32 2147483647, %v4664
        %vm5313 = vcmp.eq.f32.partialorder %v5312, 8.507059e+37
        %v5314 = vand.u32 %v4664, 2147483648
        %v5315 = vor.u32 1.1754944e-38, %v5314
        %v5316 = vsel %vm5313, %v5315, %v5311
        %v5317 = vrcp.pop %v4665
        %v5318 = vmul.f32 %v4665, %v5317
        %v5319 = vsub.f32 1.0, %v5318
        %v5320 = vmul.f32 %v5317, %v5319
        %v5321 = vadd.f32 %v5317, %v5320
        %vm5322 = vweird.f32 %v4665
        %vm5323 = vweird.f32 %v5317
        %vm5324 = vmor %vm5322, %vm5323
        %v5325 = vsel %vm5324, %v5317, %v5321
        %v5326 = vand.u32 2147483647, %v4665
        %vm5327 = vcmp.eq.f32.partialorder %v5326, 8.507059e+37
        %v5328 = vand.u32 %v4665, 2147483648
        %v5329 = vor.u32 1.1754944e-38, %v5328
        %v5330 = vsel %vm5327, %v5329, %v5325
        %v5331 = vrcp.pop %v4666
        %v5332 = vmul.f32 %v4666, %v5331
        %v5333 = vsub.f32 1.0, %v5332
        %v5334 = vmul.f32 %v5331, %v5333
        %v5335 = vadd.f32 %v5331, %v5334
        %vm5336 = vweird.f32 %v4666
        %vm5337 = vweird.f32 %v5331
        %vm5338 = vmor %vm5336, %vm5337
        %v5339 = vsel %vm5338, %v5331, %v5335
        %v5340 = vand.u32 2147483647, %v4666
        %vm5341 = vcmp.eq.f32.partialorder %v5340, 8.507059e+37
        %v5342 = vand.u32 %v4666, 2147483648
        %v5343 = vor.u32 1.1754944e-38, %v5342
        %v5344 = vsel %vm5341, %v5343, %v5339
        %v5345 = vrcp.pop %v4667
        %v5346 = vmul.f32 %v4667, %v5345
        %v5347 = vsub.f32 1.0, %v5346
        %v5348 = vmul.f32 %v5345, %v5347
        %v5349 = vadd.f32 %v5345, %v5348
        %vm5350 = vweird.f32 %v4667
        %vm5351 = vweird.f32 %v5345
        %vm5352 = vmor %vm5350, %vm5351
        %v5353 = vsel %vm5352, %v5345, %v5349
        %v5354 = vand.u32 2147483647, %v4667
        %vm5355 = vcmp.eq.f32.partialorder %v5354, 8.507059e+37
        %v5356 = vand.u32 %v4667, 2147483648
        %v5357 = vor.u32 1.1754944e-38, %v5356
        %v5358 = vsel %vm5355, %v5357, %v5353
        %v5359 = vrcp.pop %v4668
        %v5360 = vmul.f32 %v4668, %v5359
        %v5361 = vsub.f32 1.0, %v5360
        %v5362 = vmul.f32 %v5359, %v5361
        %v5363 = vadd.f32 %v5359, %v5362
        %vm5364 = vweird.f32 %v4668
        %vm5365 = vweird.f32 %v5359
        %vm5366 = vmor %vm5364, %vm5365
        %v5367 = vsel %vm5366, %v5359, %v5363
        %v5368 = vand.u32 2147483647, %v4668
        %vm5369 = vcmp.eq.f32.partialorder %v5368, 8.507059e+37
        %v5370 = vand.u32 %v4668, 2147483648
        %v5371 = vor.u32 1.1754944e-38, %v5370
        %v5372 = vsel %vm5369, %v5371, %v5367
        %v5373 = vrcp.pop %v4669
        %v5374 = vmul.f32 %v4669, %v5373
        %v5375 = vsub.f32 1.0, %v5374
        %v5376 = vmul.f32 %v5373, %v5375
        %v5377 = vadd.f32 %v5373, %v5376
        %vm5378 = vweird.f32 %v4669
        %vm5379 = vweird.f32 %v5373
        %vm5380 = vmor %vm5378, %vm5379
        %v5381 = vsel %vm5380, %v5373, %v5377
        %v5382 = vand.u32 2147483647, %v4669
        %vm5383 = vcmp.eq.f32.partialorder %v5382, 8.507059e+37
        %v5384 = vand.u32 %v4669, 2147483648
        %v5385 = vor.u32 1.1754944e-38, %v5384
        %v5386 = vsel %vm5383, %v5385, %v5381
        %v5387 = vrcp.pop %v4670
        %v5388 = vmul.f32 %v4670, %v5387
        %v5389 = vsub.f32 1.0, %v5388
        %v5390 = vmul.f32 %v5387, %v5389
        %v5391 = vadd.f32 %v5387, %v5390
        %vm5392 = vweird.f32 %v4670
        %vm5393 = vweird.f32 %v5387
        %vm5394 = vmor %vm5392, %vm5393
        %v5395 = vsel %vm5394, %v5387, %v5391
        %v5396 = vand.u32 2147483647, %v4670
        %vm5397 = vcmp.eq.f32.partialorder %v5396, 8.507059e+37
        %v5398 = vand.u32 %v4670, 2147483648
        %v5399 = vor.u32 1.1754944e-38, %v5398
        %v5400 = vsel %vm5397, %v5399, %v5395
        %v5401 = vrcp.pop %v4671
        %v5402 = vmul.f32 %v4671, %v5401
        %v5403 = vsub.f32 1.0, %v5402
        %v5404 = vmul.f32 %v5401, %v5403
        %v5405 = vadd.f32 %v5401, %v5404
        %vm5406 = vweird.f32 %v4671
        %vm5407 = vweird.f32 %v5401
        %vm5408 = vmor %vm5406, %vm5407
        %v5409 = vsel %vm5408, %v5401, %v5405
        %v5410 = vand.u32 2147483647, %v4671
        %vm5411 = vcmp.eq.f32.partialorder %v5410, 8.507059e+37
        %v5412 = vand.u32 %v4671, 2147483648
        %v5413 = vor.u32 1.1754944e-38, %v5412
        %v5414 = vsel %vm5411, %v5413, %v5409
        %v5415 = vrcp.pop %v4672
        %v5416 = vmul.f32 %v4672, %v5415
        %v5417 = vsub.f32 1.0, %v5416
        %v5418 = vmul.f32 %v5415, %v5417
        %v5419 = vadd.f32 %v5415, %v5418
        %vm5420 = vweird.f32 %v4672
        %vm5421 = vweird.f32 %v5415
        %vm5422 = vmor %vm5420, %vm5421
        %v5423 = vsel %vm5422, %v5415, %v5419
        %v5424 = vand.u32 2147483647, %v4672
        %vm5425 = vcmp.eq.f32.partialorder %v5424, 8.507059e+37
        %v5426 = vand.u32 %v4672, 2147483648
        %v5427 = vor.u32 1.1754944e-38, %v5426
        %v5428 = vsel %vm5425, %v5427, %v5423
        %v5429 = vrcp.pop %v4673
        %v5430 = vmul.f32 %v4673, %v5429
        %v5431 = vsub.f32 1.0, %v5430
        %v5432 = vmul.f32 %v5429, %v5431
        %v5433 = vadd.f32 %v5429, %v5432
        %vm5434 = vweird.f32 %v4673
        %vm5435 = vweird.f32 %v5429
        %vm5436 = vmor %vm5434, %vm5435
        %v5437 = vsel %vm5436, %v5429, %v5433
        %v5438 = vand.u32 2147483647, %v4673
        %vm5439 = vcmp.eq.f32.partialorder %v5438, 8.507059e+37
        %v5440 = vand.u32 %v4673, 2147483648
        %v5441 = vor.u32 1.1754944e-38, %v5440
        %v5442 = vsel %vm5439, %v5441, %v5437
        %v5443 = vrcp.pop %v4674
        %v5444 = vmul.f32 %v4674, %v5443
        %v5445 = vsub.f32 1.0, %v5444
        %v5446 = vmul.f32 %v5443, %v5445
        %v5447 = vadd.f32 %v5443, %v5446
        %vm5448 = vweird.f32 %v4674
        %vm5449 = vweird.f32 %v5443
        %vm5450 = vmor %vm5448, %vm5449
        %v5451 = vsel %vm5450, %v5443, %v5447
        %v5452 = vand.u32 2147483647, %v4674
        %vm5453 = vcmp.eq.f32.partialorder %v5452, 8.507059e+37
        %v5454 = vand.u32 %v4674, 2147483648
        %v5455 = vor.u32 1.1754944e-38, %v5454
        %v5456 = vsel %vm5453, %v5455, %v5451
        %v5457 = vrcp.pop %v4675
        %v5458 = vmul.f32 %v4675, %v5457
        %v5459 = vsub.f32 1.0, %v5458
        %v5460 = vmul.f32 %v5457, %v5459
        %v5461 = vadd.f32 %v5457, %v5460
        %vm5462 = vweird.f32 %v4675
        %vm5463 = vweird.f32 %v5457
        %vm5464 = vmor %vm5462, %vm5463
        %v5465 = vsel %vm5464, %v5457, %v5461
        %v5466 = vand.u32 2147483647, %v4675
        %vm5467 = vcmp.eq.f32.partialorder %v5466, 8.507059e+37
        %v5468 = vand.u32 %v4675, 2147483648
        %v5469 = vor.u32 1.1754944e-38, %v5468
        %v5470 = vsel %vm5467, %v5469, %v5465
        %v5471 = vrcp.pop %v4676
        %v5472 = vmul.f32 %v4676, %v5471
        %v5473 = vsub.f32 1.0, %v5472
        %v5474 = vmul.f32 %v5471, %v5473
        %v5475 = vadd.f32 %v5471, %v5474
        %vm5476 = vweird.f32 %v4676
        %vm5477 = vweird.f32 %v5471
        %vm5478 = vmor %vm5476, %vm5477
        %v5479 = vsel %vm5478, %v5471, %v5475
        %v5480 = vand.u32 2147483647, %v4676
        %vm5481 = vcmp.eq.f32.partialorder %v5480, 8.507059e+37
        %v5482 = vand.u32 %v4676, 2147483648
        %v5483 = vor.u32 1.1754944e-38, %v5482
        %v5484 = vsel %vm5481, %v5483, %v5479
        %v5485 = vmul.f32 %v5005, %v5050
        %v5486 = vmul.f32 %v5006, %v5064
        %v5487 = vmul.f32 %v5007, %v5078
        %v5488 = vmul.f32 %v5008, %v5092
        %v5489 = vmul.f32 %v5009, %v5106
        %v5490 = vmul.f32 %v5010, %v5120
        %v5491 = vmul.f32 %v5011, %v5134
        %v5492 = vmul.f32 %v5012, %v5148
        %v5493 = vmul.f32 %v5013, %v5162
        %v5494 = vmul.f32 %v5014, %v5176
        %v5495 = vmul.f32 %v5015, %v5190
        %v5496 = vmul.f32 %v5016, %v5204
        %v5497 = vmul.f32 %v5017, %v5218
        %v5498 = vmul.f32 %v5018, %v5232
        %v5499 = vmul.f32 %v5019, %v5246
        %v5500 = vmul.f32 %v5020, %v5260
        %v5501 = vmul.f32 %v5021, %v5274
        %v5502 = vmul.f32 %v5022, %v5288
        %v5503 = vmul.f32 %v5023, %v5302
        %v5504 = vmul.f32 %v5024, %v5316
        %v5505 = vmul.f32 %v5025, %v5330
        %v5506 = vmul.f32 %v5026, %v5344
        %v5507 = vmul.f32 %v5027, %v5358
        %v5508 = vmul.f32 %v5028, %v5372
        %v5509 = vmul.f32 %v5029, %v5386
        %v5510 = vmul.f32 %v5030, %v5400
        %v5511 = vmul.f32 %v5031, %v5414
        %v5512 = vmul.f32 %v5032, %v5428
        %v5513 = vmul.f32 %v5033, %v5442
        %v5514 = vmul.f32 %v5034, %v5456
        %v5515 = vmul.f32 %v5035, %v5470
        %v5516 = vmul.f32 %v5036, %v5484
        %v5517 = vrot.slane %v5493, 4
        %v5518 = vsel %vm1004, %v5517, %v5485
        %v5519 = vrot.slane %v5485, 4
        %v5520 = vsel %vm1004, %v5493, %v5519
        %v5522 = vunpack.c.l.s4 1983009808
        %v5523 = vunpack.c.0.s8 %v5522
        %v5524 = vperm.slane %v5518, %v5523
        %v5526 = vunpack.c.l.s4 1983009808
        %v5527 = vunpack.c.0.s8 %v5526
        %v5528 = vperm.slane %v5520, %v5527
        %v5529 = vrot.slane %v5497, 4
        %v5530 = vsel %vm1004, %v5529, %v5489
        %v5531 = vrot.slane %v5489, 4
        %v5532 = vsel %vm1004, %v5497, %v5531
        %v5534 = vunpack.c.l.s4 1983009808
        %v5535 = vunpack.c.0.s8 %v5534
        %v5536 = vperm.slane %v5530, %v5535
        %v5538 = vunpack.c.l.s4 1983009808
        %v5539 = vunpack.c.0.s8 %v5538
        %v5540 = vperm.slane %v5532, %v5539
        %v5541 = vrot.slane %v5536, 4
        %v5542 = vsel %vm1004, %v5541, %v5524
        %v5543 = vrot.slane %v5524, 4
        %v5544 = vsel %vm1004, %v5536, %v5543
        %v5546 = vunpack.c.l.s4 1934713408
        %v5547 = vunpack.c.0.s8 %v5546
        %v5548 = vperm.slane %v5542, %v5547
        %v5550 = vunpack.c.l.s4 1934713408
        %v5551 = vunpack.c.0.s8 %v5550
        %v5552 = vperm.slane %v5544, %v5551
        %v5553 = vrot.slane %v5540, 4
        %v5554 = vsel %vm1004, %v5553, %v5528
        %v5555 = vrot.slane %v5528, 4
        %v5556 = vsel %vm1004, %v5540, %v5555
        %v5558 = vunpack.c.l.s4 1934713408
        %v5559 = vunpack.c.0.s8 %v5558
        %v5560 = vperm.slane %v5554, %v5559
        %v5562 = vunpack.c.l.s4 1934713408
        %v5563 = vunpack.c.0.s8 %v5562
        %v5564 = vperm.slane %v5556, %v5563
        %v5565 = vrot.slane %v5548, 4
        %v5566 = vsel %vm1004, 0.0, %v5565
        %v5567 = vrot.slane %v5552, 4
        %v5568 = vsel %vm1004, 0.0, %v5567
        %v5569 = vrot.slane %v5560, 4
        %v5570 = vsel %vm1004, 0.0, %v5569
        %v5571 = vrot.slane %v5564, 4
        %v5572 = vsel %vm1004, 0.0, %v5571
        %v5573 = vrot.slane %v5494, 4
        %v5574 = vsel %vm1004, %v5573, %v5486
        %v5575 = vrot.slane %v5486, 4
        %v5576 = vsel %vm1004, %v5494, %v5575
        %v5578 = vunpack.c.l.s4 1983009808
        %v5579 = vunpack.c.0.s8 %v5578
        %v5580 = vperm.slane %v5574, %v5579
        %v5582 = vunpack.c.l.s4 1983009808
        %v5583 = vunpack.c.0.s8 %v5582
        %v5584 = vperm.slane %v5576, %v5583
        %v5585 = vrot.slane %v5498, 4
        %v5586 = vsel %vm1004, %v5585, %v5490
        %v5587 = vrot.slane %v5490, 4
        %v5588 = vsel %vm1004, %v5498, %v5587
        %v5590 = vunpack.c.l.s4 1983009808
        %v5591 = vunpack.c.0.s8 %v5590
        %v5592 = vperm.slane %v5586, %v5591
        %v5594 = vunpack.c.l.s4 1983009808
        %v5595 = vunpack.c.0.s8 %v5594
        %v5596 = vperm.slane %v5588, %v5595
        %v5597 = vrot.slane %v5592, 4
        %v5598 = vsel %vm1004, %v5597, %v5580
        %v5599 = vrot.slane %v5580, 4
        %v5600 = vsel %vm1004, %v5592, %v5599
        %v5602 = vunpack.c.l.s4 1934713408
        %v5603 = vunpack.c.0.s8 %v5602
        %v5604 = vperm.slane %v5598, %v5603
        %v5606 = vunpack.c.l.s4 1934713408
        %v5607 = vunpack.c.0.s8 %v5606
        %v5608 = vperm.slane %v5600, %v5607
        %v5609 = vrot.slane %v5596, 4
        %v5610 = vsel %vm1004, %v5609, %v5584
        %v5611 = vrot.slane %v5584, 4
        %v5612 = vsel %vm1004, %v5596, %v5611
        %v5614 = vunpack.c.l.s4 1934713408
        %v5615 = vunpack.c.0.s8 %v5614
        %v5616 = vperm.slane %v5610, %v5615
        %v5618 = vunpack.c.l.s4 1934713408
        %v5619 = vunpack.c.0.s8 %v5618
        %v5620 = vperm.slane %v5612, %v5619
        %v5621 = vrot.slane %v5604, 4
        %v5622 = vsel %vm1004, 0.0, %v5621
        %v5623 = vrot.slane %v5608, 4
        %v5624 = vsel %vm1004, 0.0, %v5623
        %v5625 = vrot.slane %v5616, 4
        %v5626 = vsel %vm1004, 0.0, %v5625
        %v5627 = vrot.slane %v5620, 4
        %v5628 = vsel %vm1004, 0.0, %v5627
        %v5629 = vrot.slane %v5495, 4
        %v5630 = vsel %vm1004, %v5629, %v5487
        %v5631 = vrot.slane %v5487, 4
        %v5632 = vsel %vm1004, %v5495, %v5631
        %v5634 = vunpack.c.l.s4 1983009808
        %v5635 = vunpack.c.0.s8 %v5634
        %v5636 = vperm.slane %v5630, %v5635
        %v5638 = vunpack.c.l.s4 1983009808
        %v5639 = vunpack.c.0.s8 %v5638
        %v5640 = vperm.slane %v5632, %v5639
        %v5641 = vrot.slane %v5499, 4
        %v5642 = vsel %vm1004, %v5641, %v5491
        %v5643 = vrot.slane %v5491, 4
        %v5644 = vsel %vm1004, %v5499, %v5643
        %v5646 = vunpack.c.l.s4 1983009808
        %v5647 = vunpack.c.0.s8 %v5646
        %v5648 = vperm.slane %v5642, %v5647
        %v5650 = vunpack.c.l.s4 1983009808
        %v5651 = vunpack.c.0.s8 %v5650
        %v5652 = vperm.slane %v5644, %v5651
        %v5653 = vrot.slane %v5648, 4
        %v5654 = vsel %vm1004, %v5653, %v5636
        %v5655 = vrot.slane %v5636, 4
        %v5656 = vsel %vm1004, %v5648, %v5655
        %v5658 = vunpack.c.l.s4 1934713408
        %v5659 = vunpack.c.0.s8 %v5658
        %v5660 = vperm.slane %v5654, %v5659
        %v5662 = vunpack.c.l.s4 1934713408
        %v5663 = vunpack.c.0.s8 %v5662
        %v5664 = vperm.slane %v5656, %v5663
        %v5665 = vrot.slane %v5652, 4
        %v5666 = vsel %vm1004, %v5665, %v5640
        %v5667 = vrot.slane %v5640, 4
        %v5668 = vsel %vm1004, %v5652, %v5667
        %v5670 = vunpack.c.l.s4 1934713408
        %v5671 = vunpack.c.0.s8 %v5670
        %v5672 = vperm.slane %v5666, %v5671
        %v5674 = vunpack.c.l.s4 1934713408
        %v5675 = vunpack.c.0.s8 %v5674
        %v5676 = vperm.slane %v5668, %v5675
        %v5677 = vrot.slane %v5660, 4
        %v5678 = vsel %vm1004, 0.0, %v5677
        %v5679 = vrot.slane %v5664, 4
        %v5680 = vsel %vm1004, 0.0, %v5679
        %v5681 = vrot.slane %v5672, 4
        %v5682 = vsel %vm1004, 0.0, %v5681
        %v5683 = vrot.slane %v5676, 4
        %v5684 = vsel %vm1004, 0.0, %v5683
        %v5685 = vrot.slane %v5496, 4
        %v5686 = vsel %vm1004, %v5685, %v5488
        %v5687 = vrot.slane %v5488, 4
        %v5688 = vsel %vm1004, %v5496, %v5687
        %v5690 = vunpack.c.l.s4 1983009808
        %v5691 = vunpack.c.0.s8 %v5690
        %v5692 = vperm.slane %v5686, %v5691
        %v5694 = vunpack.c.l.s4 1983009808
        %v5695 = vunpack.c.0.s8 %v5694
        %v5696 = vperm.slane %v5688, %v5695
        %v5697 = vrot.slane %v5500, 4
        %v5698 = vsel %vm1004, %v5697, %v5492
        %v5699 = vrot.slane %v5492, 4
        %v5700 = vsel %vm1004, %v5500, %v5699
        %v5702 = vunpack.c.l.s4 1983009808
        %v5703 = vunpack.c.0.s8 %v5702
        %v5704 = vperm.slane %v5698, %v5703
        %v5706 = vunpack.c.l.s4 1983009808
        %v5707 = vunpack.c.0.s8 %v5706
        %v5708 = vperm.slane %v5700, %v5707
        %v5709 = vrot.slane %v5704, 4
        %v5710 = vsel %vm1004, %v5709, %v5692
        %v5711 = vrot.slane %v5692, 4
        %v5712 = vsel %vm1004, %v5704, %v5711
        %v5714 = vunpack.c.l.s4 1934713408
        %v5715 = vunpack.c.0.s8 %v5714
        %v5716 = vperm.slane %v5710, %v5715
        %v5718 = vunpack.c.l.s4 1934713408
        %v5719 = vunpack.c.0.s8 %v5718
        %v5720 = vperm.slane %v5712, %v5719
        %v5721 = vrot.slane %v5708, 4
        %v5722 = vsel %vm1004, %v5721, %v5696
        %v5723 = vrot.slane %v5696, 4
        %v5724 = vsel %vm1004, %v5708, %v5723
        %v5726 = vunpack.c.l.s4 1934713408
        %v5727 = vunpack.c.0.s8 %v5726
        %v5728 = vperm.slane %v5722, %v5727
        %v5730 = vunpack.c.l.s4 1934713408
        %v5731 = vunpack.c.0.s8 %v5730
        %v5732 = vperm.slane %v5724, %v5731
        %v5733 = vrot.slane %v5716, 4
        %v5734 = vsel %vm1004, 0.0, %v5733
        %v5735 = vrot.slane %v5720, 4
        %v5736 = vsel %vm1004, 0.0, %v5735
        %v5737 = vrot.slane %v5728, 4
        %v5738 = vsel %vm1004, 0.0, %v5737
        %v5739 = vrot.slane %v5732, 4
        %v5740 = vsel %vm1004, 0.0, %v5739
        %v5741 = vrot.slane %v5509, 4
        %v5742 = vsel %vm1004, %v5741, %v5501
        %v5743 = vrot.slane %v5501, 4
        %v5744 = vsel %vm1004, %v5509, %v5743
        %v5746 = vunpack.c.l.s4 1983009808
        %v5747 = vunpack.c.0.s8 %v5746
        %v5748 = vperm.slane %v5742, %v5747
        %v5750 = vunpack.c.l.s4 1983009808
        %v5751 = vunpack.c.0.s8 %v5750
        %v5752 = vperm.slane %v5744, %v5751
        %v5753 = vrot.slane %v5513, 4
        %v5754 = vsel %vm1004, %v5753, %v5505
        %v5755 = vrot.slane %v5505, 4
        %v5756 = vsel %vm1004, %v5513, %v5755
        %v5758 = vunpack.c.l.s4 1983009808
        %v5759 = vunpack.c.0.s8 %v5758
        %v5760 = vperm.slane %v5754, %v5759
        %v5762 = vunpack.c.l.s4 1983009808
        %v5763 = vunpack.c.0.s8 %v5762
        %v5764 = vperm.slane %v5756, %v5763
        %v5765 = vrot.slane %v5760, 4
        %v5766 = vsel %vm1004, %v5765, %v5748
        %v5767 = vrot.slane %v5748, 4
        %v5768 = vsel %vm1004, %v5760, %v5767
        %v5770 = vunpack.c.l.s4 1934713408
        %v5771 = vunpack.c.0.s8 %v5770
        %v5772 = vperm.slane %v5766, %v5771
        %v5774 = vunpack.c.l.s4 1934713408
        %v5775 = vunpack.c.0.s8 %v5774
        %v5776 = vperm.slane %v5768, %v5775
        %v5777 = vrot.slane %v5764, 4
        %v5778 = vsel %vm1004, %v5777, %v5752
        %v5779 = vrot.slane %v5752, 4
        %v5780 = vsel %vm1004, %v5764, %v5779
        %v5782 = vunpack.c.l.s4 1934713408
        %v5783 = vunpack.c.0.s8 %v5782
        %v5784 = vperm.slane %v5778, %v5783
        %v5786 = vunpack.c.l.s4 1934713408
        %v5787 = vunpack.c.0.s8 %v5786
        %v5788 = vperm.slane %v5780, %v5787
        %v5789 = vrot.slane %v5772, 4
        %v5790 = vsel %vm1004, 0.0, %v5789
        %v5791 = vrot.slane %v5776, 4
        %v5792 = vsel %vm1004, 0.0, %v5791
        %v5793 = vrot.slane %v5784, 4
        %v5794 = vsel %vm1004, 0.0, %v5793
        %v5795 = vrot.slane %v5788, 4
        %v5796 = vsel %vm1004, 0.0, %v5795
        %v5797 = vrot.slane %v5510, 4
        %v5798 = vsel %vm1004, %v5797, %v5502
        %v5799 = vrot.slane %v5502, 4
        %v5800 = vsel %vm1004, %v5510, %v5799
        %v5802 = vunpack.c.l.s4 1983009808
        %v5803 = vunpack.c.0.s8 %v5802
        %v5804 = vperm.slane %v5798, %v5803
        %v5806 = vunpack.c.l.s4 1983009808
        %v5807 = vunpack.c.0.s8 %v5806
        %v5808 = vperm.slane %v5800, %v5807
        %v5809 = vrot.slane %v5514, 4
        %v5810 = vsel %vm1004, %v5809, %v5506
        %v5811 = vrot.slane %v5506, 4
        %v5812 = vsel %vm1004, %v5514, %v5811
        %v5814 = vunpack.c.l.s4 1983009808
        %v5815 = vunpack.c.0.s8 %v5814
        %v5816 = vperm.slane %v5810, %v5815
        %v5818 = vunpack.c.l.s4 1983009808
        %v5819 = vunpack.c.0.s8 %v5818
        %v5820 = vperm.slane %v5812, %v5819
        %v5821 = vrot.slane %v5816, 4
        %v5822 = vsel %vm1004, %v5821, %v5804
        %v5823 = vrot.slane %v5804, 4
        %v5824 = vsel %vm1004, %v5816, %v5823
        %v5826 = vunpack.c.l.s4 1934713408
        %v5827 = vunpack.c.0.s8 %v5826
        %v5828 = vperm.slane %v5822, %v5827
        %v5830 = vunpack.c.l.s4 1934713408
        %v5831 = vunpack.c.0.s8 %v5830
        %v5832 = vperm.slane %v5824, %v5831
        %v5833 = vrot.slane %v5820, 4
        %v5834 = vsel %vm1004, %v5833, %v5808
        %v5835 = vrot.slane %v5808, 4
        %v5836 = vsel %vm1004, %v5820, %v5835
        %v5838 = vunpack.c.l.s4 1934713408
        %v5839 = vunpack.c.0.s8 %v5838
        %v5840 = vperm.slane %v5834, %v5839
        %v5842 = vunpack.c.l.s4 1934713408
        %v5843 = vunpack.c.0.s8 %v5842
        %v5844 = vperm.slane %v5836, %v5843
        %v5845 = vrot.slane %v5828, 4
        %v5846 = vsel %vm1004, 0.0, %v5845
        %v5847 = vrot.slane %v5832, 4
        %v5848 = vsel %vm1004, 0.0, %v5847
        %v5849 = vrot.slane %v5840, 4
        %v5850 = vsel %vm1004, 0.0, %v5849
        %v5851 = vrot.slane %v5844, 4
        %v5852 = vsel %vm1004, 0.0, %v5851
        %v5853 = vrot.slane %v5511, 4
        %v5854 = vsel %vm1004, %v5853, %v5503
        %v5855 = vrot.slane %v5503, 4
        %v5856 = vsel %vm1004, %v5511, %v5855
        %v5858 = vunpack.c.l.s4 1983009808
        %v5859 = vunpack.c.0.s8 %v5858
        %v5860 = vperm.slane %v5854, %v5859
        %v5862 = vunpack.c.l.s4 1983009808
        %v5863 = vunpack.c.0.s8 %v5862
        %v5864 = vperm.slane %v5856, %v5863
        %v5865 = vrot.slane %v5515, 4
        %v5866 = vsel %vm1004, %v5865, %v5507
        %v5867 = vrot.slane %v5507, 4
        %v5868 = vsel %vm1004, %v5515, %v5867
        %v5870 = vunpack.c.l.s4 1983009808
        %v5871 = vunpack.c.0.s8 %v5870
        %v5872 = vperm.slane %v5866, %v5871
        %v5874 = vunpack.c.l.s4 1983009808
        %v5875 = vunpack.c.0.s8 %v5874
        %v5876 = vperm.slane %v5868, %v5875
        %v5877 = vrot.slane %v5872, 4
        %v5878 = vsel %vm1004, %v5877, %v5860
        %v5879 = vrot.slane %v5860, 4
        %v5880 = vsel %vm1004, %v5872, %v5879
        %v5882 = vunpack.c.l.s4 1934713408
        %v5883 = vunpack.c.0.s8 %v5882
        %v5884 = vperm.slane %v5878, %v5883
        %v5886 = vunpack.c.l.s4 1934713408
        %v5887 = vunpack.c.0.s8 %v5886
        %v5888 = vperm.slane %v5880, %v5887
        %v5889 = vrot.slane %v5876, 4
        %v5890 = vsel %vm1004, %v5889, %v5864
        %v5891 = vrot.slane %v5864, 4
        %v5892 = vsel %vm1004, %v5876, %v5891
        %v5894 = vunpack.c.l.s4 1934713408
        %v5895 = vunpack.c.0.s8 %v5894
        %v5896 = vperm.slane %v5890, %v5895
        %v5898 = vunpack.c.l.s4 1934713408
        %v5899 = vunpack.c.0.s8 %v5898
        %v5900 = vperm.slane %v5892, %v5899
        %v5901 = vrot.slane %v5884, 4
        %v5902 = vsel %vm1004, 0.0, %v5901
        %v5903 = vrot.slane %v5888, 4
        %v5904 = vsel %vm1004, 0.0, %v5903
        %v5905 = vrot.slane %v5896, 4
        %v5906 = vsel %vm1004, 0.0, %v5905
        %v5907 = vrot.slane %v5900, 4
        %v5908 = vsel %vm1004, 0.0, %v5907
        %v5909 = vrot.slane %v5512, 4
        %v5910 = vsel %vm1004, %v5909, %v5504
        %v5911 = vrot.slane %v5504, 4
        %v5912 = vsel %vm1004, %v5512, %v5911
        %v5914 = vunpack.c.l.s4 1983009808
        %v5915 = vunpack.c.0.s8 %v5914
        %v5916 = vperm.slane %v5910, %v5915
        %v5918 = vunpack.c.l.s4 1983009808
        %v5919 = vunpack.c.0.s8 %v5918
        %v5920 = vperm.slane %v5912, %v5919
        %v5921 = vrot.slane %v5516, 4
        %v5922 = vsel %vm1004, %v5921, %v5508
        %v5923 = vrot.slane %v5508, 4
        %v5924 = vsel %vm1004, %v5516, %v5923
        %v5926 = vunpack.c.l.s4 1983009808
        %v5927 = vunpack.c.0.s8 %v5926
        %v5928 = vperm.slane %v5922, %v5927
        %v5930 = vunpack.c.l.s4 1983009808
        %v5931 = vunpack.c.0.s8 %v5930
        %v5932 = vperm.slane %v5924, %v5931
        %v5933 = vrot.slane %v5928, 4
        %v5934 = vsel %vm1004, %v5933, %v5916
        %v5935 = vrot.slane %v5916, 4
        %v5936 = vsel %vm1004, %v5928, %v5935
        %v5938 = vunpack.c.l.s4 1934713408
        %v5939 = vunpack.c.0.s8 %v5938
        %v5940 = vperm.slane %v5934, %v5939
        %v5942 = vunpack.c.l.s4 1934713408
        %v5943 = vunpack.c.0.s8 %v5942
        %v5944 = vperm.slane %v5936, %v5943
        %v5945 = vrot.slane %v5932, 4
        %v5946 = vsel %vm1004, %v5945, %v5920
        %v5947 = vrot.slane %v5920, 4
        %v5948 = vsel %vm1004, %v5932, %v5947
        %v5950 = vunpack.c.l.s4 1934713408
        %v5951 = vunpack.c.0.s8 %v5950
        %v5952 = vperm.slane %v5946, %v5951
        %v5954 = vunpack.c.l.s4 1934713408
        %v5955 = vunpack.c.0.s8 %v5954
        %v5956 = vperm.slane %v5948, %v5955
        %v5957 = vrot.slane %v5940, 4
        %v5958 = vsel %vm1004, 0.0, %v5957
        %v5959 = vrot.slane %v5944, 4
        %v5960 = vsel %vm1004, 0.0, %v5959
        %v5961 = vrot.slane %v5952, 4
        %v5962 = vsel %vm1004, 0.0, %v5961
        %v5963 = vrot.slane %v5956, 4
        %v5964 = vsel %vm1004, 0.0, %v5963
        %v5965 = vsel %vm1004, %v5567, %v5548
        %v5967 = vunpack.c.l.s4 1983009808
        %v5968 = vunpack.c.0.s8 %v5967
        %v5969 = vperm.slane %v5965, %v5968
        %v5970 = vrot.slane %v5568, 4
        %v5971 = vsel %vm1004, %v5970, %v5566
        %v5973 = vunpack.c.l.s4 1983009808
        %v5974 = vunpack.c.0.s8 %v5973
        %v5975 = vperm.slane %v5971, %v5974
        %v5976 = vsel %vm1004, %v5571, %v5560
        %v5978 = vunpack.c.l.s4 1983009808
        %v5979 = vunpack.c.0.s8 %v5978
        %v5980 = vperm.slane %v5976, %v5979
        %v5981 = vrot.slane %v5572, 4
        %v5982 = vsel %vm1004, %v5981, %v5570
        %v5984 = vunpack.c.l.s4 1983009808
        %v5985 = vunpack.c.0.s8 %v5984
        %v5986 = vperm.slane %v5982, %v5985
        %v5987 = vrot.slane %v5975, 4
        %v5988 = vsel %vm1004, %v5987, %v5969
        %v5989 = vrot.slane %v5969, 4
        %v5990 = vsel %vm1004, %v5975, %v5989
        %v5992 = vunpack.c.l.s4 1934713408
        %v5993 = vunpack.c.0.s8 %v5992
        %v5994 = vperm.slane %v5988, %v5993
        %v5996 = vunpack.c.l.s4 1934713408
        %v5997 = vunpack.c.0.s8 %v5996
        %v5998 = vperm.slane %v5990, %v5997
        %v5999 = vrot.slane %v5986, 4
        %v6000 = vsel %vm1004, %v5999, %v5980
        %v6001 = vrot.slane %v5980, 4
        %v6002 = vsel %vm1004, %v5986, %v6001
        %v6004 = vunpack.c.l.s4 1934713408
        %v6005 = vunpack.c.0.s8 %v6004
        %v6006 = vperm.slane %v6000, %v6005
        %v6008 = vunpack.c.l.s4 1934713408
        %v6009 = vunpack.c.0.s8 %v6008
        %v6010 = vperm.slane %v6002, %v6009
        %v6011 = vrot.slane %v6006, 4
        %v6012 = vsel %vm1004, %v6011, %v5994
        %v6013 = vrot.slane %v5994, 4
        %v6014 = vsel %vm1004, %v6006, %v6013
        %v6015 = vrot.slane %v6010, 4
        %v6016 = vsel %vm1004, %v6015, %v5998
        %v6017 = vrot.slane %v5998, 4
        %v6018 = vsel %vm1004, %v6010, %v6017
        %v6019 = vsel %vm1004, %v5623, %v5604
        %v6021 = vunpack.c.l.s4 1983009808
        %v6022 = vunpack.c.0.s8 %v6021
        %v6023 = vperm.slane %v6019, %v6022
        %v6024 = vrot.slane %v5624, 4
        %v6025 = vsel %vm1004, %v6024, %v5622
        %v6027 = vunpack.c.l.s4 1983009808
        %v6028 = vunpack.c.0.s8 %v6027
        %v6029 = vperm.slane %v6025, %v6028
        %v6030 = vsel %vm1004, %v5627, %v5616
        %v6032 = vunpack.c.l.s4 1983009808
        %v6033 = vunpack.c.0.s8 %v6032
        %v6034 = vperm.slane %v6030, %v6033
        %v6035 = vrot.slane %v5628, 4
        %v6036 = vsel %vm1004, %v6035, %v5626
        %v6038 = vunpack.c.l.s4 1983009808
        %v6039 = vunpack.c.0.s8 %v6038
        %v6040 = vperm.slane %v6036, %v6039
        %v6041 = vrot.slane %v6029, 4
        %v6042 = vsel %vm1004, %v6041, %v6023
        %v6043 = vrot.slane %v6023, 4
        %v6044 = vsel %vm1004, %v6029, %v6043
        %v6046 = vunpack.c.l.s4 1934713408
        %v6047 = vunpack.c.0.s8 %v6046
        %v6048 = vperm.slane %v6042, %v6047
        %v6050 = vunpack.c.l.s4 1934713408
        %v6051 = vunpack.c.0.s8 %v6050
        %v6052 = vperm.slane %v6044, %v6051
        %v6053 = vrot.slane %v6040, 4
        %v6054 = vsel %vm1004, %v6053, %v6034
        %v6055 = vrot.slane %v6034, 4
        %v6056 = vsel %vm1004, %v6040, %v6055
        %v6058 = vunpack.c.l.s4 1934713408
        %v6059 = vunpack.c.0.s8 %v6058
        %v6060 = vperm.slane %v6054, %v6059
        %v6062 = vunpack.c.l.s4 1934713408
        %v6063 = vunpack.c.0.s8 %v6062
        %v6064 = vperm.slane %v6056, %v6063
        %v6065 = vrot.slane %v6060, 4
        %v6066 = vsel %vm1004, %v6065, %v6048
        %v6067 = vrot.slane %v6048, 4
        %v6068 = vsel %vm1004, %v6060, %v6067
        %v6069 = vrot.slane %v6064, 4
        %v6070 = vsel %vm1004, %v6069, %v6052
        %v6071 = vrot.slane %v6052, 4
        %v6072 = vsel %vm1004, %v6064, %v6071
        %v6073 = vsel %vm1004, %v5679, %v5660
        %v6075 = vunpack.c.l.s4 1983009808
        %v6076 = vunpack.c.0.s8 %v6075
        %v6077 = vperm.slane %v6073, %v6076
        %v6078 = vrot.slane %v5680, 4
        %v6079 = vsel %vm1004, %v6078, %v5678
        %v6081 = vunpack.c.l.s4 1983009808
        %v6082 = vunpack.c.0.s8 %v6081
        %v6083 = vperm.slane %v6079, %v6082
        %v6084 = vsel %vm1004, %v5683, %v5672
        %v6086 = vunpack.c.l.s4 1983009808
        %v6087 = vunpack.c.0.s8 %v6086
        %v6088 = vperm.slane %v6084, %v6087
        %v6089 = vrot.slane %v5684, 4
        %v6090 = vsel %vm1004, %v6089, %v5682
        %v6092 = vunpack.c.l.s4 1983009808
        %v6093 = vunpack.c.0.s8 %v6092
        %v6094 = vperm.slane %v6090, %v6093
        %v6095 = vrot.slane %v6083, 4
        %v6096 = vsel %vm1004, %v6095, %v6077
        %v6097 = vrot.slane %v6077, 4
        %v6098 = vsel %vm1004, %v6083, %v6097
        %v6100 = vunpack.c.l.s4 1934713408
        %v6101 = vunpack.c.0.s8 %v6100
        %v6102 = vperm.slane %v6096, %v6101
        %v6104 = vunpack.c.l.s4 1934713408
        %v6105 = vunpack.c.0.s8 %v6104
        %v6106 = vperm.slane %v6098, %v6105
        %v6107 = vrot.slane %v6094, 4
        %v6108 = vsel %vm1004, %v6107, %v6088
        %v6109 = vrot.slane %v6088, 4
        %v6110 = vsel %vm1004, %v6094, %v6109
        %v6112 = vunpack.c.l.s4 1934713408
        %v6113 = vunpack.c.0.s8 %v6112
        %v6114 = vperm.slane %v6108, %v6113
        %v6116 = vunpack.c.l.s4 1934713408
        %v6117 = vunpack.c.0.s8 %v6116
        %v6118 = vperm.slane %v6110, %v6117
        %v6119 = vrot.slane %v6114, 4
        %v6120 = vsel %vm1004, %v6119, %v6102
        %v6121 = vrot.slane %v6102, 4
        %v6122 = vsel %vm1004, %v6114, %v6121
        %v6123 = vrot.slane %v6118, 4
        %v6124 = vsel %vm1004, %v6123, %v6106
        %v6125 = vrot.slane %v6106, 4
        %v6126 = vsel %vm1004, %v6118, %v6125
        %v6127 = vsel %vm1004, %v5735, %v5716
        %v6129 = vunpack.c.l.s4 1983009808
        %v6130 = vunpack.c.0.s8 %v6129
        %v6131 = vperm.slane %v6127, %v6130
        %v6132 = vrot.slane %v5736, 4
        %v6133 = vsel %vm1004, %v6132, %v5734
        %v6135 = vunpack.c.l.s4 1983009808
        %v6136 = vunpack.c.0.s8 %v6135
        %v6137 = vperm.slane %v6133, %v6136
        %v6138 = vsel %vm1004, %v5739, %v5728
        %v6140 = vunpack.c.l.s4 1983009808
        %v6141 = vunpack.c.0.s8 %v6140
        %v6142 = vperm.slane %v6138, %v6141
        %v6143 = vrot.slane %v5740, 4
        %v6144 = vsel %vm1004, %v6143, %v5738
        %v6146 = vunpack.c.l.s4 1983009808
        %v6147 = vunpack.c.0.s8 %v6146
        %v6148 = vperm.slane %v6144, %v6147
        %v6149 = vrot.slane %v6137, 4
        %v6150 = vsel %vm1004, %v6149, %v6131
        %v6151 = vrot.slane %v6131, 4
        %v6152 = vsel %vm1004, %v6137, %v6151
        %v6154 = vunpack.c.l.s4 1934713408
        %v6155 = vunpack.c.0.s8 %v6154
        %v6156 = vperm.slane %v6150, %v6155
        %v6158 = vunpack.c.l.s4 1934713408
        %v6159 = vunpack.c.0.s8 %v6158
        %v6160 = vperm.slane %v6152, %v6159
        %v6161 = vrot.slane %v6148, 4
        %v6162 = vsel %vm1004, %v6161, %v6142
        %v6163 = vrot.slane %v6142, 4
        %v6164 = vsel %vm1004, %v6148, %v6163
        %v6166 = vunpack.c.l.s4 1934713408
        %v6167 = vunpack.c.0.s8 %v6166
        %v6168 = vperm.slane %v6162, %v6167
        %v6170 = vunpack.c.l.s4 1934713408
        %v6171 = vunpack.c.0.s8 %v6170
        %v6172 = vperm.slane %v6164, %v6171
        %v6173 = vrot.slane %v6168, 4
        %v6174 = vsel %vm1004, %v6173, %v6156
        %v6175 = vrot.slane %v6156, 4
        %v6176 = vsel %vm1004, %v6168, %v6175
        %v6177 = vrot.slane %v6172, 4
        %v6178 = vsel %vm1004, %v6177, %v6160
        %v6179 = vrot.slane %v6160, 4
        %v6180 = vsel %vm1004, %v6172, %v6179
        %v6181 = vsel %vm1004, %v5791, %v5772
        %v6183 = vunpack.c.l.s4 1983009808
        %v6184 = vunpack.c.0.s8 %v6183
        %v6185 = vperm.slane %v6181, %v6184
        %v6186 = vrot.slane %v5792, 4
        %v6187 = vsel %vm1004, %v6186, %v5790
        %v6189 = vunpack.c.l.s4 1983009808
        %v6190 = vunpack.c.0.s8 %v6189
        %v6191 = vperm.slane %v6187, %v6190
        %v6192 = vsel %vm1004, %v5795, %v5784
        %v6194 = vunpack.c.l.s4 1983009808
        %v6195 = vunpack.c.0.s8 %v6194
        %v6196 = vperm.slane %v6192, %v6195
        %v6197 = vrot.slane %v5796, 4
        %v6198 = vsel %vm1004, %v6197, %v5794
        %v6200 = vunpack.c.l.s4 1983009808
        %v6201 = vunpack.c.0.s8 %v6200
        %v6202 = vperm.slane %v6198, %v6201
        %v6203 = vrot.slane %v6191, 4
        %v6204 = vsel %vm1004, %v6203, %v6185
        %v6205 = vrot.slane %v6185, 4
        %v6206 = vsel %vm1004, %v6191, %v6205
        %v6208 = vunpack.c.l.s4 1934713408
        %v6209 = vunpack.c.0.s8 %v6208
        %v6210 = vperm.slane %v6204, %v6209
        %v6212 = vunpack.c.l.s4 1934713408
        %v6213 = vunpack.c.0.s8 %v6212
        %v6214 = vperm.slane %v6206, %v6213
        %v6215 = vrot.slane %v6202, 4
        %v6216 = vsel %vm1004, %v6215, %v6196
        %v6217 = vrot.slane %v6196, 4
        %v6218 = vsel %vm1004, %v6202, %v6217
        %v6220 = vunpack.c.l.s4 1934713408
        %v6221 = vunpack.c.0.s8 %v6220
        %v6222 = vperm.slane %v6216, %v6221
        %v6224 = vunpack.c.l.s4 1934713408
        %v6225 = vunpack.c.0.s8 %v6224
        %v6226 = vperm.slane %v6218, %v6225
        %v6227 = vrot.slane %v6222, 4
        %v6228 = vsel %vm1004, %v6227, %v6210
        %v6229 = vrot.slane %v6210, 4
        %v6230 = vsel %vm1004, %v6222, %v6229
        %v6231 = vrot.slane %v6226, 4
        %v6232 = vsel %vm1004, %v6231, %v6214
        %v6233 = vrot.slane %v6214, 4
        %v6234 = vsel %vm1004, %v6226, %v6233
        %v6235 = vsel %vm1004, %v5847, %v5828
        %v6237 = vunpack.c.l.s4 1983009808
        %v6238 = vunpack.c.0.s8 %v6237
        %v6239 = vperm.slane %v6235, %v6238
        %v6240 = vrot.slane %v5848, 4
        %v6241 = vsel %vm1004, %v6240, %v5846
        %v6243 = vunpack.c.l.s4 1983009808
        %v6244 = vunpack.c.0.s8 %v6243
        %v6245 = vperm.slane %v6241, %v6244
        %v6246 = vsel %vm1004, %v5851, %v5840
        %v6248 = vunpack.c.l.s4 1983009808
        %v6249 = vunpack.c.0.s8 %v6248
        %v6250 = vperm.slane %v6246, %v6249
        %v6251 = vrot.slane %v5852, 4
        %v6252 = vsel %vm1004, %v6251, %v5850
        %v6254 = vunpack.c.l.s4 1983009808
        %v6255 = vunpack.c.0.s8 %v6254
        %v6256 = vperm.slane %v6252, %v6255
        %v6257 = vrot.slane %v6245, 4
        %v6258 = vsel %vm1004, %v6257, %v6239
        %v6259 = vrot.slane %v6239, 4
        %v6260 = vsel %vm1004, %v6245, %v6259
        %v6262 = vunpack.c.l.s4 1934713408
        %v6263 = vunpack.c.0.s8 %v6262
        %v6264 = vperm.slane %v6258, %v6263
        %v6266 = vunpack.c.l.s4 1934713408
        %v6267 = vunpack.c.0.s8 %v6266
        %v6268 = vperm.slane %v6260, %v6267
        %v6269 = vrot.slane %v6256, 4
        %v6270 = vsel %vm1004, %v6269, %v6250
        %v6271 = vrot.slane %v6250, 4
        %v6272 = vsel %vm1004, %v6256, %v6271
        %v6274 = vunpack.c.l.s4 1934713408
        %v6275 = vunpack.c.0.s8 %v6274
        %v6276 = vperm.slane %v6270, %v6275
        %v6278 = vunpack.c.l.s4 1934713408
        %v6279 = vunpack.c.0.s8 %v6278
        %v6280 = vperm.slane %v6272, %v6279
        %v6281 = vrot.slane %v6276, 4
        %v6282 = vsel %vm1004, %v6281, %v6264
        %v6283 = vrot.slane %v6264, 4
        %v6284 = vsel %vm1004, %v6276, %v6283
        %v6285 = vrot.slane %v6280, 4
        %v6286 = vsel %vm1004, %v6285, %v6268
        %v6287 = vrot.slane %v6268, 4
        %v6288 = vsel %vm1004, %v6280, %v6287
        %v6289 = vsel %vm1004, %v5903, %v5884
        %v6291 = vunpack.c.l.s4 1983009808
        %v6292 = vunpack.c.0.s8 %v6291
        %v6293 = vperm.slane %v6289, %v6292
        %v6294 = vrot.slane %v5904, 4
        %v6295 = vsel %vm1004, %v6294, %v5902
        %v6297 = vunpack.c.l.s4 1983009808
        %v6298 = vunpack.c.0.s8 %v6297
        %v6299 = vperm.slane %v6295, %v6298
        %v6300 = vsel %vm1004, %v5907, %v5896
        %v6302 = vunpack.c.l.s4 1983009808
        %v6303 = vunpack.c.0.s8 %v6302
        %v6304 = vperm.slane %v6300, %v6303
        %v6305 = vrot.slane %v5908, 4
        %v6306 = vsel %vm1004, %v6305, %v5906
        %v6308 = vunpack.c.l.s4 1983009808
        %v6309 = vunpack.c.0.s8 %v6308
        %v6310 = vperm.slane %v6306, %v6309
        %v6311 = vrot.slane %v6299, 4
        %v6312 = vsel %vm1004, %v6311, %v6293
        %v6313 = vrot.slane %v6293, 4
        %v6314 = vsel %vm1004, %v6299, %v6313
        %v6316 = vunpack.c.l.s4 1934713408
        %v6317 = vunpack.c.0.s8 %v6316
        %v6318 = vperm.slane %v6312, %v6317
        %v6320 = vunpack.c.l.s4 1934713408
        %v6321 = vunpack.c.0.s8 %v6320
        %v6322 = vperm.slane %v6314, %v6321
        %v6323 = vrot.slane %v6310, 4
        %v6324 = vsel %vm1004, %v6323, %v6304
        %v6325 = vrot.slane %v6304, 4
        %v6326 = vsel %vm1004, %v6310, %v6325
        %v6328 = vunpack.c.l.s4 1934713408
        %v6329 = vunpack.c.0.s8 %v6328
        %v6330 = vperm.slane %v6324, %v6329
        %v6332 = vunpack.c.l.s4 1934713408
        %v6333 = vunpack.c.0.s8 %v6332
        %v6334 = vperm.slane %v6326, %v6333
        %v6335 = vrot.slane %v6330, 4
        %v6336 = vsel %vm1004, %v6335, %v6318
        %v6337 = vrot.slane %v6318, 4
        %v6338 = vsel %vm1004, %v6330, %v6337
        %v6339 = vrot.slane %v6334, 4
        %v6340 = vsel %vm1004, %v6339, %v6322
        %v6341 = vrot.slane %v6322, 4
        %v6342 = vsel %vm1004, %v6334, %v6341
        %v6343 = vsel %vm1004, %v5959, %v5940
        %v6345 = vunpack.c.l.s4 1983009808
        %v6346 = vunpack.c.0.s8 %v6345
        %v6347 = vperm.slane %v6343, %v6346
        %v6348 = vrot.slane %v5960, 4
        %v6349 = vsel %vm1004, %v6348, %v5958
        %v6351 = vunpack.c.l.s4 1983009808
        %v6352 = vunpack.c.0.s8 %v6351
        %v6353 = vperm.slane %v6349, %v6352
        %v6354 = vsel %vm1004, %v5963, %v5952
        %v6356 = vunpack.c.l.s4 1983009808
        %v6357 = vunpack.c.0.s8 %v6356
        %v6358 = vperm.slane %v6354, %v6357
        %v6359 = vrot.slane %v5964, 4
        %v6360 = vsel %vm1004, %v6359, %v5962
        %v6362 = vunpack.c.l.s4 1983009808
        %v6363 = vunpack.c.0.s8 %v6362
        %v6364 = vperm.slane %v6360, %v6363
        %v6365 = vrot.slane %v6353, 4
        %v6366 = vsel %vm1004, %v6365, %v6347
        %v6367 = vrot.slane %v6347, 4
        %v6368 = vsel %vm1004, %v6353, %v6367
        %v6370 = vunpack.c.l.s4 1934713408
        %v6371 = vunpack.c.0.s8 %v6370
        %v6372 = vperm.slane %v6366, %v6371
        %v6374 = vunpack.c.l.s4 1934713408
        %v6375 = vunpack.c.0.s8 %v6374
        %v6376 = vperm.slane %v6368, %v6375
        %v6377 = vrot.slane %v6364, 4
        %v6378 = vsel %vm1004, %v6377, %v6358
        %v6379 = vrot.slane %v6358, 4
        %v6380 = vsel %vm1004, %v6364, %v6379
        %v6382 = vunpack.c.l.s4 1934713408
        %v6383 = vunpack.c.0.s8 %v6382
        %v6384 = vperm.slane %v6378, %v6383
        %v6386 = vunpack.c.l.s4 1934713408
        %v6387 = vunpack.c.0.s8 %v6386
        %v6388 = vperm.slane %v6380, %v6387
        %v6389 = vrot.slane %v6384, 4
        %v6390 = vsel %vm1004, %v6389, %v6372
        %v6391 = vrot.slane %v6372, 4
        %v6392 = vsel %vm1004, %v6384, %v6391
        %v6393 = vrot.slane %v6388, 4
        %v6394 = vsel %vm1004, %v6393, %v6376
        %v6395 = vrot.slane %v6376, 4
        %v6396 = vsel %vm1004, %v6388, %v6395
        %6405 = vrot.lane.b32.xlu0 %v6014, 32
        %v6406 = vpop.permute.xlu0 %6405
        %6407 = vrot.lane.b32.xlu0 %v6068, 32
        %v6408 = vpop.permute.xlu0 %6407
        %6409 = vrot.lane.b32.xlu0 %v6122, 32
        %v6410 = vpop.permute.xlu0 %6409
        %6411 = vrot.lane.b32.xlu0 %v6176, 32
        %v6412 = vpop.permute.xlu0 %6411
        %6413 = vrot.lane.b32.xlu0 %v6230, 32
        %v6414 = vpop.permute.xlu0 %6413
        %6415 = vrot.lane.b32.xlu0 %v6284, 32
        %v6416 = vpop.permute.xlu0 %6415
        %6417 = vrot.lane.b32.xlu0 %v6338, 32
        %v6418 = vpop.permute.xlu0 %6417
        %6419 = vrot.lane.b32.xlu0 %v6392, 32
        %v6420 = vpop.permute.xlu0 %6419
        %6437 = vrot.lane.b32.xlu0 %v6016, 64
        %v6438 = vpop.permute.xlu0 %6437
        %6439 = vrot.lane.b32.xlu0 %v6070, 64
        %v6440 = vpop.permute.xlu0 %6439
        %6441 = vrot.lane.b32.xlu0 %v6124, 64
        %v6442 = vpop.permute.xlu0 %6441
        %6443 = vrot.lane.b32.xlu0 %v6178, 64
        %v6444 = vpop.permute.xlu0 %6443
        %6445 = vrot.lane.b32.xlu0 %v6232, 64
        %v6446 = vpop.permute.xlu0 %6445
        %6447 = vrot.lane.b32.xlu0 %v6286, 64
        %v6448 = vpop.permute.xlu0 %6447
        %6449 = vrot.lane.b32.xlu0 %v6340, 64
        %v6450 = vpop.permute.xlu0 %6449
        %6451 = vrot.lane.b32.xlu0 %v6394, 64
        %v6452 = vpop.permute.xlu0 %6451
        %6469 = vrot.lane.b32.xlu0 %v6018, 96
        %v6470 = vpop.permute.xlu0 %6469
        %6471 = vrot.lane.b32.xlu0 %v6072, 96
        %v6472 = vpop.permute.xlu0 %6471
        %6473 = vrot.lane.b32.xlu0 %v6126, 96
        %v6474 = vpop.permute.xlu0 %6473
        %6475 = vrot.lane.b32.xlu0 %v6180, 96
        %v6476 = vpop.permute.xlu0 %6475
        %6477 = vrot.lane.b32.xlu0 %v6234, 96
        %v6478 = vpop.permute.xlu0 %6477
        %6479 = vrot.lane.b32.xlu0 %v6288, 96
        %v6480 = vpop.permute.xlu0 %6479
        %6481 = vrot.lane.b32.xlu0 %v6342, 96
        %v6482 = vpop.permute.xlu0 %6481
        %6483 = vrot.lane.b32.xlu0 %v6396, 96
        %v6484 = vpop.permute.xlu0 %6483
        %v6493 = vsel %vm3804, %v6012, %v6406
        %v6494 = vsel %vm3804, %v6066, %v6408
        %v6495 = vsel %vm3804, %v6120, %v6410
        %v6496 = vsel %vm3804, %v6174, %v6412
        %v6497 = vsel %vm3804, %v6228, %v6414
        %v6498 = vsel %vm3804, %v6282, %v6416
        %v6499 = vsel %vm3804, %v6336, %v6418
        %v6500 = vsel %vm3804, %v6390, %v6420
        %vm6501 = vcmask 523264
        %v6502 = vsel %vm6501, %v6493, %v6438
        %v6503 = vsel %vm6501, %v6494, %v6440
        %v6504 = vsel %vm6501, %v6495, %v6442
        %v6505 = vsel %vm6501, %v6496, %v6444
        %v6506 = vsel %vm6501, %v6497, %v6446
        %v6507 = vsel %vm6501, %v6498, %v6448
        %v6508 = vsel %vm6501, %v6499, %v6450
        %v6509 = vsel %vm6501, %v6500, %v6452
        %vm6510 = vcmask 785408
        %v6511 = vsel %vm6510, %v6502, %v6470
        %v6512 = vsel %vm6510, %v6503, %v6472
        %v6513 = vsel %vm6510, %v6504, %v6474
        %v6514 = vsel %vm6510, %v6505, %v6476
        %v6515 = vsel %vm6510, %v6506, %v6478
        %v6516 = vsel %vm6510, %v6507, %v6480
        %v6517 = vsel %vm6510, %v6508, %v6482
        %v6518 = vsel %vm6510, %v6509, %v6484
        %v6519 = vld [vmem:[#allocation8] sm:$0xff]
        %v6520 = vld [vmem:[#allocation8 + $0x8] sm:$0xff]
        %v6521 = vld [vmem:[#allocation8 + $0x10] sm:$0xff]
        %v6522 = vld [vmem:[#allocation8 + $0x18] sm:$0xff]
        %v6523 = vld [vmem:[#allocation8 + $0x20] sm:$0xff]
        %v6524 = vld [vmem:[#allocation8 + $0x28] sm:$0xff]
        %v6525 = vld [vmem:[#allocation8 + $0x30] sm:$0xff]
        %v6526 = vld [vmem:[#allocation8 + $0x38] sm:$0xff]
        %v6527 = vld [vmem:[#allocation8 + $0x40] sm:$0xff]
        %v6528 = vld [vmem:[#allocation8 + $0x48] sm:$0xff]
        %v6529 = vld [vmem:[#allocation8 + $0x50] sm:$0xff]
        %v6530 = vld [vmem:[#allocation8 + $0x58] sm:$0xff]
        %v6531 = vld [vmem:[#allocation8 + $0x60] sm:$0xff]
        %v6532 = vld [vmem:[#allocation8 + $0x68] sm:$0xff]
        %v6533 = vld [vmem:[#allocation8 + $0x70] sm:$0xff]
        %v6534 = vld [vmem:[#allocation8 + $0x78] sm:$0xff]
        %v6535 = vld [vmem:[%s4] sm:$0x1]
        %v6537 = vperm.slane %v6535, 0
        %6539 = vmatpush.msra.mxu0 %v6534
        %6540 = vmatpush.msra.mxu0 %v6533
        %6541 = vmatpush.msra.mxu0 %v6532
        %6542 = vmatpush.msra.mxu0 %v6531
        %6543 = vmatpush.msra.mxu0 %v6530
        %6544 = vmatpush.msra.mxu0 %v6529
        %6545 = vmatpush.msra.mxu0 %v6528
        %6546 = vmatpush.msra.mxu0 %v6527
        %6547 = vmatpush.msra.mxu0 %v6526
        %6548 = vmatpush.msra.mxu0 %v6525
        %6549 = vmatpush.msra.mxu0 %v6524
        %6550 = vmatpush.msra.mxu0 %v6523
        %6551 = vmatpush.msra.mxu0 %v6522
        %6552 = vmatpush.msra.mxu0 %v6521
        %6553 = vmatpush.msra.mxu0 %v6520
        %6554 = vmatpush.msra.mxu0 %v6519
        %6555 = vmatmul.f32.gmra.mxu0 %v6511
        %v6556 = vpop.f32.mrf.mxu0
        %v6557 = vadd.f32 %v6537, %v6556
        %6558 = vmatmul.f32.gmra.mxu0 %v6512
        %v6559 = vpop.f32.mrf.mxu0
        %v6560 = vadd.f32 %v6537, %v6559
        %6561 = vmatmul.f32.gmra.mxu0 %v6513
        %v6562 = vpop.f32.mrf.mxu0
        %v6563 = vadd.f32 %v6537, %v6562
        %6564 = vmatmul.f32.gmra.mxu0 %v6514
        %v6565 = vpop.f32.mrf.mxu0
        %v6566 = vadd.f32 %v6537, %v6565
        %6567 = vmatmul.f32.gmra.mxu0 %v6515
        %v6568 = vpop.f32.mrf.mxu0
        %v6569 = vadd.f32 %v6537, %v6568
        %6570 = vmatmul.f32.gmra.mxu0 %v6516
        %v6571 = vpop.f32.mrf.mxu0
        %v6572 = vadd.f32 %v6537, %v6571
        %6573 = vmatmul.f32.gmra.mxu0 %v6517
        %v6574 = vpop.f32.mrf.mxu0
        %v6575 = vadd.f32 %v6537, %v6574
        %6576 = vmatmul.f32.gmra.mxu0 %v6518
        %v6577 = vpop.f32.mrf.mxu0
        %v6578 = vadd.f32 %v6537, %v6577
        %6579 = vdwg.mxu0
        %v6580 = vadd.f32 %v545, %v6557
        %v6581 = vadd.f32 %v546, %v6560
        %v6582 = vadd.f32 %v547, %v6563
        %v6583 = vadd.f32 %v548, %v6566
        %v6584 = vadd.f32 %v549, %v6569
        %v6585 = vadd.f32 %v550, %v6572
        %v6586 = vadd.f32 %v551, %v6575
        %v6587 = vadd.f32 %v552, %v6578
        %v6588 = vld [vmem:[%s11] sm:$0x1]
        %v6589 = vld [vmem:[%s12] sm:$0x1]
        %6590 = vadd.xlane.f32.xlu0 %v6580
        %v6591 = vpop.xlane.xlu0 %6590
        %6592 = vadd.xlane.f32.xlu0 %v6581
        %v6593 = vpop.xlane.xlu0 %6592
        %6594 = vadd.xlane.f32.xlu0 %v6582
        %v6595 = vpop.xlane.xlu0 %6594
        %6596 = vadd.xlane.f32.xlu0 %v6583
        %v6597 = vpop.xlane.xlu0 %6596
        %6598 = vadd.xlane.f32.xlu0 %v6584
        %v6599 = vpop.xlane.xlu0 %6598
        %6600 = vadd.xlane.f32.xlu0 %v6585
        %v6601 = vpop.xlane.xlu0 %6600
        %6602 = vadd.xlane.f32.xlu0 %v6586
        %v6603 = vpop.xlane.xlu0 %6602
        %6604 = vadd.xlane.f32.xlu0 %v6587
        %v6605 = vpop.xlane.xlu0 %6604
        %v6606 = vmul.f32 %v6591, %v577
        %v6607 = vmul.f32 %v6593, %v577
        %v6608 = vmul.f32 %v6595, %v577
        %v6609 = vmul.f32 %v6597, %v577
        %v6610 = vmul.f32 %v6599, %v577
        %v6611 = vmul.f32 %v6601, %v577
        %v6612 = vmul.f32 %v6603, %v577
        %v6613 = vmul.f32 %v6605, %v577
        %v6614 = vsub.f32 %v6580, %v6606
        %v6615 = vsub.f32 %v6581, %v6607
        %v6616 = vsub.f32 %v6582, %v6608
        %v6617 = vsub.f32 %v6583, %v6609
        %v6618 = vsub.f32 %v6584, %v6610
        %v6619 = vsub.f32 %v6585, %v6611
        %v6620 = vsub.f32 %v6586, %v6612
        %v6621 = vsub.f32 %v6587, %v6613
        %v6622 = vmul.f32 %v6614, %v6614
        %v6623 = vmul.f32 %v6615, %v6615
        %v6624 = vmul.f32 %v6616, %v6616
        %v6625 = vmul.f32 %v6617, %v6617
        %v6626 = vmul.f32 %v6618, %v6618
        %v6627 = vmul.f32 %v6619, %v6619
        %v6628 = vmul.f32 %v6620, %v6620
        %v6629 = vmul.f32 %v6621, %v6621
        %6630 = vadd.xlane.f32.xlu0 %v6622
        %v6631 = vpop.xlane.xlu0 %6630
        %6632 = vadd.xlane.f32.xlu0 %v6623
        %v6633 = vpop.xlane.xlu0 %6632
        %6634 = vadd.xlane.f32.xlu0 %v6624
        %v6635 = vpop.xlane.xlu0 %6634
        %6636 = vadd.xlane.f32.xlu0 %v6625
        %v6637 = vpop.xlane.xlu0 %6636
        %6638 = vadd.xlane.f32.xlu0 %v6626
        %v6639 = vpop.xlane.xlu0 %6638
        %6640 = vadd.xlane.f32.xlu0 %v6627
        %v6641 = vpop.xlane.xlu0 %6640
        %6642 = vadd.xlane.f32.xlu0 %v6628
        %v6643 = vpop.xlane.xlu0 %6642
        %6644 = vadd.xlane.f32.xlu0 %v6629
        %v6645 = vpop.xlane.xlu0 %6644
        %v6646 = vmul.f32 %v6631, %v577
        %v6647 = vmul.f32 %v6633, %v577
        %v6648 = vmul.f32 %v6635, %v577
        %v6649 = vmul.f32 %v6637, %v577
        %v6650 = vmul.f32 %v6639, %v577
        %v6651 = vmul.f32 %v6641, %v577
        %v6652 = vmul.f32 %v6643, %v577
        %v6653 = vmul.f32 %v6645, %v577
        %v6654 = vadd.f32 %v6646, 1e-05
        %v6655 = vadd.f32 %v6647, 1e-05
        %v6656 = vadd.f32 %v6648, 1e-05
        %v6657 = vadd.f32 %v6649, 1e-05
        %v6658 = vadd.f32 %v6650, 1e-05
        %v6659 = vadd.f32 %v6651, 1e-05
        %v6660 = vadd.f32 %v6652, 1e-05
        %v6661 = vadd.f32 %v6653, 1e-05
        %v6662 = vrsqrt.pop %v6654
        %v6663 = vmul.f32 %v6662, %v6654
        %v6664 = vmul.f32 %v6663, %v6662
        %v6665 = vmul.f32 0.5, %v6664
        %v6666 = vsub.f32 1.5, %v6665
        %v6667 = vmul.f32 %v6662, %v6666
        %vm6668 = vweird.f32 %v6654
        %vm6669 = vweird.f32 %v6662
        %vm6670 = vmor %vm6668, %vm6669
        %v6671 = vsel %vm6670, %v6662, %v6667
        %v6672 = vrsqrt.pop %v6655
        %v6673 = vmul.f32 %v6672, %v6655
        %v6674 = vmul.f32 %v6673, %v6672
        %v6675 = vmul.f32 0.5, %v6674
        %v6676 = vsub.f32 1.5, %v6675
        %v6677 = vmul.f32 %v6672, %v6676
        %vm6678 = vweird.f32 %v6655
        %vm6679 = vweird.f32 %v6672
        %vm6680 = vmor %vm6678, %vm6679
        %v6681 = vsel %vm6680, %v6672, %v6677
        %v6682 = vrsqrt.pop %v6656
        %v6683 = vmul.f32 %v6682, %v6656
        %v6684 = vmul.f32 %v6683, %v6682
        %v6685 = vmul.f32 0.5, %v6684
        %v6686 = vsub.f32 1.5, %v6685
        %v6687 = vmul.f32 %v6682, %v6686
        %vm6688 = vweird.f32 %v6656
        %vm6689 = vweird.f32 %v6682
        %vm6690 = vmor %vm6688, %vm6689
        %v6691 = vsel %vm6690, %v6682, %v6687
        %v6692 = vrsqrt.pop %v6657
        %v6693 = vmul.f32 %v6692, %v6657
        %v6694 = vmul.f32 %v6693, %v6692
        %v6695 = vmul.f32 0.5, %v6694
        %v6696 = vsub.f32 1.5, %v6695
        %v6697 = vmul.f32 %v6692, %v6696
        %vm6698 = vweird.f32 %v6657
        %vm6699 = vweird.f32 %v6692
        %vm6700 = vmor %vm6698, %vm6699
        %v6701 = vsel %vm6700, %v6692, %v6697
        %v6702 = vrsqrt.pop %v6658
        %v6703 = vmul.f32 %v6702, %v6658
        %v6704 = vmul.f32 %v6703, %v6702
        %v6705 = vmul.f32 0.5, %v6704
        %v6706 = vsub.f32 1.5, %v6705
        %v6707 = vmul.f32 %v6702, %v6706
        %vm6708 = vweird.f32 %v6658
        %vm6709 = vweird.f32 %v6702
        %vm6710 = vmor %vm6708, %vm6709
        %v6711 = vsel %vm6710, %v6702, %v6707
        %v6712 = vrsqrt.pop %v6659
        %v6713 = vmul.f32 %v6712, %v6659
        %v6714 = vmul.f32 %v6713, %v6712
        %v6715 = vmul.f32 0.5, %v6714
        %v6716 = vsub.f32 1.5, %v6715
        %v6717 = vmul.f32 %v6712, %v6716
        %vm6718 = vweird.f32 %v6659
        %vm6719 = vweird.f32 %v6712
        %vm6720 = vmor %vm6718, %vm6719
        %v6721 = vsel %vm6720, %v6712, %v6717
        %v6722 = vrsqrt.pop %v6660
        %v6723 = vmul.f32 %v6722, %v6660
        %v6724 = vmul.f32 %v6723, %v6722
        %v6725 = vmul.f32 0.5, %v6724
        %v6726 = vsub.f32 1.5, %v6725
        %v6727 = vmul.f32 %v6722, %v6726
        %vm6728 = vweird.f32 %v6660
        %vm6729 = vweird.f32 %v6722
        %vm6730 = vmor %vm6728, %vm6729
        %v6731 = vsel %vm6730, %v6722, %v6727
        %v6732 = vrsqrt.pop %v6661
        %v6733 = vmul.f32 %v6732, %v6661
        %v6734 = vmul.f32 %v6733, %v6732
        %v6735 = vmul.f32 0.5, %v6734
        %v6736 = vsub.f32 1.5, %v6735
        %v6737 = vmul.f32 %v6732, %v6736
        %vm6738 = vweird.f32 %v6661
        %vm6739 = vweird.f32 %v6732
        %vm6740 = vmor %vm6738, %vm6739
        %v6741 = vsel %vm6740, %v6732, %v6737
        %v6742 = vmul.f32 %v6614, %v6671
        %v6743 = vmul.f32 %v6615, %v6681
        %v6744 = vmul.f32 %v6616, %v6691
        %v6745 = vmul.f32 %v6617, %v6701
        %v6746 = vmul.f32 %v6618, %v6711
        %v6747 = vmul.f32 %v6619, %v6721
        %v6748 = vmul.f32 %v6620, %v6731
        %v6749 = vmul.f32 %v6621, %v6741
        %v6751 = vperm.slane %v6588, 0
        %v6753 = vmul.f32 %v6742, %v6751
        %v6754 = vmul.f32 %v6743, %v6751
        %v6755 = vmul.f32 %v6744, %v6751
        %v6756 = vmul.f32 %v6745, %v6751
        %v6757 = vmul.f32 %v6746, %v6751
        %v6758 = vmul.f32 %v6747, %v6751
        %v6759 = vmul.f32 %v6748, %v6751
        %v6760 = vmul.f32 %v6749, %v6751
        %v6762 = vperm.slane %v6589, 0
        %v6764 = vadd.f32 %v6753, %v6762
        %v6765 = vadd.f32 %v6754, %v6762
        %v6766 = vadd.f32 %v6755, %v6762
        %v6767 = vadd.f32 %v6756, %v6762
        %v6768 = vadd.f32 %v6757, %v6762
        %v6769 = vadd.f32 %v6758, %v6762
        %v6770 = vadd.f32 %v6759, %v6762
        %v6771 = vadd.f32 %v6760, %v6762
        %v6772 = vld [vmem:[#allocation10] sm:$0xff]
        %v6773 = vld [vmem:[#allocation10 + $0x8] sm:$0xff]
        %v6774 = vld [vmem:[#allocation10 + $0x10] sm:$0xff]
        %v6775 = vld [vmem:[#allocation10 + $0x18] sm:$0xff]
        %v6776 = vld [vmem:[#allocation10 + $0x20] sm:$0xff]
        %v6777 = vld [vmem:[#allocation10 + $0x28] sm:$0xff]
        %v6778 = vld [vmem:[#allocation10 + $0x30] sm:$0xff]
        %v6779 = vld [vmem:[#allocation10 + $0x38] sm:$0xff]
        %v6780 = vld [vmem:[#allocation10 + $0x40] sm:$0xff]
        %v6781 = vld [vmem:[#allocation10 + $0x48] sm:$0xff]
        %v6782 = vld [vmem:[#allocation10 + $0x50] sm:$0xff]
        %v6783 = vld [vmem:[#allocation10 + $0x58] sm:$0xff]
        %v6784 = vld [vmem:[#allocation10 + $0x60] sm:$0xff]
        %v6785 = vld [vmem:[#allocation10 + $0x68] sm:$0xff]
        %v6786 = vld [vmem:[#allocation10 + $0x70] sm:$0xff]
        %v6787 = vld [vmem:[#allocation10 + $0x78] sm:$0xff]
        %v6788 = vld [vmem:[#allocation10 + $0x80] sm:$0xff]
        %v6789 = vld [vmem:[#allocation10 + $0x88] sm:$0xff]
        %v6790 = vld [vmem:[#allocation10 + $0x90] sm:$0xff]
        %v6791 = vld [vmem:[#allocation10 + $0x98] sm:$0xff]
        %v6792 = vld [vmem:[#allocation10 + $0xa0] sm:$0xff]
        %v6793 = vld [vmem:[#allocation10 + $0xa8] sm:$0xff]
        %v6794 = vld [vmem:[#allocation10 + $0xb0] sm:$0xff]
        %v6795 = vld [vmem:[#allocation10 + $0xb8] sm:$0xff]
        %v6796 = vld [vmem:[#allocation10 + $0xc0] sm:$0xff]
        %v6797 = vld [vmem:[#allocation10 + $0xc8] sm:$0xff]
        %v6798 = vld [vmem:[#allocation10 + $0xd0] sm:$0xff]
        %v6799 = vld [vmem:[#allocation10 + $0xd8] sm:$0xff]
        %v6800 = vld [vmem:[#allocation10 + $0xe0] sm:$0xff]
        %v6801 = vld [vmem:[#allocation10 + $0xe8] sm:$0xff]
        %v6802 = vld [vmem:[#allocation10 + $0xf0] sm:$0xff]
        %v6803 = vld [vmem:[#allocation10 + $0xf8] sm:$0xff]
        %v6804 = vld [vmem:[%s8] sm:$0x3]
        %v6806 = vperm.slane %v6804, 0
        %v6807 = vperm.slane %v6804, 1
        %6810 = vmatpush.msra.mxu0 %v6802
        %6811 = vmatpush.msra.mxu0 %v6800
        %6812 = vmatpush.msra.mxu0 %v6798
        %6813 = vmatpush.msra.mxu0 %v6796
        %6814 = vmatpush.msra.mxu0 %v6794
        %6815 = vmatpush.msra.mxu0 %v6792
        %6816 = vmatpush.msra.mxu0 %v6790
        %6817 = vmatpush.msra.mxu0 %v6788
        %6818 = vmatpush.msra.mxu0 %v6786
        %6819 = vmatpush.msra.mxu0 %v6784
        %6820 = vmatpush.msra.mxu0 %v6782
        %6821 = vmatpush.msra.mxu0 %v6780
        %6822 = vmatpush.msra.mxu0 %v6778
        %6823 = vmatpush.msra.mxu0 %v6776
        %6824 = vmatpush.msra.mxu0 %v6774
        %6825 = vmatpush.msra.mxu0 %v6772
        %6826 = vmatmul.f32.gmra.mxu0 %v6764
        %v6827 = vpop.f32.mrf.mxu0
        %v6828 = vadd.f32 %v6806, %v6827
        %6829 = vmatmul.f32.gmra.mxu0 %v6765
        %v6830 = vpop.f32.mrf.mxu0
        %v6831 = vadd.f32 %v6806, %v6830
        %6832 = vmatmul.f32.gmra.mxu0 %v6766
        %v6833 = vpop.f32.mrf.mxu0
        %v6834 = vadd.f32 %v6806, %v6833
        %6835 = vmatmul.f32.gmra.mxu0 %v6767
        %v6836 = vpop.f32.mrf.mxu0
        %v6837 = vadd.f32 %v6806, %v6836
        %6838 = vmatmul.f32.gmra.mxu0 %v6768
        %v6839 = vpop.f32.mrf.mxu0
        %v6840 = vadd.f32 %v6806, %v6839
        %6841 = vmatmul.f32.gmra.mxu0 %v6769
        %v6842 = vpop.f32.mrf.mxu0
        %v6843 = vadd.f32 %v6806, %v6842
        %6844 = vmatmul.f32.gmra.mxu0 %v6770
        %v6845 = vpop.f32.mrf.mxu0
        %v6846 = vadd.f32 %v6806, %v6845
        %6847 = vmatmul.f32.gmra.mxu0 %v6771
        %v6848 = vpop.f32.mrf.mxu0
        %v6849 = vadd.f32 %v6806, %v6848
        %6850 = vdwg.mxu0
        %6851 = vmatpush.msra.mxu0 %v6803
        %6852 = vmatpush.msra.mxu0 %v6801
        %6853 = vmatpush.msra.mxu0 %v6799
        %6854 = vmatpush.msra.mxu0 %v6797
        %6855 = vmatpush.msra.mxu0 %v6795
        %6856 = vmatpush.msra.mxu0 %v6793
        %6857 = vmatpush.msra.mxu0 %v6791
        %6858 = vmatpush.msra.mxu0 %v6789
        %6859 = vmatpush.msra.mxu0 %v6787
        %6860 = vmatpush.msra.mxu0 %v6785
        %6861 = vmatpush.msra.mxu0 %v6783
        %6862 = vmatpush.msra.mxu0 %v6781
        %6863 = vmatpush.msra.mxu0 %v6779
        %6864 = vmatpush.msra.mxu0 %v6777
        %6865 = vmatpush.msra.mxu0 %v6775
        %6866 = vmatpush.msra.mxu0 %v6773
        %6867 = vmatmul.f32.gmra.mxu0 %v6764
        %v6868 = vpop.f32.mrf.mxu0
        %v6869 = vadd.f32 %v6807, %v6868
        %6870 = vmatmul.f32.gmra.mxu0 %v6765
        %v6871 = vpop.f32.mrf.mxu0
        %v6872 = vadd.f32 %v6807, %v6871
        %6873 = vmatmul.f32.gmra.mxu0 %v6766
        %v6874 = vpop.f32.mrf.mxu0
        %v6875 = vadd.f32 %v6807, %v6874
        %6876 = vmatmul.f32.gmra.mxu0 %v6767
        %v6877 = vpop.f32.mrf.mxu0
        %v6878 = vadd.f32 %v6807, %v6877
        %6879 = vmatmul.f32.gmra.mxu0 %v6768
        %v6880 = vpop.f32.mrf.mxu0
        %v6881 = vadd.f32 %v6807, %v6880
        %6882 = vmatmul.f32.gmra.mxu0 %v6769
        %v6883 = vpop.f32.mrf.mxu0
        %v6884 = vadd.f32 %v6807, %v6883
        %6885 = vmatmul.f32.gmra.mxu0 %v6770
        %v6886 = vpop.f32.mrf.mxu0
        %v6887 = vadd.f32 %v6807, %v6886
        %6888 = vmatmul.f32.gmra.mxu0 %v6771
        %v6889 = vpop.f32.mrf.mxu0
        %v6890 = vadd.f32 %v6807, %v6889
        %6891 = vdwg.mxu0
        %v6892 = vmul.f32 %v6828, 0.5
        %v6893 = vmul.f32 %v6869, 0.5
        %v6894 = vmul.f32 %v6831, 0.5
        %v6895 = vmul.f32 %v6872, 0.5
        %v6896 = vmul.f32 %v6834, 0.5
        %v6897 = vmul.f32 %v6875, 0.5
        %v6898 = vmul.f32 %v6837, 0.5
        %v6899 = vmul.f32 %v6878, 0.5
        %v6900 = vmul.f32 %v6840, 0.5
        %v6901 = vmul.f32 %v6881, 0.5
        %v6902 = vmul.f32 %v6843, 0.5
        %v6903 = vmul.f32 %v6884, 0.5
        %v6904 = vmul.f32 %v6846, 0.5
        %v6905 = vmul.f32 %v6887, 0.5
        %v6906 = vmul.f32 %v6849, 0.5
        %v6907 = vmul.f32 %v6890, 0.5
        %v6908 = vmul.f32 %v6828, 0.70710677
        %v6909 = vmul.f32 %v6869, 0.70710677
        %v6910 = vmul.f32 %v6831, 0.70710677
        %v6911 = vmul.f32 %v6872, 0.70710677
        %v6912 = vmul.f32 %v6834, 0.70710677
        %v6913 = vmul.f32 %v6875, 0.70710677
        %v6914 = vmul.f32 %v6837, 0.70710677
        %v6915 = vmul.f32 %v6878, 0.70710677
        %v6916 = vmul.f32 %v6840, 0.70710677
        %v6917 = vmul.f32 %v6881, 0.70710677
        %v6918 = vmul.f32 %v6843, 0.70710677
        %v6919 = vmul.f32 %v6884, 0.70710677
        %v6920 = vmul.f32 %v6846, 0.70710677
        %v6921 = vmul.f32 %v6887, 0.70710677
        %v6922 = vmul.f32 %v6849, 0.70710677
        %v6923 = vmul.f32 %v6890, 0.70710677
        %v6924 = vand.u32 2147483647, %v6908
        %v6925 = vand.u32 2147483647, %v6909
        %v6926 = vand.u32 2147483647, %v6910
        %v6927 = vand.u32 2147483647, %v6911
        %v6928 = vand.u32 2147483647, %v6912
        %v6929 = vand.u32 2147483647, %v6913
        %v6930 = vand.u32 2147483647, %v6914
        %v6931 = vand.u32 2147483647, %v6915
        %v6932 = vand.u32 2147483647, %v6916
        %v6933 = vand.u32 2147483647, %v6917
        %v6934 = vand.u32 2147483647, %v6918
        %v6935 = vand.u32 2147483647, %v6919
        %v6936 = vand.u32 2147483647, %v6920
        %v6937 = vand.u32 2147483647, %v6921
        %v6938 = vand.u32 2147483647, %v6922
        %v6939 = vand.u32 2147483647, %v6923
        %v6940 = vmul.f32 %v6924, 0.3275911
        %v6941 = vmul.f32 %v6925, 0.3275911
        %v6942 = vmul.f32 %v6926, 0.3275911
        %v6943 = vmul.f32 %v6927, 0.3275911
        %v6944 = vmul.f32 %v6928, 0.3275911
        %v6945 = vmul.f32 %v6929, 0.3275911
        %v6946 = vmul.f32 %v6930, 0.3275911
        %v6947 = vmul.f32 %v6931, 0.3275911
        %v6948 = vmul.f32 %v6932, 0.3275911
        %v6949 = vmul.f32 %v6933, 0.3275911
        %v6950 = vmul.f32 %v6934, 0.3275911
        %v6951 = vmul.f32 %v6935, 0.3275911
        %v6952 = vmul.f32 %v6936, 0.3275911
        %v6953 = vmul.f32 %v6937, 0.3275911
        %v6954 = vmul.f32 %v6938, 0.3275911
        %v6955 = vmul.f32 %v6939, 0.3275911
        %v6956 = vadd.f32 %v6940, 1.0
        %v6957 = vadd.f32 %v6941, 1.0
        %v6958 = vadd.f32 %v6942, 1.0
        %v6959 = vadd.f32 %v6943, 1.0
        %v6960 = vadd.f32 %v6944, 1.0
        %v6961 = vadd.f32 %v6945, 1.0
        %v6962 = vadd.f32 %v6946, 1.0
        %v6963 = vadd.f32 %v6947, 1.0
        %v6964 = vadd.f32 %v6948, 1.0
        %v6965 = vadd.f32 %v6949, 1.0
        %v6966 = vadd.f32 %v6950, 1.0
        %v6967 = vadd.f32 %v6951, 1.0
        %v6968 = vadd.f32 %v6952, 1.0
        %v6969 = vadd.f32 %v6953, 1.0
        %v6970 = vadd.f32 %v6954, 1.0
        %v6971 = vadd.f32 %v6955, 1.0
        %v6972 = vrcp.pop %v6956
        %v6973 = vmul.f32 %v6956, %v6972
        %v6974 = vsub.f32 1.0, %v6973
        %v6975 = vmul.f32 %v6972, %v6974
        %v6976 = vadd.f32 %v6972, %v6975
        %vm6977 = vweird.f32 %v6956
        %vm6978 = vweird.f32 %v6972
        %vm6979 = vmor %vm6977, %vm6978
        %v6980 = vsel %vm6979, %v6972, %v6976
        %v6981 = vand.u32 2147483647, %v6956
        %vm6982 = vcmp.eq.f32.partialorder %v6981, 8.507059e+37
        %v6983 = vand.u32 %v6956, 2147483648
        %v6984 = vor.u32 1.1754944e-38, %v6983
        %v6985 = vsel %vm6982, %v6984, %v6980
        %v6986 = vmul.f32 1.0, %v6985
        %v6987 = vrcp.pop %v6957
        %v6988 = vmul.f32 %v6957, %v6987
        %v6989 = vsub.f32 1.0, %v6988
        %v6990 = vmul.f32 %v6987, %v6989
        %v6991 = vadd.f32 %v6987, %v6990
        %vm6992 = vweird.f32 %v6957
        %vm6993 = vweird.f32 %v6987
        %vm6994 = vmor %vm6992, %vm6993
        %v6995 = vsel %vm6994, %v6987, %v6991
        %v6996 = vand.u32 2147483647, %v6957
        %vm6997 = vcmp.eq.f32.partialorder %v6996, 8.507059e+37
        %v6998 = vand.u32 %v6957, 2147483648
        %v6999 = vor.u32 1.1754944e-38, %v6998
        %v7000 = vsel %vm6997, %v6999, %v6995
        %v7001 = vmul.f32 1.0, %v7000
        %v7002 = vrcp.pop %v6958
        %v7003 = vmul.f32 %v6958, %v7002
        %v7004 = vsub.f32 1.0, %v7003
        %v7005 = vmul.f32 %v7002, %v7004
        %v7006 = vadd.f32 %v7002, %v7005
        %vm7007 = vweird.f32 %v6958
        %vm7008 = vweird.f32 %v7002
        %vm7009 = vmor %vm7007, %vm7008
        %v7010 = vsel %vm7009, %v7002, %v7006
        %v7011 = vand.u32 2147483647, %v6958
        %vm7012 = vcmp.eq.f32.partialorder %v7011, 8.507059e+37
        %v7013 = vand.u32 %v6958, 2147483648
        %v7014 = vor.u32 1.1754944e-38, %v7013
        %v7015 = vsel %vm7012, %v7014, %v7010
        %v7016 = vmul.f32 1.0, %v7015
        %v7017 = vrcp.pop %v6959
        %v7018 = vmul.f32 %v6959, %v7017
        %v7019 = vsub.f32 1.0, %v7018
        %v7020 = vmul.f32 %v7017, %v7019
        %v7021 = vadd.f32 %v7017, %v7020
        %vm7022 = vweird.f32 %v6959
        %vm7023 = vweird.f32 %v7017
        %vm7024 = vmor %vm7022, %vm7023
        %v7025 = vsel %vm7024, %v7017, %v7021
        %v7026 = vand.u32 2147483647, %v6959
        %vm7027 = vcmp.eq.f32.partialorder %v7026, 8.507059e+37
        %v7028 = vand.u32 %v6959, 2147483648
        %v7029 = vor.u32 1.1754944e-38, %v7028
        %v7030 = vsel %vm7027, %v7029, %v7025
        %v7031 = vmul.f32 1.0, %v7030
        %v7032 = vrcp.pop %v6960
        %v7033 = vmul.f32 %v6960, %v7032
        %v7034 = vsub.f32 1.0, %v7033
        %v7035 = vmul.f32 %v7032, %v7034
        %v7036 = vadd.f32 %v7032, %v7035
        %vm7037 = vweird.f32 %v6960
        %vm7038 = vweird.f32 %v7032
        %vm7039 = vmor %vm7037, %vm7038
        %v7040 = vsel %vm7039, %v7032, %v7036
        %v7041 = vand.u32 2147483647, %v6960
        %vm7042 = vcmp.eq.f32.partialorder %v7041, 8.507059e+37
        %v7043 = vand.u32 %v6960, 2147483648
        %v7044 = vor.u32 1.1754944e-38, %v7043
        %v7045 = vsel %vm7042, %v7044, %v7040
        %v7046 = vmul.f32 1.0, %v7045
        %v7047 = vrcp.pop %v6961
        %v7048 = vmul.f32 %v6961, %v7047
        %v7049 = vsub.f32 1.0, %v7048
        %v7050 = vmul.f32 %v7047, %v7049
        %v7051 = vadd.f32 %v7047, %v7050
        %vm7052 = vweird.f32 %v6961
        %vm7053 = vweird.f32 %v7047
        %vm7054 = vmor %vm7052, %vm7053
        %v7055 = vsel %vm7054, %v7047, %v7051
        %v7056 = vand.u32 2147483647, %v6961
        %vm7057 = vcmp.eq.f32.partialorder %v7056, 8.507059e+37
        %v7058 = vand.u32 %v6961, 2147483648
        %v7059 = vor.u32 1.1754944e-38, %v7058
        %v7060 = vsel %vm7057, %v7059, %v7055
        %v7061 = vmul.f32 1.0, %v7060
        %v7062 = vrcp.pop %v6962
        %v7063 = vmul.f32 %v6962, %v7062
        %v7064 = vsub.f32 1.0, %v7063
        %v7065 = vmul.f32 %v7062, %v7064
        %v7066 = vadd.f32 %v7062, %v7065
        %vm7067 = vweird.f32 %v6962
        %vm7068 = vweird.f32 %v7062
        %vm7069 = vmor %vm7067, %vm7068
        %v7070 = vsel %vm7069, %v7062, %v7066
        %v7071 = vand.u32 2147483647, %v6962
        %vm7072 = vcmp.eq.f32.partialorder %v7071, 8.507059e+37
        %v7073 = vand.u32 %v6962, 2147483648
        %v7074 = vor.u32 1.1754944e-38, %v7073
        %v7075 = vsel %vm7072, %v7074, %v7070
        %v7076 = vmul.f32 1.0, %v7075
        %v7077 = vrcp.pop %v6963
        %v7078 = vmul.f32 %v6963, %v7077
        %v7079 = vsub.f32 1.0, %v7078
        %v7080 = vmul.f32 %v7077, %v7079
        %v7081 = vadd.f32 %v7077, %v7080
        %vm7082 = vweird.f32 %v6963
        %vm7083 = vweird.f32 %v7077
        %vm7084 = vmor %vm7082, %vm7083
        %v7085 = vsel %vm7084, %v7077, %v7081
        %v7086 = vand.u32 2147483647, %v6963
        %vm7087 = vcmp.eq.f32.partialorder %v7086, 8.507059e+37
        %v7088 = vand.u32 %v6963, 2147483648
        %v7089 = vor.u32 1.1754944e-38, %v7088
        %v7090 = vsel %vm7087, %v7089, %v7085
        %v7091 = vmul.f32 1.0, %v7090
        %v7092 = vrcp.pop %v6964
        %v7093 = vmul.f32 %v6964, %v7092
        %v7094 = vsub.f32 1.0, %v7093
        %v7095 = vmul.f32 %v7092, %v7094
        %v7096 = vadd.f32 %v7092, %v7095
        %vm7097 = vweird.f32 %v6964
        %vm7098 = vweird.f32 %v7092
        %vm7099 = vmor %vm7097, %vm7098
        %v7100 = vsel %vm7099, %v7092, %v7096
        %v7101 = vand.u32 2147483647, %v6964
        %vm7102 = vcmp.eq.f32.partialorder %v7101, 8.507059e+37
        %v7103 = vand.u32 %v6964, 2147483648
        %v7104 = vor.u32 1.1754944e-38, %v7103
        %v7105 = vsel %vm7102, %v7104, %v7100
        %v7106 = vmul.f32 1.0, %v7105
        %v7107 = vrcp.pop %v6965
        %v7108 = vmul.f32 %v6965, %v7107
        %v7109 = vsub.f32 1.0, %v7108
        %v7110 = vmul.f32 %v7107, %v7109
        %v7111 = vadd.f32 %v7107, %v7110
        %vm7112 = vweird.f32 %v6965
        %vm7113 = vweird.f32 %v7107
        %vm7114 = vmor %vm7112, %vm7113
        %v7115 = vsel %vm7114, %v7107, %v7111
        %v7116 = vand.u32 2147483647, %v6965
        %vm7117 = vcmp.eq.f32.partialorder %v7116, 8.507059e+37
        %v7118 = vand.u32 %v6965, 2147483648
        %v7119 = vor.u32 1.1754944e-38, %v7118
        %v7120 = vsel %vm7117, %v7119, %v7115
        %v7121 = vmul.f32 1.0, %v7120
        %v7122 = vrcp.pop %v6966
        %v7123 = vmul.f32 %v6966, %v7122
        %v7124 = vsub.f32 1.0, %v7123
        %v7125 = vmul.f32 %v7122, %v7124
        %v7126 = vadd.f32 %v7122, %v7125
        %vm7127 = vweird.f32 %v6966
        %vm7128 = vweird.f32 %v7122
        %vm7129 = vmor %vm7127, %vm7128
        %v7130 = vsel %vm7129, %v7122, %v7126
        %v7131 = vand.u32 2147483647, %v6966
        %vm7132 = vcmp.eq.f32.partialorder %v7131, 8.507059e+37
        %v7133 = vand.u32 %v6966, 2147483648
        %v7134 = vor.u32 1.1754944e-38, %v7133
        %v7135 = vsel %vm7132, %v7134, %v7130
        %v7136 = vmul.f32 1.0, %v7135
        %v7137 = vrcp.pop %v6967
        %v7138 = vmul.f32 %v6967, %v7137
        %v7139 = vsub.f32 1.0, %v7138
        %v7140 = vmul.f32 %v7137, %v7139
        %v7141 = vadd.f32 %v7137, %v7140
        %vm7142 = vweird.f32 %v6967
        %vm7143 = vweird.f32 %v7137
        %vm7144 = vmor %vm7142, %vm7143
        %v7145 = vsel %vm7144, %v7137, %v7141
        %v7146 = vand.u32 2147483647, %v6967
        %vm7147 = vcmp.eq.f32.partialorder %v7146, 8.507059e+37
        %v7148 = vand.u32 %v6967, 2147483648
        %v7149 = vor.u32 1.1754944e-38, %v7148
        %v7150 = vsel %vm7147, %v7149, %v7145
        %v7151 = vmul.f32 1.0, %v7150
        %v7152 = vrcp.pop %v6968
        %v7153 = vmul.f32 %v6968, %v7152
        %v7154 = vsub.f32 1.0, %v7153
        %v7155 = vmul.f32 %v7152, %v7154
        %v7156 = vadd.f32 %v7152, %v7155
        %vm7157 = vweird.f32 %v6968
        %vm7158 = vweird.f32 %v7152
        %vm7159 = vmor %vm7157, %vm7158
        %v7160 = vsel %vm7159, %v7152, %v7156
        %v7161 = vand.u32 2147483647, %v6968
        %vm7162 = vcmp.eq.f32.partialorder %v7161, 8.507059e+37
        %v7163 = vand.u32 %v6968, 2147483648
        %v7164 = vor.u32 1.1754944e-38, %v7163
        %v7165 = vsel %vm7162, %v7164, %v7160
        %v7166 = vmul.f32 1.0, %v7165
        %v7167 = vrcp.pop %v6969
        %v7168 = vmul.f32 %v6969, %v7167
        %v7169 = vsub.f32 1.0, %v7168
        %v7170 = vmul.f32 %v7167, %v7169
        %v7171 = vadd.f32 %v7167, %v7170
        %vm7172 = vweird.f32 %v6969
        %vm7173 = vweird.f32 %v7167
        %vm7174 = vmor %vm7172, %vm7173
        %v7175 = vsel %vm7174, %v7167, %v7171
        %v7176 = vand.u32 2147483647, %v6969
        %vm7177 = vcmp.eq.f32.partialorder %v7176, 8.507059e+37
        %v7178 = vand.u32 %v6969, 2147483648
        %v7179 = vor.u32 1.1754944e-38, %v7178
        %v7180 = vsel %vm7177, %v7179, %v7175
        %v7181 = vmul.f32 1.0, %v7180
        %v7182 = vrcp.pop %v6970
        %v7183 = vmul.f32 %v6970, %v7182
        %v7184 = vsub.f32 1.0, %v7183
        %v7185 = vmul.f32 %v7182, %v7184
        %v7186 = vadd.f32 %v7182, %v7185
        %vm7187 = vweird.f32 %v6970
        %vm7188 = vweird.f32 %v7182
        %vm7189 = vmor %vm7187, %vm7188
        %v7190 = vsel %vm7189, %v7182, %v7186
        %v7191 = vand.u32 2147483647, %v6970
        %vm7192 = vcmp.eq.f32.partialorder %v7191, 8.507059e+37
        %v7193 = vand.u32 %v6970, 2147483648
        %v7194 = vor.u32 1.1754944e-38, %v7193
        %v7195 = vsel %vm7192, %v7194, %v7190
        %v7196 = vmul.f32 1.0, %v7195
        %v7197 = vrcp.pop %v6971
        %v7198 = vmul.f32 %v6971, %v7197
        %v7199 = vsub.f32 1.0, %v7198
        %v7200 = vmul.f32 %v7197, %v7199
        %v7201 = vadd.f32 %v7197, %v7200
        %vm7202 = vweird.f32 %v6971
        %vm7203 = vweird.f32 %v7197
        %vm7204 = vmor %vm7202, %vm7203
        %v7205 = vsel %vm7204, %v7197, %v7201
        %v7206 = vand.u32 2147483647, %v6971
        %vm7207 = vcmp.eq.f32.partialorder %v7206, 8.507059e+37
        %v7208 = vand.u32 %v6971, 2147483648
        %v7209 = vor.u32 1.1754944e-38, %v7208
        %v7210 = vsel %vm7207, %v7209, %v7205
        %v7211 = vmul.f32 1.0, %v7210
        %v7212 = vmul.f32 %v6986, 1.0614054
        %v7213 = vmul.f32 %v7001, 1.0614054
        %v7214 = vmul.f32 %v7016, 1.0614054
        %v7215 = vmul.f32 %v7031, 1.0614054
        %v7216 = vmul.f32 %v7046, 1.0614054
        %v7217 = vmul.f32 %v7061, 1.0614054
        %v7218 = vmul.f32 %v7076, 1.0614054
        %v7219 = vmul.f32 %v7091, 1.0614054
        %v7220 = vmul.f32 %v7106, 1.0614054
        %v7221 = vmul.f32 %v7121, 1.0614054
        %v7222 = vmul.f32 %v7136, 1.0614054
        %v7223 = vmul.f32 %v7151, 1.0614054
        %v7224 = vmul.f32 %v7166, 1.0614054
        %v7225 = vmul.f32 %v7181, 1.0614054
        %v7226 = vmul.f32 %v7196, 1.0614054
        %v7227 = vmul.f32 %v7211, 1.0614054
        %v7228 = vadd.f32 %v7212, -1.4531521
        %v7229 = vadd.f32 %v7213, -1.4531521
        %v7230 = vadd.f32 %v7214, -1.4531521
        %v7231 = vadd.f32 %v7215, -1.4531521
        %v7232 = vadd.f32 %v7216, -1.4531521
        %v7233 = vadd.f32 %v7217, -1.4531521
        %v7234 = vadd.f32 %v7218, -1.4531521
        %v7235 = vadd.f32 %v7219, -1.4531521
        %v7236 = vadd.f32 %v7220, -1.4531521
        %v7237 = vadd.f32 %v7221, -1.4531521
        %v7238 = vadd.f32 %v7222, -1.4531521
        %v7239 = vadd.f32 %v7223, -1.4531521
        %v7240 = vadd.f32 %v7224, -1.4531521
        %v7241 = vadd.f32 %v7225, -1.4531521
        %v7242 = vadd.f32 %v7226, -1.4531521
        %v7243 = vadd.f32 %v7227, -1.4531521
        %v7244 = vmul.f32 %v6986, %v7228
        %v7245 = vmul.f32 %v7001, %v7229
        %v7246 = vmul.f32 %v7016, %v7230
        %v7247 = vmul.f32 %v7031, %v7231
        %v7248 = vmul.f32 %v7046, %v7232
        %v7249 = vmul.f32 %v7061, %v7233
        %v7250 = vmul.f32 %v7076, %v7234
        %v7251 = vmul.f32 %v7091, %v7235
        %v7252 = vmul.f32 %v7106, %v7236
        %v7253 = vmul.f32 %v7121, %v7237
        %v7254 = vmul.f32 %v7136, %v7238
        %v7255 = vmul.f32 %v7151, %v7239
        %v7256 = vmul.f32 %v7166, %v7240
        %v7257 = vmul.f32 %v7181, %v7241
        %v7258 = vmul.f32 %v7196, %v7242
        %v7259 = vmul.f32 %v7211, %v7243
        %v7260 = vadd.f32 %v7244, 1.4214138
        %v7261 = vadd.f32 %v7245, 1.4214138
        %v7262 = vadd.f32 %v7246, 1.4214138
        %v7263 = vadd.f32 %v7247, 1.4214138
        %v7264 = vadd.f32 %v7248, 1.4214138
        %v7265 = vadd.f32 %v7249, 1.4214138
        %v7266 = vadd.f32 %v7250, 1.4214138
        %v7267 = vadd.f32 %v7251, 1.4214138
        %v7268 = vadd.f32 %v7252, 1.4214138
        %v7269 = vadd.f32 %v7253, 1.4214138
        %v7270 = vadd.f32 %v7254, 1.4214138
        %v7271 = vadd.f32 %v7255, 1.4214138
        %v7272 = vadd.f32 %v7256, 1.4214138
        %v7273 = vadd.f32 %v7257, 1.4214138
        %v7274 = vadd.f32 %v7258, 1.4214138
        %v7275 = vadd.f32 %v7259, 1.4214138
        %v7276 = vmul.f32 %v6986, %v7260
        %v7277 = vmul.f32 %v7001, %v7261
        %v7278 = vmul.f32 %v7016, %v7262
        %v7279 = vmul.f32 %v7031, %v7263
        %v7280 = vmul.f32 %v7046, %v7264
        %v7281 = vmul.f32 %v7061, %v7265
        %v7282 = vmul.f32 %v7076, %v7266
        %v7283 = vmul.f32 %v7091, %v7267
        %v7284 = vmul.f32 %v7106, %v7268
        %v7285 = vmul.f32 %v7121, %v7269
        %v7286 = vmul.f32 %v7136, %v7270
        %v7287 = vmul.f32 %v7151, %v7271
        %v7288 = vmul.f32 %v7166, %v7272
        %v7289 = vmul.f32 %v7181, %v7273
        %v7290 = vmul.f32 %v7196, %v7274
        %v7291 = vmul.f32 %v7211, %v7275
        %v7292 = vadd.f32 %v7276, -0.28449672
        %v7293 = vadd.f32 %v7277, -0.28449672
        %v7294 = vadd.f32 %v7278, -0.28449672
        %v7295 = vadd.f32 %v7279, -0.28449672
        %v7296 = vadd.f32 %v7280, -0.28449672
        %v7297 = vadd.f32 %v7281, -0.28449672
        %v7298 = vadd.f32 %v7282, -0.28449672
        %v7299 = vadd.f32 %v7283, -0.28449672
        %v7300 = vadd.f32 %v7284, -0.28449672
        %v7301 = vadd.f32 %v7285, -0.28449672
        %v7302 = vadd.f32 %v7286, -0.28449672
        %v7303 = vadd.f32 %v7287, -0.28449672
        %v7304 = vadd.f32 %v7288, -0.28449672
        %v7305 = vadd.f32 %v7289, -0.28449672
        %v7306 = vadd.f32 %v7290, -0.28449672
        %v7307 = vadd.f32 %v7291, -0.28449672
        %v7308 = vmul.f32 %v6986, %v7292
        %v7309 = vmul.f32 %v7001, %v7293
        %v7310 = vmul.f32 %v7016, %v7294
        %v7311 = vmul.f32 %v7031, %v7295
        %v7312 = vmul.f32 %v7046, %v7296
        %v7313 = vmul.f32 %v7061, %v7297
        %v7314 = vmul.f32 %v7076, %v7298
        %v7315 = vmul.f32 %v7091, %v7299
        %v7316 = vmul.f32 %v7106, %v7300
        %v7317 = vmul.f32 %v7121, %v7301
        %v7318 = vmul.f32 %v7136, %v7302
        %v7319 = vmul.f32 %v7151, %v7303
        %v7320 = vmul.f32 %v7166, %v7304
        %v7321 = vmul.f32 %v7181, %v7305
        %v7322 = vmul.f32 %v7196, %v7306
        %v7323 = vmul.f32 %v7211, %v7307
        %v7324 = vadd.f32 %v7308, 0.2548296
        %v7325 = vadd.f32 %v7309, 0.2548296
        %v7326 = vadd.f32 %v7310, 0.2548296
        %v7327 = vadd.f32 %v7311, 0.2548296
        %v7328 = vadd.f32 %v7312, 0.2548296
        %v7329 = vadd.f32 %v7313, 0.2548296
        %v7330 = vadd.f32 %v7314, 0.2548296
        %v7331 = vadd.f32 %v7315, 0.2548296
        %v7332 = vadd.f32 %v7316, 0.2548296
        %v7333 = vadd.f32 %v7317, 0.2548296
        %v7334 = vadd.f32 %v7318, 0.2548296
        %v7335 = vadd.f32 %v7319, 0.2548296
        %v7336 = vadd.f32 %v7320, 0.2548296
        %v7337 = vadd.f32 %v7321, 0.2548296
        %v7338 = vadd.f32 %v7322, 0.2548296
        %v7339 = vadd.f32 %v7323, 0.2548296
        %v7340 = vmul.f32 %v6986, %v7324
        %v7341 = vmul.f32 %v7001, %v7325
        %v7342 = vmul.f32 %v7016, %v7326
        %v7343 = vmul.f32 %v7031, %v7327
        %v7344 = vmul.f32 %v7046, %v7328
        %v7345 = vmul.f32 %v7061, %v7329
        %v7346 = vmul.f32 %v7076, %v7330
        %v7347 = vmul.f32 %v7091, %v7331
        %v7348 = vmul.f32 %v7106, %v7332
        %v7349 = vmul.f32 %v7121, %v7333
        %v7350 = vmul.f32 %v7136, %v7334
        %v7351 = vmul.f32 %v7151, %v7335
        %v7352 = vmul.f32 %v7166, %v7336
        %v7353 = vmul.f32 %v7181, %v7337
        %v7354 = vmul.f32 %v7196, %v7338
        %v7355 = vmul.f32 %v7211, %v7339
        %v7356 = vsub.f32 0.0, %v6924
        %v7357 = vsub.f32 0.0, %v6925
        %v7358 = vsub.f32 0.0, %v6926
        %v7359 = vsub.f32 0.0, %v6927
        %v7360 = vsub.f32 0.0, %v6928
        %v7361 = vsub.f32 0.0, %v6929
        %v7362 = vsub.f32 0.0, %v6930
        %v7363 = vsub.f32 0.0, %v6931
        %v7364 = vsub.f32 0.0, %v6932
        %v7365 = vsub.f32 0.0, %v6933
        %v7366 = vsub.f32 0.0, %v6934
        %v7367 = vsub.f32 0.0, %v6935
        %v7368 = vsub.f32 0.0, %v6936
        %v7369 = vsub.f32 0.0, %v6937
        %v7370 = vsub.f32 0.0, %v6938
        %v7371 = vsub.f32 0.0, %v6939
        %v7372 = vmul.f32 %v7356, %v6924
        %v7373 = vmul.f32 %v7357, %v6925
        %v7374 = vmul.f32 %v7358, %v6926
        %v7375 = vmul.f32 %v7359, %v6927
        %v7376 = vmul.f32 %v7360, %v6928
        %v7377 = vmul.f32 %v7361, %v6929
        %v7378 = vmul.f32 %v7362, %v6930
        %v7379 = vmul.f32 %v7363, %v6931
        %v7380 = vmul.f32 %v7364, %v6932
        %v7381 = vmul.f32 %v7365, %v6933
        %v7382 = vmul.f32 %v7366, %v6934
        %v7383 = vmul.f32 %v7367, %v6935
        %v7384 = vmul.f32 %v7368, %v6936
        %v7385 = vmul.f32 %v7369, %v6937
        %v7386 = vmul.f32 %v7370, %v6938
        %v7387 = vmul.f32 %v7371, %v6939
        %v7388 = vmul.f32 %v7372, 1.442695
        %v7389 = vpow.pop %v7388
        %v7390 = vmul.f32 %v7373, 1.442695
        %v7391 = vpow.pop %v7390
        %v7392 = vmul.f32 %v7374, 1.442695
        %v7393 = vpow.pop %v7392
        %v7394 = vmul.f32 %v7375, 1.442695
        %v7395 = vpow.pop %v7394
        %v7396 = vmul.f32 %v7376, 1.442695
        %v7397 = vpow.pop %v7396
        %v7398 = vmul.f32 %v7377, 1.442695
        %v7399 = vpow.pop %v7398
        %v7400 = vmul.f32 %v7378, 1.442695
        %v7401 = vpow.pop %v7400
        %v7402 = vmul.f32 %v7379, 1.442695
        %v7403 = vpow.pop %v7402
        %v7404 = vmul.f32 %v7380, 1.442695
        %v7405 = vpow.pop %v7404
        %v7406 = vmul.f32 %v7381, 1.442695
        %v7407 = vpow.pop %v7406
        %v7408 = vmul.f32 %v7382, 1.442695
        %v7409 = vpow.pop %v7408
        %v7410 = vmul.f32 %v7383, 1.442695
        %v7411 = vpow.pop %v7410
        %v7412 = vmul.f32 %v7384, 1.442695
        %v7413 = vpow.pop %v7412
        %v7414 = vmul.f32 %v7385, 1.442695
        %v7415 = vpow.pop %v7414
        %v7416 = vmul.f32 %v7386, 1.442695
        %v7417 = vpow.pop %v7416
        %v7418 = vmul.f32 %v7387, 1.442695
        %v7419 = vpow.pop %v7418
        %v7420 = vmul.f32 %v7340, %v7389
        %v7421 = vmul.f32 %v7341, %v7391
        %v7422 = vmul.f32 %v7342, %v7393
        %v7423 = vmul.f32 %v7343, %v7395
        %v7424 = vmul.f32 %v7344, %v7397
        %v7425 = vmul.f32 %v7345, %v7399
        %v7426 = vmul.f32 %v7346, %v7401
        %v7427 = vmul.f32 %v7347, %v7403
        %v7428 = vmul.f32 %v7348, %v7405
        %v7429 = vmul.f32 %v7349, %v7407
        %v7430 = vmul.f32 %v7350, %v7409
        %v7431 = vmul.f32 %v7351, %v7411
        %v7432 = vmul.f32 %v7352, %v7413
        %v7433 = vmul.f32 %v7353, %v7415
        %v7434 = vmul.f32 %v7354, %v7417
        %v7435 = vmul.f32 %v7355, %v7419
        %v7436 = vsub.f32 1.0, %v7420
        %v7437 = vsub.f32 1.0, %v7421
        %v7438 = vsub.f32 1.0, %v7422
        %v7439 = vsub.f32 1.0, %v7423
        %v7440 = vsub.f32 1.0, %v7424
        %v7441 = vsub.f32 1.0, %v7425
        %v7442 = vsub.f32 1.0, %v7426
        %v7443 = vsub.f32 1.0, %v7427
        %v7444 = vsub.f32 1.0, %v7428
        %v7445 = vsub.f32 1.0, %v7429
        %v7446 = vsub.f32 1.0, %v7430
        %v7447 = vsub.f32 1.0, %v7431
        %v7448 = vsub.f32 1.0, %v7432
        %v7449 = vsub.f32 1.0, %v7433
        %v7450 = vsub.f32 1.0, %v7434
        %v7451 = vsub.f32 1.0, %v7435
        %vm7452 = vcmp.lt.f32.partialorder %v6908, 0.0
        %vm7453 = vcmp.lt.f32.partialorder %v6909, 0.0
        %vm7454 = vcmp.lt.f32.partialorder %v6910, 0.0
        %vm7455 = vcmp.lt.f32.partialorder %v6911, 0.0
        %vm7456 = vcmp.lt.f32.partialorder %v6912, 0.0
        %vm7457 = vcmp.lt.f32.partialorder %v6913, 0.0
        %vm7458 = vcmp.lt.f32.partialorder %v6914, 0.0
        %vm7459 = vcmp.lt.f32.partialorder %v6915, 0.0
        %vm7460 = vcmp.lt.f32.partialorder %v6916, 0.0
        %vm7461 = vcmp.lt.f32.partialorder %v6917, 0.0
        %vm7462 = vcmp.lt.f32.partialorder %v6918, 0.0
        %vm7463 = vcmp.lt.f32.partialorder %v6919, 0.0
        %vm7464 = vcmp.lt.f32.partialorder %v6920, 0.0
        %vm7465 = vcmp.lt.f32.partialorder %v6921, 0.0
        %vm7466 = vcmp.lt.f32.partialorder %v6922, 0.0
        %vm7467 = vcmp.lt.f32.partialorder %v6923, 0.0
        %v7468 = vsub.f32 0.0, %v7436
        %v7469 = vsub.f32 0.0, %v7437
        %v7470 = vsub.f32 0.0, %v7438
        %v7471 = vsub.f32 0.0, %v7439
        %v7472 = vsub.f32 0.0, %v7440
        %v7473 = vsub.f32 0.0, %v7441
        %v7474 = vsub.f32 0.0, %v7442
        %v7475 = vsub.f32 0.0, %v7443
        %v7476 = vsub.f32 0.0, %v7444
        %v7477 = vsub.f32 0.0, %v7445
        %v7478 = vsub.f32 0.0, %v7446
        %v7479 = vsub.f32 0.0, %v7447
        %v7480 = vsub.f32 0.0, %v7448
        %v7481 = vsub.f32 0.0, %v7449
        %v7482 = vsub.f32 0.0, %v7450
        %v7483 = vsub.f32 0.0, %v7451
        %v7484 = vsel %vm7452, %v7468, %v7436
        %v7485 = vsel %vm7453, %v7469, %v7437
        %v7486 = vsel %vm7454, %v7470, %v7438
        %v7487 = vsel %vm7455, %v7471, %v7439
        %v7488 = vsel %vm7456, %v7472, %v7440
        %v7489 = vsel %vm7457, %v7473, %v7441
        %v7490 = vsel %vm7458, %v7474, %v7442
        %v7491 = vsel %vm7459, %v7475, %v7443
        %v7492 = vsel %vm7460, %v7476, %v7444
        %v7493 = vsel %vm7461, %v7477, %v7445
        %v7494 = vsel %vm7462, %v7478, %v7446
        %v7495 = vsel %vm7463, %v7479, %v7447
        %v7496 = vsel %vm7464, %v7480, %v7448
        %v7497 = vsel %vm7465, %v7481, %v7449
        %v7498 = vsel %vm7466, %v7482, %v7450
        %v7499 = vsel %vm7467, %v7483, %v7451
        %v7500 = vadd.f32 %v7484, 1.0
        %v7501 = vadd.f32 %v7485, 1.0
        %v7502 = vadd.f32 %v7486, 1.0
        %v7503 = vadd.f32 %v7487, 1.0
        %v7504 = vadd.f32 %v7488, 1.0
        %v7505 = vadd.f32 %v7489, 1.0
        %v7506 = vadd.f32 %v7490, 1.0
        %v7507 = vadd.f32 %v7491, 1.0
        %v7508 = vadd.f32 %v7492, 1.0
        %v7509 = vadd.f32 %v7493, 1.0
        %v7510 = vadd.f32 %v7494, 1.0
        %v7511 = vadd.f32 %v7495, 1.0
        %v7512 = vadd.f32 %v7496, 1.0
        %v7513 = vadd.f32 %v7497, 1.0
        %v7514 = vadd.f32 %v7498, 1.0
        %v7515 = vadd.f32 %v7499, 1.0
        %v7516 = vmul.f32 %v6892, %v7500
        %v7517 = vmul.f32 %v6893, %v7501
        %v7518 = vmul.f32 %v6894, %v7502
        %v7519 = vmul.f32 %v6895, %v7503
        %v7520 = vmul.f32 %v6896, %v7504
        %v7521 = vmul.f32 %v6897, %v7505
        %v7522 = vmul.f32 %v6898, %v7506
        %v7523 = vmul.f32 %v6899, %v7507
        %v7524 = vmul.f32 %v6900, %v7508
        %v7525 = vmul.f32 %v6901, %v7509
        %v7526 = vmul.f32 %v6902, %v7510
        %v7527 = vmul.f32 %v6903, %v7511
        %v7528 = vmul.f32 %v6904, %v7512
        %v7529 = vmul.f32 %v6905, %v7513
        %v7530 = vmul.f32 %v6906, %v7514
        %v7531 = vmul.f32 %v6907, %v7515
        %v7532 = vld [vmem:[#allocation11] sm:$0xff]
        %v7533 = vld [vmem:[#allocation11 + $0x8] sm:$0xff]
        %v7534 = vld [vmem:[#allocation11 + $0x10] sm:$0xff]
        %v7535 = vld [vmem:[#allocation11 + $0x18] sm:$0xff]
        %v7536 = vld [vmem:[#allocation11 + $0x20] sm:$0xff]
        %v7537 = vld [vmem:[#allocation11 + $0x28] sm:$0xff]
        %v7538 = vld [vmem:[#allocation11 + $0x30] sm:$0xff]
        %v7539 = vld [vmem:[#allocation11 + $0x38] sm:$0xff]
        %v7540 = vld [vmem:[#allocation11 + $0x40] sm:$0xff]
        %v7541 = vld [vmem:[#allocation11 + $0x48] sm:$0xff]
        %v7542 = vld [vmem:[#allocation11 + $0x50] sm:$0xff]
        %v7543 = vld [vmem:[#allocation11 + $0x58] sm:$0xff]
        %v7544 = vld [vmem:[#allocation11 + $0x60] sm:$0xff]
        %v7545 = vld [vmem:[#allocation11 + $0x68] sm:$0xff]
        %v7546 = vld [vmem:[#allocation11 + $0x70] sm:$0xff]
        %v7547 = vld [vmem:[#allocation11 + $0x78] sm:$0xff]
        %v7548 = vld [vmem:[#allocation11 + $0x80] sm:$0xff]
        %v7549 = vld [vmem:[#allocation11 + $0x88] sm:$0xff]
        %v7550 = vld [vmem:[#allocation11 + $0x90] sm:$0xff]
        %v7551 = vld [vmem:[#allocation11 + $0x98] sm:$0xff]
        %v7552 = vld [vmem:[#allocation11 + $0xa0] sm:$0xff]
        %v7553 = vld [vmem:[#allocation11 + $0xa8] sm:$0xff]
        %v7554 = vld [vmem:[#allocation11 + $0xb0] sm:$0xff]
        %v7555 = vld [vmem:[#allocation11 + $0xb8] sm:$0xff]
        %v7556 = vld [vmem:[#allocation11 + $0xc0] sm:$0xff]
        %v7557 = vld [vmem:[#allocation11 + $0xc8] sm:$0xff]
        %v7558 = vld [vmem:[#allocation11 + $0xd0] sm:$0xff]
        %v7559 = vld [vmem:[#allocation11 + $0xd8] sm:$0xff]
        %v7560 = vld [vmem:[#allocation11 + $0xe0] sm:$0xff]
        %v7561 = vld [vmem:[#allocation11 + $0xe8] sm:$0xff]
        %v7562 = vld [vmem:[#allocation11 + $0xf0] sm:$0xff]
        %v7563 = vld [vmem:[#allocation11 + $0xf8] sm:$0xff]
        %v7564 = vld [vmem:[%s10] sm:$0x1]
        %v7566 = vperm.slane %v7564, 0
        %7568 = vmatpush.msra.mxu0 %v7547
        %7569 = vmatpush.msra.mxu0 %v7546
        %7570 = vmatpush.msra.mxu0 %v7545
        %7571 = vmatpush.msra.mxu0 %v7544
        %7572 = vmatpush.msra.mxu0 %v7543
        %7573 = vmatpush.msra.mxu0 %v7542
        %7574 = vmatpush.msra.mxu0 %v7541
        %7575 = vmatpush.msra.mxu0 %v7540
        %7576 = vmatpush.msra.mxu0 %v7539
        %7577 = vmatpush.msra.mxu0 %v7538
        %7578 = vmatpush.msra.mxu0 %v7537
        %7579 = vmatpush.msra.mxu0 %v7536
        %7580 = vmatpush.msra.mxu0 %v7535
        %7581 = vmatpush.msra.mxu0 %v7534
        %7582 = vmatpush.msra.mxu0 %v7533
        %7583 = vmatpush.msra.mxu0 %v7532
        %7584 = vmatmul.f32.gmra.mxu0 %v7516
        %v7585 = vpop.f32.mrf.mxu0
        %v7586 = vadd.f32 %v7566, %v7585
        %7587 = vmatmul.f32.gmra.mxu0 %v7518
        %v7588 = vpop.f32.mrf.mxu0
        %v7589 = vadd.f32 %v7566, %v7588
        %7590 = vmatmul.f32.gmra.mxu0 %v7520
        %v7591 = vpop.f32.mrf.mxu0
        %v7592 = vadd.f32 %v7566, %v7591
        %7593 = vmatmul.f32.gmra.mxu0 %v7522
        %v7594 = vpop.f32.mrf.mxu0
        %v7595 = vadd.f32 %v7566, %v7594
        %7596 = vmatmul.f32.gmra.mxu0 %v7524
        %v7597 = vpop.f32.mrf.mxu0
        %v7598 = vadd.f32 %v7566, %v7597
        %7599 = vmatmul.f32.gmra.mxu0 %v7526
        %v7600 = vpop.f32.mrf.mxu0
        %v7601 = vadd.f32 %v7566, %v7600
        %7602 = vmatmul.f32.gmra.mxu0 %v7528
        %v7603 = vpop.f32.mrf.mxu0
        %v7604 = vadd.f32 %v7566, %v7603
        %7605 = vmatmul.f32.gmra.mxu0 %v7530
        %v7606 = vpop.f32.mrf.mxu0
        %v7607 = vadd.f32 %v7566, %v7606
        %7608 = vdwg.mxu0
        %7609 = vmatpush.msra.mxu0 %v7563
        %7610 = vmatpush.msra.mxu0 %v7562
        %7611 = vmatpush.msra.mxu0 %v7561
        %7612 = vmatpush.msra.mxu0 %v7560
        %7613 = vmatpush.msra.mxu0 %v7559
        %7614 = vmatpush.msra.mxu0 %v7558
        %7615 = vmatpush.msra.mxu0 %v7557
        %7616 = vmatpush.msra.mxu0 %v7556
        %7617 = vmatpush.msra.mxu0 %v7555
        %7618 = vmatpush.msra.mxu0 %v7554
        %7619 = vmatpush.msra.mxu0 %v7553
        %7620 = vmatpush.msra.mxu0 %v7552
        %7621 = vmatpush.msra.mxu0 %v7551
        %7622 = vmatpush.msra.mxu0 %v7550
        %7623 = vmatpush.msra.mxu0 %v7549
        %7624 = vmatpush.msra.mxu0 %v7548
        %7625 = vmatmul.f32.gmra.mxu0 %v7517
        %v7626 = vpop.f32.mrf.mxu0
        %v7627 = vadd.f32 %v7586, %v7626
        %7628 = vmatmul.f32.gmra.mxu0 %v7519
        %v7629 = vpop.f32.mrf.mxu0
        %v7630 = vadd.f32 %v7589, %v7629
        %7631 = vmatmul.f32.gmra.mxu0 %v7521
        %v7632 = vpop.f32.mrf.mxu0
        %v7633 = vadd.f32 %v7592, %v7632
        %7634 = vmatmul.f32.gmra.mxu0 %v7523
        %v7635 = vpop.f32.mrf.mxu0
        %v7636 = vadd.f32 %v7595, %v7635
        %7637 = vmatmul.f32.gmra.mxu0 %v7525
        %v7638 = vpop.f32.mrf.mxu0
        %v7639 = vadd.f32 %v7598, %v7638
        %7640 = vmatmul.f32.gmra.mxu0 %v7527
        %v7641 = vpop.f32.mrf.mxu0
        %v7642 = vadd.f32 %v7601, %v7641
        %7643 = vmatmul.f32.gmra.mxu0 %v7529
        %v7644 = vpop.f32.mrf.mxu0
        %v7645 = vadd.f32 %v7604, %v7644
        %7646 = vmatmul.f32.gmra.mxu0 %v7531
        %v7647 = vpop.f32.mrf.mxu0
        %v7648 = vadd.f32 %v7607, %v7647
        %7649 = vdwg.mxu0
        %v7650 = vadd.f32 %v6580, %v7627
        %v7651 = vadd.f32 %v6581, %v7630
        %v7652 = vadd.f32 %v6582, %v7633
        %v7653 = vadd.f32 %v6583, %v7636
        %v7654 = vadd.f32 %v6584, %v7639
        %v7655 = vadd.f32 %v6585, %v7642
        %v7656 = vadd.f32 %v6586, %v7645
        %v7657 = vadd.f32 %v6587, %v7648
        %7658 = vst [vmem:[%s542] sm:$0xff] %v7650
        %7659 = vst [vmem:[%s542 + $0x8] sm:$0xff] %v7651
        %7660 = vst [vmem:[%s542 + $0x10] sm:$0xff] %v7652
        %7661 = vst [vmem:[%s542 + $0x18] sm:$0xff] %v7653
        %7662 = vst [vmem:[%s542 + $0x20] sm:$0xff] %v7654
        %7663 = vst [vmem:[%s542 + $0x28] sm:$0xff] %v7655
        %7664 = vst [vmem:[%s542 + $0x30] sm:$0xff] %v7656
        %7665 = vst [vmem:[%s542 + $0x38] sm:$0xff] %v7657
        %s7666 = sand.u32 %s319, 1
        %s7667 = scalar_lea.sflag [#allocation4], %s7666
        %s7668 = sand.u32 %s319, 1
        %s7669 = smul.addr %s7668, 64
        %s7670 = scalar_lea.vmem [#allocation13], %s7669
        // Predicated region
        $region97: #{tpu_custom_call.1} parent=71 // pred_check
          %p7671 = pneg %p329
        $region98: #{tpu_custom_call.1} parent=71 // pred_check_branch
          %7673 = sbr.rel (%p7671) target = $region100
        $region99: #{tpu_custom_call.1} parent=71 // pred_region
          %s7674 = smul.u32 2, %s33
          %7676 = vsyncadd %s7667, 0
          %s7677 = smul.addr %s7674, 4
          %s7678 = smul.addr %s7677, 8
          %s7679 = scalar_lea.hbm %s13, %s7678
          %s7680 = sshll.u32 %s7670, 4
          %s7681 = int_to_ptr.vmem [resolvable:$true] %s7680
          %s7682 = sshll.u32 %s7679, 4
          %s7683 = int_to_ptr.hbm [resolvable:$true] %s7682
          %7688 = dma.vmem_to_hbm [thread:$0]  %s7681, 1024, %s7683, %s7667, 128, 128, 8
        $region100: #{tpu_custom_call.1} parent=71 // pred_fallthru
          _
      $region72: #{tpu_custom_call.1} parent=5 // pred_fallthru
        _
      %p7689 = scmp.le.s32.totalorder 2, %s28
      // Predicated region
      $region101: #{tpu_custom_call.1} parent=5 // pred_check
        %p7690 = pneg %p7689
      $region102: #{tpu_custom_call.1} parent=5 // pred_check_branch
        %7692 = sbr.rel (%p7690) target = $region104
      $region103: #{tpu_custom_call.1} parent=5 // pred_region
        %s7693 = ssub.s32 %s28, 2
        // Predicated region
        $region105: #{tpu_custom_call.1} parent=103 // pred_check
          %p7694 = pneg %p335
        $region106: #{tpu_custom_call.1} parent=103 // pred_check_branch
          %7696 = sbr.rel (%p7694) target = $region108
        $region107: #{tpu_custom_call.1} parent=103 // pred_region
          %s7697 = sand.u32 %s320, 1
          %s7698 = scalar_lea.sflag [#allocation4], %s7697
          %s7699 = sand.u32 %s320, 1
          %s7700 = smul.addr %s7699, 64
          %s7701 = scalar_lea.vmem [#allocation13], %s7700
          %7703 = dma.done %s7698, 1024
        $region108: #{tpu_custom_call.1} parent=103 // pred_fallthru
          _
      $region104: #{tpu_custom_call.1} parent=5 // pred_fallthru
        _
    $region6: #{tpu_custom_call.1} parent=1 // loop_footer
      %s32 = sadd.s32 1, %s28
    $region7: #{tpu_custom_call.1} parent=1 // loop_footer_branch
      %27 = sbr.rel target = $region3
    $region8: #{tpu_custom_call.1} parent=1 // loop_exit
      _
    %7704 = vsyncpa [#allocation3], 1
    %s7705 = scalar_lea.sflag [#allocation3], 1
    %7706 = vsyncpa %s7705, 1
    %7707 = vsyncpa [#allocation6], 1
    %7708 = vsyncpa [#allocation9], 1
    %7709 = vsyncpa [#allocation12], 1
    %7710 = vsyncpa [#allocation4], 1
    %s7711 = scalar_lea.sflag [#allocation4], 1
    %7712 = vsyncpa %s7711, 1

</llo_original>
